<compile_context>
chip_gen: v5e
topology: v5e:2x2
jax: 0.10.0
libtpu: 0.0.40
codegen_flags: <defaults>
</compile_context>

<pallas_src>
import functools

import numpy as np
import jax
import jax.numpy as jnp
from jax.experimental import pallas as pl
from jax.experimental.pallas import tpu as pltpu

NUM_CLASSES = 2
_EPS = 1e-5


def _round_up(x, m):
    return (x + m - 1) // m * m


def _const_spec(shape):
    zeros = (0,) * len(shape)
    return pl.BlockSpec(shape, lambda i, _z=zeros: _z)


# ----------------------------------------------------------------------------
# Row-shift helper: y[d] = x[d + s] for every row d that the callers actually
# consume (interior rows of the flat zero-padded spatial layout / selected
# pool-window origins).  Other rows may hold wrapped (roll path) or zero
# (slice path) data; they are masked out / never selected downstream.
# ----------------------------------------------------------------------------
def _shift_rows(x, s, use_roll, roll_jnp_like):
    if s == 0:
        return x
    nrows, ncols = x.shape
    if use_roll:
        amt = (-s) % nrows if roll_jnp_like else s % nrows
        return pltpu.roll(x, amt, 0)
    margin = _round_up(abs(s), 8)
    z = jnp.zeros((margin, ncols), x.dtype)
    xz = jnp.concatenate([z, x, z], axis=0)
    return xz[margin + s: margin + s + nrows, :]


# ----------------------------------------------------------------------------
# The single fused kernel (one batch tile per grid step).
#
# Flat padded-spatial activation layout (after the max-pool):
#   rows enumerate (sample, h, w) with h, w in [0, P), P = pool_out + 2.
#   Border / padding rows are kept exactly zero, so a 3x3 / pad-1 convolution
#   is 9 uniform row shifts of one (Rp, Cin) matrix; all 9 shifted copies are
#   concatenated along K and hit the MXU as ONE matmul per layer.
# ----------------------------------------------------------------------------
def _fused_forward_kernel(
        patches_ref, w1_ref, b1_ref, spool_ref, rowmask_ref, gsel_ref,
        w2_ref, b2_ref, w3_ref, b3_ref, w4_ref, b4_ref,
        fc1w_ref, fc1b_ref, fc2w_ref, fc2b_ref, out_ref,
        *, ow1, conv_p, use_roll, roll_jnp_like):
    f32, bf16 = jnp.float32, jnp.bfloat16

    # ---- Conv2d(3,64,k7,s2,p3) + BN + ReLU (im2col patches, K=147) ---------
    c1 = jnp.dot(patches_ref[...], w1_ref[...], preferred_element_type=f32)
    c1 = jnp.maximum(c1 + b1_ref[...], 0.0)                  # (m1, 128) f32

    # ---- MaxPool2d(3, stride=2): elementwise maxima over 8 row shifts ------
    pooled = c1
    for i in range(3):
        for j in range(3):
            s = i * ow1 + j
            if s:
                pooled = jnp.maximum(
                    pooled, _shift_rows(c1, s, use_roll, roll_jnp_like))

    # ---- scatter stride-2 window origins into flat zero-padded layout ------
    act = jnp.dot(spool_ref[...], pooled.astype(bf16),
                  preferred_element_type=f32)                 # (Rp, 128) f32

    rmask = rowmask_ref[...]                                  # (Rp, 1) f32
    shifts = tuple((di - 1) * conv_p + (dj - 1)
                   for di in range(3) for dj in range(3))

    def conv3x3_bn_relu(x, w_ref, b_ref):
        # x: (Rp, Cin) f32, non-interior rows exactly zero.
        # Build the 9 taps as one (Rp, 9*Cin) matrix -> single MXU matmul.
        big = jnp.concatenate(
            [_shift_rows(x, s, use_roll, roll_jnp_like) for s in shifts],
            axis=1)
        y = jnp.dot(big.astype(bf16), w_ref[...], preferred_element_type=f32)
        y = jnp.maximum(y + b_ref[...], 0.0)
        return y * rmask                                      # re-zero borders

    act = conv3x3_bn_relu(act, w2_ref, b2_ref)                # (Rp, 128)
    act = conv3x3_bn_relu(act, w3_ref, b3_ref)                # (Rp, 256)
    act = conv3x3_bn_relu(act, w4_ref, b4_ref)                # (Rp, 512)

    # ---- AdaptiveAvgPool2d((1,1)) (1/9 folded into gsel) -> classifier -----
    # TODO(synk): training-mode Dropout(0.5) not implemented (eval semantics).
    g = jnp.dot(gsel_ref[...], act.astype(bf16), preferred_element_type=f32)
    h = jnp.dot(g.astype(bf16), fc1w_ref[...], preferred_element_type=f32)
    h = jnp.maximum(h + fc1b_ref[...], 0.0)
    logits = jnp.dot(h.astype(bf16), fc2w_ref[...],
                     preferred_element_type=f32) + fc2b_ref[...]
    out_ref[...] = logits.astype(out_ref.dtype)


# ----------------------------------------------------------------------------
# One-time parameter packing (BN folding, transposes, padding, bf16 cast).
# ----------------------------------------------------------------------------
def _fold_bn(w, b, gamma, beta, mean, var, eps=_EPS):
    s = gamma / jnp.sqrt(var + eps)
    return w * s[:, None, None, None], (b - mean) * s + beta


def prepare_params(p):
    pk = {}

    # conv1 -> (147, 128) im2col weight (K un-padded, Cout 64 -> 128).
    w, b = _fold_bn(p["c1_w"], p["c1_b"], p["c1_g"], p["c1_beta"],
                    p["c1_m"], p["c1_v"])
    cout, cin, kh, kw = w.shape
    k = kh * kw * cin
    coutp = _round_up(cout, 128)
    wm = jnp.transpose(w, (2, 3, 1, 0)).reshape(k, cout)
    pk["w1"] = (jnp.zeros((k, coutp), jnp.float32)
                .at[:, :cout].set(wm).astype(jnp.bfloat16))
    pk["b1"] = jnp.zeros((1, coutp), jnp.float32).at[0, :cout].set(b)

    # conv2/3/4 -> big-K (9*Cin_pad, Cout) weights, BN folded.
    def pack3x3(name, cin_pad):
        wc, bc = _fold_bn(p[f"{name}_w"], p[f"{name}_b"], p[f"{name}_g"],
                          p[f"{name}_beta"], p[f"{name}_m"], p[f"{name}_v"])
        co, ci, a, _ = wc.shape
        wt = jnp.transpose(wc, (2, 3, 1, 0)).reshape(a * a, ci, co)
        wt = jnp.zeros((a * a, cin_pad, co), jnp.float32).at[:, :ci, :].set(wt)
        return (wt.reshape(a * a * cin_pad, co).astype(jnp.bfloat16),
                bc.reshape(1, co).astype(jnp.float32))

    pk["w2"], pk["b2"] = pack3x3("c2", 128)   # Cin 64 -> 128 padded
    pk["w3"], pk["b3"] = pack3x3("c3", 128)
    pk["w4"], pk["b4"] = pack3x3("c4", 256)

    # classifier
    pk["fc1w"] = jnp.transpose(p["fc1_w"]).astype(jnp.bfloat16)        # (512,256)
    pk["fc1b"] = p["fc1_b"].reshape(1, -1).astype(jnp.float32)
    fc2t = jnp.transpose(p["fc2_w"])                                   # (256,2)
    noutp = _round_up(fc2t.shape[1], 128)
    pk["fc2w"] = (jnp.zeros((fc2t.shape[0], noutp), jnp.float32)
                  .at[:, :fc2t.shape[1]].set(fc2t).astype(jnp.bfloat16))
    pk["fc2b"] = (jnp.zeros((1, noutp), jnp.float32)
                  .at[0, :fc2t.shape[1]].set(p["fc2_b"]))
    return pk


# ----------------------------------------------------------------------------
# Per-batch-TILE constants: pool scatter selector, interior-row mask, GAP
# selector (1/(pho*pwo) folded in).  Size O(tile^2), independent of the batch.
# ----------------------------------------------------------------------------
def _layout_constants(bt, oh1, ow1, pho, pwo):
    P = pho + 2
    rows = bt * P * P
    rp = max(_round_up(rows, 8), 8)
    m1 = bt * oh1 * ow1
    spool = np.zeros((rp, m1), np.float32)
    rowmask = np.zeros((rp, 1), np.float32)
    gsel = np.zeros((bt, rp), np.float32)
    inv = 1.0 / float(pho * pwo)
    for b in range(bt):
        for i in range(pho):
            for j in range(pwo):
                d = b * P * P + (i + 1) * P + (j + 1)
                src = b * oh1 * ow1 + (2 * i) * ow1 + (2 * j)
                spool[d, src] = 1.0
                rowmask[d, 0] = 1.0
                gsel[b, d] = inv
    return (jnp.asarray(spool, jnp.bfloat16),
            jnp.asarray(rowmask, jnp.float32),
            jnp.asarray(gsel, jnp.bfloat16))


def _im2col(x, kh, kw, stride, pad):
    n, h, w, c = x.shape
    xp = jnp.pad(x, ((0, 0), (pad, pad), (pad, pad), (0, 0)))
    oh = (h + 2 * pad - kh) // stride + 1
    ow = (w + 2 * pad - kw) // stride + 1
    cols = []
    for i in range(kh):
        for j in range(kw):
            cols.append(jax.lax.slice(
                xp, (0, i, j, 0),
                (n, i + (oh - 1) * stride + 1, j + (ow - 1) * stride + 1, c),
                (1, stride, stride, 1)))
    patches = jnp.stack(cols, axis=3)             # (n, oh, ow, kh*kw, c)
    return patches.reshape(n * oh * ow, kh * kw * c), oh, ow


# ----------------------------------------------------------------------------
# Forward pass (eval mode).  Grid = batch tiles, marked "parallel".
# ----------------------------------------------------------------------------
def forward(x_nchw, pk, *, use_roll=True, roll_jnp_like=True, batch_tile=None):
    n, cin, h, w = x_nchw.shape
    assert cin == 3 and h == w, "expects square RGB input"

    x = jnp.transpose(x_nchw, (0, 2, 3, 1)).astype(jnp.float32)      # NHWC
    # conv1's im2col (7x7, s2, Cin=3) stays in the wrapper (tiny input);
    # patches go to HBM un-padded (K=147) and in bf16.
    cols, oh1, ow1 = _im2col(x, 7, 7, 2, 3)
    patches = cols.astype(jnp.bfloat16)                              # (n*64, 147)

    pho = (oh1 - 3) // 2 + 1
    pwo = (ow1 - 3) // 2 + 1

    if batch_tile is None:
        batch_tile = n if (n <= 8 or n % 8 != 0) else 8
    bt = batch_tile
    assert n % bt == 0
    n_tiles = n // bt
    P = pho + 2

    spool, rowmask, gsel = _layout_constants(bt, oh1, ow1, pho, pwo)
    m1 = bt * oh1 * ow1
    k1 = patches.shape[1]
    outp = pk["fc2w"].shape[1]

    consts = (pk["w1"], pk["b1"], spool, rowmask, gsel,
              pk["w2"], pk["b2"], pk["w3"], pk["b3"], pk["w4"], pk["b4"],
              pk["fc1w"], pk["fc1b"], pk["fc2w"], pk["fc2b"])

    kernel = functools.partial(
        _fused_forward_kernel, ow1=ow1, conv_p=P,
        use_roll=use_roll, roll_jnp_like=roll_jnp_like)

    out = pl.pallas_call(
        kernel,
        out_shape=jax.ShapeDtypeStruct((n, outp), jnp.float32),
        grid=(n_tiles,),
        in_specs=[pl.BlockSpec((m1, k1), lambda i: (i, 0))]
                 + [_const_spec(c.shape) for c in consts],
        out_specs=pl.BlockSpec((bt, outp), lambda i: (i, 0)),
        compiler_params=pltpu.CompilerParams(
            dimension_semantics=("parallel",),
            vmem_limit_bytes=48 * 1024 * 1024),
    )(patches, *consts)
    return out[:, :NUM_CLASSES]


# ----------------------------------------------------------------------------
# Tiny runtime probe: is pltpu.roll usable, and is its convention jnp.roll-like
# (out[i] = in[i - shift])?  Falls back to the slice path otherwise.
# ----------------------------------------------------------------------------
def _probe_roll():
    nrows, ncols = 56, 256

    def k(x_ref, o_ref):
        o_ref[...] = pltpu.roll(x_ref[...], 1, 0)

    x = jnp.broadcast_to(jnp.arange(nrows, dtype=jnp.float32)[:, None],
                         (nrows, ncols))
    try:
        out = pl.pallas_call(
            k, out_shape=jax.ShapeDtypeStruct((nrows, ncols), jnp.float32))(x)
        out = np.asarray(jax.block_until_ready(out))
    except Exception:
        return False, True
    if out[0, 0] == float(nrows - 1):     # jnp.roll convention
        return True, True
    if out[0, 0] == 1.0:                  # flipped convention
        return True, False
    return False, True


# ----------------------------------------------------------------------------
# Parameter initialization (PyTorch layouts, eval-mode BN stats).
# ----------------------------------------------------------------------------
def init_params(key):
    ks = jax.random.split(key, 28)
    p = {}

    def conv_block(name, cout, cin, k, i):
        p[f"{name}_w"] = 0.05 * jax.random.normal(ks[i], (cout, cin, k, k), jnp.float32)
        p[f"{name}_b"] = 0.05 * jax.random.normal(ks[i + 1], (cout,), jnp.float32)
        p[f"{name}_g"] = 1.0 + 0.1 * jax.random.normal(ks[i + 2], (cout,), jnp.float32)
        p[f"{name}_beta"] = 0.1 * jax.random.normal(ks[i + 3], (cout,), jnp.float32)
        p[f"{name}_m"] = 0.1 * jax.random.normal(ks[i + 4], (cout,), jnp.float32)
        p[f"{name}_v"] = 0.5 + jnp.abs(jax.random.normal(ks[i + 5], (cout,), jnp.float32))

    conv_block("c1", 64, 3, 7, 0)
    conv_block("c2", 128, 64, 3, 6)
    conv_block("c3", 256, 128, 3, 12)
    conv_block("c4", 512, 256, 3, 18)

    p["fc1_w"] = 0.05 * jax.random.normal(ks[24], (256, 512), jnp.float32)
    p["fc1_b"] = 0.05 * jax.random.normal(ks[25], (256,), jnp.float32)
    p["fc2_w"] = 0.05 * jax.random.normal(ks[26], (2, 256), jnp.float32)
    p["fc2_b"] = 0.05 * jax.random.normal(ks[27], (2,), jnp.float32)
    return p


if __name__ == "__main__":
    key = jax.random.PRNGKey(0)
    k_param, k_x = jax.random.split(key)
    raw_params = init_params(k_param)
    packed = prepare_params(raw_params)                 # one-time packing
    x = jax.random.normal(k_x, (2, 3, 16, 16), jnp.float32)   # NCHW like PyTorch

    use_roll, roll_jnp_like = _probe_roll()
    fwd = jax.jit(functools.partial(forward, use_roll=use_roll,
                                    roll_jnp_like=roll_jnp_like))
    out = jax.block_until_ready(fwd(x, packed))
    assert out.shape == (2, NUM_CLASSES), out.shape
    assert out.dtype == jnp.float32
    assert bool(jnp.all(jnp.isfinite(out)))
    print("KERNEL_OK")
</pallas_src>

<mosaic_0001>
module attributes {stable_mosaic.version = 11 : i64} {
  func.func @k(%arg0: memref<56x256xf32, #tpu.memory_space<vmem>>, %arg1: memref<56x256xf32, #tpu.memory_space<vmem>>) attributes {dimension_semantics = [], scalar_prefetch = 0 : i64, scratch_operands = 0 : i64, tpu.core_type = #tpu.core_type<tc>} {
    %c0 = arith.constant 0 : index
    %c0_0 = arith.constant 0 : index
    %0 = vector.load %arg0[%c0, %c0_0] : memref<56x256xf32, #tpu.memory_space<vmem>>, vector<56x256xf32>
    %c1_i32 = arith.constant 1 : i32
    %1 = tpu.dynamic_rotate %0 by %c1_i32 dim 0 : vector<56x256xf32>, i32 -> vector<56x256xf32>
    %c0_1 = arith.constant 0 : index
    %c0_2 = arith.constant 0 : index
    %2 = vector.load %arg1[%c0_1, %c0_2] : memref<56x256xf32, #tpu.memory_space<vmem>>, vector<56x256xf32>
    tpu.vector_store %arg1[%c0_1, %c0_2], %1 {strides = array<i32>} : memref<56x256xf32, #tpu.memory_space<vmem>>, vector<56x256xf32>,
    return
  }
}

module attributes {stable_mosaic.version = 11 : i64} {
  func.func @_fused_forward_kernel(%arg0: i32, %arg1: memref<128x147xbf16, #tpu.memory_space<vmem>>, %arg2: memref<147x128xbf16, #tpu.memory_space<vmem>>, %arg3: memref<1x128xf32, #tpu.memory_space<vmem>>, %arg4: memref<56x128xbf16, #tpu.memory_space<vmem>>, %arg5: memref<56x1xf32, #tpu.memory_space<vmem>>, %arg6: memref<2x56xbf16, #tpu.memory_space<vmem>>, %arg7: memref<1152x128xbf16, #tpu.memory_space<vmem>>, %arg8: memref<1x128xf32, #tpu.memory_space<vmem>>, %arg9: memref<1152x256xbf16, #tpu.memory_space<vmem>>, %arg10: memref<1x256xf32, #tpu.memory_space<vmem>>, %arg11: memref<2304x512xbf16, #tpu.memory_space<vmem>>, %arg12: memref<1x512xf32, #tpu.memory_space<vmem>>, %arg13: memref<512x256xbf16, #tpu.memory_space<vmem>>, %arg14: memref<1x256xf32, #tpu.memory_space<vmem>>, %arg15: memref<256x128xbf16, #tpu.memory_space<vmem>>, %arg16: memref<1x128xf32, #tpu.memory_space<vmem>>, %arg17: memref<2x128xf32, #tpu.memory_space<vmem>>) attributes {dimension_semantics = [#tpu.dimension_semantics<parallel>], iteration_bounds = array<i64: 1>, scalar_prefetch = 0 : i64, scratch_operands = 0 : i64, tpu.core_type = #tpu.core_type<tc>, window_params = [{transform_indices = @transform_0, window_bounds = array<i64: 128, 147>}, {pipeline_mode = #tpu.pipeline_mode<synchronous>, transform_indices = @transform_1, window_bounds = array<i64: 147, 128>}, {pipeline_mode = #tpu.pipeline_mode<synchronous>, transform_indices = @transform_2, window_bounds = array<i64: 1, 128>}, {pipeline_mode = #tpu.pipeline_mode<synchronous>, transform_indices = @transform_3, window_bounds = array<i64: 56, 128>}, {pipeline_mode = #tpu.pipeline_mode<synchronous>, transform_indices = @transform_4, window_bounds = array<i64: 56, 1>}, {pipeline_mode = #tpu.pipeline_mode<synchronous>, transform_indices = @transform_5, window_bounds = array<i64: 2, 56>}, {pipeline_mode = #tpu.pipeline_mode<synchronous>, transform_indices = @transform_6, window_bounds = array<i64: 1152, 128>}, {pipeline_mode = #tpu.pipeline_mode<synchronous>, transform_indices = @transform_7, window_bounds = array<i64: 1, 128>}, {pipeline_mode = #tpu.pipeline_mode<synchronous>, transform_indices = @transform_8, window_bounds = array<i64: 1152, 256>}, {pipeline_mode = #tpu.pipeline_mode<synchronous>, transform_indices = @transform_9, window_bounds = array<i64: 1, 256>}, {pipeline_mode = #tpu.pipeline_mode<synchronous>, transform_indices = @transform_10, window_bounds = array<i64: 2304, 512>}, {pipeline_mode = #tpu.pipeline_mode<synchronous>, transform_indices = @transform_11, window_bounds = array<i64: 1, 512>}, {pipeline_mode = #tpu.pipeline_mode<synchronous>, transform_indices = @transform_12, window_bounds = array<i64: 512, 256>}, {pipeline_mode = #tpu.pipeline_mode<synchronous>, transform_indices = @transform_13, window_bounds = array<i64: 1, 256>}, {pipeline_mode = #tpu.pipeline_mode<synchronous>, transform_indices = @transform_14, window_bounds = array<i64: 256, 128>}, {pipeline_mode = #tpu.pipeline_mode<synchronous>, transform_indices = @transform_15, window_bounds = array<i64: 1, 128>}, {transform_indices = @transform_16, window_bounds = array<i64: 2, 128>}]} {
    %c0 = arith.constant 0 : index
    %c0_0 = arith.constant 0 : index
    %0 = vector.load %arg1[%c0, %c0_0] : memref<128x147xbf16, #tpu.memory_space<vmem>>, vector<128x147xbf16>
    %c0_1 = arith.constant 0 : index
    %c0_2 = arith.constant 0 : index
    %1 = vector.load %arg2[%c0_1, %c0_2] : memref<147x128xbf16, #tpu.memory_space<vmem>>, vector<147x128xbf16>
    %cst = arith.constant dense<0.000000e+00> : vector<128x128xf32>
    %2 = tpu.matmul %0, %1, %cst {dimension_numbers = #tpu.dot_dimension_numbers<[1], [0], [0], [1], [0, 0, 1, 1], [], []>} : vector<128x147xbf16>, vector<147x128xbf16>, vector<128x128xf32> -> vector<128x128xf32>
    %c0_3 = arith.constant 0 : index
    %c0_4 = arith.constant 0 : index
    %3 = vector.load %arg3[%c0_3, %c0_4] : memref<1x128xf32, #tpu.memory_space<vmem>>, vector<1x128xf32>
    %4 = vector.broadcast %3 : vector<1x128xf32> to vector<128x128xf32>
    %5 = arith.addf %2, %4 : vector<128x128xf32>
    %cst_5 = arith.constant 0.000000e+00 : f32
    %6 = vector.broadcast %cst_5 : f32 to vector<128x128xf32>
    %7 = arith.maximumf %5, %6 : vector<128x128xf32>
    %cst_6 = arith.constant 0.000000e+00 : f32
    %8 = vector.broadcast %cst_6 : f32 to vector<8x128xf32>
    %9 = tpu.concatenate %8, %7, %8 in 0 : vector<8x128xf32>, vector<128x128xf32>, vector<8x128xf32> -> vector<144x128xf32>
    %10 = vector.extract_strided_slice %9 {offsets = [9, 0], sizes = [128, 128], strides = [1, 1]} : vector<144x128xf32> to vector<128x128xf32>
    %11 = arith.maximumf %7, %10 : vector<128x128xf32>
    %cst_7 = arith.constant 0.000000e+00 : f32
    %12 = vector.broadcast %cst_7 : f32 to vector<8x128xf32>
    %13 = tpu.concatenate %12, %7, %12 in 0 : vector<8x128xf32>, vector<128x128xf32>, vector<8x128xf32> -> vector<144x128xf32>
    %14 = vector.extract_strided_slice %13 {offsets = [10, 0], sizes = [128, 128], strides = [1, 1]} : vector<144x128xf32> to vector<128x128xf32>
    %15 = arith.maximumf %11, %14 : vector<128x128xf32>
    %cst_8 = arith.constant 0.000000e+00 : f32
    %16 = vector.broadcast %cst_8 : f32 to vector<8x128xf32>
    %17 = tpu.concatenate %16, %7, %16 in 0 : vector<8x128xf32>, vector<128x128xf32>, vector<8x128xf32> -> vector<144x128xf32>
    %18 = vector.extract_strided_slice %17 {offsets = [16, 0], sizes = [128, 128], strides = [1, 1]} : vector<144x128xf32> to vector<128x128xf32>
    %19 = arith.maximumf %15, %18 : vector<128x128xf32>
    %cst_9 = arith.constant 0.000000e+00 : f32
    %20 = vector.broadcast %cst_9 : f32 to vector<16x128xf32>
    %21 = tpu.concatenate %20, %7, %20 in 0 : vector<16x128xf32>, vector<128x128xf32>, vector<16x128xf32> -> vector<160x128xf32>
    %22 = vector.extract_strided_slice %21 {offsets = [25, 0], sizes = [128, 128], strides = [1, 1]} : vector<160x128xf32> to vector<128x128xf32>
    %23 = arith.maximumf %19, %22 : vector<128x128xf32>
    %cst_10 = arith.constant 0.000000e+00 : f32
    %24 = vector.broadcast %cst_10 : f32 to vector<16x128xf32>
    %25 = tpu.concatenate %24, %7, %24 in 0 : vector<16x128xf32>, vector<128x128xf32>, vector<16x128xf32> -> vector<160x128xf32>
    %26 = vector.extract_strided_slice %25 {offsets = [26, 0], sizes = [128, 128], strides = [1, 1]} : vector<160x128xf32> to vector<128x128xf32>
    %27 = arith.maximumf %23, %26 : vector<128x128xf32>
    %cst_11 = arith.constant 0.000000e+00 : f32
    %28 = vector.broadcast %cst_11 : f32 to vector<16x128xf32>
    %29 = tpu.concatenate %28, %7, %28 in 0 : vector<16x128xf32>, vector<128x128xf32>, vector<16x128xf32> -> vector<160x128xf32>
    %30 = vector.extract_strided_slice %29 {offsets = [32, 0], sizes = [128, 128], strides = [1, 1]} : vector<160x128xf32> to vector<128x128xf32>
    %31 = arith.maximumf %27, %30 : vector<128x128xf32>
    %cst_12 = arith.constant 0.000000e+00 : f32
    %32 = vector.broadcast %cst_12 : f32 to vector<24x128xf32>
    %33 = tpu.concatenate %32, %7, %32 in 0 : vector<24x128xf32>, vector<128x128xf32>, vector<24x128xf32> -> vector<176x128xf32>
    %34 = vector.extract_strided_slice %33 {offsets = [41, 0], sizes = [128, 128], strides = [1, 1]} : vector<176x128xf32> to vector<128x128xf32>
    %35 = arith.maximumf %31, %34 : vector<128x128xf32>
    %cst_13 = arith.constant 0.000000e+00 : f32
    %36 = vector.broadcast %cst_13 : f32 to vector<24x128xf32>
    %37 = tpu.concatenate %36, %7, %36 in 0 : vector<24x128xf32>, vector<128x128xf32>, vector<24x128xf32> -> vector<176x128xf32>
    %38 = vector.extract_strided_slice %37 {offsets = [42, 0], sizes = [128, 128], strides = [1, 1]} : vector<176x128xf32> to vector<128x128xf32>
    %39 = arith.maximumf %35, %38 : vector<128x128xf32>
    %c0_14 = arith.constant 0 : index
    %c0_15 = arith.constant 0 : index
    %40 = vector.load %arg4[%c0_14, %c0_15] : memref<56x128xbf16, #tpu.memory_space<vmem>>, vector<56x128xbf16>
    %41 = arith.truncf %39 : vector<128x128xf32> to vector<128x128xbf16>
    %cst_16 = arith.constant dense<0.000000e+00> : vector<56x128xf32>
    %42 = tpu.matmul %40, %41, %cst_16 {dimension_numbers = #tpu.dot_dimension_numbers<[1], [0], [0], [1], [0, 0, 1, 1], [], []>} : vector<56x128xbf16>, vector<128x128xbf16>, vector<56x128xf32> -> vector<56x128xf32>
    %c0_17 = arith.constant 0 : index
    %c0_18 = arith.constant 0 : index
    %43 = vector.load %arg5[%c0_17, %c0_18] : memref<56x1xf32, #tpu.memory_space<vmem>>, vector<56x1xf32>
    %cst_19 = arith.constant 0.000000e+00 : f32
    %44 = vector.broadcast %cst_19 : f32 to vector<8x128xf32>
    %45 = tpu.concatenate %44, %42, %44 in 0 : vector<8x128xf32>, vector<56x128xf32>, vector<8x128xf32> -> vector<72x128xf32>
    %46 = vector.extract_strided_slice %45 {offsets = [2, 0], sizes = [56, 128], strides = [1, 1]} : vector<72x128xf32> to vector<56x128xf32>
    %cst_20 = arith.constant 0.000000e+00 : f32
    %47 = vector.broadcast %cst_20 : f32 to vector<8x128xf32>
    %48 = tpu.concatenate %47, %42, %47 in 0 : vector<8x128xf32>, vector<56x128xf32>, vector<8x128xf32> -> vector<72x128xf32>
    %49 = vector.extract_strided_slice %48 {offsets = [3, 0], sizes = [56, 128], strides = [1, 1]} : vector<72x128xf32> to vector<56x128xf32>
    %cst_21 = arith.constant 0.000000e+00 : f32
    %50 = vector.broadcast %cst_21 : f32 to vector<8x128xf32>
    %51 = tpu.concatenate %50, %42, %50 in 0 : vector<8x128xf32>, vector<56x128xf32>, vector<8x128xf32> -> vector<72x128xf32>
    %52 = vector.extract_strided_slice %51 {offsets = [4, 0], sizes = [56, 128], strides = [1, 1]} : vector<72x128xf32> to vector<56x128xf32>
    %cst_22 = arith.constant 0.000000e+00 : f32
    %53 = vector.broadcast %cst_22 : f32 to vector<8x128xf32>
    %54 = tpu.concatenate %53, %42, %53 in 0 : vector<8x128xf32>, vector<56x128xf32>, vector<8x128xf32> -> vector<72x128xf32>
    %55 = vector.extract_strided_slice %54 {offsets = [7, 0], sizes = [56, 128], strides = [1, 1]} : vector<72x128xf32> to vector<56x128xf32>
    %cst_23 = arith.constant 0.000000e+00 : f32
    %56 = vector.broadcast %cst_23 : f32 to vector<8x128xf32>
    %57 = tpu.concatenate %56, %42, %56 in 0 : vector<8x128xf32>, vector<56x128xf32>, vector<8x128xf32> -> vector<72x128xf32>
    %58 = vector.extract_strided_slice %57 {offsets = [9, 0], sizes = [56, 128], strides = [1, 1]} : vector<72x128xf32> to vector<56x128xf32>
    %cst_24 = arith.constant 0.000000e+00 : f32
    %59 = vector.broadcast %cst_24 : f32 to vector<8x128xf32>
    %60 = tpu.concatenate %59, %42, %59 in 0 : vector<8x128xf32>, vector<56x128xf32>, vector<8x128xf32> -> vector<72x128xf32>
    %61 = vector.extract_strided_slice %60 {offsets = [12, 0], sizes = [56, 128], strides = [1, 1]} : vector<72x128xf32> to vector<56x128xf32>
    %cst_25 = arith.constant 0.000000e+00 : f32
    %62 = vector.broadcast %cst_25 : f32 to vector<8x128xf32>
    %63 = tpu.concatenate %62, %42, %62 in 0 : vector<8x128xf32>, vector<56x128xf32>, vector<8x128xf32> -> vector<72x128xf32>
    %64 = vector.extract_strided_slice %63 {offsets = [13, 0], sizes = [56, 128], strides = [1, 1]} : vector<72x128xf32> to vector<56x128xf32>
    %cst_26 = arith.constant 0.000000e+00 : f32
    %65 = vector.broadcast %cst_26 : f32 to vector<8x128xf32>
    %66 = tpu.concatenate %65, %42, %65 in 0 : vector<8x128xf32>, vector<56x128xf32>, vector<8x128xf32> -> vector<72x128xf32>
    %67 = vector.extract_strided_slice %66 {offsets = [14, 0], sizes = [56, 128], strides = [1, 1]} : vector<72x128xf32> to vector<56x128xf32>
    %68 = tpu.concatenate %46, %49, %52, %55, %42, %58, %61, %64, %67 in 1 : vector<56x128xf32>, vector<56x128xf32>, vector<56x128xf32>, vector<56x128xf32>, vector<56x128xf32>, vector<56x128xf32>, vector<56x128xf32>, vector<56x128xf32>, vector<56x128xf32> -> vector<56x1152xf32>
    %69 = arith.truncf %68 : vector<56x1152xf32> to vector<56x1152xbf16>
    %c0_27 = arith.constant 0 : index
    %c0_28 = arith.constant 0 : index
    %70 = vector.load %arg7[%c0_27, %c0_28] : memref<1152x128xbf16, #tpu.memory_space<vmem>>, vector<1152x128xbf16>
    %cst_29 = arith.constant dense<0.000000e+00> : vector<56x128xf32>
    %71 = tpu.matmul %69, %70, %cst_29 {dimension_numbers = #tpu.dot_dimension_numbers<[1], [0], [0], [1], [0, 0, 1, 1], [], []>} : vector<56x1152xbf16>, vector<1152x128xbf16>, vector<56x128xf32> -> vector<56x128xf32>
    %c0_30 = arith.constant 0 : index
    %c0_31 = arith.constant 0 : index
    %72 = vector.load %arg8[%c0_30, %c0_31] : memref<1x128xf32, #tpu.memory_space<vmem>>, vector<1x128xf32>
    %73 = vector.broadcast %72 : vector<1x128xf32> to vector<56x128xf32>
    %74 = arith.addf %71, %73 : vector<56x128xf32>
    %cst_32 = arith.constant 0.000000e+00 : f32
    %75 = vector.broadcast %cst_32 : f32 to vector<56x128xf32>
    %76 = arith.maximumf %74, %75 : vector<56x128xf32>
    %77 = vector.broadcast %43 : vector<56x1xf32> to vector<56x128xf32>
    %78 = arith.mulf %76, %77 : vector<56x128xf32>
    %cst_33 = arith.constant 0.000000e+00 : f32
    %79 = vector.broadcast %cst_33 : f32 to vector<8x128xf32>
    %80 = tpu.concatenate %79, %78, %79 in 0 : vector<8x128xf32>, vector<56x128xf32>, vector<8x128xf32> -> vector<72x128xf32>
    %81 = vector.extract_strided_slice %80 {offsets = [2, 0], sizes = [56, 128], strides = [1, 1]} : vector<72x128xf32> to vector<56x128xf32>
    %cst_34 = arith.constant 0.000000e+00 : f32
    %82 = vector.broadcast %cst_34 : f32 to vector<8x128xf32>
    %83 = tpu.concatenate %82, %78, %82 in 0 : vector<8x128xf32>, vector<56x128xf32>, vector<8x128xf32> -> vector<72x128xf32>
    %84 = vector.extract_strided_slice %83 {offsets = [3, 0], sizes = [56, 128], strides = [1, 1]} : vector<72x128xf32> to vector<56x128xf32>
    %cst_35 = arith.constant 0.000000e+00 : f32
    %85 = vector.broadcast %cst_35 : f32 to vector<8x128xf32>
    %86 = tpu.concatenate %85, %78, %85 in 0 : vector<8x128xf32>, vector<56x128xf32>, vector<8x128xf32> -> vector<72x128xf32>
    %87 = vector.extract_strided_slice %86 {offsets = [4, 0], sizes = [56, 128], strides = [1, 1]} : vector<72x128xf32> to vector<56x128xf32>
    %cst_36 = arith.constant 0.000000e+00 : f32
    %88 = vector.broadcast %cst_36 : f32 to vector<8x128xf32>
    %89 = tpu.concatenate %88, %78, %88 in 0 : vector<8x128xf32>, vector<56x128xf32>, vector<8x128xf32> -> vector<72x128xf32>
    %90 = vector.extract_strided_slice %89 {offsets = [7, 0], sizes = [56, 128], strides = [1, 1]} : vector<72x128xf32> to vector<56x128xf32>
    %cst_37 = arith.constant 0.000000e+00 : f32
    %91 = vector.broadcast %cst_37 : f32 to vector<8x128xf32>
    %92 = tpu.concatenate %91, %78, %91 in 0 : vector<8x128xf32>, vector<56x128xf32>, vector<8x128xf32> -> vector<72x128xf32>
    %93 = vector.extract_strided_slice %92 {offsets = [9, 0], sizes = [56, 128], strides = [1, 1]} : vector<72x128xf32> to vector<56x128xf32>
    %cst_38 = arith.constant 0.000000e+00 : f32
    %94 = vector.broadcast %cst_38 : f32 to vector<8x128xf32>
    %95 = tpu.concatenate %94, %78, %94 in 0 : vector<8x128xf32>, vector<56x128xf32>, vector<8x128xf32> -> vector<72x128xf32>
    %96 = vector.extract_strided_slice %95 {offsets = [12, 0], sizes = [56, 128], strides = [1, 1]} : vector<72x128xf32> to vector<56x128xf32>
    %cst_39 = arith.constant 0.000000e+00 : f32
    %97 = vector.broadcast %cst_39 : f32 to vector<8x128xf32>
    %98 = tpu.concatenate %97, %78, %97 in 0 : vector<8x128xf32>, vector<56x128xf32>, vector<8x128xf32> -> vector<72x128xf32>
    %99 = vector.extract_strided_slice %98 {offsets = [13, 0], sizes = [56, 128], strides = [1, 1]} : vector<72x128xf32> to vector<56x128xf32>
    %cst_40 = arith.constant 0.000000e+00 : f32
    %100 = vector.broadcast %cst_40 : f32 to vector<8x128xf32>
    %101 = tpu.concatenate %100, %78, %100 in 0 : vector<8x128xf32>, vector<56x128xf32>, vector<8x128xf32> -> vector<72x128xf32>
    %102 = vector.extract_strided_slice %101 {offsets = [14, 0], sizes = [56, 128], strides = [1, 1]} : vector<72x128xf32> to vector<56x128xf32>
    %103 = tpu.concatenate %81, %84, %87, %90, %78, %93, %96, %99, %102 in 1 : vector<56x128xf32>, vector<56x128xf32>, vector<56x128xf32>, vector<56x128xf32>, vector<56x128xf32>, vector<56x128xf32>, vector<56x128xf32>, vector<56x128xf32>, vector<56x128xf32> -> vector<56x1152xf32>
    %104 = arith.truncf %103 : vector<56x1152xf32> to vector<56x1152xbf16>
    %c0_41 = arith.constant 0 : index
    %c0_42 = arith.constant 0 : index
    %105 = vector.load %arg9[%c0_41, %c0_42] : memref<1152x256xbf16, #tpu.memory_space<vmem>>, vector<1152x256xbf16>
    %cst_43 = arith.constant dense<0.000000e+00> : vector<56x256xf32>
    %106 = tpu.matmul %104, %105, %cst_43 {dimension_numbers = #tpu.dot_dimension_numbers<[1], [0], [0], [1], [0, 0, 1, 1], [], []>} : vector<56x1152xbf16>, vector<1152x256xbf16>, vector<56x256xf32> -> vector<56x256xf32>
    %c0_44 = arith.constant 0 : index
    %c0_45 = arith.constant 0 : index
    %107 = vector.load %arg10[%c0_44, %c0_45] : memref<1x256xf32, #tpu.memory_space<vmem>>, vector<1x256xf32>
    %108 = vector.broadcast %107 : vector<1x256xf32> to vector<56x256xf32>
    %109 = arith.addf %106, %108 : vector<56x256xf32>
    %cst_46 = arith.constant 0.000000e+00 : f32
    %110 = vector.broadcast %cst_46 : f32 to vector<56x256xf32>
    %111 = arith.maximumf %109, %110 : vector<56x256xf32>
    %112 = vector.broadcast %43 : vector<56x1xf32> to vector<56x256xf32>
    %113 = arith.mulf %111, %112 : vector<56x256xf32>
    %cst_47 = arith.constant 0.000000e+00 : f32
    %114 = vector.broadcast %cst_47 : f32 to vector<8x256xf32>
    %115 = tpu.concatenate %114, %113, %114 in 0 : vector<8x256xf32>, vector<56x256xf32>, vector<8x256xf32> -> vector<72x256xf32>
    %116 = vector.extract_strided_slice %115 {offsets = [2, 0], sizes = [56, 256], strides = [1, 1]} : vector<72x256xf32> to vector<56x256xf32>
    %cst_48 = arith.constant 0.000000e+00 : f32
    %117 = vector.broadcast %cst_48 : f32 to vector<8x256xf32>
    %118 = tpu.concatenate %117, %113, %117 in 0 : vector<8x256xf32>, vector<56x256xf32>, vector<8x256xf32> -> vector<72x256xf32>
    %119 = vector.extract_strided_slice %118 {offsets = [3, 0], sizes = [56, 256], strides = [1, 1]} : vector<72x256xf32> to vector<56x256xf32>
    %cst_49 = arith.constant 0.000000e+00 : f32
    %120 = vector.broadcast %cst_49 : f32 to vector<8x256xf32>
    %121 = tpu.concatenate %120, %113, %120 in 0 : vector<8x256xf32>, vector<56x256xf32>, vector<8x256xf32> -> vector<72x256xf32>
    %122 = vector.extract_strided_slice %121 {offsets = [4, 0], sizes = [56, 256], strides = [1, 1]} : vector<72x256xf32> to vector<56x256xf32>
    %cst_50 = arith.constant 0.000000e+00 : f32
    %123 = vector.broadcast %cst_50 : f32 to vector<8x256xf32>
    %124 = tpu.concatenate %123, %113, %123 in 0 : vector<8x256xf32>, vector<56x256xf32>, vector<8x256xf32> -> vector<72x256xf32>
    %125 = vector.extract_strided_slice %124 {offsets = [7, 0], sizes = [56, 256], strides = [1, 1]} : vector<72x256xf32> to vector<56x256xf32>
    %cst_51 = arith.constant 0.000000e+00 : f32
    %126 = vector.broadcast %cst_51 : f32 to vector<8x256xf32>
    %127 = tpu.concatenate %126, %113, %126 in 0 : vector<8x256xf32>, vector<56x256xf32>, vector<8x256xf32> -> vector<72x256xf32>
    %128 = vector.extract_strided_slice %127 {offsets = [9, 0], sizes = [56, 256], strides = [1, 1]} : vector<72x256xf32> to vector<56x256xf32>
    %cst_52 = arith.constant 0.000000e+00 : f32
    %129 = vector.broadcast %cst_52 : f32 to vector<8x256xf32>
    %130 = tpu.concatenate %129, %113, %129 in 0 : vector<8x256xf32>, vector<56x256xf32>, vector<8x256xf32> -> vector<72x256xf32>
    %131 = vector.extract_strided_slice %130 {offsets = [12, 0], sizes = [56, 256], strides = [1, 1]} : vector<72x256xf32> to vector<56x256xf32>
    %cst_53 = arith.constant 0.000000e+00 : f32
    %132 = vector.broadcast %cst_53 : f32 to vector<8x256xf32>
    %133 = tpu.concatenate %132, %113, %132 in 0 : vector<8x256xf32>, vector<56x256xf32>, vector<8x256xf32> -> vector<72x256xf32>
    %134 = vector.extract_strided_slice %133 {offsets = [13, 0], sizes = [56, 256], strides = [1, 1]} : vector<72x256xf32> to vector<56x256xf32>
    %cst_54 = arith.constant 0.000000e+00 : f32
    %135 = vector.broadcast %cst_54 : f32 to vector<8x256xf32>
    %136 = tpu.concatenate %135, %113, %135 in 0 : vector<8x256xf32>, vector<56x256xf32>, vector<8x256xf32> -> vector<72x256xf32>
    %137 = vector.extract_strided_slice %136 {offsets = [14, 0], sizes = [56, 256], strides = [1, 1]} : vector<72x256xf32> to vector<56x256xf32>
    %138 = tpu.concatenate %116, %119, %122, %125, %113, %128, %131, %134, %137 in 1 : vector<56x256xf32>, vector<56x256xf32>, vector<56x256xf32>, vector<56x256xf32>, vector<56x256xf32>, vector<56x256xf32>, vector<56x256xf32>, vector<56x256xf32>, vector<56x256xf32> -> vector<56x2304xf32>
    %139 = arith.truncf %138 : vector<56x2304xf32> to vector<56x2304xbf16>
    %c0_55 = arith.constant 0 : index
    %c0_56 = arith.constant 0 : index
    %140 = vector.load %arg11[%c0_55, %c0_56] : memref<2304x512xbf16, #tpu.memory_space<vmem>>, vector<2304x512xbf16>
    %cst_57 = arith.constant dense<0.000000e+00> : vector<56x512xf32>
    %141 = tpu.matmul %139, %140, %cst_57 {dimension_numbers = #tpu.dot_dimension_numbers<[1], [0], [0], [1], [0, 0, 1, 1], [], []>} : vector<56x2304xbf16>, vector<2304x512xbf16>, vector<56x512xf32> -> vector<56x512xf32>
    %c0_58 = arith.constant 0 : index
    %c0_59 = arith.constant 0 : index
    %142 = vector.load %arg12[%c0_58, %c0_59] : memref<1x512xf32, #tpu.memory_space<vmem>>, vector<1x512xf32>
    %143 = vector.broadcast %142 : vector<1x512xf32> to vector<56x512xf32>
    %144 = arith.addf %141, %143 : vector<56x512xf32>
    %cst_60 = arith.constant 0.000000e+00 : f32
    %145 = vector.broadcast %cst_60 : f32 to vector<56x512xf32>
    %146 = arith.maximumf %144, %145 : vector<56x512xf32>
    %147 = vector.broadcast %43 : vector<56x1xf32> to vector<56x512xf32>
    %148 = arith.mulf %146, %147 : vector<56x512xf32>
    %c0_61 = arith.constant 0 : index
    %c0_62 = arith.constant 0 : index
    %149 = vector.load %arg6[%c0_61, %c0_62] : memref<2x56xbf16, #tpu.memory_space<vmem>>, vector<2x56xbf16>
    %150 = arith.truncf %148 : vector<56x512xf32> to vector<56x512xbf16>
    %cst_63 = arith.constant dense<0.000000e+00> : vector<2x512xf32>
    %151 = tpu.matmul %149, %150, %cst_63 {dimension_numbers = #tpu.dot_dimension_numbers<[1], [0], [0], [1], [0, 0, 1, 1], [], []>} : vector<2x56xbf16>, vector<56x512xbf16>, vector<2x512xf32> -> vector<2x512xf32>
    %152 = arith.truncf %151 : vector<2x512xf32> to vector<2x512xbf16>
    %c0_64 = arith.constant 0 : index
    %c0_65 = arith.constant 0 : index
    %153 = vector.load %arg13[%c0_64, %c0_65] : memref<512x256xbf16, #tpu.memory_space<vmem>>, vector<512x256xbf16>
    %cst_66 = arith.constant dense<0.000000e+00> : vector<2x256xf32>
    %154 = tpu.matmul %152, %153, %cst_66 {dimension_numbers = #tpu.dot_dimension_numbers<[1], [0], [0], [1], [0, 0, 1, 1], [], []>} : vector<2x512xbf16>, vector<512x256xbf16>, vector<2x256xf32> -> vector<2x256xf32>
    %c0_67 = arith.constant 0 : index
    %c0_68 = arith.constant 0 : index
    %155 = vector.load %arg14[%c0_67, %c0_68] : memref<1x256xf32, #tpu.memory_space<vmem>>, vector<1x256xf32>
    %156 = vector.broadcast %155 : vector<1x256xf32> to vector<2x256xf32>
    %157 = arith.addf %154, %156 : vector<2x256xf32>
    %cst_69 = arith.constant 0.000000e+00 : f32
    %158 = vector.broadcast %cst_69 : f32 to vector<2x256xf32>
    %159 = arith.maximumf %157, %158 : vector<2x256xf32>
    %160 = arith.truncf %159 : vector<2x256xf32> to vector<2x256xbf16>
    %c0_70 = arith.constant 0 : index
    %c0_71 = arith.constant 0 : index
    %161 = vector.load %arg15[%c0_70, %c0_71] : memref<256x128xbf16, #tpu.memory_space<vmem>>, vector<256x128xbf16>
    %cst_72 = arith.constant dense<0.000000e+00> : vector<2x128xf32>
    %162 = tpu.matmul %160, %161, %cst_72 {dimension_numbers = #tpu.dot_dimension_numbers<[1], [0], [0], [1], [0, 0, 1, 1], [], []>} : vector<2x256xbf16>, vector<256x128xbf16>, vector<2x128xf32> -> vector<2x128xf32>
    %c0_73 = arith.constant 0 : index
    %c0_74 = arith.constant 0 : index
    %163 = vector.load %arg16[%c0_73, %c0_74] : memref<1x128xf32, #tpu.memory_space<vmem>>, vector<1x128xf32>
    %164 = vector.broadcast %163 : vector<1x128xf32> to vector<2x128xf32>
    %165 = arith.addf %162, %164 : vector<2x128xf32>
    %c0_75 = arith.constant 0 : index
    %c0_76 = arith.constant 0 : index
    %166 = vector.load %arg17[%c0_75, %c0_76] : memref<2x128xf32, #tpu.memory_space<vmem>>, vector<2x128xf32>
    tpu.vector_store %arg17[%c0_75, %c0_76], %165 {strides = array<i32>} : memref<2x128xf32, #tpu.memory_space<vmem>>, vector<2x128xf32>,
    return
  }
  func.func @transform_0(%arg0: i32) -> (i32, i32) {
    %c0_i32 = arith.constant 0 : i32
    %c0_i32_0 = arith.constant 0 : i32
    return %arg0, %c0_i32 : i32, i32
  }
  func.func @transform_1(%arg0: i32) -> (i32, i32) {
    %c0_i32 = arith.constant 0 : i32
    %c0_i32_0 = arith.constant 0 : i32
    %c0_i32_1 = arith.constant 0 : i32
    return %c0_i32, %c0_i32_0 : i32, i32
  }
  func.func @transform_2(%arg0: i32) -> (i32, i32) {
    %c0_i32 = arith.constant 0 : i32
    %c0_i32_0 = arith.constant 0 : i32
    %c0_i32_1 = arith.constant 0 : i32
    return %c0_i32, %c0_i32_0 : i32, i32
  }
  func.func @transform_3(%arg0: i32) -> (i32, i32) {
    %c0_i32 = arith.constant 0 : i32
    %c0_i32_0 = arith.constant 0 : i32
    %c0_i32_1 = arith.constant 0 : i32
    return %c0_i32, %c0_i32_0 : i32, i32
  }
  func.func @transform_4(%arg0: i32) -> (i32, i32) {
    %c0_i32 = arith.constant 0 : i32
    %c0_i32_0 = arith.constant 0 : i32
    %c0_i32_1 = arith.constant 0 : i32
    return %c0_i32, %c0_i32_0 : i32, i32
  }
  func.func @transform_5(%arg0: i32) -> (i32, i32) {
    %c0_i32 = arith.constant 0 : i32
    %c0_i32_0 = arith.constant 0 : i32
    %c0_i32_1 = arith.constant 0 : i32
    return %c0_i32, %c0_i32_0 : i32, i32
  }
  func.func @transform_6(%arg0: i32) -> (i32, i32) {
    %c0_i32 = arith.constant 0 : i32
    %c0_i32_0 = arith.constant 0 : i32
    %c0_i32_1 = arith.constant 0 : i32
    return %c0_i32, %c0_i32_0 : i32, i32
  }
  func.func @transform_7(%arg0: i32) -> (i32, i32) {
    %c0_i32 = arith.constant 0 : i32
    %c0_i32_0 = arith.constant 0 : i32
    %c0_i32_1 = arith.constant 0 : i32
    return %c0_i32, %c0_i32_0 : i32, i32
  }
  func.func @transform_8(%arg0: i32) -> (i32, i32) {
    %c0_i32 = arith.constant 0 : i32
    %c0_i32_0 = arith.constant 0 : i32
    %c0_i32_1 = arith.constant 0 : i32
    return %c0_i32, %c0_i32_0 : i32, i32
  }
  func.func @transform_9(%arg0: i32) -> (i32, i32) {
    %c0_i32 = arith.constant 0 : i32
    %c0_i32_0 = arith.constant 0 : i32
    %c0_i32_1 = arith.constant 0 : i32
    return %c0_i32, %c0_i32_0 : i32, i32
  }
  func.func @transform_10(%arg0: i32) -> (i32, i32) {
    %c0_i32 = arith.constant 0 : i32
    %c0_i32_0 = arith.constant 0 : i32
    %c0_i32_1 = arith.constant 0 : i32
    return %c0_i32, %c0_i32_0 : i32, i32
  }
  func.func @transform_11(%arg0: i32) -> (i32, i32) {
    %c0_i32 = arith.constant 0 : i32
    %c0_i32_0 = arith.constant 0 : i32
    %c0_i32_1 = arith.constant 0 : i32
    return %c0_i32, %c0_i32_0 : i32, i32
  }
  func.func @transform_12(%arg0: i32) -> (i32, i32) {
    %c0_i32 = arith.constant 0 : i32
    %c0_i32_0 = arith.constant 0 : i32
    %c0_i32_1 = arith.constant 0 : i32
    return %c0_i32, %c0_i32_0 : i32, i32
  }
  func.func @transform_13(%arg0: i32) -> (i32, i32) {
    %c0_i32 = arith.constant 0 : i32
    %c0_i32_0 = arith.constant 0 : i32
    %c0_i32_1 = arith.constant 0 : i32
    return %c0_i32, %c0_i32_0 : i32, i32
  }
  func.func @transform_14(%arg0: i32) -> (i32, i32) {
    %c0_i32 = arith.constant 0 : i32
    %c0_i32_0 = arith.constant 0 : i32
    %c0_i32_1 = arith.constant 0 : i32
    return %c0_i32, %c0_i32_0 : i32, i32
  }
  func.func @transform_15(%arg0: i32) -> (i32, i32) {
    %c0_i32 = arith.constant 0 : i32
    %c0_i32_0 = arith.constant 0 : i32
    %c0_i32_1 = arith.constant 0 : i32
    return %c0_i32, %c0_i32_0 : i32, i32
  }
  func.func @transform_16(%arg0: i32) -> (i32, i32) {
    %c0_i32 = arith.constant 0 : i32
    %c0_i32_0 = arith.constant 0 : i32
    return %arg0, %c0_i32 : i32, i32
  }
}

</mosaic_0001>

<llo_original>
// kernel: tpu_custom_call.1
$region0: #{tpu_custom_call.1}
  #allocation0 [shape = 'u32[]', space=smem, size = 0x4, offset = 0x4, fixed_abs, tag = 'smem constant byte address 0x4 - core index']
  #allocation1 [shape = 'u32[72,128]{1,0:T(1,128)}', space=vmem, size = 0x9000, scoped, tag = 'internal scratch']
  %s0 = inlined_call_operand.hbm [shape: f32[56,256], index: 0, kind: input, shape index: {}]
  %s1 = inlined_call_operand.hbm [shape: f32[56,256], index: 1, kind: output, shape index: {}]
  %s2 = sld [smem:[#allocation0]]
  $region18: #{tpu_custom_call.1} parent=0
    _
  %s4 = ssub.s32 1, %s2
  %s5 = scalar_select 0, %s4, %s2
  $region1: #{tpu_custom_call.1} parent=0
    #allocation2 [shape = 'u8[57344]{0}', space=vmem, size = 0xe000, scoped, tag = 'input window, operand 0, single buffered']
    #allocation3 [shape = 's32[1]{0}', space=sflag, size = 0x4, scoped, tag = 'scoped memory for tpu_custom_call.1']
    #allocation4 [shape = 's32[1]{0}', space=sflag, size = 0x4, scoped, tag = 'scoped memory for tpu_custom_call.1']
    #allocation5 [shape = 'u8[57344]{0}', space=vmem, size = 0xe000, scoped, tag = 'output window, operand 0, single buffered']
    %6 = vsyncpa [#allocation3], 0
    %7 = vsyncpa [#allocation4], 0
    // Predicated region
    $region2: #{tpu_custom_call.1} parent=1 // pred_check
      _
    $region3: #{tpu_custom_call.1} parent=1 // pred_check_branch
      %9 = sbr.rel (0) target = $region5
    $region4: #{tpu_custom_call.1} parent=1 // pred_region
      %11 = vsyncadd [#allocation3], 0
      %s12 = sshll.u32 %s0, 4
      %s13 = int_to_ptr.hbm [resolvable:$true] %s12
      %s14 = sshll.u32 [#allocation2], 4
      %s15 = int_to_ptr.vmem [resolvable:$true] %s14
      %20 = dma.hbm_to_vmem [thread:$0]  %s13, 1792, %s15, [#allocation3], 256, 256, 16
    $region5: #{tpu_custom_call.1} parent=1 // pred_fallthru
      _
    // Predicated region
    $region6: #{tpu_custom_call.1} parent=1 // pred_check
      _
    $region7: #{tpu_custom_call.1} parent=1 // pred_check_branch
      %22 = sbr.rel (0) target = $region9
    $region8: #{tpu_custom_call.1} parent=1 // pred_region
      %24 = dma.done [#allocation3], 1792
    $region9: #{tpu_custom_call.1} parent=1 // pred_fallthru
      _
    %v25 = vld [vmem:[#allocation2] sm:$0xff]
    %v26 = vld [vmem:[#allocation2 + $0x8] sm:$0xff]
    %v27 = vld [vmem:[#allocation2 + $0x10] sm:$0xff]
    %v28 = vld [vmem:[#allocation2 + $0x18] sm:$0xff]
    %v29 = vld [vmem:[#allocation2 + $0x20] sm:$0xff]
    %v30 = vld [vmem:[#allocation2 + $0x28] sm:$0xff]
    %v31 = vld [vmem:[#allocation2 + $0x30] sm:$0xff]
    %v32 = vld [vmem:[#allocation2 + $0x38] sm:$0xff]
    %v33 = vld [vmem:[#allocation2 + $0x40] sm:$0xff]
    %v34 = vld [vmem:[#allocation2 + $0x48] sm:$0xff]
    %v35 = vld [vmem:[#allocation2 + $0x50] sm:$0xff]
    %v36 = vld [vmem:[#allocation2 + $0x58] sm:$0xff]
    %v37 = vld [vmem:[#allocation2 + $0x60] sm:$0xff]
    %v38 = vld [vmem:[#allocation2 + $0x68] sm:$0xff]
    %v39 = vrot.slane %v25, 7
    %v40 = vrot.slane %v26, 7
    %v41 = vrot.slane %v27, 7
    %v42 = vrot.slane %v28, 7
    %v43 = vrot.slane %v29, 7
    %v44 = vrot.slane %v30, 7
    %v45 = vrot.slane %v31, 7
    %v46 = vrot.slane %v32, 7
    %v47 = vrot.slane %v33, 7
    %v48 = vrot.slane %v34, 7
    %v49 = vrot.slane %v35, 7
    %v50 = vrot.slane %v36, 7
    %v51 = vrot.slane %v37, 7
    %v52 = vrot.slane %v38, 7
    %v53 = vlaneseq
    %v54 = vshrl.u32 %v53, 7
    %vm55 = vcmp.lt.s32.totalorder %v54, 1
    %v56 = vsel %vm55, %v49, %v51
    %v57 = vsel %vm55, %v50, %v52
    %v58 = vsel %vm55, %v47, %v49
    %v59 = vsel %vm55, %v48, %v50
    %v60 = vsel %vm55, %v45, %v47
    %v61 = vsel %vm55, %v46, %v48
    %v62 = vsel %vm55, %v43, %v45
    %v63 = vsel %vm55, %v44, %v46
    %v64 = vsel %vm55, %v41, %v43
    %v65 = vsel %vm55, %v42, %v44
    %v66 = vsel %vm55, %v39, %v41
    %v67 = vsel %vm55, %v40, %v42
    %v68 = vsel %vm55, %v51, %v39
    %v69 = vsel %vm55, %v52, %v40
    %70 = vst [vmem:[#allocation5] sm:$0xff] %v68
    %71 = vst [vmem:[#allocation5 + $0x8] sm:$0xff] %v69
    %72 = vst [vmem:[#allocation5 + $0x10] sm:$0xff] %v66
    %73 = vst [vmem:[#allocation5 + $0x18] sm:$0xff] %v67
    %74 = vst [vmem:[#allocation5 + $0x20] sm:$0xff] %v64
    %75 = vst [vmem:[#allocation5 + $0x28] sm:$0xff] %v65
    %76 = vst [vmem:[#allocation5 + $0x30] sm:$0xff] %v62
    %77 = vst [vmem:[#allocation5 + $0x38] sm:$0xff] %v63
    %78 = vst [vmem:[#allocation5 + $0x40] sm:$0xff] %v60
    %79 = vst [vmem:[#allocation5 + $0x48] sm:$0xff] %v61
    %80 = vst [vmem:[#allocation5 + $0x50] sm:$0xff] %v58
    %81 = vst [vmem:[#allocation5 + $0x58] sm:$0xff] %v59
    %82 = vst [vmem:[#allocation5 + $0x60] sm:$0xff] %v56
    %83 = vst [vmem:[#allocation5 + $0x68] sm:$0xff] %v57
    // Predicated region
    $region10: #{tpu_custom_call.1} parent=1 // pred_check
      _
    $region11: #{tpu_custom_call.1} parent=1 // pred_check_branch
      %85 = sbr.rel (0) target = $region13
    $region12: #{tpu_custom_call.1} parent=1 // pred_region
      %87 = vsyncadd [#allocation4], 0
      %s88 = sshll.u32 [#allocation5], 4
      %s89 = int_to_ptr.vmem [resolvable:$true] %s88
      %s90 = sshll.u32 %s1, 4
      %s91 = int_to_ptr.hbm [resolvable:$true] %s90
      %96 = dma.vmem_to_hbm [thread:$0]  %s89, 1792, %s91, [#allocation4], 256, 256, 16
    $region13: #{tpu_custom_call.1} parent=1 // pred_fallthru
      _
    // Predicated region
    $region14: #{tpu_custom_call.1} parent=1 // pred_check
      _
    $region15: #{tpu_custom_call.1} parent=1 // pred_check_branch
      %98 = sbr.rel (0) target = $region17
    $region16: #{tpu_custom_call.1} parent=1 // pred_region
      %100 = dma.done [#allocation4], 1792
    $region17: #{tpu_custom_call.1} parent=1 // pred_fallthru
      _
    %101 = vsyncpa [#allocation3], 1
    %102 = vsyncpa [#allocation4], 1

// kernel: forward.1
$region0: #{forward.1}
  #allocation0 [shape = 'u32[]', space=smem, size = 0x4, offset = 0x4, fixed_abs, tag = 'smem constant byte address 0x4 - core index']
  #allocation1 [shape = 'u32[72,128]{1,0:T(1,128)}', space=vmem, size = 0x9000, scoped, tag = 'internal scratch']
  %s0 = inlined_call_operand.vmem [shape: bf16[128,147], index: 0, kind: input, shape index: {}]
  %s1 = inlined_call_operand.vmem [shape: bf16[147,128], index: 1, kind: input, shape index: {}]
  %s2 = inlined_call_operand.vmem [shape: f32[1,128], index: 2, kind: input, shape index: {}]
  %s3 = inlined_call_operand.vmem [shape: bf16[56,128], index: 3, kind: input, shape index: {}]
  %s4 = inlined_call_operand.vmem [shape: f32[56,1], index: 4, kind: input, shape index: {}]
  %s5 = inlined_call_operand.vmem [shape: bf16[2,56], index: 5, kind: input, shape index: {}]
  %s6 = inlined_call_operand.vmem [shape: bf16[1152,128], index: 6, kind: input, shape index: {}]
  %s7 = inlined_call_operand.vmem [shape: f32[1,128], index: 7, kind: input, shape index: {}]
  %s8 = inlined_call_operand.vmem [shape: bf16[1152,256], index: 8, kind: input, shape index: {}]
  %s9 = inlined_call_operand.vmem [shape: f32[1,256], index: 9, kind: input, shape index: {}]
  %s10 = inlined_call_operand.vmem [shape: bf16[2304,512], index: 10, kind: input, shape index: {}]
  %s11 = inlined_call_operand.vmem [shape: f32[1,512], index: 11, kind: input, shape index: {}]
  %s12 = inlined_call_operand.vmem [shape: bf16[512,256], index: 12, kind: input, shape index: {}]
  %s13 = inlined_call_operand.vmem [shape: f32[1,256], index: 13, kind: input, shape index: {}]
  %s14 = inlined_call_operand.vmem [shape: bf16[256,128], index: 14, kind: input, shape index: {}]
  %s15 = inlined_call_operand.vmem [shape: f32[1,128], index: 15, kind: input, shape index: {}]
  %s16 = inlined_call_operand.hbm [shape: f32[2,128], index: 16, kind: output, shape index: {}]
  %s17 = sld [smem:[#allocation0]]
  $region74: #{forward.1} parent=0
    _
  %s19 = ssub.s32 1, %s17
  %s20 = scalar_select 0, %s19, %s17
  $region1: #{forward.1} parent=0
    #allocation2 [shape = 'u8[1024]{0}', space=vmem, size = 0x400, scoped, tag = 'output window, operand 0, single buffered']
    #allocation3 [shape = 's32[1]{0}', space=sflag, size = 0x4, scoped, tag = 'scoped memory for forward.1']
    %21 = vsyncpa [#allocation3], 0
    // Predicated region
    $region2: #{forward.1} parent=1 // pred_check
      _
    $region3: #{forward.1} parent=1 // pred_check_branch
      %23 = sbr.rel (0) target = $region5
    $region4: #{forward.1} parent=1 // pred_region
      _
    $region5: #{forward.1} parent=1 // pred_fallthru
      _
    // Predicated region
    $region6: #{forward.1} parent=1 // pred_check
      _
    $region7: #{forward.1} parent=1 // pred_check_branch
      %25 = sbr.rel (0) target = $region9
    $region8: #{forward.1} parent=1 // pred_region
      _
    $region9: #{forward.1} parent=1 // pred_fallthru
      _
    // Predicated region
    $region10: #{forward.1} parent=1 // pred_check
      _
    $region11: #{forward.1} parent=1 // pred_check_branch
      %27 = sbr.rel (0) target = $region13
    $region12: #{forward.1} parent=1 // pred_region
      _
    $region13: #{forward.1} parent=1 // pred_fallthru
      _
    // Predicated region
    $region14: #{forward.1} parent=1 // pred_check
      _
    $region15: #{forward.1} parent=1 // pred_check_branch
      %29 = sbr.rel (0) target = $region17
    $region16: #{forward.1} parent=1 // pred_region
      _
    $region17: #{forward.1} parent=1 // pred_fallthru
      _
    // Predicated region
    $region18: #{forward.1} parent=1 // pred_check
      _
    $region19: #{forward.1} parent=1 // pred_check_branch
      %31 = sbr.rel (0) target = $region21
    $region20: #{forward.1} parent=1 // pred_region
      _
    $region21: #{forward.1} parent=1 // pred_fallthru
      _
    // Predicated region
    $region22: #{forward.1} parent=1 // pred_check
      _
    $region23: #{forward.1} parent=1 // pred_check_branch
      %33 = sbr.rel (0) target = $region25
    $region24: #{forward.1} parent=1 // pred_region
      _
    $region25: #{forward.1} parent=1 // pred_fallthru
      _
    // Predicated region
    $region26: #{forward.1} parent=1 // pred_check
      _
    $region27: #{forward.1} parent=1 // pred_check_branch
      %35 = sbr.rel (0) target = $region29
    $region28: #{forward.1} parent=1 // pred_region
      _
    $region29: #{forward.1} parent=1 // pred_fallthru
      _
    // Predicated region
    $region30: #{forward.1} parent=1 // pred_check
      _
    $region31: #{forward.1} parent=1 // pred_check_branch
      %37 = sbr.rel (0) target = $region33
    $region32: #{forward.1} parent=1 // pred_region
      _
    $region33: #{forward.1} parent=1 // pred_fallthru
      _
    // Predicated region
    $region34: #{forward.1} parent=1 // pred_check
      _
    $region35: #{forward.1} parent=1 // pred_check_branch
      %39 = sbr.rel (0) target = $region37
    $region36: #{forward.1} parent=1 // pred_region
      _
    $region37: #{forward.1} parent=1 // pred_fallthru
      _
    // Predicated region
    $region38: #{forward.1} parent=1 // pred_check
      _
    $region39: #{forward.1} parent=1 // pred_check_branch
      %41 = sbr.rel (0) target = $region41
    $region40: #{forward.1} parent=1 // pred_region
      _
    $region41: #{forward.1} parent=1 // pred_fallthru
      _
    // Predicated region
    $region42: #{forward.1} parent=1 // pred_check
      _
    $region43: #{forward.1} parent=1 // pred_check_branch
      %43 = sbr.rel (0) target = $region45
    $region44: #{forward.1} parent=1 // pred_region
      _
    $region45: #{forward.1} parent=1 // pred_fallthru
      _
    // Predicated region
    $region46: #{forward.1} parent=1 // pred_check
      _
    $region47: #{forward.1} parent=1 // pred_check_branch
      %45 = sbr.rel (0) target = $region49
    $region48: #{forward.1} parent=1 // pred_region
      _
    $region49: #{forward.1} parent=1 // pred_fallthru
      _
    // Predicated region
    $region50: #{forward.1} parent=1 // pred_check
      _
    $region51: #{forward.1} parent=1 // pred_check_branch
      %47 = sbr.rel (0) target = $region53
    $region52: #{forward.1} parent=1 // pred_region
      _
    $region53: #{forward.1} parent=1 // pred_fallthru
      _
    // Predicated region
    $region54: #{forward.1} parent=1 // pred_check
      _
    $region55: #{forward.1} parent=1 // pred_check_branch
      %49 = sbr.rel (0) target = $region57
    $region56: #{forward.1} parent=1 // pred_region
      _
    $region57: #{forward.1} parent=1 // pred_fallthru
      _
    // Predicated region
    $region58: #{forward.1} parent=1 // pred_check
      _
    $region59: #{forward.1} parent=1 // pred_check_branch
      %51 = sbr.rel (0) target = $region61
    $region60: #{forward.1} parent=1 // pred_region
      _
    $region61: #{forward.1} parent=1 // pred_fallthru
      _
    // Predicated region
    $region62: #{forward.1} parent=1 // pred_check
      _
    $region63: #{forward.1} parent=1 // pred_check_branch
      %53 = sbr.rel (0) target = $region65
    $region64: #{forward.1} parent=1 // pred_region
      _
    $region65: #{forward.1} parent=1 // pred_fallthru
      _
    %v55 = vld [vmem:[%s0] sm:$0xff]
    %v56 = vld [vmem:[%s0 + $0x8] sm:$0xff]
    %v57 = vld [vmem:[%s0 + $0x10] sm:$0xff]
    %v58 = vld [vmem:[%s0 + $0x18] sm:$0xff]
    %v59 = vld [vmem:[%s0 + $0x20] sm:$0xff]
    %v60 = vld [vmem:[%s0 + $0x28] sm:$0xff]
    %v61 = vld [vmem:[%s0 + $0x30] sm:$0xff]
    %v62 = vld [vmem:[%s0 + $0x38] sm:$0xff]
    %v63 = vld [vmem:[%s0 + $0x40] sm:$0xff]
    %v64 = vld [vmem:[%s0 + $0x48] sm:$0xff]
    %v65 = vld [vmem:[%s0 + $0x50] sm:$0xff]
    %v66 = vld [vmem:[%s0 + $0x58] sm:$0xff]
    %v67 = vld [vmem:[%s0 + $0x60] sm:$0xff]
    %v68 = vld [vmem:[%s0 + $0x68] sm:$0xff]
    %v69 = vld [vmem:[%s0 + $0x70] sm:$0xff]
    %v70 = vld [vmem:[%s0 + $0x78] sm:$0xff]
    %v71 = vld [vmem:[%s1] sm:$0xf]
    %v72 = vld [vmem:[%s1 + $0x4] sm:$0xf]
    %v73 = vld [vmem:[%s1 + $0x8] sm:$0xf]
    %v74 = vld [vmem:[%s1 + $0xc] sm:$0xf]
    %v75 = vld [vmem:[%s1 + $0x10] sm:$0xf]
    %v76 = vld [vmem:[%s1 + $0x14] sm:$0xf]
    %v77 = vld [vmem:[%s1 + $0x18] sm:$0xf]
    %v78 = vld [vmem:[%s1 + $0x1c] sm:$0xf]
    %v79 = vld [vmem:[%s1 + $0x20] sm:$0xf]
    %v80 = vld [vmem:[%s1 + $0x24] sm:$0xf]
    %v81 = vld [vmem:[%s1 + $0x28] sm:$0xf]
    %v82 = vld [vmem:[%s1 + $0x2c] sm:$0xf]
    %v83 = vld [vmem:[%s1 + $0x30] sm:$0xf]
    %v84 = vld [vmem:[%s1 + $0x34] sm:$0xf]
    %v85 = vld [vmem:[%s1 + $0x38] sm:$0xf]
    %v86 = vld [vmem:[%s1 + $0x3c] sm:$0xf]
    %v87 = vld [vmem:[%s1 + $0x40] sm:$0xf]
    %v88 = vld [vmem:[%s1 + $0x44] sm:$0xf]
    %v89 = vld [vmem:[%s1 + $0x48] sm:$0x3]
    %v90 = vld [vmem:[%s2] sm:$0x1]
    %v92 = vperm.slane %v90, 0
    %v110 = vunpack.c.l.b16 %v55
    %v111 = vunpack.c.h.b16 %v55
    %v112 = vunpack.c.l.b16 %v56
    %v113 = vunpack.c.h.b16 %v56
    %v114 = vunpack.c.l.b16 %v57
    %v115 = vunpack.c.h.b16 %v57
    %v116 = vunpack.c.l.b16 %v58
    %v117 = vunpack.c.h.b16 %v58
    %v118 = vunpack.c.l.b16 %v59
    %v119 = vunpack.c.h.b16 %v59
    %v120 = vunpack.c.l.b16 %v60
    %v121 = vunpack.c.h.b16 %v60
    %v122 = vunpack.c.l.b16 %v61
    %v123 = vunpack.c.h.b16 %v61
    %v124 = vunpack.c.l.b16 %v62
    %v125 = vunpack.c.h.b16 %v62
    %v126 = vunpack.c.l.b16 %v63
    %v127 = vunpack.c.h.b16 %v63
    %v128 = vunpack.c.l.b16 %v64
    %v129 = vunpack.c.h.b16 %v64
    %v130 = vunpack.c.l.b16 %v65
    %v131 = vunpack.c.h.b16 %v65
    %v132 = vunpack.c.l.b16 %v66
    %v133 = vunpack.c.h.b16 %v66
    %v134 = vunpack.c.l.b16 %v67
    %v135 = vunpack.c.h.b16 %v67
    %v136 = vunpack.c.l.b16 %v68
    %v137 = vunpack.c.h.b16 %v68
    %v138 = vunpack.c.l.b16 %v69
    %v139 = vunpack.c.h.b16 %v69
    %v140 = vunpack.c.l.b16 %v70
    %v141 = vunpack.c.h.b16 %v70
    %v142 = vpack.c.b16 %v112, %v110
    %v143 = vpack.c.b16 %v113, %v111
    %v144 = vpack.c.b16 %v116, %v114
    %v145 = vpack.c.b16 %v117, %v115
    %v146 = vpack.c.b16 %v120, %v118
    %v147 = vpack.c.b16 %v121, %v119
    %v148 = vpack.c.b16 %v124, %v122
    %v149 = vpack.c.b16 %v125, %v123
    %v150 = vpack.c.b16 %v128, %v126
    %v151 = vpack.c.b16 %v129, %v127
    %v152 = vpack.c.b16 %v132, %v130
    %v153 = vpack.c.b16 %v133, %v131
    %v154 = vpack.c.b16 %v136, %v134
    %v155 = vpack.c.b16 %v137, %v135
    %v156 = vpack.c.b16 %v140, %v138
    %v157 = vpack.c.b16 %v141, %v139
    %v185 = vunpack.c.l.b16 %v71
    %v186 = vunpack.c.l.b16 %v72
    %v187 = vunpack.c.l.b16 %v73
    %v188 = vunpack.c.l.b16 %v74
    %v189 = vunpack.c.l.b16 %v75
    %v190 = vunpack.c.l.b16 %v76
    %v191 = vunpack.c.l.b16 %v77
    %v192 = vunpack.c.l.b16 %v78
    %v193 = vunpack.c.l.b16 %v79
    %v194 = vunpack.c.l.b16 %v80
    %v195 = vunpack.c.l.b16 %v81
    %v196 = vunpack.c.l.b16 %v82
    %v197 = vunpack.c.l.b16 %v83
    %v198 = vunpack.c.l.b16 %v84
    %v199 = vunpack.c.l.b16 %v85
    %v200 = vunpack.c.l.b16 %v86
    %v201 = vunpack.c.l.b16 %v87
    %v202 = vunpack.c.l.b16 %v88
    %v203 = vunpack.c.l.b16 %v89
    %v204 = vpack.c.b16 %v186, %v185
    %v205 = vpack.c.b16 %v188, %v187
    %v206 = vpack.c.b16 %v190, %v189
    %v207 = vpack.c.b16 %v192, %v191
    %v208 = vpack.c.b16 %v194, %v193
    %v209 = vpack.c.b16 %v196, %v195
    %v210 = vpack.c.b16 %v198, %v197
    %v211 = vpack.c.b16 %v200, %v199
    %v212 = vpack.c.b16 %v202, %v201
    %v213 = vpack.c.b16 %v203, %v203
    %vm223 = vcmask 154624
    %v225 = vsel %vm223, %v143, 0
    %v228 = vsel %vm223, %v145, 0
    %v231 = vsel %vm223, %v147, 0
    %v234 = vsel %vm223, %v149, 0
    %v237 = vsel %vm223, %v151, 0
    %v240 = vsel %vm223, %v153, 0
    %v243 = vsel %vm223, %v155, 0
    %v246 = vsel %vm223, %v157, 0
    %vm248 = vcmask 1040384
    %vm249 = vcmask 1041408
    %v250 = vsel %vm248, 4294967295, 65535
    %v251 = vsel %vm249, %v250, 0
    %v253 = vand.u32 %v213, %v251
    %255 = vmatpush.bf16.msra.mxu0 %v211
    %256 = vmatpush.bf16.msra.mxu0 %v210
    %257 = vmatpush.bf16.msra.mxu0 %v209
    %258 = vmatpush.bf16.msra.mxu0 %v208
    %259 = vmatpush.bf16.msra.mxu0 %v207
    %260 = vmatpush.bf16.msra.mxu0 %v206
    %261 = vmatpush.bf16.msra.mxu0 %v205
    %262 = vmatpush.bf16.msra.mxu0 %v204
    %263 = vmatmul.bf16.gmra.mxu0 %v142
    %v264 = vpop.f32.mrf.mxu0
    %v265 = vadd.f32 %v92, %v264
    %v266 = vpop.f32.mrf.mxu0
    %v267 = vadd.f32 %v92, %v266
    %268 = vmatmul.bf16.gmra.mxu0 %v144
    %v269 = vpop.f32.mrf.mxu0
    %v270 = vadd.f32 %v92, %v269
    %v271 = vpop.f32.mrf.mxu0
    %v272 = vadd.f32 %v92, %v271
    %273 = vmatmul.bf16.gmra.mxu0 %v146
    %v274 = vpop.f32.mrf.mxu0
    %v275 = vadd.f32 %v92, %v274
    %v276 = vpop.f32.mrf.mxu0
    %v277 = vadd.f32 %v92, %v276
    %278 = vmatmul.bf16.gmra.mxu0 %v148
    %v279 = vpop.f32.mrf.mxu0
    %v280 = vadd.f32 %v92, %v279
    %v281 = vpop.f32.mrf.mxu0
    %v282 = vadd.f32 %v92, %v281
    %283 = vmatmul.bf16.gmra.mxu0 %v150
    %v284 = vpop.f32.mrf.mxu0
    %v285 = vadd.f32 %v92, %v284
    %v286 = vpop.f32.mrf.mxu0
    %v287 = vadd.f32 %v92, %v286
    %288 = vmatmul.bf16.gmra.mxu0 %v152
    %v289 = vpop.f32.mrf.mxu0
    %v290 = vadd.f32 %v92, %v289
    %v291 = vpop.f32.mrf.mxu0
    %v292 = vadd.f32 %v92, %v291
    %293 = vmatmul.bf16.gmra.mxu0 %v154
    %v294 = vpop.f32.mrf.mxu0
    %v295 = vadd.f32 %v92, %v294
    %v296 = vpop.f32.mrf.mxu0
    %v297 = vadd.f32 %v92, %v296
    %298 = vmatmul.bf16.gmra.mxu0 %v156
    %v299 = vpop.f32.mrf.mxu0
    %v300 = vadd.f32 %v92, %v299
    %v301 = vpop.f32.mrf.mxu0
    %v302 = vadd.f32 %v92, %v301
    %303 = vdwg.mxu0
    %304 = vmatpush.bf16.msra.mxu0 0
    %305 = vmatpush.bf16.msra.mxu0 0
    %306 = vmatpush.bf16.msra.mxu0 0
    %307 = vmatpush.bf16.msra.mxu0 0
    %308 = vmatpush.bf16.msra.mxu0 0
    %309 = vmatpush.bf16.msra.mxu0 0
    %310 = vmatpush.bf16.msra.mxu0 %v253
    %311 = vmatpush.bf16.msra.mxu0 %v212
    %312 = vmatmul.bf16.gmra.mxu0 %v225
    %v313 = vpop.f32.mrf.mxu0
    %v314 = vadd.f32 %v265, %v313
    %v315 = vpop.f32.mrf.mxu0
    %v316 = vadd.f32 %v267, %v315
    %317 = vmatmul.bf16.gmra.mxu0 %v228
    %v318 = vpop.f32.mrf.mxu0
    %v319 = vadd.f32 %v270, %v318
    %v320 = vpop.f32.mrf.mxu0
    %v321 = vadd.f32 %v272, %v320
    %322 = vmatmul.bf16.gmra.mxu0 %v231
    %v323 = vpop.f32.mrf.mxu0
    %v324 = vadd.f32 %v275, %v323
    %v325 = vpop.f32.mrf.mxu0
    %v326 = vadd.f32 %v277, %v325
    %327 = vmatmul.bf16.gmra.mxu0 %v234
    %v328 = vpop.f32.mrf.mxu0
    %v329 = vadd.f32 %v280, %v328
    %v330 = vpop.f32.mrf.mxu0
    %v331 = vadd.f32 %v282, %v330
    %332 = vmatmul.bf16.gmra.mxu0 %v237
    %v333 = vpop.f32.mrf.mxu0
    %v334 = vadd.f32 %v285, %v333
    %v335 = vpop.f32.mrf.mxu0
    %v336 = vadd.f32 %v287, %v335
    %337 = vmatmul.bf16.gmra.mxu0 %v240
    %v338 = vpop.f32.mrf.mxu0
    %v339 = vadd.f32 %v290, %v338
    %v340 = vpop.f32.mrf.mxu0
    %v341 = vadd.f32 %v292, %v340
    %342 = vmatmul.bf16.gmra.mxu0 %v243
    %v343 = vpop.f32.mrf.mxu0
    %v344 = vadd.f32 %v295, %v343
    %v345 = vpop.f32.mrf.mxu0
    %v346 = vadd.f32 %v297, %v345
    %347 = vmatmul.bf16.gmra.mxu0 %v246
    %v348 = vpop.f32.mrf.mxu0
    %v349 = vadd.f32 %v300, %v348
    %v350 = vpop.f32.mrf.mxu0
    %v351 = vadd.f32 %v302, %v350
    %352 = vdwg.mxu0
    %v353 = vmax.f32 %v314, 0.0
    %v354 = vmax.f32 %v316, 0.0
    %v355 = vmax.f32 %v319, 0.0
    %v356 = vmax.f32 %v321, 0.0
    %v357 = vmax.f32 %v324, 0.0
    %v358 = vmax.f32 %v326, 0.0
    %v359 = vmax.f32 %v329, 0.0
    %v360 = vmax.f32 %v331, 0.0
    %v361 = vmax.f32 %v334, 0.0
    %v362 = vmax.f32 %v336, 0.0
    %v363 = vmax.f32 %v339, 0.0
    %v364 = vmax.f32 %v341, 0.0
    %v365 = vmax.f32 %v344, 0.0
    %v366 = vmax.f32 %v346, 0.0
    %v367 = vmax.f32 %v349, 0.0
    %v368 = vmax.f32 %v351, 0.0
    %vm386 = vcmask 1046528
    %v387 = vrot.slane %v353, 1
    %v388 = vrot.slane %v354, 1
    %v389 = vsel %vm386, %v387, %v388
    %v390 = vrot.slane %v355, 1
    %v391 = vsel %vm386, %v388, %v390
    %v392 = vrot.slane %v356, 1
    %v393 = vsel %vm386, %v390, %v392
    %v394 = vrot.slane %v357, 1
    %v395 = vsel %vm386, %v392, %v394
    %v396 = vrot.slane %v358, 1
    %v397 = vsel %vm386, %v394, %v396
    %v398 = vrot.slane %v359, 1
    %v399 = vsel %vm386, %v396, %v398
    %v400 = vrot.slane %v360, 1
    %v401 = vsel %vm386, %v398, %v400
    %v402 = vrot.slane %v361, 1
    %v403 = vsel %vm386, %v400, %v402
    %v404 = vrot.slane %v362, 1
    %v405 = vsel %vm386, %v402, %v404
    %v406 = vrot.slane %v363, 1
    %v407 = vsel %vm386, %v404, %v406
    %v408 = vrot.slane %v364, 1
    %v409 = vsel %vm386, %v406, %v408
    %v410 = vrot.slane %v365, 1
    %v411 = vsel %vm386, %v408, %v410
    %v412 = vrot.slane %v366, 1
    %v413 = vsel %vm386, %v410, %v412
    %v414 = vrot.slane %v367, 1
    %v415 = vsel %vm386, %v412, %v414
    %v416 = vrot.slane %v368, 1
    %v417 = vsel %vm386, %v414, %v416
    %v418 = vrot.slane 0.0, 1
    %v419 = vsel %vm386, %v416, %v418
    %v436 = vmax.f32 %v353, %v389
    %v437 = vmax.f32 %v354, %v391
    %v438 = vmax.f32 %v355, %v393
    %v439 = vmax.f32 %v356, %v395
    %v440 = vmax.f32 %v357, %v397
    %v441 = vmax.f32 %v358, %v399
    %v442 = vmax.f32 %v359, %v401
    %v443 = vmax.f32 %v360, %v403
    %v444 = vmax.f32 %v361, %v405
    %v445 = vmax.f32 %v362, %v407
    %v446 = vmax.f32 %v363, %v409
    %v447 = vmax.f32 %v364, %v411
    %v448 = vmax.f32 %v365, %v413
    %v449 = vmax.f32 %v366, %v415
    %v450 = vmax.f32 %v367, %v417
    %v451 = vmax.f32 %v368, %v419
    %vm452 = vcmask 1045504
    %v453 = vrot.slane %v353, 2
    %v454 = vrot.slane %v354, 2
    %v455 = vsel %vm452, %v453, %v454
    %v456 = vrot.slane %v355, 2
    %v457 = vsel %vm452, %v454, %v456
    %v458 = vrot.slane %v356, 2
    %v459 = vsel %vm452, %v456, %v458
    %v460 = vrot.slane %v357, 2
    %v461 = vsel %vm452, %v458, %v460
    %v462 = vrot.slane %v358, 2
    %v463 = vsel %vm452, %v460, %v462
    %v464 = vrot.slane %v359, 2
    %v465 = vsel %vm452, %v462, %v464
    %v466 = vrot.slane %v360, 2
    %v467 = vsel %vm452, %v464, %v466
    %v468 = vrot.slane %v361, 2
    %v469 = vsel %vm452, %v466, %v468
    %v470 = vrot.slane %v362, 2
    %v471 = vsel %vm452, %v468, %v470
    %v472 = vrot.slane %v363, 2
    %v473 = vsel %vm452, %v470, %v472
    %v474 = vrot.slane %v364, 2
    %v475 = vsel %vm452, %v472, %v474
    %v476 = vrot.slane %v365, 2
    %v477 = vsel %vm452, %v474, %v476
    %v478 = vrot.slane %v366, 2
    %v479 = vsel %vm452, %v476, %v478
    %v480 = vrot.slane %v367, 2
    %v481 = vsel %vm452, %v478, %v480
    %v482 = vrot.slane %v368, 2
    %v483 = vsel %vm452, %v480, %v482
    %v484 = vrot.slane 0.0, 2
    %v485 = vsel %vm452, %v482, %v484
    %v502 = vmax.f32 %v436, %v455
    %v503 = vmax.f32 %v437, %v457
    %v504 = vmax.f32 %v438, %v459
    %v505 = vmax.f32 %v439, %v461
    %v506 = vmax.f32 %v440, %v463
    %v507 = vmax.f32 %v441, %v465
    %v508 = vmax.f32 %v442, %v467
    %v509 = vmax.f32 %v443, %v469
    %v510 = vmax.f32 %v444, %v471
    %v511 = vmax.f32 %v445, %v473
    %v512 = vmax.f32 %v446, %v475
    %v513 = vmax.f32 %v447, %v477
    %v514 = vmax.f32 %v448, %v479
    %v515 = vmax.f32 %v449, %v481
    %v516 = vmax.f32 %v450, %v483
    %v517 = vmax.f32 %v451, %v485
    %v518 = vmax.f32 %v502, %v354
    %v519 = vmax.f32 %v503, %v355
    %v520 = vmax.f32 %v504, %v356
    %v521 = vmax.f32 %v505, %v357
    %v522 = vmax.f32 %v506, %v358
    %v523 = vmax.f32 %v507, %v359
    %v524 = vmax.f32 %v508, %v360
    %v525 = vmax.f32 %v509, %v361
    %v526 = vmax.f32 %v510, %v362
    %v527 = vmax.f32 %v511, %v363
    %v528 = vmax.f32 %v512, %v364
    %v529 = vmax.f32 %v513, %v365
    %v530 = vmax.f32 %v514, %v366
    %v531 = vmax.f32 %v515, %v367
    %v532 = vmax.f32 %v516, %v368
    %v533 = vmax.f32 %v517, 0.0
    %v534 = vsel %vm386, %v418, %v418
    %v536 = vmax.f32 %v518, %v391
    %v537 = vmax.f32 %v519, %v393
    %v538 = vmax.f32 %v520, %v395
    %v539 = vmax.f32 %v521, %v397
    %v540 = vmax.f32 %v522, %v399
    %v541 = vmax.f32 %v523, %v401
    %v542 = vmax.f32 %v524, %v403
    %v543 = vmax.f32 %v525, %v405
    %v544 = vmax.f32 %v526, %v407
    %v545 = vmax.f32 %v527, %v409
    %v546 = vmax.f32 %v528, %v411
    %v547 = vmax.f32 %v529, %v413
    %v548 = vmax.f32 %v530, %v415
    %v549 = vmax.f32 %v531, %v417
    %v550 = vmax.f32 %v532, %v419
    %v551 = vmax.f32 %v533, %v534
    %v552 = vsel %vm452, %v484, %v484
    %v554 = vmax.f32 %v536, %v457
    %v555 = vmax.f32 %v537, %v459
    %v556 = vmax.f32 %v538, %v461
    %v557 = vmax.f32 %v539, %v463
    %v558 = vmax.f32 %v540, %v465
    %v559 = vmax.f32 %v541, %v467
    %v560 = vmax.f32 %v542, %v469
    %v561 = vmax.f32 %v543, %v471
    %v562 = vmax.f32 %v544, %v473
    %v563 = vmax.f32 %v545, %v475
    %v564 = vmax.f32 %v546, %v477
    %v565 = vmax.f32 %v547, %v479
    %v566 = vmax.f32 %v548, %v481
    %v567 = vmax.f32 %v549, %v483
    %v568 = vmax.f32 %v550, %v485
    %v569 = vmax.f32 %v551, %v552
    %v570 = vmax.f32 %v554, %v355
    %v571 = vmax.f32 %v555, %v356
    %v572 = vmax.f32 %v556, %v357
    %v573 = vmax.f32 %v557, %v358
    %v574 = vmax.f32 %v558, %v359
    %v575 = vmax.f32 %v559, %v360
    %v576 = vmax.f32 %v560, %v361
    %v577 = vmax.f32 %v561, %v362
    %v578 = vmax.f32 %v562, %v363
    %v579 = vmax.f32 %v563, %v364
    %v580 = vmax.f32 %v564, %v365
    %v581 = vmax.f32 %v565, %v366
    %v582 = vmax.f32 %v566, %v367
    %v583 = vmax.f32 %v567, %v368
    %v584 = vmax.f32 %v568, 0.0
    %v585 = vmax.f32 %v569, 0.0
    %v586 = vmax.f32 %v570, %v393
    %v587 = vmax.f32 %v571, %v395
    %v588 = vmax.f32 %v572, %v397
    %v589 = vmax.f32 %v573, %v399
    %v590 = vmax.f32 %v574, %v401
    %v591 = vmax.f32 %v575, %v403
    %v592 = vmax.f32 %v576, %v405
    %v593 = vmax.f32 %v577, %v407
    %v594 = vmax.f32 %v578, %v409
    %v595 = vmax.f32 %v579, %v411
    %v596 = vmax.f32 %v580, %v413
    %v597 = vmax.f32 %v581, %v415
    %v598 = vmax.f32 %v582, %v417
    %v599 = vmax.f32 %v583, %v419
    %v600 = vmax.f32 %v584, %v534
    %v601 = vmax.f32 %v585, %v534
    %v602 = vmax.f32 %v586, %v459
    %v603 = vmax.f32 %v587, %v461
    %v604 = vmax.f32 %v588, %v463
    %v605 = vmax.f32 %v589, %v465
    %v606 = vmax.f32 %v590, %v467
    %v607 = vmax.f32 %v591, %v469
    %v608 = vmax.f32 %v592, %v471
    %v609 = vmax.f32 %v593, %v473
    %v610 = vmax.f32 %v594, %v475
    %v611 = vmax.f32 %v595, %v477
    %v612 = vmax.f32 %v596, %v479
    %v613 = vmax.f32 %v597, %v481
    %v614 = vmax.f32 %v598, %v483
    %v615 = vmax.f32 %v599, %v485
    %v616 = vmax.f32 %v600, %v552
    %v617 = vmax.f32 %v601, %v552
    %v618 = vld [vmem:[%s3] sm:$0xf]
    %v619 = vld [vmem:[%s3 + $0x4] sm:$0xf]
    %v620 = vld [vmem:[%s3 + $0x8] sm:$0xf]
    %v621 = vld [vmem:[%s3 + $0xc] sm:$0xf]
    %v622 = vld [vmem:[%s3 + $0x10] sm:$0xf]
    %v623 = vld [vmem:[%s3 + $0x14] sm:$0xf]
    %v624 = vld [vmem:[%s3 + $0x18] sm:$0xf]
    %v625 = vpack.c.bf16 %v603, %v602
    %v626 = vpack.c.bf16 %v605, %v604
    %v627 = vpack.c.bf16 %v607, %v606
    %v628 = vpack.c.bf16 %v609, %v608
    %v629 = vpack.c.bf16 %v611, %v610
    %v630 = vpack.c.bf16 %v613, %v612
    %v631 = vpack.c.bf16 %v615, %v614
    %v632 = vpack.c.bf16 %v617, %v616
    %v640 = vunpack.c.l.b16 %v618
    %v641 = vunpack.c.l.b16 %v619
    %v642 = vunpack.c.l.b16 %v620
    %v643 = vunpack.c.l.b16 %v621
    %v644 = vunpack.c.l.b16 %v622
    %v645 = vunpack.c.l.b16 %v623
    %v646 = vunpack.c.l.b16 %v624
    %v647 = vpack.c.b16 %v641, %v640
    %v648 = vpack.c.b16 %v643, %v642
    %v649 = vpack.c.b16 %v645, %v644
    %v650 = vpack.c.b16 %v646, %v646
    %655 = vmatpush.bf16.msra.mxu0 %v632
    %656 = vmatpush.bf16.msra.mxu0 %v631
    %657 = vmatpush.bf16.msra.mxu0 %v630
    %658 = vmatpush.bf16.msra.mxu0 %v629
    %659 = vmatpush.bf16.msra.mxu0 %v628
    %660 = vmatpush.bf16.msra.mxu0 %v627
    %661 = vmatpush.bf16.msra.mxu0 %v626
    %662 = vmatpush.bf16.msra.mxu0 %v625
    %663 = vmatmul.bf16.gmra.mxu0 %v647
    %v664 = vpop.f32.mrf.mxu0
    %v665 = vadd.f32 0.0, %v664
    %v666 = vpop.f32.mrf.mxu0
    %v667 = vadd.f32 0.0, %v666
    %668 = vmatmul.bf16.gmra.mxu0 %v648
    %v669 = vpop.f32.mrf.mxu0
    %v670 = vadd.f32 0.0, %v669
    %v671 = vpop.f32.mrf.mxu0
    %v672 = vadd.f32 0.0, %v671
    %673 = vmatmul.bf16.gmra.mxu0 %v649
    %v674 = vpop.f32.mrf.mxu0
    %v675 = vadd.f32 0.0, %v674
    %v676 = vpop.f32.mrf.mxu0
    %v677 = vadd.f32 0.0, %v676
    %678 = vmatmul.bf16.gmra.mxu0 %v650
    %v679 = vpop.f32.mrf.mxu0
    %v680 = vadd.f32 0.0, %v679
    %v681 = vpop.f32.mrf.mxu0
    %682 = vdwg.mxu0
    %v683 = vld [vmem:[%s4] sm:$0xff]
    %v684 = vld [vmem:[%s4 + $0x8] sm:$0xff]
    %v685 = vld [vmem:[%s4 + $0x10] sm:$0xff]
    %v686 = vld [vmem:[%s4 + $0x18] sm:$0xff]
    %v687 = vld [vmem:[%s4 + $0x20] sm:$0xff]
    %v688 = vld [vmem:[%s4 + $0x28] sm:$0xff]
    %v689 = vld [vmem:[%s4 + $0x30] sm:$0xff]
    %v697 = vrot.slane %v665, 1
    %v698 = vsel %vm386, %v418, %v697
    %v699 = vrot.slane %v667, 1
    %v700 = vsel %vm386, %v697, %v699
    %v701 = vrot.slane %v670, 1
    %v702 = vsel %vm386, %v699, %v701
    %v703 = vrot.slane %v672, 1
    %v704 = vsel %vm386, %v701, %v703
    %v705 = vrot.slane %v675, 1
    %v706 = vsel %vm386, %v703, %v705
    %v707 = vrot.slane %v677, 1
    %v708 = vsel %vm386, %v705, %v707
    %v709 = vrot.slane %v680, 1
    %v710 = vsel %vm386, %v707, %v709
    %v719 = vrot.slane %v665, 2
    %v720 = vsel %vm452, %v484, %v719
    %v721 = vrot.slane %v667, 2
    %v722 = vsel %vm452, %v719, %v721
    %v723 = vrot.slane %v670, 2
    %v724 = vsel %vm452, %v721, %v723
    %v725 = vrot.slane %v672, 2
    %v726 = vsel %vm452, %v723, %v725
    %v727 = vrot.slane %v675, 2
    %v728 = vsel %vm452, %v725, %v727
    %v729 = vrot.slane %v677, 2
    %v730 = vsel %vm452, %v727, %v729
    %v731 = vrot.slane %v680, 2
    %v732 = vsel %vm452, %v729, %v731
    %vm741 = vcmask 1042432
    %v742 = vrot.slane 0.0, 5
    %v743 = vrot.slane %v665, 5
    %v744 = vsel %vm741, %v742, %v743
    %v745 = vrot.slane %v667, 5
    %v746 = vsel %vm741, %v743, %v745
    %v747 = vrot.slane %v670, 5
    %v748 = vsel %vm741, %v745, %v747
    %v749 = vrot.slane %v672, 5
    %v750 = vsel %vm741, %v747, %v749
    %v751 = vrot.slane %v675, 5
    %v752 = vsel %vm741, %v749, %v751
    %v753 = vrot.slane %v677, 5
    %v754 = vsel %vm741, %v751, %v753
    %v755 = vrot.slane %v680, 5
    %v756 = vsel %vm741, %v753, %v755
    %v765 = vrot.slane %v665, 6
    %v766 = vrot.slane %v667, 6
    %v767 = vsel %vm249, %v765, %v766
    %v768 = vrot.slane %v670, 6
    %v769 = vsel %vm249, %v766, %v768
    %v770 = vrot.slane %v672, 6
    %v771 = vsel %vm249, %v768, %v770
    %v772 = vrot.slane %v675, 6
    %v773 = vsel %vm249, %v770, %v772
    %v774 = vrot.slane %v677, 6
    %v775 = vsel %vm249, %v772, %v774
    %v776 = vrot.slane %v680, 6
    %v777 = vsel %vm249, %v774, %v776
    %v786 = vrot.slane %v665, 7
    %v787 = vrot.slane %v667, 7
    %v788 = vsel %vm248, %v786, %v787
    %v789 = vrot.slane %v670, 7
    %v790 = vsel %vm248, %v787, %v789
    %v791 = vrot.slane %v672, 7
    %v792 = vsel %vm248, %v789, %v791
    %v793 = vrot.slane %v675, 7
    %v794 = vsel %vm248, %v791, %v793
    %v795 = vrot.slane %v677, 7
    %v796 = vsel %vm248, %v793, %v795
    %v797 = vrot.slane %v680, 7
    %v798 = vsel %vm248, %v795, %v797
    %v799 = vrot.slane 0.0, 7
    %v800 = vsel %vm248, %v797, %v799
    %v809 = vsel %vm452, %v731, %v484
    %vm812 = vcmask 1044480
    %v813 = vrot.slane %v665, 3
    %v814 = vrot.slane %v667, 3
    %v815 = vsel %vm812, %v813, %v814
    %v816 = vrot.slane %v670, 3
    %v817 = vsel %vm812, %v814, %v816
    %v818 = vrot.slane %v672, 3
    %v819 = vsel %vm812, %v816, %v818
    %v820 = vrot.slane %v675, 3
    %v821 = vsel %vm812, %v818, %v820
    %v822 = vrot.slane %v677, 3
    %v823 = vsel %vm812, %v820, %v822
    %v824 = vrot.slane %v680, 3
    %v825 = vsel %vm812, %v822, %v824
    %v826 = vrot.slane 0.0, 3
    %v827 = vsel %vm812, %v824, %v826
    %vm836 = vcmask 1043456
    %v837 = vrot.slane %v665, 4
    %v838 = vrot.slane %v667, 4
    %v839 = vsel %vm836, %v837, %v838
    %v840 = vrot.slane %v670, 4
    %v841 = vsel %vm836, %v838, %v840
    %v842 = vrot.slane %v672, 4
    %v843 = vsel %vm836, %v840, %v842
    %v844 = vrot.slane %v675, 4
    %v845 = vsel %vm836, %v842, %v844
    %v846 = vrot.slane %v677, 4
    %v847 = vsel %vm836, %v844, %v846
    %v848 = vrot.slane %v680, 4
    %v849 = vsel %vm836, %v846, %v848
    %v850 = vrot.slane 0.0, 4
    %v851 = vsel %vm836, %v848, %v850
    %v860 = vpack.c.bf16 %v665, 0.0
    %v861 = vpack.c.bf16 %v700, %v698
    %v862 = vpack.c.bf16 %v722, %v720
    %v863 = vpack.c.bf16 %v746, %v744
    %v864 = vpack.c.bf16 %v767, %v765
    %v865 = vpack.c.bf16 %v788, %v786
    %v866 = vpack.c.bf16 %v724, %v722
    %v867 = vpack.c.bf16 %v817, %v815
    %v868 = vpack.c.bf16 %v841, %v839
    %v869 = vpack.c.bf16 %v670, %v667
    %v870 = vpack.c.bf16 %v704, %v702
    %v871 = vpack.c.bf16 %v726, %v724
    %v872 = vpack.c.bf16 %v750, %v748
    %v873 = vpack.c.bf16 %v771, %v769
    %v874 = vpack.c.bf16 %v792, %v790
    %v875 = vpack.c.bf16 %v728, %v726
    %v876 = vpack.c.bf16 %v821, %v819
    %v877 = vpack.c.bf16 %v845, %v843
    %v878 = vpack.c.bf16 %v675, %v672
    %v879 = vpack.c.bf16 %v708, %v706
    %v880 = vpack.c.bf16 %v730, %v728
    %v881 = vpack.c.bf16 %v754, %v752
    %v882 = vpack.c.bf16 %v775, %v773
    %v883 = vpack.c.bf16 %v796, %v794
    %v884 = vpack.c.bf16 %v732, %v730
    %v885 = vpack.c.bf16 %v825, %v823
    %v886 = vpack.c.bf16 %v849, %v847
    %v887 = vpack.c.bf16 %v680, %v677
    %v888 = vpack.c.bf16 %v709, %v710
    %v889 = vpack.c.bf16 %v731, %v732
    %v890 = vpack.c.bf16 %v755, %v756
    %v891 = vpack.c.bf16 %v776, %v777
    %v892 = vpack.c.bf16 %v800, %v798
    %v893 = vpack.c.bf16 %v484, %v809
    %v894 = vpack.c.bf16 %v826, %v827
    %v895 = vpack.c.bf16 %v850, %v851
    %v896 = vld [vmem:[%s6] sm:$0xf]
    %v897 = vld [vmem:[%s6 + $0x4] sm:$0xf]
    %v898 = vld [vmem:[%s6 + $0x8] sm:$0xf]
    %v899 = vld [vmem:[%s6 + $0xc] sm:$0xf]
    %v900 = vld [vmem:[%s6 + $0x10] sm:$0xf]
    %v901 = vld [vmem:[%s6 + $0x14] sm:$0xf]
    %v902 = vld [vmem:[%s6 + $0x18] sm:$0xf]
    %v903 = vld [vmem:[%s6 + $0x1c] sm:$0xf]
    %v904 = vld [vmem:[%s6 + $0x20] sm:$0xf]
    %v905 = vld [vmem:[%s6 + $0x24] sm:$0xf]
    %v906 = vld [vmem:[%s6 + $0x28] sm:$0xf]
    %v907 = vld [vmem:[%s6 + $0x2c] sm:$0xf]
    %v908 = vld [vmem:[%s6 + $0x30] sm:$0xf]
    %v909 = vld [vmem:[%s6 + $0x34] sm:$0xf]
    %v910 = vld [vmem:[%s6 + $0x38] sm:$0xf]
    %v911 = vld [vmem:[%s6 + $0x3c] sm:$0xf]
    %v912 = vld [vmem:[%s6 + $0x40] sm:$0xf]
    %v913 = vld [vmem:[%s6 + $0x44] sm:$0xf]
    %v914 = vld [vmem:[%s6 + $0x48] sm:$0xf]
    %v915 = vld [vmem:[%s6 + $0x4c] sm:$0xf]
    %v916 = vld [vmem:[%s6 + $0x50] sm:$0xf]
    %v917 = vld [vmem:[%s6 + $0x54] sm:$0xf]
    %v918 = vld [vmem:[%s6 + $0x58] sm:$0xf]
    %v919 = vld [vmem:[%s6 + $0x5c] sm:$0xf]
    %v920 = vld [vmem:[%s6 + $0x60] sm:$0xf]
    %v921 = vld [vmem:[%s6 + $0x64] sm:$0xf]
    %v922 = vld [vmem:[%s6 + $0x68] sm:$0xf]
    %v923 = vld [vmem:[%s6 + $0x6c] sm:$0xf]
    %v924 = vld [vmem:[%s6 + $0x70] sm:$0xf]
    %v925 = vld [vmem:[%s6 + $0x74] sm:$0xf]
    %v926 = vld [vmem:[%s6 + $0x78] sm:$0xf]
    %v927 = vld [vmem:[%s6 + $0x7c] sm:$0xf]
    %v928 = vld [vmem:[%s6 + $0x80] sm:$0xf]
    %v929 = vld [vmem:[%s6 + $0x84] sm:$0xf]
    %v930 = vld [vmem:[%s6 + $0x88] sm:$0xf]
    %v931 = vld [vmem:[%s6 + $0x8c] sm:$0xf]
    %v932 = vld [vmem:[%s6 + $0x90] sm:$0xf]
    %v933 = vld [vmem:[%s6 + $0x94] sm:$0xf]
    %v934 = vld [vmem:[%s6 + $0x98] sm:$0xf]
    %v935 = vld [vmem:[%s6 + $0x9c] sm:$0xf]
    %v936 = vld [vmem:[%s6 + $0xa0] sm:$0xf]
    %v937 = vld [vmem:[%s6 + $0xa4] sm:$0xf]
    %v938 = vld [vmem:[%s6 + $0xa8] sm:$0xf]
    %v939 = vld [vmem:[%s6 + $0xac] sm:$0xf]
    %v940 = vld [vmem:[%s6 + $0xb0] sm:$0xf]
    %v941 = vld [vmem:[%s6 + $0xb4] sm:$0xf]
    %v942 = vld [vmem:[%s6 + $0xb8] sm:$0xf]
    %v943 = vld [vmem:[%s6 + $0xbc] sm:$0xf]
    %v944 = vld [vmem:[%s6 + $0xc0] sm:$0xf]
    %v945 = vld [vmem:[%s6 + $0xc4] sm:$0xf]
    %v946 = vld [vmem:[%s6 + $0xc8] sm:$0xf]
    %v947 = vld [vmem:[%s6 + $0xcc] sm:$0xf]
    %v948 = vld [vmem:[%s6 + $0xd0] sm:$0xf]
    %v949 = vld [vmem:[%s6 + $0xd4] sm:$0xf]
    %v950 = vld [vmem:[%s6 + $0xd8] sm:$0xf]
    %v951 = vld [vmem:[%s6 + $0xdc] sm:$0xf]
    %v952 = vld [vmem:[%s6 + $0xe0] sm:$0xf]
    %v953 = vld [vmem:[%s6 + $0xe4] sm:$0xf]
    %v954 = vld [vmem:[%s6 + $0xe8] sm:$0xf]
    %v955 = vld [vmem:[%s6 + $0xec] sm:$0xf]
    %v956 = vld [vmem:[%s6 + $0xf0] sm:$0xf]
    %v957 = vld [vmem:[%s6 + $0xf4] sm:$0xf]
    %v958 = vld [vmem:[%s6 + $0xf8] sm:$0xf]
    %v959 = vld [vmem:[%s6 + $0xfc] sm:$0xf]
    %v960 = vld [vmem:[%s6 + $0x100] sm:$0xf]
    %v961 = vld [vmem:[%s6 + $0x104] sm:$0xf]
    %v962 = vld [vmem:[%s6 + $0x108] sm:$0xf]
    %v963 = vld [vmem:[%s6 + $0x10c] sm:$0xf]
    %v964 = vld [vmem:[%s6 + $0x110] sm:$0xf]
    %v965 = vld [vmem:[%s6 + $0x114] sm:$0xf]
    %v966 = vld [vmem:[%s6 + $0x118] sm:$0xf]
    %v967 = vld [vmem:[%s6 + $0x11c] sm:$0xf]
    %v968 = vld [vmem:[%s6 + $0x120] sm:$0xf]
    %v969 = vld [vmem:[%s6 + $0x124] sm:$0xf]
    %v970 = vld [vmem:[%s6 + $0x128] sm:$0xf]
    %v971 = vld [vmem:[%s6 + $0x12c] sm:$0xf]
    %v972 = vld [vmem:[%s6 + $0x130] sm:$0xf]
    %v973 = vld [vmem:[%s6 + $0x134] sm:$0xf]
    %v974 = vld [vmem:[%s6 + $0x138] sm:$0xf]
    %v975 = vld [vmem:[%s6 + $0x13c] sm:$0xf]
    %v976 = vld [vmem:[%s6 + $0x140] sm:$0xf]
    %v977 = vld [vmem:[%s6 + $0x144] sm:$0xf]
    %v978 = vld [vmem:[%s6 + $0x148] sm:$0xf]
    %v979 = vld [vmem:[%s6 + $0x14c] sm:$0xf]
    %v980 = vld [vmem:[%s6 + $0x150] sm:$0xf]
    %v981 = vld [vmem:[%s6 + $0x154] sm:$0xf]
    %v982 = vld [vmem:[%s6 + $0x158] sm:$0xf]
    %v983 = vld [vmem:[%s6 + $0x15c] sm:$0xf]
    %v984 = vld [vmem:[%s6 + $0x160] sm:$0xf]
    %v985 = vld [vmem:[%s6 + $0x164] sm:$0xf]
    %v986 = vld [vmem:[%s6 + $0x168] sm:$0xf]
    %v987 = vld [vmem:[%s6 + $0x16c] sm:$0xf]
    %v988 = vld [vmem:[%s6 + $0x170] sm:$0xf]
    %v989 = vld [vmem:[%s6 + $0x174] sm:$0xf]
    %v990 = vld [vmem:[%s6 + $0x178] sm:$0xf]
    %v991 = vld [vmem:[%s6 + $0x17c] sm:$0xf]
    %v992 = vld [vmem:[%s6 + $0x180] sm:$0xf]
    %v993 = vld [vmem:[%s6 + $0x184] sm:$0xf]
    %v994 = vld [vmem:[%s6 + $0x188] sm:$0xf]
    %v995 = vld [vmem:[%s6 + $0x18c] sm:$0xf]
    %v996 = vld [vmem:[%s6 + $0x190] sm:$0xf]
    %v997 = vld [vmem:[%s6 + $0x194] sm:$0xf]
    %v998 = vld [vmem:[%s6 + $0x198] sm:$0xf]
    %v999 = vld [vmem:[%s6 + $0x19c] sm:$0xf]
    %v1000 = vld [vmem:[%s6 + $0x1a0] sm:$0xf]
    %v1001 = vld [vmem:[%s6 + $0x1a4] sm:$0xf]
    %v1002 = vld [vmem:[%s6 + $0x1a8] sm:$0xf]
    %v1003 = vld [vmem:[%s6 + $0x1ac] sm:$0xf]
    %v1004 = vld [vmem:[%s6 + $0x1b0] sm:$0xf]
    %v1005 = vld [vmem:[%s6 + $0x1b4] sm:$0xf]
    %v1006 = vld [vmem:[%s6 + $0x1b8] sm:$0xf]
    %v1007 = vld [vmem:[%s6 + $0x1bc] sm:$0xf]
    %v1008 = vld [vmem:[%s6 + $0x1c0] sm:$0xf]
    %v1009 = vld [vmem:[%s6 + $0x1c4] sm:$0xf]
    %v1010 = vld [vmem:[%s6 + $0x1c8] sm:$0xf]
    %v1011 = vld [vmem:[%s6 + $0x1cc] sm:$0xf]
    %v1012 = vld [vmem:[%s6 + $0x1d0] sm:$0xf]
    %v1013 = vld [vmem:[%s6 + $0x1d4] sm:$0xf]
    %v1014 = vld [vmem:[%s6 + $0x1d8] sm:$0xf]
    %v1015 = vld [vmem:[%s6 + $0x1dc] sm:$0xf]
    %v1016 = vld [vmem:[%s6 + $0x1e0] sm:$0xf]
    %v1017 = vld [vmem:[%s6 + $0x1e4] sm:$0xf]
    %v1018 = vld [vmem:[%s6 + $0x1e8] sm:$0xf]
    %v1019 = vld [vmem:[%s6 + $0x1ec] sm:$0xf]
    %v1020 = vld [vmem:[%s6 + $0x1f0] sm:$0xf]
    %v1021 = vld [vmem:[%s6 + $0x1f4] sm:$0xf]
    %v1022 = vld [vmem:[%s6 + $0x1f8] sm:$0xf]
    %v1023 = vld [vmem:[%s6 + $0x1fc] sm:$0xf]
    %v1024 = vld [vmem:[%s6 + $0x200] sm:$0xf]
    %v1025 = vld [vmem:[%s6 + $0x204] sm:$0xf]
    %v1026 = vld [vmem:[%s6 + $0x208] sm:$0xf]
    %v1027 = vld [vmem:[%s6 + $0x20c] sm:$0xf]
    %v1028 = vld [vmem:[%s6 + $0x210] sm:$0xf]
    %v1029 = vld [vmem:[%s6 + $0x214] sm:$0xf]
    %v1030 = vld [vmem:[%s6 + $0x218] sm:$0xf]
    %v1031 = vld [vmem:[%s6 + $0x21c] sm:$0xf]
    %v1032 = vld [vmem:[%s6 + $0x220] sm:$0xf]
    %v1033 = vld [vmem:[%s6 + $0x224] sm:$0xf]
    %v1034 = vld [vmem:[%s6 + $0x228] sm:$0xf]
    %v1035 = vld [vmem:[%s6 + $0x22c] sm:$0xf]
    %v1036 = vld [vmem:[%s6 + $0x230] sm:$0xf]
    %v1037 = vld [vmem:[%s6 + $0x234] sm:$0xf]
    %v1038 = vld [vmem:[%s6 + $0x238] sm:$0xf]
    %v1039 = vld [vmem:[%s6 + $0x23c] sm:$0xf]
    %v1040 = vld [vmem:[%s7] sm:$0x1]
    %v1042 = vperm.slane %v1040, 0
    %vm1080 = vcmask 1046528
    %v1081 = vrot.slane %v860, 1
    %v1082 = vrot.slane %v869, 1
    %v1083 = vsel %vm1080, %v1081, %v1082
    %v1084 = vrot.slane %v861, 1
    %v1085 = vrot.slane %v870, 1
    %v1086 = vsel %vm1080, %v1084, %v1085
    %v1087 = vrot.slane %v862, 1
    %v1088 = vrot.slane %v871, 1
    %v1089 = vsel %vm1080, %v1087, %v1088
    %v1090 = vrot.slane %v863, 1
    %v1091 = vrot.slane %v872, 1
    %v1092 = vsel %vm1080, %v1090, %v1091
    %v1093 = vrot.slane %v864, 1
    %v1094 = vrot.slane %v873, 1
    %v1095 = vsel %vm1080, %v1093, %v1094
    %v1096 = vrot.slane %v865, 1
    %v1097 = vrot.slane %v874, 1
    %v1098 = vsel %vm1080, %v1096, %v1097
    %v1099 = vrot.slane %v866, 1
    %v1100 = vrot.slane %v875, 1
    %v1101 = vsel %vm1080, %v1099, %v1100
    %v1102 = vrot.slane %v867, 1
    %v1103 = vrot.slane %v876, 1
    %v1104 = vsel %vm1080, %v1102, %v1103
    %v1105 = vrot.slane %v868, 1
    %v1106 = vrot.slane %v877, 1
    %v1107 = vsel %vm1080, %v1105, %v1106
    %v1108 = vrot.slane %v878, 1
    %v1109 = vsel %vm1080, %v1082, %v1108
    %v1110 = vrot.slane %v879, 1
    %v1111 = vsel %vm1080, %v1085, %v1110
    %v1112 = vrot.slane %v880, 1
    %v1113 = vsel %vm1080, %v1088, %v1112
    %v1114 = vrot.slane %v881, 1
    %v1115 = vsel %vm1080, %v1091, %v1114
    %v1116 = vrot.slane %v882, 1
    %v1117 = vsel %vm1080, %v1094, %v1116
    %v1118 = vrot.slane %v883, 1
    %v1119 = vsel %vm1080, %v1097, %v1118
    %v1120 = vrot.slane %v884, 1
    %v1121 = vsel %vm1080, %v1100, %v1120
    %v1122 = vrot.slane %v885, 1
    %v1123 = vsel %vm1080, %v1103, %v1122
    %v1124 = vrot.slane %v886, 1
    %v1125 = vsel %vm1080, %v1106, %v1124
    %v1126 = vrot.slane %v887, 1
    %v1127 = vsel %vm1080, %v1108, %v1126
    %v1128 = vrot.slane %v888, 1
    %v1129 = vsel %vm1080, %v1110, %v1128
    %v1130 = vrot.slane %v889, 1
    %v1131 = vsel %vm1080, %v1112, %v1130
    %v1132 = vrot.slane %v890, 1
    %v1133 = vsel %vm1080, %v1114, %v1132
    %v1134 = vrot.slane %v891, 1
    %v1135 = vsel %vm1080, %v1116, %v1134
    %v1136 = vrot.slane %v892, 1
    %v1137 = vsel %vm1080, %v1118, %v1136
    %v1138 = vrot.slane %v893, 1
    %v1139 = vsel %vm1080, %v1120, %v1138
    %v1140 = vrot.slane %v894, 1
    %v1141 = vsel %vm1080, %v1122, %v1140
    %v1142 = vrot.slane %v895, 1
    %v1143 = vsel %vm1080, %v1124, %v1142
    %v1324 = vunpack.c.l.b16 %v896
    %v1325 = vunpack.c.l.b16 %v897
    %v1326 = vunpack.c.l.b16 %v898
    %v1327 = vunpack.c.l.b16 %v899
    %v1328 = vunpack.c.l.b16 %v900
    %v1329 = vunpack.c.l.b16 %v901
    %v1330 = vunpack.c.l.b16 %v902
    %v1331 = vunpack.c.l.b16 %v903
    %v1332 = vunpack.c.l.b16 %v904
    %v1333 = vunpack.c.l.b16 %v905
    %v1334 = vunpack.c.l.b16 %v906
    %v1335 = vunpack.c.l.b16 %v907
    %v1336 = vunpack.c.l.b16 %v908
    %v1337 = vunpack.c.l.b16 %v909
    %v1338 = vunpack.c.l.b16 %v910
    %v1339 = vunpack.c.l.b16 %v911
    %v1340 = vunpack.c.l.b16 %v912
    %v1341 = vunpack.c.l.b16 %v913
    %v1342 = vunpack.c.l.b16 %v914
    %v1343 = vunpack.c.l.b16 %v915
    %v1344 = vunpack.c.l.b16 %v916
    %v1345 = vunpack.c.l.b16 %v917
    %v1346 = vunpack.c.l.b16 %v918
    %v1347 = vunpack.c.l.b16 %v919
    %v1348 = vunpack.c.l.b16 %v920
    %v1349 = vunpack.c.l.b16 %v921
    %v1350 = vunpack.c.l.b16 %v922
    %v1351 = vunpack.c.l.b16 %v923
    %v1352 = vunpack.c.l.b16 %v924
    %v1353 = vunpack.c.l.b16 %v925
    %v1354 = vunpack.c.l.b16 %v926
    %v1355 = vunpack.c.l.b16 %v927
    %v1356 = vunpack.c.l.b16 %v928
    %v1357 = vunpack.c.l.b16 %v929
    %v1358 = vunpack.c.l.b16 %v930
    %v1359 = vunpack.c.l.b16 %v931
    %v1360 = vunpack.c.l.b16 %v932
    %v1361 = vunpack.c.l.b16 %v933
    %v1362 = vunpack.c.l.b16 %v934
    %v1363 = vunpack.c.l.b16 %v935
    %v1364 = vunpack.c.l.b16 %v936
    %v1365 = vunpack.c.l.b16 %v937
    %v1366 = vunpack.c.l.b16 %v938
    %v1367 = vunpack.c.l.b16 %v939
    %v1368 = vunpack.c.l.b16 %v940
    %v1369 = vunpack.c.l.b16 %v941
    %v1370 = vunpack.c.l.b16 %v942
    %v1371 = vunpack.c.l.b16 %v943
    %v1372 = vunpack.c.l.b16 %v944
    %v1373 = vunpack.c.l.b16 %v945
    %v1374 = vunpack.c.l.b16 %v946
    %v1375 = vunpack.c.l.b16 %v947
    %v1376 = vunpack.c.l.b16 %v948
    %v1377 = vunpack.c.l.b16 %v949
    %v1378 = vunpack.c.l.b16 %v950
    %v1379 = vunpack.c.l.b16 %v951
    %v1380 = vunpack.c.l.b16 %v952
    %v1381 = vunpack.c.l.b16 %v953
    %v1382 = vunpack.c.l.b16 %v954
    %v1383 = vunpack.c.l.b16 %v955
    %v1384 = vunpack.c.l.b16 %v956
    %v1385 = vunpack.c.l.b16 %v957
    %v1386 = vunpack.c.l.b16 %v958
    %v1387 = vunpack.c.l.b16 %v959
    %v1388 = vunpack.c.l.b16 %v960
    %v1389 = vunpack.c.l.b16 %v961
    %v1390 = vunpack.c.l.b16 %v962
    %v1391 = vunpack.c.l.b16 %v963
    %v1392 = vunpack.c.l.b16 %v964
    %v1393 = vunpack.c.l.b16 %v965
    %v1394 = vunpack.c.l.b16 %v966
    %v1395 = vunpack.c.l.b16 %v967
    %v1396 = vunpack.c.l.b16 %v968
    %v1397 = vunpack.c.l.b16 %v969
    %v1398 = vunpack.c.l.b16 %v970
    %v1399 = vunpack.c.l.b16 %v971
    %v1400 = vunpack.c.l.b16 %v972
    %v1401 = vunpack.c.l.b16 %v973
    %v1402 = vunpack.c.l.b16 %v974
    %v1403 = vunpack.c.l.b16 %v975
    %v1404 = vunpack.c.l.b16 %v976
    %v1405 = vunpack.c.l.b16 %v977
    %v1406 = vunpack.c.l.b16 %v978
    %v1407 = vunpack.c.l.b16 %v979
    %v1408 = vunpack.c.l.b16 %v980
    %v1409 = vunpack.c.l.b16 %v981
    %v1410 = vunpack.c.l.b16 %v982
    %v1411 = vunpack.c.l.b16 %v983
    %v1412 = vunpack.c.l.b16 %v984
    %v1413 = vunpack.c.l.b16 %v985
    %v1414 = vunpack.c.l.b16 %v986
    %v1415 = vunpack.c.l.b16 %v987
    %v1416 = vunpack.c.l.b16 %v988
    %v1417 = vunpack.c.l.b16 %v989
    %v1418 = vunpack.c.l.b16 %v990
    %v1419 = vunpack.c.l.b16 %v991
    %v1420 = vunpack.c.l.b16 %v992
    %v1421 = vunpack.c.l.b16 %v993
    %v1422 = vunpack.c.l.b16 %v994
    %v1423 = vunpack.c.l.b16 %v995
    %v1424 = vunpack.c.l.b16 %v996
    %v1425 = vunpack.c.l.b16 %v997
    %v1426 = vunpack.c.l.b16 %v998
    %v1427 = vunpack.c.l.b16 %v999
    %v1428 = vunpack.c.l.b16 %v1000
    %v1429 = vunpack.c.l.b16 %v1001
    %v1430 = vunpack.c.l.b16 %v1002
    %v1431 = vunpack.c.l.b16 %v1003
    %v1432 = vunpack.c.l.b16 %v1004
    %v1433 = vunpack.c.l.b16 %v1005
    %v1434 = vunpack.c.l.b16 %v1006
    %v1435 = vunpack.c.l.b16 %v1007
    %v1436 = vunpack.c.l.b16 %v1008
    %v1437 = vunpack.c.l.b16 %v1009
    %v1438 = vunpack.c.l.b16 %v1010
    %v1439 = vunpack.c.l.b16 %v1011
    %v1440 = vunpack.c.l.b16 %v1012
    %v1441 = vunpack.c.l.b16 %v1013
    %v1442 = vunpack.c.l.b16 %v1014
    %v1443 = vunpack.c.l.b16 %v1015
    %v1444 = vunpack.c.l.b16 %v1016
    %v1445 = vunpack.c.l.b16 %v1017
    %v1446 = vunpack.c.l.b16 %v1018
    %v1447 = vunpack.c.l.b16 %v1019
    %v1448 = vunpack.c.l.b16 %v1020
    %v1449 = vunpack.c.l.b16 %v1021
    %v1450 = vunpack.c.l.b16 %v1022
    %v1451 = vunpack.c.l.b16 %v1023
    %v1452 = vunpack.c.l.b16 %v1024
    %v1453 = vunpack.c.l.b16 %v1025
    %v1454 = vunpack.c.l.b16 %v1026
    %v1455 = vunpack.c.l.b16 %v1027
    %v1456 = vunpack.c.l.b16 %v1028
    %v1457 = vunpack.c.l.b16 %v1029
    %v1458 = vunpack.c.l.b16 %v1030
    %v1459 = vunpack.c.l.b16 %v1031
    %v1460 = vunpack.c.l.b16 %v1032
    %v1461 = vunpack.c.l.b16 %v1033
    %v1462 = vunpack.c.l.b16 %v1034
    %v1463 = vunpack.c.l.b16 %v1035
    %v1464 = vunpack.c.l.b16 %v1036
    %v1465 = vunpack.c.l.b16 %v1037
    %v1466 = vunpack.c.l.b16 %v1038
    %v1467 = vunpack.c.l.b16 %v1039
    %v1468 = vpack.c.b16 %v1325, %v1324
    %v1469 = vpack.c.b16 %v1327, %v1326
    %v1470 = vpack.c.b16 %v1329, %v1328
    %v1471 = vpack.c.b16 %v1331, %v1330
    %v1472 = vpack.c.b16 %v1333, %v1332
    %v1473 = vpack.c.b16 %v1335, %v1334
    %v1474 = vpack.c.b16 %v1337, %v1336
    %v1475 = vpack.c.b16 %v1339, %v1338
    %v1476 = vpack.c.b16 %v1341, %v1340
    %v1477 = vpack.c.b16 %v1343, %v1342
    %v1478 = vpack.c.b16 %v1345, %v1344
    %v1479 = vpack.c.b16 %v1347, %v1346
    %v1480 = vpack.c.b16 %v1349, %v1348
    %v1481 = vpack.c.b16 %v1351, %v1350
    %v1482 = vpack.c.b16 %v1353, %v1352
    %v1483 = vpack.c.b16 %v1355, %v1354
    %v1484 = vpack.c.b16 %v1357, %v1356
    %v1485 = vpack.c.b16 %v1359, %v1358
    %v1486 = vpack.c.b16 %v1361, %v1360
    %v1487 = vpack.c.b16 %v1363, %v1362
    %v1488 = vpack.c.b16 %v1365, %v1364
    %v1489 = vpack.c.b16 %v1367, %v1366
    %v1490 = vpack.c.b16 %v1369, %v1368
    %v1491 = vpack.c.b16 %v1371, %v1370
    %v1492 = vpack.c.b16 %v1373, %v1372
    %v1493 = vpack.c.b16 %v1375, %v1374
    %v1494 = vpack.c.b16 %v1377, %v1376
    %v1495 = vpack.c.b16 %v1379, %v1378
    %v1496 = vpack.c.b16 %v1381, %v1380
    %v1497 = vpack.c.b16 %v1383, %v1382
    %v1498 = vpack.c.b16 %v1385, %v1384
    %v1499 = vpack.c.b16 %v1387, %v1386
    %v1500 = vpack.c.b16 %v1389, %v1388
    %v1501 = vpack.c.b16 %v1391, %v1390
    %v1502 = vpack.c.b16 %v1393, %v1392
    %v1503 = vpack.c.b16 %v1395, %v1394
    %v1504 = vpack.c.b16 %v1397, %v1396
    %v1505 = vpack.c.b16 %v1399, %v1398
    %v1506 = vpack.c.b16 %v1401, %v1400
    %v1507 = vpack.c.b16 %v1403, %v1402
    %v1508 = vpack.c.b16 %v1405, %v1404
    %v1509 = vpack.c.b16 %v1407, %v1406
    %v1510 = vpack.c.b16 %v1409, %v1408
    %v1511 = vpack.c.b16 %v1411, %v1410
    %v1512 = vpack.c.b16 %v1413, %v1412
    %v1513 = vpack.c.b16 %v1415, %v1414
    %v1514 = vpack.c.b16 %v1417, %v1416
    %v1515 = vpack.c.b16 %v1419, %v1418
    %v1516 = vpack.c.b16 %v1421, %v1420
    %v1517 = vpack.c.b16 %v1423, %v1422
    %v1518 = vpack.c.b16 %v1425, %v1424
    %v1519 = vpack.c.b16 %v1427, %v1426
    %v1520 = vpack.c.b16 %v1429, %v1428
    %v1521 = vpack.c.b16 %v1431, %v1430
    %v1522 = vpack.c.b16 %v1433, %v1432
    %v1523 = vpack.c.b16 %v1435, %v1434
    %v1524 = vpack.c.b16 %v1437, %v1436
    %v1525 = vpack.c.b16 %v1439, %v1438
    %v1526 = vpack.c.b16 %v1441, %v1440
    %v1527 = vpack.c.b16 %v1443, %v1442
    %v1528 = vpack.c.b16 %v1445, %v1444
    %v1529 = vpack.c.b16 %v1447, %v1446
    %v1530 = vpack.c.b16 %v1449, %v1448
    %v1531 = vpack.c.b16 %v1451, %v1450
    %v1532 = vpack.c.b16 %v1453, %v1452
    %v1533 = vpack.c.b16 %v1455, %v1454
    %v1534 = vpack.c.b16 %v1457, %v1456
    %v1535 = vpack.c.b16 %v1459, %v1458
    %v1536 = vpack.c.b16 %v1461, %v1460
    %v1537 = vpack.c.b16 %v1463, %v1462
    %v1538 = vpack.c.b16 %v1465, %v1464
    %v1539 = vpack.c.b16 %v1467, %v1466
    %1612 = vmatpush.bf16.msra.mxu0 %v1475
    %1613 = vmatpush.bf16.msra.mxu0 %v1474
    %1614 = vmatpush.bf16.msra.mxu0 %v1473
    %1615 = vmatpush.bf16.msra.mxu0 %v1472
    %1616 = vmatpush.bf16.msra.mxu0 %v1471
    %1617 = vmatpush.bf16.msra.mxu0 %v1470
    %1618 = vmatpush.bf16.msra.mxu0 %v1469
    %1619 = vmatpush.bf16.msra.mxu0 %v1468
    %1620 = vmatmul.bf16.gmra.mxu0 %v1083
    %v1621 = vpop.f32.mrf.mxu0
    %v1622 = vadd.f32 %v1042, %v1621
    %v1623 = vpop.f32.mrf.mxu0
    %v1624 = vadd.f32 %v1042, %v1623
    %1625 = vmatmul.bf16.gmra.mxu0 %v1109
    %v1626 = vpop.f32.mrf.mxu0
    %v1627 = vadd.f32 %v1042, %v1626
    %v1628 = vpop.f32.mrf.mxu0
    %v1629 = vadd.f32 %v1042, %v1628
    %1630 = vmatmul.bf16.gmra.mxu0 %v1127
    %v1631 = vpop.f32.mrf.mxu0
    %v1632 = vadd.f32 %v1042, %v1631
    %v1633 = vpop.f32.mrf.mxu0
    %v1634 = vadd.f32 %v1042, %v1633
    %1635 = vmatmul.bf16.gmra.mxu0 %v1126
    %v1636 = vpop.f32.mrf.mxu0
    %v1637 = vadd.f32 %v1042, %v1636
    %v1638 = vpop.f32.mrf.mxu0
    %1639 = vdwg.mxu0
    %1640 = vmatpush.bf16.msra.mxu0 %v1483
    %1641 = vmatpush.bf16.msra.mxu0 %v1482
    %1642 = vmatpush.bf16.msra.mxu0 %v1481
    %1643 = vmatpush.bf16.msra.mxu0 %v1480
    %1644 = vmatpush.bf16.msra.mxu0 %v1479
    %1645 = vmatpush.bf16.msra.mxu0 %v1478
    %1646 = vmatpush.bf16.msra.mxu0 %v1477
    %1647 = vmatpush.bf16.msra.mxu0 %v1476
    %1648 = vmatmul.bf16.gmra.mxu0 %v1086
    %v1649 = vpop.f32.mrf.mxu0
    %v1650 = vadd.f32 %v1622, %v1649
    %v1651 = vpop.f32.mrf.mxu0
    %v1652 = vadd.f32 %v1624, %v1651
    %1653 = vmatmul.bf16.gmra.mxu0 %v1111
    %v1654 = vpop.f32.mrf.mxu0
    %v1655 = vadd.f32 %v1627, %v1654
    %v1656 = vpop.f32.mrf.mxu0
    %v1657 = vadd.f32 %v1629, %v1656
    %1658 = vmatmul.bf16.gmra.mxu0 %v1129
    %v1659 = vpop.f32.mrf.mxu0
    %v1660 = vadd.f32 %v1632, %v1659
    %v1661 = vpop.f32.mrf.mxu0
    %v1662 = vadd.f32 %v1634, %v1661
    %1663 = vmatmul.bf16.gmra.mxu0 %v1128
    %v1664 = vpop.f32.mrf.mxu0
    %v1665 = vadd.f32 %v1637, %v1664
    %v1666 = vpop.f32.mrf.mxu0
    %1667 = vdwg.mxu0
    %1668 = vmatpush.bf16.msra.mxu0 %v1491
    %1669 = vmatpush.bf16.msra.mxu0 %v1490
    %1670 = vmatpush.bf16.msra.mxu0 %v1489
    %1671 = vmatpush.bf16.msra.mxu0 %v1488
    %1672 = vmatpush.bf16.msra.mxu0 %v1487
    %1673 = vmatpush.bf16.msra.mxu0 %v1486
    %1674 = vmatpush.bf16.msra.mxu0 %v1485
    %1675 = vmatpush.bf16.msra.mxu0 %v1484
    %1676 = vmatmul.bf16.gmra.mxu0 %v1089
    %v1677 = vpop.f32.mrf.mxu0
    %v1678 = vadd.f32 %v1650, %v1677
    %v1679 = vpop.f32.mrf.mxu0
    %v1680 = vadd.f32 %v1652, %v1679
    %1681 = vmatmul.bf16.gmra.mxu0 %v1113
    %v1682 = vpop.f32.mrf.mxu0
    %v1683 = vadd.f32 %v1655, %v1682
    %v1684 = vpop.f32.mrf.mxu0
    %v1685 = vadd.f32 %v1657, %v1684
    %1686 = vmatmul.bf16.gmra.mxu0 %v1131
    %v1687 = vpop.f32.mrf.mxu0
    %v1688 = vadd.f32 %v1660, %v1687
    %v1689 = vpop.f32.mrf.mxu0
    %v1690 = vadd.f32 %v1662, %v1689
    %1691 = vmatmul.bf16.gmra.mxu0 %v1130
    %v1692 = vpop.f32.mrf.mxu0
    %v1693 = vadd.f32 %v1665, %v1692
    %v1694 = vpop.f32.mrf.mxu0
    %1695 = vdwg.mxu0
    %1696 = vmatpush.bf16.msra.mxu0 %v1499
    %1697 = vmatpush.bf16.msra.mxu0 %v1498
    %1698 = vmatpush.bf16.msra.mxu0 %v1497
    %1699 = vmatpush.bf16.msra.mxu0 %v1496
    %1700 = vmatpush.bf16.msra.mxu0 %v1495
    %1701 = vmatpush.bf16.msra.mxu0 %v1494
    %1702 = vmatpush.bf16.msra.mxu0 %v1493
    %1703 = vmatpush.bf16.msra.mxu0 %v1492
    %1704 = vmatmul.bf16.gmra.mxu0 %v1092
    %v1705 = vpop.f32.mrf.mxu0
    %v1706 = vadd.f32 %v1678, %v1705
    %v1707 = vpop.f32.mrf.mxu0
    %v1708 = vadd.f32 %v1680, %v1707
    %1709 = vmatmul.bf16.gmra.mxu0 %v1115
    %v1710 = vpop.f32.mrf.mxu0
    %v1711 = vadd.f32 %v1683, %v1710
    %v1712 = vpop.f32.mrf.mxu0
    %v1713 = vadd.f32 %v1685, %v1712
    %1714 = vmatmul.bf16.gmra.mxu0 %v1133
    %v1715 = vpop.f32.mrf.mxu0
    %v1716 = vadd.f32 %v1688, %v1715
    %v1717 = vpop.f32.mrf.mxu0
    %v1718 = vadd.f32 %v1690, %v1717
    %1719 = vmatmul.bf16.gmra.mxu0 %v1132
    %v1720 = vpop.f32.mrf.mxu0
    %v1721 = vadd.f32 %v1693, %v1720
    %v1722 = vpop.f32.mrf.mxu0
    %1723 = vdwg.mxu0
    %1724 = vmatpush.bf16.msra.mxu0 %v1507
    %1725 = vmatpush.bf16.msra.mxu0 %v1506
    %1726 = vmatpush.bf16.msra.mxu0 %v1505
    %1727 = vmatpush.bf16.msra.mxu0 %v1504
    %1728 = vmatpush.bf16.msra.mxu0 %v1503
    %1729 = vmatpush.bf16.msra.mxu0 %v1502
    %1730 = vmatpush.bf16.msra.mxu0 %v1501
    %1731 = vmatpush.bf16.msra.mxu0 %v1500
    %1732 = vmatmul.bf16.gmra.mxu0 %v1095
    %v1733 = vpop.f32.mrf.mxu0
    %v1734 = vadd.f32 %v1706, %v1733
    %v1735 = vpop.f32.mrf.mxu0
    %v1736 = vadd.f32 %v1708, %v1735
    %1737 = vmatmul.bf16.gmra.mxu0 %v1117
    %v1738 = vpop.f32.mrf.mxu0
    %v1739 = vadd.f32 %v1711, %v1738
    %v1740 = vpop.f32.mrf.mxu0
    %v1741 = vadd.f32 %v1713, %v1740
    %1742 = vmatmul.bf16.gmra.mxu0 %v1135
    %v1743 = vpop.f32.mrf.mxu0
    %v1744 = vadd.f32 %v1716, %v1743
    %v1745 = vpop.f32.mrf.mxu0
    %v1746 = vadd.f32 %v1718, %v1745
    %1747 = vmatmul.bf16.gmra.mxu0 %v1134
    %v1748 = vpop.f32.mrf.mxu0
    %v1749 = vadd.f32 %v1721, %v1748
    %v1750 = vpop.f32.mrf.mxu0
    %1751 = vdwg.mxu0
    %1752 = vmatpush.bf16.msra.mxu0 %v1515
    %1753 = vmatpush.bf16.msra.mxu0 %v1514
    %1754 = vmatpush.bf16.msra.mxu0 %v1513
    %1755 = vmatpush.bf16.msra.mxu0 %v1512
    %1756 = vmatpush.bf16.msra.mxu0 %v1511
    %1757 = vmatpush.bf16.msra.mxu0 %v1510
    %1758 = vmatpush.bf16.msra.mxu0 %v1509
    %1759 = vmatpush.bf16.msra.mxu0 %v1508
    %1760 = vmatmul.bf16.gmra.mxu0 %v1098
    %v1761 = vpop.f32.mrf.mxu0
    %v1762 = vadd.f32 %v1734, %v1761
    %v1763 = vpop.f32.mrf.mxu0
    %v1764 = vadd.f32 %v1736, %v1763
    %1765 = vmatmul.bf16.gmra.mxu0 %v1119
    %v1766 = vpop.f32.mrf.mxu0
    %v1767 = vadd.f32 %v1739, %v1766
    %v1768 = vpop.f32.mrf.mxu0
    %v1769 = vadd.f32 %v1741, %v1768
    %1770 = vmatmul.bf16.gmra.mxu0 %v1137
    %v1771 = vpop.f32.mrf.mxu0
    %v1772 = vadd.f32 %v1744, %v1771
    %v1773 = vpop.f32.mrf.mxu0
    %v1774 = vadd.f32 %v1746, %v1773
    %1775 = vmatmul.bf16.gmra.mxu0 %v1136
    %v1776 = vpop.f32.mrf.mxu0
    %v1777 = vadd.f32 %v1749, %v1776
    %v1778 = vpop.f32.mrf.mxu0
    %1779 = vdwg.mxu0
    %1780 = vmatpush.bf16.msra.mxu0 %v1523
    %1781 = vmatpush.bf16.msra.mxu0 %v1522
    %1782 = vmatpush.bf16.msra.mxu0 %v1521
    %1783 = vmatpush.bf16.msra.mxu0 %v1520
    %1784 = vmatpush.bf16.msra.mxu0 %v1519
    %1785 = vmatpush.bf16.msra.mxu0 %v1518
    %1786 = vmatpush.bf16.msra.mxu0 %v1517
    %1787 = vmatpush.bf16.msra.mxu0 %v1516
    %1788 = vmatmul.bf16.gmra.mxu0 %v1101
    %v1789 = vpop.f32.mrf.mxu0
    %v1790 = vadd.f32 %v1762, %v1789
    %v1791 = vpop.f32.mrf.mxu0
    %v1792 = vadd.f32 %v1764, %v1791
    %1793 = vmatmul.bf16.gmra.mxu0 %v1121
    %v1794 = vpop.f32.mrf.mxu0
    %v1795 = vadd.f32 %v1767, %v1794
    %v1796 = vpop.f32.mrf.mxu0
    %v1797 = vadd.f32 %v1769, %v1796
    %1798 = vmatmul.bf16.gmra.mxu0 %v1139
    %v1799 = vpop.f32.mrf.mxu0
    %v1800 = vadd.f32 %v1772, %v1799
    %v1801 = vpop.f32.mrf.mxu0
    %v1802 = vadd.f32 %v1774, %v1801
    %1803 = vmatmul.bf16.gmra.mxu0 %v1138
    %v1804 = vpop.f32.mrf.mxu0
    %v1805 = vadd.f32 %v1777, %v1804
    %v1806 = vpop.f32.mrf.mxu0
    %1807 = vdwg.mxu0
    %1808 = vmatpush.bf16.msra.mxu0 %v1531
    %1809 = vmatpush.bf16.msra.mxu0 %v1530
    %1810 = vmatpush.bf16.msra.mxu0 %v1529
    %1811 = vmatpush.bf16.msra.mxu0 %v1528
    %1812 = vmatpush.bf16.msra.mxu0 %v1527
    %1813 = vmatpush.bf16.msra.mxu0 %v1526
    %1814 = vmatpush.bf16.msra.mxu0 %v1525
    %1815 = vmatpush.bf16.msra.mxu0 %v1524
    %1816 = vmatmul.bf16.gmra.mxu0 %v1104
    %v1817 = vpop.f32.mrf.mxu0
    %v1818 = vadd.f32 %v1790, %v1817
    %v1819 = vpop.f32.mrf.mxu0
    %v1820 = vadd.f32 %v1792, %v1819
    %1821 = vmatmul.bf16.gmra.mxu0 %v1123
    %v1822 = vpop.f32.mrf.mxu0
    %v1823 = vadd.f32 %v1795, %v1822
    %v1824 = vpop.f32.mrf.mxu0
    %v1825 = vadd.f32 %v1797, %v1824
    %1826 = vmatmul.bf16.gmra.mxu0 %v1141
    %v1827 = vpop.f32.mrf.mxu0
    %v1828 = vadd.f32 %v1800, %v1827
    %v1829 = vpop.f32.mrf.mxu0
    %v1830 = vadd.f32 %v1802, %v1829
    %1831 = vmatmul.bf16.gmra.mxu0 %v1140
    %v1832 = vpop.f32.mrf.mxu0
    %v1833 = vadd.f32 %v1805, %v1832
    %v1834 = vpop.f32.mrf.mxu0
    %1835 = vdwg.mxu0
    %1836 = vmatpush.bf16.msra.mxu0 %v1539
    %1837 = vmatpush.bf16.msra.mxu0 %v1538
    %1838 = vmatpush.bf16.msra.mxu0 %v1537
    %1839 = vmatpush.bf16.msra.mxu0 %v1536
    %1840 = vmatpush.bf16.msra.mxu0 %v1535
    %1841 = vmatpush.bf16.msra.mxu0 %v1534
    %1842 = vmatpush.bf16.msra.mxu0 %v1533
    %1843 = vmatpush.bf16.msra.mxu0 %v1532
    %1844 = vmatmul.bf16.gmra.mxu0 %v1107
    %v1845 = vpop.f32.mrf.mxu0
    %v1846 = vadd.f32 %v1818, %v1845
    %v1847 = vpop.f32.mrf.mxu0
    %v1848 = vadd.f32 %v1820, %v1847
    %1849 = vmatmul.bf16.gmra.mxu0 %v1125
    %v1850 = vpop.f32.mrf.mxu0
    %v1851 = vadd.f32 %v1823, %v1850
    %v1852 = vpop.f32.mrf.mxu0
    %v1853 = vadd.f32 %v1825, %v1852
    %1854 = vmatmul.bf16.gmra.mxu0 %v1143
    %v1855 = vpop.f32.mrf.mxu0
    %v1856 = vadd.f32 %v1828, %v1855
    %v1857 = vpop.f32.mrf.mxu0
    %v1858 = vadd.f32 %v1830, %v1857
    %1859 = vmatmul.bf16.gmra.mxu0 %v1142
    %v1860 = vpop.f32.mrf.mxu0
    %v1861 = vadd.f32 %v1833, %v1860
    %v1862 = vpop.f32.mrf.mxu0
    %1863 = vdwg.mxu0
    %v1864 = vmax.f32 %v1846, 0.0
    %v1865 = vmax.f32 %v1848, 0.0
    %v1866 = vmax.f32 %v1851, 0.0
    %v1867 = vmax.f32 %v1853, 0.0
    %v1868 = vmax.f32 %v1856, 0.0
    %v1869 = vmax.f32 %v1858, 0.0
    %v1870 = vmax.f32 %v1861, 0.0
    %1872 = vset.pattern.permute.xlu0 0
    %1873 = vperm.xlu0 %1872, %v683
    %v1874 = vpop.permute.xlu0 %1873
    %1877 = vset.pattern.permute.xlu0 0
    %1878 = vperm.xlu0 %1877, %v684
    %v1879 = vpop.permute.xlu0 %1878
    %1882 = vset.pattern.permute.xlu0 0
    %1883 = vperm.xlu0 %1882, %v685
    %v1884 = vpop.permute.xlu0 %1883
    %1887 = vset.pattern.permute.xlu0 0
    %1888 = vperm.xlu0 %1887, %v686
    %v1889 = vpop.permute.xlu0 %1888
    %1892 = vset.pattern.permute.xlu0 0
    %1893 = vperm.xlu0 %1892, %v687
    %v1894 = vpop.permute.xlu0 %1893
    %1897 = vset.pattern.permute.xlu0 0
    %1898 = vperm.xlu0 %1897, %v688
    %v1899 = vpop.permute.xlu0 %1898
    %1902 = vset.pattern.permute.xlu0 0
    %1903 = vperm.xlu0 %1902, %v689
    %v1904 = vpop.permute.xlu0 %1903
    %v1906 = vmul.f32 %v1864, %v1874
    %v1907 = vmul.f32 %v1865, %v1879
    %v1908 = vmul.f32 %v1866, %v1884
    %v1909 = vmul.f32 %v1867, %v1889
    %v1910 = vmul.f32 %v1868, %v1894
    %v1911 = vmul.f32 %v1869, %v1899
    %v1912 = vmul.f32 %v1870, %v1904
    %v1920 = vrot.slane %v1906, 1
    %v1921 = vsel %vm386, %v418, %v1920
    %v1922 = vrot.slane %v1907, 1
    %v1923 = vsel %vm386, %v1920, %v1922
    %v1924 = vrot.slane %v1908, 1
    %v1925 = vsel %vm386, %v1922, %v1924
    %v1926 = vrot.slane %v1909, 1
    %v1927 = vsel %vm386, %v1924, %v1926
    %v1928 = vrot.slane %v1910, 1
    %v1929 = vsel %vm386, %v1926, %v1928
    %v1930 = vrot.slane %v1911, 1
    %v1931 = vsel %vm386, %v1928, %v1930
    %v1932 = vrot.slane %v1912, 1
    %v1933 = vsel %vm386, %v1930, %v1932
    %v1942 = vrot.slane %v1906, 2
    %v1943 = vsel %vm452, %v484, %v1942
    %v1944 = vrot.slane %v1907, 2
    %v1945 = vsel %vm452, %v1942, %v1944
    %v1946 = vrot.slane %v1908, 2
    %v1947 = vsel %vm452, %v1944, %v1946
    %v1948 = vrot.slane %v1909, 2
    %v1949 = vsel %vm452, %v1946, %v1948
    %v1950 = vrot.slane %v1910, 2
    %v1951 = vsel %vm452, %v1948, %v1950
    %v1952 = vrot.slane %v1911, 2
    %v1953 = vsel %vm452, %v1950, %v1952
    %v1954 = vrot.slane %v1912, 2
    %v1955 = vsel %vm452, %v1952, %v1954
    %v1964 = vrot.slane %v1906, 5
    %v1965 = vsel %vm741, %v742, %v1964
    %v1966 = vrot.slane %v1907, 5
    %v1967 = vsel %vm741, %v1964, %v1966
    %v1968 = vrot.slane %v1908, 5
    %v1969 = vsel %vm741, %v1966, %v1968
    %v1970 = vrot.slane %v1909, 5
    %v1971 = vsel %vm741, %v1968, %v1970
    %v1972 = vrot.slane %v1910, 5
    %v1973 = vsel %vm741, %v1970, %v1972
    %v1974 = vrot.slane %v1911, 5
    %v1975 = vsel %vm741, %v1972, %v1974
    %v1976 = vrot.slane %v1912, 5
    %v1977 = vsel %vm741, %v1974, %v1976
    %v1986 = vrot.slane %v1906, 6
    %v1987 = vrot.slane %v1907, 6
    %v1988 = vsel %vm249, %v1986, %v1987
    %v1989 = vrot.slane %v1908, 6
    %v1990 = vsel %vm249, %v1987, %v1989
    %v1991 = vrot.slane %v1909, 6
    %v1992 = vsel %vm249, %v1989, %v1991
    %v1993 = vrot.slane %v1910, 6
    %v1994 = vsel %vm249, %v1991, %v1993
    %v1995 = vrot.slane %v1911, 6
    %v1996 = vsel %vm249, %v1993, %v1995
    %v1997 = vrot.slane %v1912, 6
    %v1998 = vsel %vm249, %v1995, %v1997
    %v2007 = vrot.slane %v1906, 7
    %v2008 = vrot.slane %v1907, 7
    %v2009 = vsel %vm248, %v2007, %v2008
    %v2010 = vrot.slane %v1908, 7
    %v2011 = vsel %vm248, %v2008, %v2010
    %v2012 = vrot.slane %v1909, 7
    %v2013 = vsel %vm248, %v2010, %v2012
    %v2014 = vrot.slane %v1910, 7
    %v2015 = vsel %vm248, %v2012, %v2014
    %v2016 = vrot.slane %v1911, 7
    %v2017 = vsel %vm248, %v2014, %v2016
    %v2018 = vrot.slane %v1912, 7
    %v2019 = vsel %vm248, %v2016, %v2018
    %v2020 = vsel %vm248, %v2018, %v799
    %v2029 = vsel %vm452, %v1954, %v484
    %v2031 = vrot.slane %v1906, 3
    %v2032 = vrot.slane %v1907, 3
    %v2033 = vsel %vm812, %v2031, %v2032
    %v2034 = vrot.slane %v1908, 3
    %v2035 = vsel %vm812, %v2032, %v2034
    %v2036 = vrot.slane %v1909, 3
    %v2037 = vsel %vm812, %v2034, %v2036
    %v2038 = vrot.slane %v1910, 3
    %v2039 = vsel %vm812, %v2036, %v2038
    %v2040 = vrot.slane %v1911, 3
    %v2041 = vsel %vm812, %v2038, %v2040
    %v2042 = vrot.slane %v1912, 3
    %v2043 = vsel %vm812, %v2040, %v2042
    %v2044 = vsel %vm812, %v2042, %v826
    %v2052 = vrot.slane %v1906, 4
    %v2053 = vrot.slane %v1907, 4
    %v2054 = vsel %vm836, %v2052, %v2053
    %v2055 = vrot.slane %v1908, 4
    %v2056 = vsel %vm836, %v2053, %v2055
    %v2057 = vrot.slane %v1909, 4
    %v2058 = vsel %vm836, %v2055, %v2057
    %v2059 = vrot.slane %v1910, 4
    %v2060 = vsel %vm836, %v2057, %v2059
    %v2061 = vrot.slane %v1911, 4
    %v2062 = vsel %vm836, %v2059, %v2061
    %v2063 = vrot.slane %v1912, 4
    %v2064 = vsel %vm836, %v2061, %v2063
    %v2065 = vsel %vm836, %v2063, %v850
    %v2073 = vpack.c.bf16 %v1906, 0.0
    %v2074 = vpack.c.bf16 %v1923, %v1921
    %v2075 = vpack.c.bf16 %v1945, %v1943
    %v2076 = vpack.c.bf16 %v1967, %v1965
    %v2077 = vpack.c.bf16 %v1988, %v1986
    %v2078 = vpack.c.bf16 %v2009, %v2007
    %v2079 = vpack.c.bf16 %v1947, %v1945
    %v2080 = vpack.c.bf16 %v2035, %v2033
    %v2081 = vpack.c.bf16 %v2056, %v2054
    %v2082 = vpack.c.bf16 %v1908, %v1907
    %v2083 = vpack.c.bf16 %v1927, %v1925
    %v2084 = vpack.c.bf16 %v1949, %v1947
    %v2085 = vpack.c.bf16 %v1971, %v1969
    %v2086 = vpack.c.bf16 %v1992, %v1990
    %v2087 = vpack.c.bf16 %v2013, %v2011
    %v2088 = vpack.c.bf16 %v1951, %v1949
    %v2089 = vpack.c.bf16 %v2039, %v2037
    %v2090 = vpack.c.bf16 %v2060, %v2058
    %v2091 = vpack.c.bf16 %v1910, %v1909
    %v2092 = vpack.c.bf16 %v1931, %v1929
    %v2093 = vpack.c.bf16 %v1953, %v1951
    %v2094 = vpack.c.bf16 %v1975, %v1973
    %v2095 = vpack.c.bf16 %v1996, %v1994
    %v2096 = vpack.c.bf16 %v2017, %v2015
    %v2097 = vpack.c.bf16 %v1955, %v1953
    %v2098 = vpack.c.bf16 %v2043, %v2041
    %v2099 = vpack.c.bf16 %v2064, %v2062
    %v2100 = vpack.c.bf16 %v1912, %v1911
    %v2101 = vpack.c.bf16 %v1932, %v1933
    %v2102 = vpack.c.bf16 %v1954, %v1955
    %v2103 = vpack.c.bf16 %v1976, %v1977
    %v2104 = vpack.c.bf16 %v1997, %v1998
    %v2105 = vpack.c.bf16 %v2020, %v2019
    %v2106 = vpack.c.bf16 %v484, %v2029
    %v2107 = vpack.c.bf16 %v826, %v2044
    %v2108 = vpack.c.bf16 %v850, %v2065
    %v2109 = vld [vmem:[%s8] sm:$0xff]
    %v2110 = vld [vmem:[%s8 + $0x8] sm:$0xff]
    %v2111 = vld [vmem:[%s8 + $0x10] sm:$0xff]
    %v2112 = vld [vmem:[%s8 + $0x18] sm:$0xff]
    %v2113 = vld [vmem:[%s8 + $0x20] sm:$0xff]
    %v2114 = vld [vmem:[%s8 + $0x28] sm:$0xff]
    %v2115 = vld [vmem:[%s8 + $0x30] sm:$0xff]
    %v2116 = vld [vmem:[%s8 + $0x38] sm:$0xff]
    %v2117 = vld [vmem:[%s8 + $0x40] sm:$0xff]
    %v2118 = vld [vmem:[%s8 + $0x48] sm:$0xff]
    %v2119 = vld [vmem:[%s8 + $0x50] sm:$0xff]
    %v2120 = vld [vmem:[%s8 + $0x58] sm:$0xff]
    %v2121 = vld [vmem:[%s8 + $0x60] sm:$0xff]
    %v2122 = vld [vmem:[%s8 + $0x68] sm:$0xff]
    %v2123 = vld [vmem:[%s8 + $0x70] sm:$0xff]
    %v2124 = vld [vmem:[%s8 + $0x78] sm:$0xff]
    %v2125 = vld [vmem:[%s8 + $0x80] sm:$0xff]
    %v2126 = vld [vmem:[%s8 + $0x88] sm:$0xff]
    %v2127 = vld [vmem:[%s8 + $0x90] sm:$0xff]
    %v2128 = vld [vmem:[%s8 + $0x98] sm:$0xff]
    %v2129 = vld [vmem:[%s8 + $0xa0] sm:$0xff]
    %v2130 = vld [vmem:[%s8 + $0xa8] sm:$0xff]
    %v2131 = vld [vmem:[%s8 + $0xb0] sm:$0xff]
    %v2132 = vld [vmem:[%s8 + $0xb8] sm:$0xff]
    %v2133 = vld [vmem:[%s8 + $0xc0] sm:$0xff]
    %v2134 = vld [vmem:[%s8 + $0xc8] sm:$0xff]
    %v2135 = vld [vmem:[%s8 + $0xd0] sm:$0xff]
    %v2136 = vld [vmem:[%s8 + $0xd8] sm:$0xff]
    %v2137 = vld [vmem:[%s8 + $0xe0] sm:$0xff]
    %v2138 = vld [vmem:[%s8 + $0xe8] sm:$0xff]
    %v2139 = vld [vmem:[%s8 + $0xf0] sm:$0xff]
    %v2140 = vld [vmem:[%s8 + $0xf8] sm:$0xff]
    %v2141 = vld [vmem:[%s8 + $0x100] sm:$0xff]
    %v2142 = vld [vmem:[%s8 + $0x108] sm:$0xff]
    %v2143 = vld [vmem:[%s8 + $0x110] sm:$0xff]
    %v2144 = vld [vmem:[%s8 + $0x118] sm:$0xff]
    %v2145 = vld [vmem:[%s8 + $0x120] sm:$0xff]
    %v2146 = vld [vmem:[%s8 + $0x128] sm:$0xff]
    %v2147 = vld [vmem:[%s8 + $0x130] sm:$0xff]
    %v2148 = vld [vmem:[%s8 + $0x138] sm:$0xff]
    %v2149 = vld [vmem:[%s8 + $0x140] sm:$0xff]
    %v2150 = vld [vmem:[%s8 + $0x148] sm:$0xff]
    %v2151 = vld [vmem:[%s8 + $0x150] sm:$0xff]
    %v2152 = vld [vmem:[%s8 + $0x158] sm:$0xff]
    %v2153 = vld [vmem:[%s8 + $0x160] sm:$0xff]
    %v2154 = vld [vmem:[%s8 + $0x168] sm:$0xff]
    %v2155 = vld [vmem:[%s8 + $0x170] sm:$0xff]
    %v2156 = vld [vmem:[%s8 + $0x178] sm:$0xff]
    %v2157 = vld [vmem:[%s8 + $0x180] sm:$0xff]
    %v2158 = vld [vmem:[%s8 + $0x188] sm:$0xff]
    %v2159 = vld [vmem:[%s8 + $0x190] sm:$0xff]
    %v2160 = vld [vmem:[%s8 + $0x198] sm:$0xff]
    %v2161 = vld [vmem:[%s8 + $0x1a0] sm:$0xff]
    %v2162 = vld [vmem:[%s8 + $0x1a8] sm:$0xff]
    %v2163 = vld [vmem:[%s8 + $0x1b0] sm:$0xff]
    %v2164 = vld [vmem:[%s8 + $0x1b8] sm:$0xff]
    %v2165 = vld [vmem:[%s8 + $0x1c0] sm:$0xff]
    %v2166 = vld [vmem:[%s8 + $0x1c8] sm:$0xff]
    %v2167 = vld [vmem:[%s8 + $0x1d0] sm:$0xff]
    %v2168 = vld [vmem:[%s8 + $0x1d8] sm:$0xff]
    %v2169 = vld [vmem:[%s8 + $0x1e0] sm:$0xff]
    %v2170 = vld [vmem:[%s8 + $0x1e8] sm:$0xff]
    %v2171 = vld [vmem:[%s8 + $0x1f0] sm:$0xff]
    %v2172 = vld [vmem:[%s8 + $0x1f8] sm:$0xff]
    %v2173 = vld [vmem:[%s8 + $0x200] sm:$0xff]
    %v2174 = vld [vmem:[%s8 + $0x208] sm:$0xff]
    %v2175 = vld [vmem:[%s8 + $0x210] sm:$0xff]
    %v2176 = vld [vmem:[%s8 + $0x218] sm:$0xff]
    %v2177 = vld [vmem:[%s8 + $0x220] sm:$0xff]
    %v2178 = vld [vmem:[%s8 + $0x228] sm:$0xff]
    %v2179 = vld [vmem:[%s8 + $0x230] sm:$0xff]
    %v2180 = vld [vmem:[%s8 + $0x238] sm:$0xff]
    %v2181 = vld [vmem:[%s8 + $0x240] sm:$0xff]
    %v2182 = vld [vmem:[%s8 + $0x248] sm:$0xff]
    %v2183 = vld [vmem:[%s8 + $0x250] sm:$0xff]
    %v2184 = vld [vmem:[%s8 + $0x258] sm:$0xff]
    %v2185 = vld [vmem:[%s8 + $0x260] sm:$0xff]
    %v2186 = vld [vmem:[%s8 + $0x268] sm:$0xff]
    %v2187 = vld [vmem:[%s8 + $0x270] sm:$0xff]
    %v2188 = vld [vmem:[%s8 + $0x278] sm:$0xff]
    %v2189 = vld [vmem:[%s8 + $0x280] sm:$0xff]
    %v2190 = vld [vmem:[%s8 + $0x288] sm:$0xff]
    %v2191 = vld [vmem:[%s8 + $0x290] sm:$0xff]
    %v2192 = vld [vmem:[%s8 + $0x298] sm:$0xff]
    %v2193 = vld [vmem:[%s8 + $0x2a0] sm:$0xff]
    %v2194 = vld [vmem:[%s8 + $0x2a8] sm:$0xff]
    %v2195 = vld [vmem:[%s8 + $0x2b0] sm:$0xff]
    %v2196 = vld [vmem:[%s8 + $0x2b8] sm:$0xff]
    %v2197 = vld [vmem:[%s8 + $0x2c0] sm:$0xff]
    %v2198 = vld [vmem:[%s8 + $0x2c8] sm:$0xff]
    %v2199 = vld [vmem:[%s8 + $0x2d0] sm:$0xff]
    %v2200 = vld [vmem:[%s8 + $0x2d8] sm:$0xff]
    %v2201 = vld [vmem:[%s8 + $0x2e0] sm:$0xff]
    %v2202 = vld [vmem:[%s8 + $0x2e8] sm:$0xff]
    %v2203 = vld [vmem:[%s8 + $0x2f0] sm:$0xff]
    %v2204 = vld [vmem:[%s8 + $0x2f8] sm:$0xff]
    %v2205 = vld [vmem:[%s8 + $0x300] sm:$0xff]
    %v2206 = vld [vmem:[%s8 + $0x308] sm:$0xff]
    %v2207 = vld [vmem:[%s8 + $0x310] sm:$0xff]
    %v2208 = vld [vmem:[%s8 + $0x318] sm:$0xff]
    %v2209 = vld [vmem:[%s8 + $0x320] sm:$0xff]
    %v2210 = vld [vmem:[%s8 + $0x328] sm:$0xff]
    %v2211 = vld [vmem:[%s8 + $0x330] sm:$0xff]
    %v2212 = vld [vmem:[%s8 + $0x338] sm:$0xff]
    %v2213 = vld [vmem:[%s8 + $0x340] sm:$0xff]
    %v2214 = vld [vmem:[%s8 + $0x348] sm:$0xff]
    %v2215 = vld [vmem:[%s8 + $0x350] sm:$0xff]
    %v2216 = vld [vmem:[%s8 + $0x358] sm:$0xff]
    %v2217 = vld [vmem:[%s8 + $0x360] sm:$0xff]
    %v2218 = vld [vmem:[%s8 + $0x368] sm:$0xff]
    %v2219 = vld [vmem:[%s8 + $0x370] sm:$0xff]
    %v2220 = vld [vmem:[%s8 + $0x378] sm:$0xff]
    %v2221 = vld [vmem:[%s8 + $0x380] sm:$0xff]
    %v2222 = vld [vmem:[%s8 + $0x388] sm:$0xff]
    %v2223 = vld [vmem:[%s8 + $0x390] sm:$0xff]
    %v2224 = vld [vmem:[%s8 + $0x398] sm:$0xff]
    %v2225 = vld [vmem:[%s8 + $0x3a0] sm:$0xff]
    %v2226 = vld [vmem:[%s8 + $0x3a8] sm:$0xff]
    %v2227 = vld [vmem:[%s8 + $0x3b0] sm:$0xff]
    %v2228 = vld [vmem:[%s8 + $0x3b8] sm:$0xff]
    %v2229 = vld [vmem:[%s8 + $0x3c0] sm:$0xff]
    %v2230 = vld [vmem:[%s8 + $0x3c8] sm:$0xff]
    %v2231 = vld [vmem:[%s8 + $0x3d0] sm:$0xff]
    %v2232 = vld [vmem:[%s8 + $0x3d8] sm:$0xff]
    %v2233 = vld [vmem:[%s8 + $0x3e0] sm:$0xff]
    %v2234 = vld [vmem:[%s8 + $0x3e8] sm:$0xff]
    %v2235 = vld [vmem:[%s8 + $0x3f0] sm:$0xff]
    %v2236 = vld [vmem:[%s8 + $0x3f8] sm:$0xff]
    %v2237 = vld [vmem:[%s8 + $0x400] sm:$0xff]
    %v2238 = vld [vmem:[%s8 + $0x408] sm:$0xff]
    %v2239 = vld [vmem:[%s8 + $0x410] sm:$0xff]
    %v2240 = vld [vmem:[%s8 + $0x418] sm:$0xff]
    %v2241 = vld [vmem:[%s8 + $0x420] sm:$0xff]
    %v2242 = vld [vmem:[%s8 + $0x428] sm:$0xff]
    %v2243 = vld [vmem:[%s8 + $0x430] sm:$0xff]
    %v2244 = vld [vmem:[%s8 + $0x438] sm:$0xff]
    %v2245 = vld [vmem:[%s8 + $0x440] sm:$0xff]
    %v2246 = vld [vmem:[%s8 + $0x448] sm:$0xff]
    %v2247 = vld [vmem:[%s8 + $0x450] sm:$0xff]
    %v2248 = vld [vmem:[%s8 + $0x458] sm:$0xff]
    %v2249 = vld [vmem:[%s8 + $0x460] sm:$0xff]
    %v2250 = vld [vmem:[%s8 + $0x468] sm:$0xff]
    %v2251 = vld [vmem:[%s8 + $0x470] sm:$0xff]
    %v2252 = vld [vmem:[%s8 + $0x478] sm:$0xff]
    %v2253 = vld [vmem:[%s9] sm:$0x3]
    %v2255 = vperm.slane %v2253, 0
    %v2256 = vperm.slane %v2253, 1
    %v2295 = vrot.slane %v2073, 1
    %v2296 = vrot.slane %v2082, 1
    %v2297 = vsel %vm1080, %v2295, %v2296
    %v2298 = vrot.slane %v2074, 1
    %v2299 = vrot.slane %v2083, 1
    %v2300 = vsel %vm1080, %v2298, %v2299
    %v2301 = vrot.slane %v2075, 1
    %v2302 = vrot.slane %v2084, 1
    %v2303 = vsel %vm1080, %v2301, %v2302
    %v2304 = vrot.slane %v2076, 1
    %v2305 = vrot.slane %v2085, 1
    %v2306 = vsel %vm1080, %v2304, %v2305
    %v2307 = vrot.slane %v2077, 1
    %v2308 = vrot.slane %v2086, 1
    %v2309 = vsel %vm1080, %v2307, %v2308
    %v2310 = vrot.slane %v2078, 1
    %v2311 = vrot.slane %v2087, 1
    %v2312 = vsel %vm1080, %v2310, %v2311
    %v2313 = vrot.slane %v2079, 1
    %v2314 = vrot.slane %v2088, 1
    %v2315 = vsel %vm1080, %v2313, %v2314
    %v2316 = vrot.slane %v2080, 1
    %v2317 = vrot.slane %v2089, 1
    %v2318 = vsel %vm1080, %v2316, %v2317
    %v2319 = vrot.slane %v2081, 1
    %v2320 = vrot.slane %v2090, 1
    %v2321 = vsel %vm1080, %v2319, %v2320
    %v2322 = vrot.slane %v2091, 1
    %v2323 = vsel %vm1080, %v2296, %v2322
    %v2324 = vrot.slane %v2092, 1
    %v2325 = vsel %vm1080, %v2299, %v2324
    %v2326 = vrot.slane %v2093, 1
    %v2327 = vsel %vm1080, %v2302, %v2326
    %v2328 = vrot.slane %v2094, 1
    %v2329 = vsel %vm1080, %v2305, %v2328
    %v2330 = vrot.slane %v2095, 1
    %v2331 = vsel %vm1080, %v2308, %v2330
    %v2332 = vrot.slane %v2096, 1
    %v2333 = vsel %vm1080, %v2311, %v2332
    %v2334 = vrot.slane %v2097, 1
    %v2335 = vsel %vm1080, %v2314, %v2334
    %v2336 = vrot.slane %v2098, 1
    %v2337 = vsel %vm1080, %v2317, %v2336
    %v2338 = vrot.slane %v2099, 1
    %v2339 = vsel %vm1080, %v2320, %v2338
    %v2340 = vrot.slane %v2100, 1
    %v2341 = vsel %vm1080, %v2322, %v2340
    %v2342 = vrot.slane %v2101, 1
    %v2343 = vsel %vm1080, %v2324, %v2342
    %v2344 = vrot.slane %v2102, 1
    %v2345 = vsel %vm1080, %v2326, %v2344
    %v2346 = vrot.slane %v2103, 1
    %v2347 = vsel %vm1080, %v2328, %v2346
    %v2348 = vrot.slane %v2104, 1
    %v2349 = vsel %vm1080, %v2330, %v2348
    %v2350 = vrot.slane %v2105, 1
    %v2351 = vsel %vm1080, %v2332, %v2350
    %v2352 = vrot.slane %v2106, 1
    %v2353 = vsel %vm1080, %v2334, %v2352
    %v2354 = vrot.slane %v2107, 1
    %v2355 = vsel %vm1080, %v2336, %v2354
    %v2356 = vrot.slane %v2108, 1
    %v2357 = vsel %vm1080, %v2338, %v2356
    %v2538 = vunpack.c.l.b16 %v2109
    %v2539 = vunpack.c.h.b16 %v2109
    %v2540 = vunpack.c.l.b16 %v2110
    %v2541 = vunpack.c.h.b16 %v2110
    %v2542 = vunpack.c.l.b16 %v2111
    %v2543 = vunpack.c.h.b16 %v2111
    %v2544 = vunpack.c.l.b16 %v2112
    %v2545 = vunpack.c.h.b16 %v2112
    %v2546 = vunpack.c.l.b16 %v2113
    %v2547 = vunpack.c.h.b16 %v2113
    %v2548 = vunpack.c.l.b16 %v2114
    %v2549 = vunpack.c.h.b16 %v2114
    %v2550 = vunpack.c.l.b16 %v2115
    %v2551 = vunpack.c.h.b16 %v2115
    %v2552 = vunpack.c.l.b16 %v2116
    %v2553 = vunpack.c.h.b16 %v2116
    %v2554 = vunpack.c.l.b16 %v2117
    %v2555 = vunpack.c.h.b16 %v2117
    %v2556 = vunpack.c.l.b16 %v2118
    %v2557 = vunpack.c.h.b16 %v2118
    %v2558 = vunpack.c.l.b16 %v2119
    %v2559 = vunpack.c.h.b16 %v2119
    %v2560 = vunpack.c.l.b16 %v2120
    %v2561 = vunpack.c.h.b16 %v2120
    %v2562 = vunpack.c.l.b16 %v2121
    %v2563 = vunpack.c.h.b16 %v2121
    %v2564 = vunpack.c.l.b16 %v2122
    %v2565 = vunpack.c.h.b16 %v2122
    %v2566 = vunpack.c.l.b16 %v2123
    %v2567 = vunpack.c.h.b16 %v2123
    %v2568 = vunpack.c.l.b16 %v2124
    %v2569 = vunpack.c.h.b16 %v2124
    %v2570 = vunpack.c.l.b16 %v2125
    %v2571 = vunpack.c.h.b16 %v2125
    %v2572 = vunpack.c.l.b16 %v2126
    %v2573 = vunpack.c.h.b16 %v2126
    %v2574 = vunpack.c.l.b16 %v2127
    %v2575 = vunpack.c.h.b16 %v2127
    %v2576 = vunpack.c.l.b16 %v2128
    %v2577 = vunpack.c.h.b16 %v2128
    %v2578 = vunpack.c.l.b16 %v2129
    %v2579 = vunpack.c.h.b16 %v2129
    %v2580 = vunpack.c.l.b16 %v2130
    %v2581 = vunpack.c.h.b16 %v2130
    %v2582 = vunpack.c.l.b16 %v2131
    %v2583 = vunpack.c.h.b16 %v2131
    %v2584 = vunpack.c.l.b16 %v2132
    %v2585 = vunpack.c.h.b16 %v2132
    %v2586 = vunpack.c.l.b16 %v2133
    %v2587 = vunpack.c.h.b16 %v2133
    %v2588 = vunpack.c.l.b16 %v2134
    %v2589 = vunpack.c.h.b16 %v2134
    %v2590 = vunpack.c.l.b16 %v2135
    %v2591 = vunpack.c.h.b16 %v2135
    %v2592 = vunpack.c.l.b16 %v2136
    %v2593 = vunpack.c.h.b16 %v2136
    %v2594 = vunpack.c.l.b16 %v2137
    %v2595 = vunpack.c.h.b16 %v2137
    %v2596 = vunpack.c.l.b16 %v2138
    %v2597 = vunpack.c.h.b16 %v2138
    %v2598 = vunpack.c.l.b16 %v2139
    %v2599 = vunpack.c.h.b16 %v2139
    %v2600 = vunpack.c.l.b16 %v2140
    %v2601 = vunpack.c.h.b16 %v2140
    %v2602 = vunpack.c.l.b16 %v2141
    %v2603 = vunpack.c.h.b16 %v2141
    %v2604 = vunpack.c.l.b16 %v2142
    %v2605 = vunpack.c.h.b16 %v2142
    %v2606 = vunpack.c.l.b16 %v2143
    %v2607 = vunpack.c.h.b16 %v2143
    %v2608 = vunpack.c.l.b16 %v2144
    %v2609 = vunpack.c.h.b16 %v2144
    %v2610 = vunpack.c.l.b16 %v2145
    %v2611 = vunpack.c.h.b16 %v2145
    %v2612 = vunpack.c.l.b16 %v2146
    %v2613 = vunpack.c.h.b16 %v2146
    %v2614 = vunpack.c.l.b16 %v2147
    %v2615 = vunpack.c.h.b16 %v2147
    %v2616 = vunpack.c.l.b16 %v2148
    %v2617 = vunpack.c.h.b16 %v2148
    %v2618 = vunpack.c.l.b16 %v2149
    %v2619 = vunpack.c.h.b16 %v2149
    %v2620 = vunpack.c.l.b16 %v2150
    %v2621 = vunpack.c.h.b16 %v2150
    %v2622 = vunpack.c.l.b16 %v2151
    %v2623 = vunpack.c.h.b16 %v2151
    %v2624 = vunpack.c.l.b16 %v2152
    %v2625 = vunpack.c.h.b16 %v2152
    %v2626 = vunpack.c.l.b16 %v2153
    %v2627 = vunpack.c.h.b16 %v2153
    %v2628 = vunpack.c.l.b16 %v2154
    %v2629 = vunpack.c.h.b16 %v2154
    %v2630 = vunpack.c.l.b16 %v2155
    %v2631 = vunpack.c.h.b16 %v2155
    %v2632 = vunpack.c.l.b16 %v2156
    %v2633 = vunpack.c.h.b16 %v2156
    %v2634 = vunpack.c.l.b16 %v2157
    %v2635 = vunpack.c.h.b16 %v2157
    %v2636 = vunpack.c.l.b16 %v2158
    %v2637 = vunpack.c.h.b16 %v2158
    %v2638 = vunpack.c.l.b16 %v2159
    %v2639 = vunpack.c.h.b16 %v2159
    %v2640 = vunpack.c.l.b16 %v2160
    %v2641 = vunpack.c.h.b16 %v2160
    %v2642 = vunpack.c.l.b16 %v2161
    %v2643 = vunpack.c.h.b16 %v2161
    %v2644 = vunpack.c.l.b16 %v2162
    %v2645 = vunpack.c.h.b16 %v2162
    %v2646 = vunpack.c.l.b16 %v2163
    %v2647 = vunpack.c.h.b16 %v2163
    %v2648 = vunpack.c.l.b16 %v2164
    %v2649 = vunpack.c.h.b16 %v2164
    %v2650 = vunpack.c.l.b16 %v2165
    %v2651 = vunpack.c.h.b16 %v2165
    %v2652 = vunpack.c.l.b16 %v2166
    %v2653 = vunpack.c.h.b16 %v2166
    %v2654 = vunpack.c.l.b16 %v2167
    %v2655 = vunpack.c.h.b16 %v2167
    %v2656 = vunpack.c.l.b16 %v2168
    %v2657 = vunpack.c.h.b16 %v2168
    %v2658 = vunpack.c.l.b16 %v2169
    %v2659 = vunpack.c.h.b16 %v2169
    %v2660 = vunpack.c.l.b16 %v2170
    %v2661 = vunpack.c.h.b16 %v2170
    %v2662 = vunpack.c.l.b16 %v2171
    %v2663 = vunpack.c.h.b16 %v2171
    %v2664 = vunpack.c.l.b16 %v2172
    %v2665 = vunpack.c.h.b16 %v2172
    %v2666 = vunpack.c.l.b16 %v2173
    %v2667 = vunpack.c.h.b16 %v2173
    %v2668 = vunpack.c.l.b16 %v2174
    %v2669 = vunpack.c.h.b16 %v2174
    %v2670 = vunpack.c.l.b16 %v2175
    %v2671 = vunpack.c.h.b16 %v2175
    %v2672 = vunpack.c.l.b16 %v2176
    %v2673 = vunpack.c.h.b16 %v2176
    %v2674 = vunpack.c.l.b16 %v2177
    %v2675 = vunpack.c.h.b16 %v2177
    %v2676 = vunpack.c.l.b16 %v2178
    %v2677 = vunpack.c.h.b16 %v2178
    %v2678 = vunpack.c.l.b16 %v2179
    %v2679 = vunpack.c.h.b16 %v2179
    %v2680 = vunpack.c.l.b16 %v2180
    %v2681 = vunpack.c.h.b16 %v2180
    %v2682 = vunpack.c.l.b16 %v2181
    %v2683 = vunpack.c.h.b16 %v2181
    %v2684 = vunpack.c.l.b16 %v2182
    %v2685 = vunpack.c.h.b16 %v2182
    %v2686 = vunpack.c.l.b16 %v2183
    %v2687 = vunpack.c.h.b16 %v2183
    %v2688 = vunpack.c.l.b16 %v2184
    %v2689 = vunpack.c.h.b16 %v2184
    %v2690 = vunpack.c.l.b16 %v2185
    %v2691 = vunpack.c.h.b16 %v2185
    %v2692 = vunpack.c.l.b16 %v2186
    %v2693 = vunpack.c.h.b16 %v2186
    %v2694 = vunpack.c.l.b16 %v2187
    %v2695 = vunpack.c.h.b16 %v2187
    %v2696 = vunpack.c.l.b16 %v2188
    %v2697 = vunpack.c.h.b16 %v2188
    %v2698 = vunpack.c.l.b16 %v2189
    %v2699 = vunpack.c.h.b16 %v2189
    %v2700 = vunpack.c.l.b16 %v2190
    %v2701 = vunpack.c.h.b16 %v2190
    %v2702 = vunpack.c.l.b16 %v2191
    %v2703 = vunpack.c.h.b16 %v2191
    %v2704 = vunpack.c.l.b16 %v2192
    %v2705 = vunpack.c.h.b16 %v2192
    %v2706 = vunpack.c.l.b16 %v2193
    %v2707 = vunpack.c.h.b16 %v2193
    %v2708 = vunpack.c.l.b16 %v2194
    %v2709 = vunpack.c.h.b16 %v2194
    %v2710 = vunpack.c.l.b16 %v2195
    %v2711 = vunpack.c.h.b16 %v2195
    %v2712 = vunpack.c.l.b16 %v2196
    %v2713 = vunpack.c.h.b16 %v2196
    %v2714 = vunpack.c.l.b16 %v2197
    %v2715 = vunpack.c.h.b16 %v2197
    %v2716 = vunpack.c.l.b16 %v2198
    %v2717 = vunpack.c.h.b16 %v2198
    %v2718 = vunpack.c.l.b16 %v2199
    %v2719 = vunpack.c.h.b16 %v2199
    %v2720 = vunpack.c.l.b16 %v2200
    %v2721 = vunpack.c.h.b16 %v2200
    %v2722 = vunpack.c.l.b16 %v2201
    %v2723 = vunpack.c.h.b16 %v2201
    %v2724 = vunpack.c.l.b16 %v2202
    %v2725 = vunpack.c.h.b16 %v2202
    %v2726 = vunpack.c.l.b16 %v2203
    %v2727 = vunpack.c.h.b16 %v2203
    %v2728 = vunpack.c.l.b16 %v2204
    %v2729 = vunpack.c.h.b16 %v2204
    %v2730 = vunpack.c.l.b16 %v2205
    %v2731 = vunpack.c.h.b16 %v2205
    %v2732 = vunpack.c.l.b16 %v2206
    %v2733 = vunpack.c.h.b16 %v2206
    %v2734 = vunpack.c.l.b16 %v2207
    %v2735 = vunpack.c.h.b16 %v2207
    %v2736 = vunpack.c.l.b16 %v2208
    %v2737 = vunpack.c.h.b16 %v2208
    %v2738 = vunpack.c.l.b16 %v2209
    %v2739 = vunpack.c.h.b16 %v2209
    %v2740 = vunpack.c.l.b16 %v2210
    %v2741 = vunpack.c.h.b16 %v2210
    %v2742 = vunpack.c.l.b16 %v2211
    %v2743 = vunpack.c.h.b16 %v2211
    %v2744 = vunpack.c.l.b16 %v2212
    %v2745 = vunpack.c.h.b16 %v2212
    %v2746 = vunpack.c.l.b16 %v2213
    %v2747 = vunpack.c.h.b16 %v2213
    %v2748 = vunpack.c.l.b16 %v2214
    %v2749 = vunpack.c.h.b16 %v2214
    %v2750 = vunpack.c.l.b16 %v2215
    %v2751 = vunpack.c.h.b16 %v2215
    %v2752 = vunpack.c.l.b16 %v2216
    %v2753 = vunpack.c.h.b16 %v2216
    %v2754 = vunpack.c.l.b16 %v2217
    %v2755 = vunpack.c.h.b16 %v2217
    %v2756 = vunpack.c.l.b16 %v2218
    %v2757 = vunpack.c.h.b16 %v2218
    %v2758 = vunpack.c.l.b16 %v2219
    %v2759 = vunpack.c.h.b16 %v2219
    %v2760 = vunpack.c.l.b16 %v2220
    %v2761 = vunpack.c.h.b16 %v2220
    %v2762 = vunpack.c.l.b16 %v2221
    %v2763 = vunpack.c.h.b16 %v2221
    %v2764 = vunpack.c.l.b16 %v2222
    %v2765 = vunpack.c.h.b16 %v2222
    %v2766 = vunpack.c.l.b16 %v2223
    %v2767 = vunpack.c.h.b16 %v2223
    %v2768 = vunpack.c.l.b16 %v2224
    %v2769 = vunpack.c.h.b16 %v2224
    %v2770 = vunpack.c.l.b16 %v2225
    %v2771 = vunpack.c.h.b16 %v2225
    %v2772 = vunpack.c.l.b16 %v2226
    %v2773 = vunpack.c.h.b16 %v2226
    %v2774 = vunpack.c.l.b16 %v2227
    %v2775 = vunpack.c.h.b16 %v2227
    %v2776 = vunpack.c.l.b16 %v2228
    %v2777 = vunpack.c.h.b16 %v2228
    %v2778 = vunpack.c.l.b16 %v2229
    %v2779 = vunpack.c.h.b16 %v2229
    %v2780 = vunpack.c.l.b16 %v2230
    %v2781 = vunpack.c.h.b16 %v2230
    %v2782 = vunpack.c.l.b16 %v2231
    %v2783 = vunpack.c.h.b16 %v2231
    %v2784 = vunpack.c.l.b16 %v2232
    %v2785 = vunpack.c.h.b16 %v2232
    %v2786 = vunpack.c.l.b16 %v2233
    %v2787 = vunpack.c.h.b16 %v2233
    %v2788 = vunpack.c.l.b16 %v2234
    %v2789 = vunpack.c.h.b16 %v2234
    %v2790 = vunpack.c.l.b16 %v2235
    %v2791 = vunpack.c.h.b16 %v2235
    %v2792 = vunpack.c.l.b16 %v2236
    %v2793 = vunpack.c.h.b16 %v2236
    %v2794 = vunpack.c.l.b16 %v2237
    %v2795 = vunpack.c.h.b16 %v2237
    %v2796 = vunpack.c.l.b16 %v2238
    %v2797 = vunpack.c.h.b16 %v2238
    %v2798 = vunpack.c.l.b16 %v2239
    %v2799 = vunpack.c.h.b16 %v2239
    %v2800 = vunpack.c.l.b16 %v2240
    %v2801 = vunpack.c.h.b16 %v2240
    %v2802 = vunpack.c.l.b16 %v2241
    %v2803 = vunpack.c.h.b16 %v2241
    %v2804 = vunpack.c.l.b16 %v2242
    %v2805 = vunpack.c.h.b16 %v2242
    %v2806 = vunpack.c.l.b16 %v2243
    %v2807 = vunpack.c.h.b16 %v2243
    %v2808 = vunpack.c.l.b16 %v2244
    %v2809 = vunpack.c.h.b16 %v2244
    %v2810 = vunpack.c.l.b16 %v2245
    %v2811 = vunpack.c.h.b16 %v2245
    %v2812 = vunpack.c.l.b16 %v2246
    %v2813 = vunpack.c.h.b16 %v2246
    %v2814 = vunpack.c.l.b16 %v2247
    %v2815 = vunpack.c.h.b16 %v2247
    %v2816 = vunpack.c.l.b16 %v2248
    %v2817 = vunpack.c.h.b16 %v2248
    %v2818 = vunpack.c.l.b16 %v2249
    %v2819 = vunpack.c.h.b16 %v2249
    %v2820 = vunpack.c.l.b16 %v2250
    %v2821 = vunpack.c.h.b16 %v2250
    %v2822 = vunpack.c.l.b16 %v2251
    %v2823 = vunpack.c.h.b16 %v2251
    %v2824 = vunpack.c.l.b16 %v2252
    %v2825 = vunpack.c.h.b16 %v2252
    %v2826 = vpack.c.b16 %v2540, %v2538
    %v2827 = vpack.c.b16 %v2541, %v2539
    %v2828 = vpack.c.b16 %v2544, %v2542
    %v2829 = vpack.c.b16 %v2545, %v2543
    %v2830 = vpack.c.b16 %v2548, %v2546
    %v2831 = vpack.c.b16 %v2549, %v2547
    %v2832 = vpack.c.b16 %v2552, %v2550
    %v2833 = vpack.c.b16 %v2553, %v2551
    %v2834 = vpack.c.b16 %v2556, %v2554
    %v2835 = vpack.c.b16 %v2557, %v2555
    %v2836 = vpack.c.b16 %v2560, %v2558
    %v2837 = vpack.c.b16 %v2561, %v2559
    %v2838 = vpack.c.b16 %v2564, %v2562
    %v2839 = vpack.c.b16 %v2565, %v2563
    %v2840 = vpack.c.b16 %v2568, %v2566
    %v2841 = vpack.c.b16 %v2569, %v2567
    %v2842 = vpack.c.b16 %v2572, %v2570
    %v2843 = vpack.c.b16 %v2573, %v2571
    %v2844 = vpack.c.b16 %v2576, %v2574
    %v2845 = vpack.c.b16 %v2577, %v2575
    %v2846 = vpack.c.b16 %v2580, %v2578
    %v2847 = vpack.c.b16 %v2581, %v2579
    %v2848 = vpack.c.b16 %v2584, %v2582
    %v2849 = vpack.c.b16 %v2585, %v2583
    %v2850 = vpack.c.b16 %v2588, %v2586
    %v2851 = vpack.c.b16 %v2589, %v2587
    %v2852 = vpack.c.b16 %v2592, %v2590
    %v2853 = vpack.c.b16 %v2593, %v2591
    %v2854 = vpack.c.b16 %v2596, %v2594
    %v2855 = vpack.c.b16 %v2597, %v2595
    %v2856 = vpack.c.b16 %v2600, %v2598
    %v2857 = vpack.c.b16 %v2601, %v2599
    %v2858 = vpack.c.b16 %v2604, %v2602
    %v2859 = vpack.c.b16 %v2605, %v2603
    %v2860 = vpack.c.b16 %v2608, %v2606
    %v2861 = vpack.c.b16 %v2609, %v2607
    %v2862 = vpack.c.b16 %v2612, %v2610
    %v2863 = vpack.c.b16 %v2613, %v2611
    %v2864 = vpack.c.b16 %v2616, %v2614
    %v2865 = vpack.c.b16 %v2617, %v2615
    %v2866 = vpack.c.b16 %v2620, %v2618
    %v2867 = vpack.c.b16 %v2621, %v2619
    %v2868 = vpack.c.b16 %v2624, %v2622
    %v2869 = vpack.c.b16 %v2625, %v2623
    %v2870 = vpack.c.b16 %v2628, %v2626
    %v2871 = vpack.c.b16 %v2629, %v2627
    %v2872 = vpack.c.b16 %v2632, %v2630
    %v2873 = vpack.c.b16 %v2633, %v2631
    %v2874 = vpack.c.b16 %v2636, %v2634
    %v2875 = vpack.c.b16 %v2637, %v2635
    %v2876 = vpack.c.b16 %v2640, %v2638
    %v2877 = vpack.c.b16 %v2641, %v2639
    %v2878 = vpack.c.b16 %v2644, %v2642
    %v2879 = vpack.c.b16 %v2645, %v2643
    %v2880 = vpack.c.b16 %v2648, %v2646
    %v2881 = vpack.c.b16 %v2649, %v2647
    %v2882 = vpack.c.b16 %v2652, %v2650
    %v2883 = vpack.c.b16 %v2653, %v2651
    %v2884 = vpack.c.b16 %v2656, %v2654
    %v2885 = vpack.c.b16 %v2657, %v2655
    %v2886 = vpack.c.b16 %v2660, %v2658
    %v2887 = vpack.c.b16 %v2661, %v2659
    %v2888 = vpack.c.b16 %v2664, %v2662
    %v2889 = vpack.c.b16 %v2665, %v2663
    %v2890 = vpack.c.b16 %v2668, %v2666
    %v2891 = vpack.c.b16 %v2669, %v2667
    %v2892 = vpack.c.b16 %v2672, %v2670
    %v2893 = vpack.c.b16 %v2673, %v2671
    %v2894 = vpack.c.b16 %v2676, %v2674
    %v2895 = vpack.c.b16 %v2677, %v2675
    %v2896 = vpack.c.b16 %v2680, %v2678
    %v2897 = vpack.c.b16 %v2681, %v2679
    %v2898 = vpack.c.b16 %v2684, %v2682
    %v2899 = vpack.c.b16 %v2685, %v2683
    %v2900 = vpack.c.b16 %v2688, %v2686
    %v2901 = vpack.c.b16 %v2689, %v2687
    %v2902 = vpack.c.b16 %v2692, %v2690
    %v2903 = vpack.c.b16 %v2693, %v2691
    %v2904 = vpack.c.b16 %v2696, %v2694
    %v2905 = vpack.c.b16 %v2697, %v2695
    %v2906 = vpack.c.b16 %v2700, %v2698
    %v2907 = vpack.c.b16 %v2701, %v2699
    %v2908 = vpack.c.b16 %v2704, %v2702
    %v2909 = vpack.c.b16 %v2705, %v2703
    %v2910 = vpack.c.b16 %v2708, %v2706
    %v2911 = vpack.c.b16 %v2709, %v2707
    %v2912 = vpack.c.b16 %v2712, %v2710
    %v2913 = vpack.c.b16 %v2713, %v2711
    %v2914 = vpack.c.b16 %v2716, %v2714
    %v2915 = vpack.c.b16 %v2717, %v2715
    %v2916 = vpack.c.b16 %v2720, %v2718
    %v2917 = vpack.c.b16 %v2721, %v2719
    %v2918 = vpack.c.b16 %v2724, %v2722
    %v2919 = vpack.c.b16 %v2725, %v2723
    %v2920 = vpack.c.b16 %v2728, %v2726
    %v2921 = vpack.c.b16 %v2729, %v2727
    %v2922 = vpack.c.b16 %v2732, %v2730
    %v2923 = vpack.c.b16 %v2733, %v2731
    %v2924 = vpack.c.b16 %v2736, %v2734
    %v2925 = vpack.c.b16 %v2737, %v2735
    %v2926 = vpack.c.b16 %v2740, %v2738
    %v2927 = vpack.c.b16 %v2741, %v2739
    %v2928 = vpack.c.b16 %v2744, %v2742
    %v2929 = vpack.c.b16 %v2745, %v2743
    %v2930 = vpack.c.b16 %v2748, %v2746
    %v2931 = vpack.c.b16 %v2749, %v2747
    %v2932 = vpack.c.b16 %v2752, %v2750
    %v2933 = vpack.c.b16 %v2753, %v2751
    %v2934 = vpack.c.b16 %v2756, %v2754
    %v2935 = vpack.c.b16 %v2757, %v2755
    %v2936 = vpack.c.b16 %v2760, %v2758
    %v2937 = vpack.c.b16 %v2761, %v2759
    %v2938 = vpack.c.b16 %v2764, %v2762
    %v2939 = vpack.c.b16 %v2765, %v2763
    %v2940 = vpack.c.b16 %v2768, %v2766
    %v2941 = vpack.c.b16 %v2769, %v2767
    %v2942 = vpack.c.b16 %v2772, %v2770
    %v2943 = vpack.c.b16 %v2773, %v2771
    %v2944 = vpack.c.b16 %v2776, %v2774
    %v2945 = vpack.c.b16 %v2777, %v2775
    %v2946 = vpack.c.b16 %v2780, %v2778
    %v2947 = vpack.c.b16 %v2781, %v2779
    %v2948 = vpack.c.b16 %v2784, %v2782
    %v2949 = vpack.c.b16 %v2785, %v2783
    %v2950 = vpack.c.b16 %v2788, %v2786
    %v2951 = vpack.c.b16 %v2789, %v2787
    %v2952 = vpack.c.b16 %v2792, %v2790
    %v2953 = vpack.c.b16 %v2793, %v2791
    %v2954 = vpack.c.b16 %v2796, %v2794
    %v2955 = vpack.c.b16 %v2797, %v2795
    %v2956 = vpack.c.b16 %v2800, %v2798
    %v2957 = vpack.c.b16 %v2801, %v2799
    %v2958 = vpack.c.b16 %v2804, %v2802
    %v2959 = vpack.c.b16 %v2805, %v2803
    %v2960 = vpack.c.b16 %v2808, %v2806
    %v2961 = vpack.c.b16 %v2809, %v2807
    %v2962 = vpack.c.b16 %v2812, %v2810
    %v2963 = vpack.c.b16 %v2813, %v2811
    %v2964 = vpack.c.b16 %v2816, %v2814
    %v2965 = vpack.c.b16 %v2817, %v2815
    %v2966 = vpack.c.b16 %v2820, %v2818
    %v2967 = vpack.c.b16 %v2821, %v2819
    %v2968 = vpack.c.b16 %v2824, %v2822
    %v2969 = vpack.c.b16 %v2825, %v2823
    %3114 = vmatpush.bf16.msra.mxu0 %v2840
    %3115 = vmatpush.bf16.msra.mxu0 %v2838
    %3116 = vmatpush.bf16.msra.mxu0 %v2836
    %3117 = vmatpush.bf16.msra.mxu0 %v2834
    %3118 = vmatpush.bf16.msra.mxu0 %v2832
    %3119 = vmatpush.bf16.msra.mxu0 %v2830
    %3120 = vmatpush.bf16.msra.mxu0 %v2828
    %3121 = vmatpush.bf16.msra.mxu0 %v2826
    %3122 = vmatmul.bf16.gmra.mxu0 %v2297
    %v3123 = vpop.f32.mrf.mxu0
    %v3124 = vadd.f32 %v2255, %v3123
    %v3125 = vpop.f32.mrf.mxu0
    %v3126 = vadd.f32 %v2255, %v3125
    %3127 = vmatmul.bf16.gmra.mxu0 %v2323
    %v3128 = vpop.f32.mrf.mxu0
    %v3129 = vadd.f32 %v2255, %v3128
    %v3130 = vpop.f32.mrf.mxu0
    %v3131 = vadd.f32 %v2255, %v3130
    %3132 = vmatmul.bf16.gmra.mxu0 %v2341
    %v3133 = vpop.f32.mrf.mxu0
    %v3134 = vadd.f32 %v2255, %v3133
    %v3135 = vpop.f32.mrf.mxu0
    %v3136 = vadd.f32 %v2255, %v3135
    %3137 = vmatmul.bf16.gmra.mxu0 %v2340
    %v3138 = vpop.f32.mrf.mxu0
    %v3139 = vadd.f32 %v2255, %v3138
    %v3140 = vpop.f32.mrf.mxu0
    %3141 = vdwg.mxu0
    %3142 = vmatpush.bf16.msra.mxu0 %v2856
    %3143 = vmatpush.bf16.msra.mxu0 %v2854
    %3144 = vmatpush.bf16.msra.mxu0 %v2852
    %3145 = vmatpush.bf16.msra.mxu0 %v2850
    %3146 = vmatpush.bf16.msra.mxu0 %v2848
    %3147 = vmatpush.bf16.msra.mxu0 %v2846
    %3148 = vmatpush.bf16.msra.mxu0 %v2844
    %3149 = vmatpush.bf16.msra.mxu0 %v2842
    %3150 = vmatmul.bf16.gmra.mxu0 %v2300
    %v3151 = vpop.f32.mrf.mxu0
    %v3152 = vadd.f32 %v3124, %v3151
    %v3153 = vpop.f32.mrf.mxu0
    %v3154 = vadd.f32 %v3126, %v3153
    %3155 = vmatmul.bf16.gmra.mxu0 %v2325
    %v3156 = vpop.f32.mrf.mxu0
    %v3157 = vadd.f32 %v3129, %v3156
    %v3158 = vpop.f32.mrf.mxu0
    %v3159 = vadd.f32 %v3131, %v3158
    %3160 = vmatmul.bf16.gmra.mxu0 %v2343
    %v3161 = vpop.f32.mrf.mxu0
    %v3162 = vadd.f32 %v3134, %v3161
    %v3163 = vpop.f32.mrf.mxu0
    %v3164 = vadd.f32 %v3136, %v3163
    %3165 = vmatmul.bf16.gmra.mxu0 %v2342
    %v3166 = vpop.f32.mrf.mxu0
    %v3167 = vadd.f32 %v3139, %v3166
    %v3168 = vpop.f32.mrf.mxu0
    %3169 = vdwg.mxu0
    %3170 = vmatpush.bf16.msra.mxu0 %v2872
    %3171 = vmatpush.bf16.msra.mxu0 %v2870
    %3172 = vmatpush.bf16.msra.mxu0 %v2868
    %3173 = vmatpush.bf16.msra.mxu0 %v2866
    %3174 = vmatpush.bf16.msra.mxu0 %v2864
    %3175 = vmatpush.bf16.msra.mxu0 %v2862
    %3176 = vmatpush.bf16.msra.mxu0 %v2860
    %3177 = vmatpush.bf16.msra.mxu0 %v2858
    %3178 = vmatmul.bf16.gmra.mxu0 %v2303
    %v3179 = vpop.f32.mrf.mxu0
    %v3180 = vadd.f32 %v3152, %v3179
    %v3181 = vpop.f32.mrf.mxu0
    %v3182 = vadd.f32 %v3154, %v3181
    %3183 = vmatmul.bf16.gmra.mxu0 %v2327
    %v3184 = vpop.f32.mrf.mxu0
    %v3185 = vadd.f32 %v3157, %v3184
    %v3186 = vpop.f32.mrf.mxu0
    %v3187 = vadd.f32 %v3159, %v3186
    %3188 = vmatmul.bf16.gmra.mxu0 %v2345
    %v3189 = vpop.f32.mrf.mxu0
    %v3190 = vadd.f32 %v3162, %v3189
    %v3191 = vpop.f32.mrf.mxu0
    %v3192 = vadd.f32 %v3164, %v3191
    %3193 = vmatmul.bf16.gmra.mxu0 %v2344
    %v3194 = vpop.f32.mrf.mxu0
    %v3195 = vadd.f32 %v3167, %v3194
    %v3196 = vpop.f32.mrf.mxu0
    %3197 = vdwg.mxu0
    %3198 = vmatpush.bf16.msra.mxu0 %v2888
    %3199 = vmatpush.bf16.msra.mxu0 %v2886
    %3200 = vmatpush.bf16.msra.mxu0 %v2884
    %3201 = vmatpush.bf16.msra.mxu0 %v2882
    %3202 = vmatpush.bf16.msra.mxu0 %v2880
    %3203 = vmatpush.bf16.msra.mxu0 %v2878
    %3204 = vmatpush.bf16.msra.mxu0 %v2876
    %3205 = vmatpush.bf16.msra.mxu0 %v2874
    %3206 = vmatmul.bf16.gmra.mxu0 %v2306
    %v3207 = vpop.f32.mrf.mxu0
    %v3208 = vadd.f32 %v3180, %v3207
    %v3209 = vpop.f32.mrf.mxu0
    %v3210 = vadd.f32 %v3182, %v3209
    %3211 = vmatmul.bf16.gmra.mxu0 %v2329
    %v3212 = vpop.f32.mrf.mxu0
    %v3213 = vadd.f32 %v3185, %v3212
    %v3214 = vpop.f32.mrf.mxu0
    %v3215 = vadd.f32 %v3187, %v3214
    %3216 = vmatmul.bf16.gmra.mxu0 %v2347
    %v3217 = vpop.f32.mrf.mxu0
    %v3218 = vadd.f32 %v3190, %v3217
    %v3219 = vpop.f32.mrf.mxu0
    %v3220 = vadd.f32 %v3192, %v3219
    %3221 = vmatmul.bf16.gmra.mxu0 %v2346
    %v3222 = vpop.f32.mrf.mxu0
    %v3223 = vadd.f32 %v3195, %v3222
    %v3224 = vpop.f32.mrf.mxu0
    %3225 = vdwg.mxu0
    %3226 = vmatpush.bf16.msra.mxu0 %v2904
    %3227 = vmatpush.bf16.msra.mxu0 %v2902
    %3228 = vmatpush.bf16.msra.mxu0 %v2900
    %3229 = vmatpush.bf16.msra.mxu0 %v2898
    %3230 = vmatpush.bf16.msra.mxu0 %v2896
    %3231 = vmatpush.bf16.msra.mxu0 %v2894
    %3232 = vmatpush.bf16.msra.mxu0 %v2892
    %3233 = vmatpush.bf16.msra.mxu0 %v2890
    %3234 = vmatmul.bf16.gmra.mxu0 %v2309
    %v3235 = vpop.f32.mrf.mxu0
    %v3236 = vadd.f32 %v3208, %v3235
    %v3237 = vpop.f32.mrf.mxu0
    %v3238 = vadd.f32 %v3210, %v3237
    %3239 = vmatmul.bf16.gmra.mxu0 %v2331
    %v3240 = vpop.f32.mrf.mxu0
    %v3241 = vadd.f32 %v3213, %v3240
    %v3242 = vpop.f32.mrf.mxu0
    %v3243 = vadd.f32 %v3215, %v3242
    %3244 = vmatmul.bf16.gmra.mxu0 %v2349
    %v3245 = vpop.f32.mrf.mxu0
    %v3246 = vadd.f32 %v3218, %v3245
    %v3247 = vpop.f32.mrf.mxu0
    %v3248 = vadd.f32 %v3220, %v3247
    %3249 = vmatmul.bf16.gmra.mxu0 %v2348
    %v3250 = vpop.f32.mrf.mxu0
    %v3251 = vadd.f32 %v3223, %v3250
    %v3252 = vpop.f32.mrf.mxu0
    %3253 = vdwg.mxu0
    %3254 = vmatpush.bf16.msra.mxu0 %v2920
    %3255 = vmatpush.bf16.msra.mxu0 %v2918
    %3256 = vmatpush.bf16.msra.mxu0 %v2916
    %3257 = vmatpush.bf16.msra.mxu0 %v2914
    %3258 = vmatpush.bf16.msra.mxu0 %v2912
    %3259 = vmatpush.bf16.msra.mxu0 %v2910
    %3260 = vmatpush.bf16.msra.mxu0 %v2908
    %3261 = vmatpush.bf16.msra.mxu0 %v2906
    %3262 = vmatmul.bf16.gmra.mxu0 %v2312
    %v3263 = vpop.f32.mrf.mxu0
    %v3264 = vadd.f32 %v3236, %v3263
    %v3265 = vpop.f32.mrf.mxu0
    %v3266 = vadd.f32 %v3238, %v3265
    %3267 = vmatmul.bf16.gmra.mxu0 %v2333
    %v3268 = vpop.f32.mrf.mxu0
    %v3269 = vadd.f32 %v3241, %v3268
    %v3270 = vpop.f32.mrf.mxu0
    %v3271 = vadd.f32 %v3243, %v3270
    %3272 = vmatmul.bf16.gmra.mxu0 %v2351
    %v3273 = vpop.f32.mrf.mxu0
    %v3274 = vadd.f32 %v3246, %v3273
    %v3275 = vpop.f32.mrf.mxu0
    %v3276 = vadd.f32 %v3248, %v3275
    %3277 = vmatmul.bf16.gmra.mxu0 %v2350
    %v3278 = vpop.f32.mrf.mxu0
    %v3279 = vadd.f32 %v3251, %v3278
    %v3280 = vpop.f32.mrf.mxu0
    %3281 = vdwg.mxu0
    %3282 = vmatpush.bf16.msra.mxu0 %v2936
    %3283 = vmatpush.bf16.msra.mxu0 %v2934
    %3284 = vmatpush.bf16.msra.mxu0 %v2932
    %3285 = vmatpush.bf16.msra.mxu0 %v2930
    %3286 = vmatpush.bf16.msra.mxu0 %v2928
    %3287 = vmatpush.bf16.msra.mxu0 %v2926
    %3288 = vmatpush.bf16.msra.mxu0 %v2924
    %3289 = vmatpush.bf16.msra.mxu0 %v2922
    %3290 = vmatmul.bf16.gmra.mxu0 %v2315
    %v3291 = vpop.f32.mrf.mxu0
    %v3292 = vadd.f32 %v3264, %v3291
    %v3293 = vpop.f32.mrf.mxu0
    %v3294 = vadd.f32 %v3266, %v3293
    %3295 = vmatmul.bf16.gmra.mxu0 %v2335
    %v3296 = vpop.f32.mrf.mxu0
    %v3297 = vadd.f32 %v3269, %v3296
    %v3298 = vpop.f32.mrf.mxu0
    %v3299 = vadd.f32 %v3271, %v3298
    %3300 = vmatmul.bf16.gmra.mxu0 %v2353
    %v3301 = vpop.f32.mrf.mxu0
    %v3302 = vadd.f32 %v3274, %v3301
    %v3303 = vpop.f32.mrf.mxu0
    %v3304 = vadd.f32 %v3276, %v3303
    %3305 = vmatmul.bf16.gmra.mxu0 %v2352
    %v3306 = vpop.f32.mrf.mxu0
    %v3307 = vadd.f32 %v3279, %v3306
    %v3308 = vpop.f32.mrf.mxu0
    %3309 = vdwg.mxu0
    %3310 = vmatpush.bf16.msra.mxu0 %v2952
    %3311 = vmatpush.bf16.msra.mxu0 %v2950
    %3312 = vmatpush.bf16.msra.mxu0 %v2948
    %3313 = vmatpush.bf16.msra.mxu0 %v2946
    %3314 = vmatpush.bf16.msra.mxu0 %v2944
    %3315 = vmatpush.bf16.msra.mxu0 %v2942
    %3316 = vmatpush.bf16.msra.mxu0 %v2940
    %3317 = vmatpush.bf16.msra.mxu0 %v2938
    %3318 = vmatmul.bf16.gmra.mxu0 %v2318
    %v3319 = vpop.f32.mrf.mxu0
    %v3320 = vadd.f32 %v3292, %v3319
    %v3321 = vpop.f32.mrf.mxu0
    %v3322 = vadd.f32 %v3294, %v3321
    %3323 = vmatmul.bf16.gmra.mxu0 %v2337
    %v3324 = vpop.f32.mrf.mxu0
    %v3325 = vadd.f32 %v3297, %v3324
    %v3326 = vpop.f32.mrf.mxu0
    %v3327 = vadd.f32 %v3299, %v3326
    %3328 = vmatmul.bf16.gmra.mxu0 %v2355
    %v3329 = vpop.f32.mrf.mxu0
    %v3330 = vadd.f32 %v3302, %v3329
    %v3331 = vpop.f32.mrf.mxu0
    %v3332 = vadd.f32 %v3304, %v3331
    %3333 = vmatmul.bf16.gmra.mxu0 %v2354
    %v3334 = vpop.f32.mrf.mxu0
    %v3335 = vadd.f32 %v3307, %v3334
    %v3336 = vpop.f32.mrf.mxu0
    %3337 = vdwg.mxu0
    %3338 = vmatpush.bf16.msra.mxu0 %v2968
    %3339 = vmatpush.bf16.msra.mxu0 %v2966
    %3340 = vmatpush.bf16.msra.mxu0 %v2964
    %3341 = vmatpush.bf16.msra.mxu0 %v2962
    %3342 = vmatpush.bf16.msra.mxu0 %v2960
    %3343 = vmatpush.bf16.msra.mxu0 %v2958
    %3344 = vmatpush.bf16.msra.mxu0 %v2956
    %3345 = vmatpush.bf16.msra.mxu0 %v2954
    %3346 = vmatmul.bf16.gmra.mxu0 %v2321
    %v3347 = vpop.f32.mrf.mxu0
    %v3348 = vadd.f32 %v3320, %v3347
    %v3349 = vpop.f32.mrf.mxu0
    %v3350 = vadd.f32 %v3322, %v3349
    %3351 = vmatmul.bf16.gmra.mxu0 %v2339
    %v3352 = vpop.f32.mrf.mxu0
    %v3353 = vadd.f32 %v3325, %v3352
    %v3354 = vpop.f32.mrf.mxu0
    %v3355 = vadd.f32 %v3327, %v3354
    %3356 = vmatmul.bf16.gmra.mxu0 %v2357
    %v3357 = vpop.f32.mrf.mxu0
    %v3358 = vadd.f32 %v3330, %v3357
    %v3359 = vpop.f32.mrf.mxu0
    %v3360 = vadd.f32 %v3332, %v3359
    %3361 = vmatmul.bf16.gmra.mxu0 %v2356
    %v3362 = vpop.f32.mrf.mxu0
    %v3363 = vadd.f32 %v3335, %v3362
    %v3364 = vpop.f32.mrf.mxu0
    %3365 = vdwg.mxu0
    %3366 = vmatpush.bf16.msra.mxu0 %v2841
    %3367 = vmatpush.bf16.msra.mxu0 %v2839
    %3368 = vmatpush.bf16.msra.mxu0 %v2837
    %3369 = vmatpush.bf16.msra.mxu0 %v2835
    %3370 = vmatpush.bf16.msra.mxu0 %v2833
    %3371 = vmatpush.bf16.msra.mxu0 %v2831
    %3372 = vmatpush.bf16.msra.mxu0 %v2829
    %3373 = vmatpush.bf16.msra.mxu0 %v2827
    %3374 = vmatmul.bf16.gmra.mxu0 %v2297
    %v3375 = vpop.f32.mrf.mxu0
    %v3376 = vadd.f32 %v2256, %v3375
    %v3377 = vpop.f32.mrf.mxu0
    %v3378 = vadd.f32 %v2256, %v3377
    %3379 = vmatmul.bf16.gmra.mxu0 %v2323
    %v3380 = vpop.f32.mrf.mxu0
    %v3381 = vadd.f32 %v2256, %v3380
    %v3382 = vpop.f32.mrf.mxu0
    %v3383 = vadd.f32 %v2256, %v3382
    %3384 = vmatmul.bf16.gmra.mxu0 %v2341
    %v3385 = vpop.f32.mrf.mxu0
    %v3386 = vadd.f32 %v2256, %v3385
    %v3387 = vpop.f32.mrf.mxu0
    %v3388 = vadd.f32 %v2256, %v3387
    %3389 = vmatmul.bf16.gmra.mxu0 %v2340
    %v3390 = vpop.f32.mrf.mxu0
    %v3391 = vadd.f32 %v2256, %v3390
    %v3392 = vpop.f32.mrf.mxu0
    %3393 = vdwg.mxu0
    %3394 = vmatpush.bf16.msra.mxu0 %v2857
    %3395 = vmatpush.bf16.msra.mxu0 %v2855
    %3396 = vmatpush.bf16.msra.mxu0 %v2853
    %3397 = vmatpush.bf16.msra.mxu0 %v2851
    %3398 = vmatpush.bf16.msra.mxu0 %v2849
    %3399 = vmatpush.bf16.msra.mxu0 %v2847
    %3400 = vmatpush.bf16.msra.mxu0 %v2845
    %3401 = vmatpush.bf16.msra.mxu0 %v2843
    %3402 = vmatmul.bf16.gmra.mxu0 %v2300
    %v3403 = vpop.f32.mrf.mxu0
    %v3404 = vadd.f32 %v3376, %v3403
    %v3405 = vpop.f32.mrf.mxu0
    %v3406 = vadd.f32 %v3378, %v3405
    %3407 = vmatmul.bf16.gmra.mxu0 %v2325
    %v3408 = vpop.f32.mrf.mxu0
    %v3409 = vadd.f32 %v3381, %v3408
    %v3410 = vpop.f32.mrf.mxu0
    %v3411 = vadd.f32 %v3383, %v3410
    %3412 = vmatmul.bf16.gmra.mxu0 %v2343
    %v3413 = vpop.f32.mrf.mxu0
    %v3414 = vadd.f32 %v3386, %v3413
    %v3415 = vpop.f32.mrf.mxu0
    %v3416 = vadd.f32 %v3388, %v3415
    %3417 = vmatmul.bf16.gmra.mxu0 %v2342
    %v3418 = vpop.f32.mrf.mxu0
    %v3419 = vadd.f32 %v3391, %v3418
    %v3420 = vpop.f32.mrf.mxu0
    %3421 = vdwg.mxu0
    %3422 = vmatpush.bf16.msra.mxu0 %v2873
    %3423 = vmatpush.bf16.msra.mxu0 %v2871
    %3424 = vmatpush.bf16.msra.mxu0 %v2869
    %3425 = vmatpush.bf16.msra.mxu0 %v2867
    %3426 = vmatpush.bf16.msra.mxu0 %v2865
    %3427 = vmatpush.bf16.msra.mxu0 %v2863
    %3428 = vmatpush.bf16.msra.mxu0 %v2861
    %3429 = vmatpush.bf16.msra.mxu0 %v2859
    %3430 = vmatmul.bf16.gmra.mxu0 %v2303
    %v3431 = vpop.f32.mrf.mxu0
    %v3432 = vadd.f32 %v3404, %v3431
    %v3433 = vpop.f32.mrf.mxu0
    %v3434 = vadd.f32 %v3406, %v3433
    %3435 = vmatmul.bf16.gmra.mxu0 %v2327
    %v3436 = vpop.f32.mrf.mxu0
    %v3437 = vadd.f32 %v3409, %v3436
    %v3438 = vpop.f32.mrf.mxu0
    %v3439 = vadd.f32 %v3411, %v3438
    %3440 = vmatmul.bf16.gmra.mxu0 %v2345
    %v3441 = vpop.f32.mrf.mxu0
    %v3442 = vadd.f32 %v3414, %v3441
    %v3443 = vpop.f32.mrf.mxu0
    %v3444 = vadd.f32 %v3416, %v3443
    %3445 = vmatmul.bf16.gmra.mxu0 %v2344
    %v3446 = vpop.f32.mrf.mxu0
    %v3447 = vadd.f32 %v3419, %v3446
    %v3448 = vpop.f32.mrf.mxu0
    %3449 = vdwg.mxu0
    %3450 = vmatpush.bf16.msra.mxu0 %v2889
    %3451 = vmatpush.bf16.msra.mxu0 %v2887
    %3452 = vmatpush.bf16.msra.mxu0 %v2885
    %3453 = vmatpush.bf16.msra.mxu0 %v2883
    %3454 = vmatpush.bf16.msra.mxu0 %v2881
    %3455 = vmatpush.bf16.msra.mxu0 %v2879
    %3456 = vmatpush.bf16.msra.mxu0 %v2877
    %3457 = vmatpush.bf16.msra.mxu0 %v2875
    %3458 = vmatmul.bf16.gmra.mxu0 %v2306
    %v3459 = vpop.f32.mrf.mxu0
    %v3460 = vadd.f32 %v3432, %v3459
    %v3461 = vpop.f32.mrf.mxu0
    %v3462 = vadd.f32 %v3434, %v3461
    %3463 = vmatmul.bf16.gmra.mxu0 %v2329
    %v3464 = vpop.f32.mrf.mxu0
    %v3465 = vadd.f32 %v3437, %v3464
    %v3466 = vpop.f32.mrf.mxu0
    %v3467 = vadd.f32 %v3439, %v3466
    %3468 = vmatmul.bf16.gmra.mxu0 %v2347
    %v3469 = vpop.f32.mrf.mxu0
    %v3470 = vadd.f32 %v3442, %v3469
    %v3471 = vpop.f32.mrf.mxu0
    %v3472 = vadd.f32 %v3444, %v3471
    %3473 = vmatmul.bf16.gmra.mxu0 %v2346
    %v3474 = vpop.f32.mrf.mxu0
    %v3475 = vadd.f32 %v3447, %v3474
    %v3476 = vpop.f32.mrf.mxu0
    %3477 = vdwg.mxu0
    %3478 = vmatpush.bf16.msra.mxu0 %v2905
    %3479 = vmatpush.bf16.msra.mxu0 %v2903
    %3480 = vmatpush.bf16.msra.mxu0 %v2901
    %3481 = vmatpush.bf16.msra.mxu0 %v2899
    %3482 = vmatpush.bf16.msra.mxu0 %v2897
    %3483 = vmatpush.bf16.msra.mxu0 %v2895
    %3484 = vmatpush.bf16.msra.mxu0 %v2893
    %3485 = vmatpush.bf16.msra.mxu0 %v2891
    %3486 = vmatmul.bf16.gmra.mxu0 %v2309
    %v3487 = vpop.f32.mrf.mxu0
    %v3488 = vadd.f32 %v3460, %v3487
    %v3489 = vpop.f32.mrf.mxu0
    %v3490 = vadd.f32 %v3462, %v3489
    %3491 = vmatmul.bf16.gmra.mxu0 %v2331
    %v3492 = vpop.f32.mrf.mxu0
    %v3493 = vadd.f32 %v3465, %v3492
    %v3494 = vpop.f32.mrf.mxu0
    %v3495 = vadd.f32 %v3467, %v3494
    %3496 = vmatmul.bf16.gmra.mxu0 %v2349
    %v3497 = vpop.f32.mrf.mxu0
    %v3498 = vadd.f32 %v3470, %v3497
    %v3499 = vpop.f32.mrf.mxu0
    %v3500 = vadd.f32 %v3472, %v3499
    %3501 = vmatmul.bf16.gmra.mxu0 %v2348
    %v3502 = vpop.f32.mrf.mxu0
    %v3503 = vadd.f32 %v3475, %v3502
    %v3504 = vpop.f32.mrf.mxu0
    %3505 = vdwg.mxu0
    %3506 = vmatpush.bf16.msra.mxu0 %v2921
    %3507 = vmatpush.bf16.msra.mxu0 %v2919
    %3508 = vmatpush.bf16.msra.mxu0 %v2917
    %3509 = vmatpush.bf16.msra.mxu0 %v2915
    %3510 = vmatpush.bf16.msra.mxu0 %v2913
    %3511 = vmatpush.bf16.msra.mxu0 %v2911
    %3512 = vmatpush.bf16.msra.mxu0 %v2909
    %3513 = vmatpush.bf16.msra.mxu0 %v2907
    %3514 = vmatmul.bf16.gmra.mxu0 %v2312
    %v3515 = vpop.f32.mrf.mxu0
    %v3516 = vadd.f32 %v3488, %v3515
    %v3517 = vpop.f32.mrf.mxu0
    %v3518 = vadd.f32 %v3490, %v3517
    %3519 = vmatmul.bf16.gmra.mxu0 %v2333
    %v3520 = vpop.f32.mrf.mxu0
    %v3521 = vadd.f32 %v3493, %v3520
    %v3522 = vpop.f32.mrf.mxu0
    %v3523 = vadd.f32 %v3495, %v3522
    %3524 = vmatmul.bf16.gmra.mxu0 %v2351
    %v3525 = vpop.f32.mrf.mxu0
    %v3526 = vadd.f32 %v3498, %v3525
    %v3527 = vpop.f32.mrf.mxu0
    %v3528 = vadd.f32 %v3500, %v3527
    %3529 = vmatmul.bf16.gmra.mxu0 %v2350
    %v3530 = vpop.f32.mrf.mxu0
    %v3531 = vadd.f32 %v3503, %v3530
    %v3532 = vpop.f32.mrf.mxu0
    %3533 = vdwg.mxu0
    %3534 = vmatpush.bf16.msra.mxu0 %v2937
    %3535 = vmatpush.bf16.msra.mxu0 %v2935
    %3536 = vmatpush.bf16.msra.mxu0 %v2933
    %3537 = vmatpush.bf16.msra.mxu0 %v2931
    %3538 = vmatpush.bf16.msra.mxu0 %v2929
    %3539 = vmatpush.bf16.msra.mxu0 %v2927
    %3540 = vmatpush.bf16.msra.mxu0 %v2925
    %3541 = vmatpush.bf16.msra.mxu0 %v2923
    %3542 = vmatmul.bf16.gmra.mxu0 %v2315
    %v3543 = vpop.f32.mrf.mxu0
    %v3544 = vadd.f32 %v3516, %v3543
    %v3545 = vpop.f32.mrf.mxu0
    %v3546 = vadd.f32 %v3518, %v3545
    %3547 = vmatmul.bf16.gmra.mxu0 %v2335
    %v3548 = vpop.f32.mrf.mxu0
    %v3549 = vadd.f32 %v3521, %v3548
    %v3550 = vpop.f32.mrf.mxu0
    %v3551 = vadd.f32 %v3523, %v3550
    %3552 = vmatmul.bf16.gmra.mxu0 %v2353
    %v3553 = vpop.f32.mrf.mxu0
    %v3554 = vadd.f32 %v3526, %v3553
    %v3555 = vpop.f32.mrf.mxu0
    %v3556 = vadd.f32 %v3528, %v3555
    %3557 = vmatmul.bf16.gmra.mxu0 %v2352
    %v3558 = vpop.f32.mrf.mxu0
    %v3559 = vadd.f32 %v3531, %v3558
    %v3560 = vpop.f32.mrf.mxu0
    %3561 = vdwg.mxu0
    %3562 = vmatpush.bf16.msra.mxu0 %v2953
    %3563 = vmatpush.bf16.msra.mxu0 %v2951
    %3564 = vmatpush.bf16.msra.mxu0 %v2949
    %3565 = vmatpush.bf16.msra.mxu0 %v2947
    %3566 = vmatpush.bf16.msra.mxu0 %v2945
    %3567 = vmatpush.bf16.msra.mxu0 %v2943
    %3568 = vmatpush.bf16.msra.mxu0 %v2941
    %3569 = vmatpush.bf16.msra.mxu0 %v2939
    %3570 = vmatmul.bf16.gmra.mxu0 %v2318
    %v3571 = vpop.f32.mrf.mxu0
    %v3572 = vadd.f32 %v3544, %v3571
    %v3573 = vpop.f32.mrf.mxu0
    %v3574 = vadd.f32 %v3546, %v3573
    %3575 = vmatmul.bf16.gmra.mxu0 %v2337
    %v3576 = vpop.f32.mrf.mxu0
    %v3577 = vadd.f32 %v3549, %v3576
    %v3578 = vpop.f32.mrf.mxu0
    %v3579 = vadd.f32 %v3551, %v3578
    %3580 = vmatmul.bf16.gmra.mxu0 %v2355
    %v3581 = vpop.f32.mrf.mxu0
    %v3582 = vadd.f32 %v3554, %v3581
    %v3583 = vpop.f32.mrf.mxu0
    %v3584 = vadd.f32 %v3556, %v3583
    %3585 = vmatmul.bf16.gmra.mxu0 %v2354
    %v3586 = vpop.f32.mrf.mxu0
    %v3587 = vadd.f32 %v3559, %v3586
    %v3588 = vpop.f32.mrf.mxu0
    %3589 = vdwg.mxu0
    %3590 = vmatpush.bf16.msra.mxu0 %v2969
    %3591 = vmatpush.bf16.msra.mxu0 %v2967
    %3592 = vmatpush.bf16.msra.mxu0 %v2965
    %3593 = vmatpush.bf16.msra.mxu0 %v2963
    %3594 = vmatpush.bf16.msra.mxu0 %v2961
    %3595 = vmatpush.bf16.msra.mxu0 %v2959
    %3596 = vmatpush.bf16.msra.mxu0 %v2957
    %3597 = vmatpush.bf16.msra.mxu0 %v2955
    %3598 = vmatmul.bf16.gmra.mxu0 %v2321
    %v3599 = vpop.f32.mrf.mxu0
    %v3600 = vadd.f32 %v3572, %v3599
    %v3601 = vpop.f32.mrf.mxu0
    %v3602 = vadd.f32 %v3574, %v3601
    %3603 = vmatmul.bf16.gmra.mxu0 %v2339
    %v3604 = vpop.f32.mrf.mxu0
    %v3605 = vadd.f32 %v3577, %v3604
    %v3606 = vpop.f32.mrf.mxu0
    %v3607 = vadd.f32 %v3579, %v3606
    %3608 = vmatmul.bf16.gmra.mxu0 %v2357
    %v3609 = vpop.f32.mrf.mxu0
    %v3610 = vadd.f32 %v3582, %v3609
    %v3611 = vpop.f32.mrf.mxu0
    %v3612 = vadd.f32 %v3584, %v3611
    %3613 = vmatmul.bf16.gmra.mxu0 %v2356
    %v3614 = vpop.f32.mrf.mxu0
    %v3615 = vadd.f32 %v3587, %v3614
    %v3616 = vpop.f32.mrf.mxu0
    %3617 = vdwg.mxu0
    %v3618 = vmax.f32 %v3348, 0.0
    %v3619 = vmax.f32 %v3600, 0.0
    %v3620 = vmax.f32 %v3350, 0.0
    %v3621 = vmax.f32 %v3602, 0.0
    %v3622 = vmax.f32 %v3353, 0.0
    %v3623 = vmax.f32 %v3605, 0.0
    %v3624 = vmax.f32 %v3355, 0.0
    %v3625 = vmax.f32 %v3607, 0.0
    %v3626 = vmax.f32 %v3358, 0.0
    %v3627 = vmax.f32 %v3610, 0.0
    %v3628 = vmax.f32 %v3360, 0.0
    %v3629 = vmax.f32 %v3612, 0.0
    %v3630 = vmax.f32 %v3363, 0.0
    %v3631 = vmax.f32 %v3615, 0.0
    %v3632 = vmul.f32 %v3618, %v1874
    %v3633 = vmul.f32 %v3619, %v1874
    %v3634 = vmul.f32 %v3620, %v1879
    %v3635 = vmul.f32 %v3621, %v1879
    %v3636 = vmul.f32 %v3622, %v1884
    %v3637 = vmul.f32 %v3623, %v1884
    %v3638 = vmul.f32 %v3624, %v1889
    %v3639 = vmul.f32 %v3625, %v1889
    %v3640 = vmul.f32 %v3626, %v1894
    %v3641 = vmul.f32 %v3627, %v1894
    %v3642 = vmul.f32 %v3628, %v1899
    %v3643 = vmul.f32 %v3629, %v1899
    %v3644 = vmul.f32 %v3630, %v1904
    %v3645 = vmul.f32 %v3631, %v1904
    %v3660 = vrot.slane %v3632, 1
    %v3661 = vsel %vm386, %v418, %v3660
    %v3662 = vrot.slane %v3633, 1
    %v3663 = vsel %vm386, %v418, %v3662
    %v3664 = vrot.slane %v3634, 1
    %v3665 = vsel %vm386, %v3660, %v3664
    %v3666 = vrot.slane %v3635, 1
    %v3667 = vsel %vm386, %v3662, %v3666
    %v3668 = vrot.slane %v3636, 1
    %v3669 = vsel %vm386, %v3664, %v3668
    %v3670 = vrot.slane %v3637, 1
    %v3671 = vsel %vm386, %v3666, %v3670
    %v3672 = vrot.slane %v3638, 1
    %v3673 = vsel %vm386, %v3668, %v3672
    %v3674 = vrot.slane %v3639, 1
    %v3675 = vsel %vm386, %v3670, %v3674
    %v3676 = vrot.slane %v3640, 1
    %v3677 = vsel %vm386, %v3672, %v3676
    %v3678 = vrot.slane %v3641, 1
    %v3679 = vsel %vm386, %v3674, %v3678
    %v3680 = vrot.slane %v3642, 1
    %v3681 = vsel %vm386, %v3676, %v3680
    %v3682 = vrot.slane %v3643, 1
    %v3683 = vsel %vm386, %v3678, %v3682
    %v3684 = vrot.slane %v3644, 1
    %v3685 = vsel %vm386, %v3680, %v3684
    %v3686 = vrot.slane %v3645, 1
    %v3687 = vsel %vm386, %v3682, %v3686
    %v3704 = vrot.slane %v3632, 2
    %v3705 = vsel %vm452, %v484, %v3704
    %v3706 = vrot.slane %v3633, 2
    %v3707 = vsel %vm452, %v484, %v3706
    %v3708 = vrot.slane %v3634, 2
    %v3709 = vsel %vm452, %v3704, %v3708
    %v3710 = vrot.slane %v3635, 2
    %v3711 = vsel %vm452, %v3706, %v3710
    %v3712 = vrot.slane %v3636, 2
    %v3713 = vsel %vm452, %v3708, %v3712
    %v3714 = vrot.slane %v3637, 2
    %v3715 = vsel %vm452, %v3710, %v3714
    %v3716 = vrot.slane %v3638, 2
    %v3717 = vsel %vm452, %v3712, %v3716
    %v3718 = vrot.slane %v3639, 2
    %v3719 = vsel %vm452, %v3714, %v3718
    %v3720 = vrot.slane %v3640, 2
    %v3721 = vsel %vm452, %v3716, %v3720
    %v3722 = vrot.slane %v3641, 2
    %v3723 = vsel %vm452, %v3718, %v3722
    %v3724 = vrot.slane %v3642, 2
    %v3725 = vsel %vm452, %v3720, %v3724
    %v3726 = vrot.slane %v3643, 2
    %v3727 = vsel %vm452, %v3722, %v3726
    %v3728 = vrot.slane %v3644, 2
    %v3729 = vsel %vm452, %v3724, %v3728
    %v3730 = vrot.slane %v3645, 2
    %v3731 = vsel %vm452, %v3726, %v3730
    %v3748 = vrot.slane %v3632, 5
    %v3749 = vsel %vm741, %v742, %v3748
    %v3750 = vrot.slane %v3633, 5
    %v3751 = vsel %vm741, %v742, %v3750
    %v3752 = vrot.slane %v3634, 5
    %v3753 = vsel %vm741, %v3748, %v3752
    %v3754 = vrot.slane %v3635, 5
    %v3755 = vsel %vm741, %v3750, %v3754
    %v3756 = vrot.slane %v3636, 5
    %v3757 = vsel %vm741, %v3752, %v3756
    %v3758 = vrot.slane %v3637, 5
    %v3759 = vsel %vm741, %v3754, %v3758
    %v3760 = vrot.slane %v3638, 5
    %v3761 = vsel %vm741, %v3756, %v3760
    %v3762 = vrot.slane %v3639, 5
    %v3763 = vsel %vm741, %v3758, %v3762
    %v3764 = vrot.slane %v3640, 5
    %v3765 = vsel %vm741, %v3760, %v3764
    %v3766 = vrot.slane %v3641, 5
    %v3767 = vsel %vm741, %v3762, %v3766
    %v3768 = vrot.slane %v3642, 5
    %v3769 = vsel %vm741, %v3764, %v3768
    %v3770 = vrot.slane %v3643, 5
    %v3771 = vsel %vm741, %v3766, %v3770
    %v3772 = vrot.slane %v3644, 5
    %v3773 = vsel %vm741, %v3768, %v3772
    %v3774 = vrot.slane %v3645, 5
    %v3775 = vsel %vm741, %v3770, %v3774
    %v3792 = vrot.slane %v3632, 6
    %v3793 = vrot.slane %v3633, 6
    %v3794 = vrot.slane %v3634, 6
    %v3795 = vsel %vm249, %v3792, %v3794
    %v3796 = vrot.slane %v3635, 6
    %v3797 = vsel %vm249, %v3793, %v3796
    %v3798 = vrot.slane %v3636, 6
    %v3799 = vsel %vm249, %v3794, %v3798
    %v3800 = vrot.slane %v3637, 6
    %v3801 = vsel %vm249, %v3796, %v3800
    %v3802 = vrot.slane %v3638, 6
    %v3803 = vsel %vm249, %v3798, %v3802
    %v3804 = vrot.slane %v3639, 6
    %v3805 = vsel %vm249, %v3800, %v3804
    %v3806 = vrot.slane %v3640, 6
    %v3807 = vsel %vm249, %v3802, %v3806
    %v3808 = vrot.slane %v3641, 6
    %v3809 = vsel %vm249, %v3804, %v3808
    %v3810 = vrot.slane %v3642, 6
    %v3811 = vsel %vm249, %v3806, %v3810
    %v3812 = vrot.slane %v3643, 6
    %v3813 = vsel %vm249, %v3808, %v3812
    %v3814 = vrot.slane %v3644, 6
    %v3815 = vsel %vm249, %v3810, %v3814
    %v3816 = vrot.slane %v3645, 6
    %v3817 = vsel %vm249, %v3812, %v3816
    %v3834 = vrot.slane %v3632, 7
    %v3835 = vrot.slane %v3633, 7
    %v3836 = vrot.slane %v3634, 7
    %v3837 = vsel %vm248, %v3834, %v3836
    %v3838 = vrot.slane %v3635, 7
    %v3839 = vsel %vm248, %v3835, %v3838
    %v3840 = vrot.slane %v3636, 7
    %v3841 = vsel %vm248, %v3836, %v3840
    %v3842 = vrot.slane %v3637, 7
    %v3843 = vsel %vm248, %v3838, %v3842
    %v3844 = vrot.slane %v3638, 7
    %v3845 = vsel %vm248, %v3840, %v3844
    %v3846 = vrot.slane %v3639, 7
    %v3847 = vsel %vm248, %v3842, %v3846
    %v3848 = vrot.slane %v3640, 7
    %v3849 = vsel %vm248, %v3844, %v3848
    %v3850 = vrot.slane %v3641, 7
    %v3851 = vsel %vm248, %v3846, %v3850
    %v3852 = vrot.slane %v3642, 7
    %v3853 = vsel %vm248, %v3848, %v3852
    %v3854 = vrot.slane %v3643, 7
    %v3855 = vsel %vm248, %v3850, %v3854
    %v3856 = vrot.slane %v3644, 7
    %v3857 = vsel %vm248, %v3852, %v3856
    %v3858 = vrot.slane %v3645, 7
    %v3859 = vsel %vm248, %v3854, %v3858
    %v3860 = vsel %vm248, %v3856, %v799
    %v3861 = vsel %vm248, %v3858, %v799
    %v3878 = vsel %vm452, %v3728, %v484
    %v3879 = vsel %vm452, %v3730, %v484
    %v3882 = vrot.slane %v3632, 3
    %v3883 = vrot.slane %v3634, 3
    %v3884 = vsel %vm812, %v3882, %v3883
    %v3885 = vrot.slane %v3633, 3
    %v3886 = vrot.slane %v3635, 3
    %v3887 = vsel %vm812, %v3885, %v3886
    %v3888 = vrot.slane %v3636, 3
    %v3889 = vsel %vm812, %v3883, %v3888
    %v3890 = vrot.slane %v3637, 3
    %v3891 = vsel %vm812, %v3886, %v3890
    %v3892 = vrot.slane %v3638, 3
    %v3893 = vsel %vm812, %v3888, %v3892
    %v3894 = vrot.slane %v3639, 3
    %v3895 = vsel %vm812, %v3890, %v3894
    %v3896 = vrot.slane %v3640, 3
    %v3897 = vsel %vm812, %v3892, %v3896
    %v3898 = vrot.slane %v3641, 3
    %v3899 = vsel %vm812, %v3894, %v3898
    %v3900 = vrot.slane %v3642, 3
    %v3901 = vsel %vm812, %v3896, %v3900
    %v3902 = vrot.slane %v3643, 3
    %v3903 = vsel %vm812, %v3898, %v3902
    %v3904 = vrot.slane %v3644, 3
    %v3905 = vsel %vm812, %v3900, %v3904
    %v3906 = vrot.slane %v3645, 3
    %v3907 = vsel %vm812, %v3902, %v3906
    %v3908 = vsel %vm812, %v3904, %v826
    %v3909 = vsel %vm812, %v3906, %v826
    %v3924 = vrot.slane %v3632, 4
    %v3925 = vrot.slane %v3634, 4
    %v3926 = vsel %vm836, %v3924, %v3925
    %v3927 = vrot.slane %v3633, 4
    %v3928 = vrot.slane %v3635, 4
    %v3929 = vsel %vm836, %v3927, %v3928
    %v3930 = vrot.slane %v3636, 4
    %v3931 = vsel %vm836, %v3925, %v3930
    %v3932 = vrot.slane %v3637, 4
    %v3933 = vsel %vm836, %v3928, %v3932
    %v3934 = vrot.slane %v3638, 4
    %v3935 = vsel %vm836, %v3930, %v3934
    %v3936 = vrot.slane %v3639, 4
    %v3937 = vsel %vm836, %v3932, %v3936
    %v3938 = vrot.slane %v3640, 4
    %v3939 = vsel %vm836, %v3934, %v3938
    %v3940 = vrot.slane %v3641, 4
    %v3941 = vsel %vm836, %v3936, %v3940
    %v3942 = vrot.slane %v3642, 4
    %v3943 = vsel %vm836, %v3938, %v3942
    %v3944 = vrot.slane %v3643, 4
    %v3945 = vsel %vm836, %v3940, %v3944
    %v3946 = vrot.slane %v3644, 4
    %v3947 = vsel %vm836, %v3942, %v3946
    %v3948 = vrot.slane %v3645, 4
    %v3949 = vsel %vm836, %v3944, %v3948
    %v3950 = vsel %vm836, %v3946, %v850
    %v3951 = vsel %vm836, %v3948, %v850
    %v3966 = vpack.c.bf16 %v3632, 0.0
    %v3967 = vpack.c.bf16 %v3633, 0.0
    %v3968 = vpack.c.bf16 %v3665, %v3661
    %v3969 = vpack.c.bf16 %v3667, %v3663
    %v3970 = vpack.c.bf16 %v3709, %v3705
    %v3971 = vpack.c.bf16 %v3711, %v3707
    %v3972 = vpack.c.bf16 %v3753, %v3749
    %v3973 = vpack.c.bf16 %v3755, %v3751
    %v3974 = vpack.c.bf16 %v3795, %v3792
    %v3975 = vpack.c.bf16 %v3797, %v3793
    %v3976 = vpack.c.bf16 %v3837, %v3834
    %v3977 = vpack.c.bf16 %v3839, %v3835
    %v3978 = vpack.c.bf16 %v3713, %v3709
    %v3979 = vpack.c.bf16 %v3715, %v3711
    %v3980 = vpack.c.bf16 %v3889, %v3884
    %v3981 = vpack.c.bf16 %v3891, %v3887
    %v3982 = vpack.c.bf16 %v3931, %v3926
    %v3983 = vpack.c.bf16 %v3933, %v3929
    %v3984 = vpack.c.bf16 %v3636, %v3634
    %v3985 = vpack.c.bf16 %v3637, %v3635
    %v3986 = vpack.c.bf16 %v3673, %v3669
    %v3987 = vpack.c.bf16 %v3675, %v3671
    %v3988 = vpack.c.bf16 %v3717, %v3713
    %v3989 = vpack.c.bf16 %v3719, %v3715
    %v3990 = vpack.c.bf16 %v3761, %v3757
    %v3991 = vpack.c.bf16 %v3763, %v3759
    %v3992 = vpack.c.bf16 %v3803, %v3799
    %v3993 = vpack.c.bf16 %v3805, %v3801
    %v3994 = vpack.c.bf16 %v3845, %v3841
    %v3995 = vpack.c.bf16 %v3847, %v3843
    %v3996 = vpack.c.bf16 %v3721, %v3717
    %v3997 = vpack.c.bf16 %v3723, %v3719
    %v3998 = vpack.c.bf16 %v3897, %v3893
    %v3999 = vpack.c.bf16 %v3899, %v3895
    %v4000 = vpack.c.bf16 %v3939, %v3935
    %v4001 = vpack.c.bf16 %v3941, %v3937
    %v4002 = vpack.c.bf16 %v3640, %v3638
    %v4003 = vpack.c.bf16 %v3641, %v3639
    %v4004 = vpack.c.bf16 %v3681, %v3677
    %v4005 = vpack.c.bf16 %v3683, %v3679
    %v4006 = vpack.c.bf16 %v3725, %v3721
    %v4007 = vpack.c.bf16 %v3727, %v3723
    %v4008 = vpack.c.bf16 %v3769, %v3765
    %v4009 = vpack.c.bf16 %v3771, %v3767
    %v4010 = vpack.c.bf16 %v3811, %v3807
    %v4011 = vpack.c.bf16 %v3813, %v3809
    %v4012 = vpack.c.bf16 %v3853, %v3849
    %v4013 = vpack.c.bf16 %v3855, %v3851
    %v4014 = vpack.c.bf16 %v3729, %v3725
    %v4015 = vpack.c.bf16 %v3731, %v3727
    %v4016 = vpack.c.bf16 %v3905, %v3901
    %v4017 = vpack.c.bf16 %v3907, %v3903
    %v4018 = vpack.c.bf16 %v3947, %v3943
    %v4019 = vpack.c.bf16 %v3949, %v3945
    %v4020 = vpack.c.bf16 %v3644, %v3642
    %v4021 = vpack.c.bf16 %v3645, %v3643
    %v4022 = vpack.c.bf16 %v3684, %v3685
    %v4023 = vpack.c.bf16 %v3686, %v3687
    %v4024 = vpack.c.bf16 %v3728, %v3729
    %v4025 = vpack.c.bf16 %v3730, %v3731
    %v4026 = vpack.c.bf16 %v3772, %v3773
    %v4027 = vpack.c.bf16 %v3774, %v3775
    %v4028 = vpack.c.bf16 %v3814, %v3815
    %v4029 = vpack.c.bf16 %v3816, %v3817
    %v4030 = vpack.c.bf16 %v3860, %v3857
    %v4031 = vpack.c.bf16 %v3861, %v3859
    %v4032 = vpack.c.bf16 %v484, %v3878
    %v4033 = vpack.c.bf16 %v484, %v3879
    %v4034 = vpack.c.bf16 %v826, %v3908
    %v4035 = vpack.c.bf16 %v826, %v3909
    %v4036 = vpack.c.bf16 %v850, %v3950
    %v4037 = vpack.c.bf16 %v850, %v3951
    %v4038 = vld [vmem:[%s10] sm:$0xff]
    %v4039 = vld [vmem:[%s10 + $0x8] sm:$0xff]
    %v4040 = vld [vmem:[%s10 + $0x10] sm:$0xff]
    %v4041 = vld [vmem:[%s10 + $0x18] sm:$0xff]
    %v4042 = vld [vmem:[%s10 + $0x20] sm:$0xff]
    %v4043 = vld [vmem:[%s10 + $0x28] sm:$0xff]
    %v4044 = vld [vmem:[%s10 + $0x30] sm:$0xff]
    %v4045 = vld [vmem:[%s10 + $0x38] sm:$0xff]
    %v4046 = vld [vmem:[%s10 + $0x40] sm:$0xff]
    %v4047 = vld [vmem:[%s10 + $0x48] sm:$0xff]
    %v4048 = vld [vmem:[%s10 + $0x50] sm:$0xff]
    %v4049 = vld [vmem:[%s10 + $0x58] sm:$0xff]
    %v4050 = vld [vmem:[%s10 + $0x60] sm:$0xff]
    %v4051 = vld [vmem:[%s10 + $0x68] sm:$0xff]
    %v4052 = vld [vmem:[%s10 + $0x70] sm:$0xff]
    %v4053 = vld [vmem:[%s10 + $0x78] sm:$0xff]
    %v4054 = vld [vmem:[%s10 + $0x80] sm:$0xff]
    %v4055 = vld [vmem:[%s10 + $0x88] sm:$0xff]
    %v4056 = vld [vmem:[%s10 + $0x90] sm:$0xff]
    %v4057 = vld [vmem:[%s10 + $0x98] sm:$0xff]
    %v4058 = vld [vmem:[%s10 + $0xa0] sm:$0xff]
    %v4059 = vld [vmem:[%s10 + $0xa8] sm:$0xff]
    %v4060 = vld [vmem:[%s10 + $0xb0] sm:$0xff]
    %v4061 = vld [vmem:[%s10 + $0xb8] sm:$0xff]
    %v4062 = vld [vmem:[%s10 + $0xc0] sm:$0xff]
    %v4063 = vld [vmem:[%s10 + $0xc8] sm:$0xff]
    %v4064 = vld [vmem:[%s10 + $0xd0] sm:$0xff]
    %v4065 = vld [vmem:[%s10 + $0xd8] sm:$0xff]
    %v4066 = vld [vmem:[%s10 + $0xe0] sm:$0xff]
    %v4067 = vld [vmem:[%s10 + $0xe8] sm:$0xff]
    %v4068 = vld [vmem:[%s10 + $0xf0] sm:$0xff]
    %v4069 = vld [vmem:[%s10 + $0xf8] sm:$0xff]
    %v4070 = vld [vmem:[%s10 + $0x100] sm:$0xff]
    %v4071 = vld [vmem:[%s10 + $0x108] sm:$0xff]
    %v4072 = vld [vmem:[%s10 + $0x110] sm:$0xff]
    %v4073 = vld [vmem:[%s10 + $0x118] sm:$0xff]
    %v4074 = vld [vmem:[%s10 + $0x120] sm:$0xff]
    %v4075 = vld [vmem:[%s10 + $0x128] sm:$0xff]
    %v4076 = vld [vmem:[%s10 + $0x130] sm:$0xff]
    %v4077 = vld [vmem:[%s10 + $0x138] sm:$0xff]
    %v4078 = vld [vmem:[%s10 + $0x140] sm:$0xff]
    %v4079 = vld [vmem:[%s10 + $0x148] sm:$0xff]
    %v4080 = vld [vmem:[%s10 + $0x150] sm:$0xff]
    %v4081 = vld [vmem:[%s10 + $0x158] sm:$0xff]
    %v4082 = vld [vmem:[%s10 + $0x160] sm:$0xff]
    %v4083 = vld [vmem:[%s10 + $0x168] sm:$0xff]
    %v4084 = vld [vmem:[%s10 + $0x170] sm:$0xff]
    %v4085 = vld [vmem:[%s10 + $0x178] sm:$0xff]
    %v4086 = vld [vmem:[%s10 + $0x180] sm:$0xff]
    %v4087 = vld [vmem:[%s10 + $0x188] sm:$0xff]
    %v4088 = vld [vmem:[%s10 + $0x190] sm:$0xff]
    %v4089 = vld [vmem:[%s10 + $0x198] sm:$0xff]
    %v4090 = vld [vmem:[%s10 + $0x1a0] sm:$0xff]
    %v4091 = vld [vmem:[%s10 + $0x1a8] sm:$0xff]
    %v4092 = vld [vmem:[%s10 + $0x1b0] sm:$0xff]
    %v4093 = vld [vmem:[%s10 + $0x1b8] sm:$0xff]
    %v4094 = vld [vmem:[%s10 + $0x1c0] sm:$0xff]
    %v4095 = vld [vmem:[%s10 + $0x1c8] sm:$0xff]
    %v4096 = vld [vmem:[%s10 + $0x1d0] sm:$0xff]
    %v4097 = vld [vmem:[%s10 + $0x1d8] sm:$0xff]
    %v4098 = vld [vmem:[%s10 + $0x1e0] sm:$0xff]
    %v4099 = vld [vmem:[%s10 + $0x1e8] sm:$0xff]
    %v4100 = vld [vmem:[%s10 + $0x1f0] sm:$0xff]
    %v4101 = vld [vmem:[%s10 + $0x1f8] sm:$0xff]
    %v4102 = vld [vmem:[%s10 + $0x200] sm:$0xff]
    %v4103 = vld [vmem:[%s10 + $0x208] sm:$0xff]
    %v4104 = vld [vmem:[%s10 + $0x210] sm:$0xff]
    %v4105 = vld [vmem:[%s10 + $0x218] sm:$0xff]
    %v4106 = vld [vmem:[%s10 + $0x220] sm:$0xff]
    %v4107 = vld [vmem:[%s10 + $0x228] sm:$0xff]
    %v4108 = vld [vmem:[%s10 + $0x230] sm:$0xff]
    %v4109 = vld [vmem:[%s10 + $0x238] sm:$0xff]
    %v4110 = vld [vmem:[%s10 + $0x240] sm:$0xff]
    %v4111 = vld [vmem:[%s10 + $0x248] sm:$0xff]
    %v4112 = vld [vmem:[%s10 + $0x250] sm:$0xff]
    %v4113 = vld [vmem:[%s10 + $0x258] sm:$0xff]
    %v4114 = vld [vmem:[%s10 + $0x260] sm:$0xff]
    %v4115 = vld [vmem:[%s10 + $0x268] sm:$0xff]
    %v4116 = vld [vmem:[%s10 + $0x270] sm:$0xff]
    %v4117 = vld [vmem:[%s10 + $0x278] sm:$0xff]
    %v4118 = vld [vmem:[%s10 + $0x280] sm:$0xff]
    %v4119 = vld [vmem:[%s10 + $0x288] sm:$0xff]
    %v4120 = vld [vmem:[%s10 + $0x290] sm:$0xff]
    %v4121 = vld [vmem:[%s10 + $0x298] sm:$0xff]
    %v4122 = vld [vmem:[%s10 + $0x2a0] sm:$0xff]
    %v4123 = vld [vmem:[%s10 + $0x2a8] sm:$0xff]
    %v4124 = vld [vmem:[%s10 + $0x2b0] sm:$0xff]
    %v4125 = vld [vmem:[%s10 + $0x2b8] sm:$0xff]
    %v4126 = vld [vmem:[%s10 + $0x2c0] sm:$0xff]
    %v4127 = vld [vmem:[%s10 + $0x2c8] sm:$0xff]
    %v4128 = vld [vmem:[%s10 + $0x2d0] sm:$0xff]
    %v4129 = vld [vmem:[%s10 + $0x2d8] sm:$0xff]
    %v4130 = vld [vmem:[%s10 + $0x2e0] sm:$0xff]
    %v4131 = vld [vmem:[%s10 + $0x2e8] sm:$0xff]
    %v4132 = vld [vmem:[%s10 + $0x2f0] sm:$0xff]
    %v4133 = vld [vmem:[%s10 + $0x2f8] sm:$0xff]
    %v4134 = vld [vmem:[%s10 + $0x300] sm:$0xff]
    %v4135 = vld [vmem:[%s10 + $0x308] sm:$0xff]
    %v4136 = vld [vmem:[%s10 + $0x310] sm:$0xff]
    %v4137 = vld [vmem:[%s10 + $0x318] sm:$0xff]
    %v4138 = vld [vmem:[%s10 + $0x320] sm:$0xff]
    %v4139 = vld [vmem:[%s10 + $0x328] sm:$0xff]
    %v4140 = vld [vmem:[%s10 + $0x330] sm:$0xff]
    %v4141 = vld [vmem:[%s10 + $0x338] sm:$0xff]
    %v4142 = vld [vmem:[%s10 + $0x340] sm:$0xff]
    %v4143 = vld [vmem:[%s10 + $0x348] sm:$0xff]
    %v4144 = vld [vmem:[%s10 + $0x350] sm:$0xff]
    %v4145 = vld [vmem:[%s10 + $0x358] sm:$0xff]
    %v4146 = vld [vmem:[%s10 + $0x360] sm:$0xff]
    %v4147 = vld [vmem:[%s10 + $0x368] sm:$0xff]
    %v4148 = vld [vmem:[%s10 + $0x370] sm:$0xff]
    %v4149 = vld [vmem:[%s10 + $0x378] sm:$0xff]
    %v4150 = vld [vmem:[%s10 + $0x380] sm:$0xff]
    %v4151 = vld [vmem:[%s10 + $0x388] sm:$0xff]
    %v4152 = vld [vmem:[%s10 + $0x390] sm:$0xff]
    %v4153 = vld [vmem:[%s10 + $0x398] sm:$0xff]
    %v4154 = vld [vmem:[%s10 + $0x3a0] sm:$0xff]
    %v4155 = vld [vmem:[%s10 + $0x3a8] sm:$0xff]
    %v4156 = vld [vmem:[%s10 + $0x3b0] sm:$0xff]
    %v4157 = vld [vmem:[%s10 + $0x3b8] sm:$0xff]
    %v4158 = vld [vmem:[%s10 + $0x3c0] sm:$0xff]
    %v4159 = vld [vmem:[%s10 + $0x3c8] sm:$0xff]
    %v4160 = vld [vmem:[%s10 + $0x3d0] sm:$0xff]
    %v4161 = vld [vmem:[%s10 + $0x3d8] sm:$0xff]
    %v4162 = vld [vmem:[%s10 + $0x3e0] sm:$0xff]
    %v4163 = vld [vmem:[%s10 + $0x3e8] sm:$0xff]
    %v4164 = vld [vmem:[%s10 + $0x3f0] sm:$0xff]
    %v4165 = vld [vmem:[%s10 + $0x3f8] sm:$0xff]
    %v4166 = vld [vmem:[%s10 + $0x400] sm:$0xff]
    %v4167 = vld [vmem:[%s10 + $0x408] sm:$0xff]
    %v4168 = vld [vmem:[%s10 + $0x410] sm:$0xff]
    %v4169 = vld [vmem:[%s10 + $0x418] sm:$0xff]
    %v4170 = vld [vmem:[%s10 + $0x420] sm:$0xff]
    %v4171 = vld [vmem:[%s10 + $0x428] sm:$0xff]
    %v4172 = vld [vmem:[%s10 + $0x430] sm:$0xff]
    %v4173 = vld [vmem:[%s10 + $0x438] sm:$0xff]
    %v4174 = vld [vmem:[%s10 + $0x440] sm:$0xff]
    %v4175 = vld [vmem:[%s10 + $0x448] sm:$0xff]
    %v4176 = vld [vmem:[%s10 + $0x450] sm:$0xff]
    %v4177 = vld [vmem:[%s10 + $0x458] sm:$0xff]
    %v4178 = vld [vmem:[%s10 + $0x460] sm:$0xff]
    %v4179 = vld [vmem:[%s10 + $0x468] sm:$0xff]
    %v4180 = vld [vmem:[%s10 + $0x470] sm:$0xff]
    %v4181 = vld [vmem:[%s10 + $0x478] sm:$0xff]
    %v4182 = vld [vmem:[%s10 + $0x480] sm:$0xff]
    %v4183 = vld [vmem:[%s10 + $0x488] sm:$0xff]
    %v4184 = vld [vmem:[%s10 + $0x490] sm:$0xff]
    %v4185 = vld [vmem:[%s10 + $0x498] sm:$0xff]
    %v4186 = vld [vmem:[%s10 + $0x4a0] sm:$0xff]
    %v4187 = vld [vmem:[%s10 + $0x4a8] sm:$0xff]
    %v4188 = vld [vmem:[%s10 + $0x4b0] sm:$0xff]
    %v4189 = vld [vmem:[%s10 + $0x4b8] sm:$0xff]
    %v4190 = vld [vmem:[%s10 + $0x4c0] sm:$0xff]
    %v4191 = vld [vmem:[%s10 + $0x4c8] sm:$0xff]
    %v4192 = vld [vmem:[%s10 + $0x4d0] sm:$0xff]
    %v4193 = vld [vmem:[%s10 + $0x4d8] sm:$0xff]
    %v4194 = vld [vmem:[%s10 + $0x4e0] sm:$0xff]
    %v4195 = vld [vmem:[%s10 + $0x4e8] sm:$0xff]
    %v4196 = vld [vmem:[%s10 + $0x4f0] sm:$0xff]
    %v4197 = vld [vmem:[%s10 + $0x4f8] sm:$0xff]
    %v4198 = vld [vmem:[%s10 + $0x500] sm:$0xff]
    %v4199 = vld [vmem:[%s10 + $0x508] sm:$0xff]
    %v4200 = vld [vmem:[%s10 + $0x510] sm:$0xff]
    %v4201 = vld [vmem:[%s10 + $0x518] sm:$0xff]
    %v4202 = vld [vmem:[%s10 + $0x520] sm:$0xff]
    %v4203 = vld [vmem:[%s10 + $0x528] sm:$0xff]
    %v4204 = vld [vmem:[%s10 + $0x530] sm:$0xff]
    %v4205 = vld [vmem:[%s10 + $0x538] sm:$0xff]
    %v4206 = vld [vmem:[%s10 + $0x540] sm:$0xff]
    %v4207 = vld [vmem:[%s10 + $0x548] sm:$0xff]
    %v4208 = vld [vmem:[%s10 + $0x550] sm:$0xff]
    %v4209 = vld [vmem:[%s10 + $0x558] sm:$0xff]
    %v4210 = vld [vmem:[%s10 + $0x560] sm:$0xff]
    %v4211 = vld [vmem:[%s10 + $0x568] sm:$0xff]
    %v4212 = vld [vmem:[%s10 + $0x570] sm:$0xff]
    %v4213 = vld [vmem:[%s10 + $0x578] sm:$0xff]
    %v4214 = vld [vmem:[%s10 + $0x580] sm:$0xff]
    %v4215 = vld [vmem:[%s10 + $0x588] sm:$0xff]
    %v4216 = vld [vmem:[%s10 + $0x590] sm:$0xff]
    %v4217 = vld [vmem:[%s10 + $0x598] sm:$0xff]
    %v4218 = vld [vmem:[%s10 + $0x5a0] sm:$0xff]
    %v4219 = vld [vmem:[%s10 + $0x5a8] sm:$0xff]
    %v4220 = vld [vmem:[%s10 + $0x5b0] sm:$0xff]
    %v4221 = vld [vmem:[%s10 + $0x5b8] sm:$0xff]
    %v4222 = vld [vmem:[%s10 + $0x5c0] sm:$0xff]
    %v4223 = vld [vmem:[%s10 + $0x5c8] sm:$0xff]
    %v4224 = vld [vmem:[%s10 + $0x5d0] sm:$0xff]
    %v4225 = vld [vmem:[%s10 + $0x5d8] sm:$0xff]
    %v4226 = vld [vmem:[%s10 + $0x5e0] sm:$0xff]
    %v4227 = vld [vmem:[%s10 + $0x5e8] sm:$0xff]
    %v4228 = vld [vmem:[%s10 + $0x5f0] sm:$0xff]
    %v4229 = vld [vmem:[%s10 + $0x5f8] sm:$0xff]
    %v4230 = vld [vmem:[%s10 + $0x600] sm:$0xff]
    %v4231 = vld [vmem:[%s10 + $0x608] sm:$0xff]
    %v4232 = vld [vmem:[%s10 + $0x610] sm:$0xff]
    %v4233 = vld [vmem:[%s10 + $0x618] sm:$0xff]
    %v4234 = vld [vmem:[%s10 + $0x620] sm:$0xff]
    %v4235 = vld [vmem:[%s10 + $0x628] sm:$0xff]
    %v4236 = vld [vmem:[%s10 + $0x630] sm:$0xff]
    %v4237 = vld [vmem:[%s10 + $0x638] sm:$0xff]
    %v4238 = vld [vmem:[%s10 + $0x640] sm:$0xff]
    %v4239 = vld [vmem:[%s10 + $0x648] sm:$0xff]
    %v4240 = vld [vmem:[%s10 + $0x650] sm:$0xff]
    %v4241 = vld [vmem:[%s10 + $0x658] sm:$0xff]
    %v4242 = vld [vmem:[%s10 + $0x660] sm:$0xff]
    %v4243 = vld [vmem:[%s10 + $0x668] sm:$0xff]
    %v4244 = vld [vmem:[%s10 + $0x670] sm:$0xff]
    %v4245 = vld [vmem:[%s10 + $0x678] sm:$0xff]
    %v4246 = vld [vmem:[%s10 + $0x680] sm:$0xff]
    %v4247 = vld [vmem:[%s10 + $0x688] sm:$0xff]
    %v4248 = vld [vmem:[%s10 + $0x690] sm:$0xff]
    %v4249 = vld [vmem:[%s10 + $0x698] sm:$0xff]
    %v4250 = vld [vmem:[%s10 + $0x6a0] sm:$0xff]
    %v4251 = vld [vmem:[%s10 + $0x6a8] sm:$0xff]
    %v4252 = vld [vmem:[%s10 + $0x6b0] sm:$0xff]
    %v4253 = vld [vmem:[%s10 + $0x6b8] sm:$0xff]
    %v4254 = vld [vmem:[%s10 + $0x6c0] sm:$0xff]
    %v4255 = vld [vmem:[%s10 + $0x6c8] sm:$0xff]
    %v4256 = vld [vmem:[%s10 + $0x6d0] sm:$0xff]
    %v4257 = vld [vmem:[%s10 + $0x6d8] sm:$0xff]
    %v4258 = vld [vmem:[%s10 + $0x6e0] sm:$0xff]
    %v4259 = vld [vmem:[%s10 + $0x6e8] sm:$0xff]
    %v4260 = vld [vmem:[%s10 + $0x6f0] sm:$0xff]
    %v4261 = vld [vmem:[%s10 + $0x6f8] sm:$0xff]
    %v4262 = vld [vmem:[%s10 + $0x700] sm:$0xff]
    %v4263 = vld [vmem:[%s10 + $0x708] sm:$0xff]
    %v4264 = vld [vmem:[%s10 + $0x710] sm:$0xff]
    %v4265 = vld [vmem:[%s10 + $0x718] sm:$0xff]
    %v4266 = vld [vmem:[%s10 + $0x720] sm:$0xff]
    %v4267 = vld [vmem:[%s10 + $0x728] sm:$0xff]
    %v4268 = vld [vmem:[%s10 + $0x730] sm:$0xff]
    %v4269 = vld [vmem:[%s10 + $0x738] sm:$0xff]
    %v4270 = vld [vmem:[%s10 + $0x740] sm:$0xff]
    %v4271 = vld [vmem:[%s10 + $0x748] sm:$0xff]
    %v4272 = vld [vmem:[%s10 + $0x750] sm:$0xff]
    %v4273 = vld [vmem:[%s10 + $0x758] sm:$0xff]
    %v4274 = vld [vmem:[%s10 + $0x760] sm:$0xff]
    %v4275 = vld [vmem:[%s10 + $0x768] sm:$0xff]
    %v4276 = vld [vmem:[%s10 + $0x770] sm:$0xff]
    %v4277 = vld [vmem:[%s10 + $0x778] sm:$0xff]
    %v4278 = vld [vmem:[%s10 + $0x780] sm:$0xff]
    %v4279 = vld [vmem:[%s10 + $0x788] sm:$0xff]
    %v4280 = vld [vmem:[%s10 + $0x790] sm:$0xff]
    %v4281 = vld [vmem:[%s10 + $0x798] sm:$0xff]
    %v4282 = vld [vmem:[%s10 + $0x7a0] sm:$0xff]
    %v4283 = vld [vmem:[%s10 + $0x7a8] sm:$0xff]
    %v4284 = vld [vmem:[%s10 + $0x7b0] sm:$0xff]
    %v4285 = vld [vmem:[%s10 + $0x7b8] sm:$0xff]
    %v4286 = vld [vmem:[%s10 + $0x7c0] sm:$0xff]
    %v4287 = vld [vmem:[%s10 + $0x7c8] sm:$0xff]
    %v4288 = vld [vmem:[%s10 + $0x7d0] sm:$0xff]
    %v4289 = vld [vmem:[%s10 + $0x7d8] sm:$0xff]
    %v4290 = vld [vmem:[%s10 + $0x7e0] sm:$0xff]
    %v4291 = vld [vmem:[%s10 + $0x7e8] sm:$0xff]
    %v4292 = vld [vmem:[%s10 + $0x7f0] sm:$0xff]
    %v4293 = vld [vmem:[%s10 + $0x7f8] sm:$0xff]
    %v4294 = vld [vmem:[%s10 + $0x800] sm:$0xff]
    %v4295 = vld [vmem:[%s10 + $0x808] sm:$0xff]
    %v4296 = vld [vmem:[%s10 + $0x810] sm:$0xff]
    %v4297 = vld [vmem:[%s10 + $0x818] sm:$0xff]
    %v4298 = vld [vmem:[%s10 + $0x820] sm:$0xff]
    %v4299 = vld [vmem:[%s10 + $0x828] sm:$0xff]
    %v4300 = vld [vmem:[%s10 + $0x830] sm:$0xff]
    %v4301 = vld [vmem:[%s10 + $0x838] sm:$0xff]
    %v4302 = vld [vmem:[%s10 + $0x840] sm:$0xff]
    %v4303 = vld [vmem:[%s10 + $0x848] sm:$0xff]
    %v4304 = vld [vmem:[%s10 + $0x850] sm:$0xff]
    %v4305 = vld [vmem:[%s10 + $0x858] sm:$0xff]
    %v4306 = vld [vmem:[%s10 + $0x860] sm:$0xff]
    %v4307 = vld [vmem:[%s10 + $0x868] sm:$0xff]
    %v4308 = vld [vmem:[%s10 + $0x870] sm:$0xff]
    %v4309 = vld [vmem:[%s10 + $0x878] sm:$0xff]
    %v4310 = vld [vmem:[%s10 + $0x880] sm:$0xff]
    %v4311 = vld [vmem:[%s10 + $0x888] sm:$0xff]
    %v4312 = vld [vmem:[%s10 + $0x890] sm:$0xff]
    %v4313 = vld [vmem:[%s10 + $0x898] sm:$0xff]
    %v4314 = vld [vmem:[%s10 + $0x8a0] sm:$0xff]
    %v4315 = vld [vmem:[%s10 + $0x8a8] sm:$0xff]
    %v4316 = vld [vmem:[%s10 + $0x8b0] sm:$0xff]
    %v4317 = vld [vmem:[%s10 + $0x8b8] sm:$0xff]
    %v4318 = vld [vmem:[%s10 + $0x8c0] sm:$0xff]
    %v4319 = vld [vmem:[%s10 + $0x8c8] sm:$0xff]
    %v4320 = vld [vmem:[%s10 + $0x8d0] sm:$0xff]
    %v4321 = vld [vmem:[%s10 + $0x8d8] sm:$0xff]
    %v4322 = vld [vmem:[%s10 + $0x8e0] sm:$0xff]
    %v4323 = vld [vmem:[%s10 + $0x8e8] sm:$0xff]
    %v4324 = vld [vmem:[%s10 + $0x8f0] sm:$0xff]
    %v4325 = vld [vmem:[%s10 + $0x8f8] sm:$0xff]
    %v4326 = vld [vmem:[%s10 + $0x900] sm:$0xff]
    %v4327 = vld [vmem:[%s10 + $0x908] sm:$0xff]
    %v4328 = vld [vmem:[%s10 + $0x910] sm:$0xff]
    %v4329 = vld [vmem:[%s10 + $0x918] sm:$0xff]
    %v4330 = vld [vmem:[%s10 + $0x920] sm:$0xff]
    %v4331 = vld [vmem:[%s10 + $0x928] sm:$0xff]
    %v4332 = vld [vmem:[%s10 + $0x930] sm:$0xff]
    %v4333 = vld [vmem:[%s10 + $0x938] sm:$0xff]
    %v4334 = vld [vmem:[%s10 + $0x940] sm:$0xff]
    %v4335 = vld [vmem:[%s10 + $0x948] sm:$0xff]
    %v4336 = vld [vmem:[%s10 + $0x950] sm:$0xff]
    %v4337 = vld [vmem:[%s10 + $0x958] sm:$0xff]
    %v4338 = vld [vmem:[%s10 + $0x960] sm:$0xff]
    %v4339 = vld [vmem:[%s10 + $0x968] sm:$0xff]
    %v4340 = vld [vmem:[%s10 + $0x970] sm:$0xff]
    %v4341 = vld [vmem:[%s10 + $0x978] sm:$0xff]
    %v4342 = vld [vmem:[%s10 + $0x980] sm:$0xff]
    %v4343 = vld [vmem:[%s10 + $0x988] sm:$0xff]
    %v4344 = vld [vmem:[%s10 + $0x990] sm:$0xff]
    %v4345 = vld [vmem:[%s10 + $0x998] sm:$0xff]
    %v4346 = vld [vmem:[%s10 + $0x9a0] sm:$0xff]
    %v4347 = vld [vmem:[%s10 + $0x9a8] sm:$0xff]
    %v4348 = vld [vmem:[%s10 + $0x9b0] sm:$0xff]
    %v4349 = vld [vmem:[%s10 + $0x9b8] sm:$0xff]
    %v4350 = vld [vmem:[%s10 + $0x9c0] sm:$0xff]
    %v4351 = vld [vmem:[%s10 + $0x9c8] sm:$0xff]
    %v4352 = vld [vmem:[%s10 + $0x9d0] sm:$0xff]
    %v4353 = vld [vmem:[%s10 + $0x9d8] sm:$0xff]
    %v4354 = vld [vmem:[%s10 + $0x9e0] sm:$0xff]
    %v4355 = vld [vmem:[%s10 + $0x9e8] sm:$0xff]
    %v4356 = vld [vmem:[%s10 + $0x9f0] sm:$0xff]
    %v4357 = vld [vmem:[%s10 + $0x9f8] sm:$0xff]
    %v4358 = vld [vmem:[%s10 + $0xa00] sm:$0xff]
    %v4359 = vld [vmem:[%s10 + $0xa08] sm:$0xff]
    %v4360 = vld [vmem:[%s10 + $0xa10] sm:$0xff]
    %v4361 = vld [vmem:[%s10 + $0xa18] sm:$0xff]
    %v4362 = vld [vmem:[%s10 + $0xa20] sm:$0xff]
    %v4363 = vld [vmem:[%s10 + $0xa28] sm:$0xff]
    %v4364 = vld [vmem:[%s10 + $0xa30] sm:$0xff]
    %v4365 = vld [vmem:[%s10 + $0xa38] sm:$0xff]
    %v4366 = vld [vmem:[%s10 + $0xa40] sm:$0xff]
    %v4367 = vld [vmem:[%s10 + $0xa48] sm:$0xff]
    %v4368 = vld [vmem:[%s10 + $0xa50] sm:$0xff]
    %v4369 = vld [vmem:[%s10 + $0xa58] sm:$0xff]
    %v4370 = vld [vmem:[%s10 + $0xa60] sm:$0xff]
    %v4371 = vld [vmem:[%s10 + $0xa68] sm:$0xff]
    %v4372 = vld [vmem:[%s10 + $0xa70] sm:$0xff]
    %v4373 = vld [vmem:[%s10 + $0xa78] sm:$0xff]
    %v4374 = vld [vmem:[%s10 + $0xa80] sm:$0xff]
    %v4375 = vld [vmem:[%s10 + $0xa88] sm:$0xff]
    %v4376 = vld [vmem:[%s10 + $0xa90] sm:$0xff]
    %v4377 = vld [vmem:[%s10 + $0xa98] sm:$0xff]
    %v4378 = vld [vmem:[%s10 + $0xaa0] sm:$0xff]
    %v4379 = vld [vmem:[%s10 + $0xaa8] sm:$0xff]
    %v4380 = vld [vmem:[%s10 + $0xab0] sm:$0xff]
    %v4381 = vld [vmem:[%s10 + $0xab8] sm:$0xff]
    %v4382 = vld [vmem:[%s10 + $0xac0] sm:$0xff]
    %v4383 = vld [vmem:[%s10 + $0xac8] sm:$0xff]
    %v4384 = vld [vmem:[%s10 + $0xad0] sm:$0xff]
    %v4385 = vld [vmem:[%s10 + $0xad8] sm:$0xff]
    %v4386 = vld [vmem:[%s10 + $0xae0] sm:$0xff]
    %v4387 = vld [vmem:[%s10 + $0xae8] sm:$0xff]
    %v4388 = vld [vmem:[%s10 + $0xaf0] sm:$0xff]
    %v4389 = vld [vmem:[%s10 + $0xaf8] sm:$0xff]
    %v4390 = vld [vmem:[%s10 + $0xb00] sm:$0xff]
    %v4391 = vld [vmem:[%s10 + $0xb08] sm:$0xff]
    %v4392 = vld [vmem:[%s10 + $0xb10] sm:$0xff]
    %v4393 = vld [vmem:[%s10 + $0xb18] sm:$0xff]
    %v4394 = vld [vmem:[%s10 + $0xb20] sm:$0xff]
    %v4395 = vld [vmem:[%s10 + $0xb28] sm:$0xff]
    %v4396 = vld [vmem:[%s10 + $0xb30] sm:$0xff]
    %v4397 = vld [vmem:[%s10 + $0xb38] sm:$0xff]
    %v4398 = vld [vmem:[%s10 + $0xb40] sm:$0xff]
    %v4399 = vld [vmem:[%s10 + $0xb48] sm:$0xff]
    %v4400 = vld [vmem:[%s10 + $0xb50] sm:$0xff]
    %v4401 = vld [vmem:[%s10 + $0xb58] sm:$0xff]
    %v4402 = vld [vmem:[%s10 + $0xb60] sm:$0xff]
    %v4403 = vld [vmem:[%s10 + $0xb68] sm:$0xff]
    %v4404 = vld [vmem:[%s10 + $0xb70] sm:$0xff]
    %v4405 = vld [vmem:[%s10 + $0xb78] sm:$0xff]
    %v4406 = vld [vmem:[%s10 + $0xb80] sm:$0xff]
    %v4407 = vld [vmem:[%s10 + $0xb88] sm:$0xff]
    %v4408 = vld [vmem:[%s10 + $0xb90] sm:$0xff]
    %v4409 = vld [vmem:[%s10 + $0xb98] sm:$0xff]
    %v4410 = vld [vmem:[%s10 + $0xba0] sm:$0xff]
    %v4411 = vld [vmem:[%s10 + $0xba8] sm:$0xff]
    %v4412 = vld [vmem:[%s10 + $0xbb0] sm:$0xff]
    %v4413 = vld [vmem:[%s10 + $0xbb8] sm:$0xff]
    %v4414 = vld [vmem:[%s10 + $0xbc0] sm:$0xff]
    %v4415 = vld [vmem:[%s10 + $0xbc8] sm:$0xff]
    %v4416 = vld [vmem:[%s10 + $0xbd0] sm:$0xff]
    %v4417 = vld [vmem:[%s10 + $0xbd8] sm:$0xff]
    %v4418 = vld [vmem:[%s10 + $0xbe0] sm:$0xff]
    %v4419 = vld [vmem:[%s10 + $0xbe8] sm:$0xff]
    %v4420 = vld [vmem:[%s10 + $0xbf0] sm:$0xff]
    %v4421 = vld [vmem:[%s10 + $0xbf8] sm:$0xff]
    %v4422 = vld [vmem:[%s10 + $0xc00] sm:$0xff]
    %v4423 = vld [vmem:[%s10 + $0xc08] sm:$0xff]
    %v4424 = vld [vmem:[%s10 + $0xc10] sm:$0xff]
    %v4425 = vld [vmem:[%s10 + $0xc18] sm:$0xff]
    %v4426 = vld [vmem:[%s10 + $0xc20] sm:$0xff]
    %v4427 = vld [vmem:[%s10 + $0xc28] sm:$0xff]
    %v4428 = vld [vmem:[%s10 + $0xc30] sm:$0xff]
    %v4429 = vld [vmem:[%s10 + $0xc38] sm:$0xff]
    %v4430 = vld [vmem:[%s10 + $0xc40] sm:$0xff]
    %v4431 = vld [vmem:[%s10 + $0xc48] sm:$0xff]
    %v4432 = vld [vmem:[%s10 + $0xc50] sm:$0xff]
    %v4433 = vld [vmem:[%s10 + $0xc58] sm:$0xff]
    %v4434 = vld [vmem:[%s10 + $0xc60] sm:$0xff]
    %v4435 = vld [vmem:[%s10 + $0xc68] sm:$0xff]
    %v4436 = vld [vmem:[%s10 + $0xc70] sm:$0xff]
    %v4437 = vld [vmem:[%s10 + $0xc78] sm:$0xff]
    %v4438 = vld [vmem:[%s10 + $0xc80] sm:$0xff]
    %v4439 = vld [vmem:[%s10 + $0xc88] sm:$0xff]
    %v4440 = vld [vmem:[%s10 + $0xc90] sm:$0xff]
    %v4441 = vld [vmem:[%s10 + $0xc98] sm:$0xff]
    %v4442 = vld [vmem:[%s10 + $0xca0] sm:$0xff]
    %v4443 = vld [vmem:[%s10 + $0xca8] sm:$0xff]
    %v4444 = vld [vmem:[%s10 + $0xcb0] sm:$0xff]
    %v4445 = vld [vmem:[%s10 + $0xcb8] sm:$0xff]
    %v4446 = vld [vmem:[%s10 + $0xcc0] sm:$0xff]
    %v4447 = vld [vmem:[%s10 + $0xcc8] sm:$0xff]
    %v4448 = vld [vmem:[%s10 + $0xcd0] sm:$0xff]
    %v4449 = vld [vmem:[%s10 + $0xcd8] sm:$0xff]
    %v4450 = vld [vmem:[%s10 + $0xce0] sm:$0xff]
    %v4451 = vld [vmem:[%s10 + $0xce8] sm:$0xff]
    %v4452 = vld [vmem:[%s10 + $0xcf0] sm:$0xff]
    %v4453 = vld [vmem:[%s10 + $0xcf8] sm:$0xff]
    %v4454 = vld [vmem:[%s10 + $0xd00] sm:$0xff]
    %v4455 = vld [vmem:[%s10 + $0xd08] sm:$0xff]
    %v4456 = vld [vmem:[%s10 + $0xd10] sm:$0xff]
    %v4457 = vld [vmem:[%s10 + $0xd18] sm:$0xff]
    %v4458 = vld [vmem:[%s10 + $0xd20] sm:$0xff]
    %v4459 = vld [vmem:[%s10 + $0xd28] sm:$0xff]
    %v4460 = vld [vmem:[%s10 + $0xd30] sm:$0xff]
    %v4461 = vld [vmem:[%s10 + $0xd38] sm:$0xff]
    %v4462 = vld [vmem:[%s10 + $0xd40] sm:$0xff]
    %v4463 = vld [vmem:[%s10 + $0xd48] sm:$0xff]
    %v4464 = vld [vmem:[%s10 + $0xd50] sm:$0xff]
    %v4465 = vld [vmem:[%s10 + $0xd58] sm:$0xff]
    %v4466 = vld [vmem:[%s10 + $0xd60] sm:$0xff]
    %v4467 = vld [vmem:[%s10 + $0xd68] sm:$0xff]
    %v4468 = vld [vmem:[%s10 + $0xd70] sm:$0xff]
    %v4469 = vld [vmem:[%s10 + $0xd78] sm:$0xff]
    %v4470 = vld [vmem:[%s10 + $0xd80] sm:$0xff]
    %v4471 = vld [vmem:[%s10 + $0xd88] sm:$0xff]
    %v4472 = vld [vmem:[%s10 + $0xd90] sm:$0xff]
    %v4473 = vld [vmem:[%s10 + $0xd98] sm:$0xff]
    %v4474 = vld [vmem:[%s10 + $0xda0] sm:$0xff]
    %v4475 = vld [vmem:[%s10 + $0xda8] sm:$0xff]
    %v4476 = vld [vmem:[%s10 + $0xdb0] sm:$0xff]
    %v4477 = vld [vmem:[%s10 + $0xdb8] sm:$0xff]
    %v4478 = vld [vmem:[%s10 + $0xdc0] sm:$0xff]
    %v4479 = vld [vmem:[%s10 + $0xdc8] sm:$0xff]
    %v4480 = vld [vmem:[%s10 + $0xdd0] sm:$0xff]
    %v4481 = vld [vmem:[%s10 + $0xdd8] sm:$0xff]
    %v4482 = vld [vmem:[%s10 + $0xde0] sm:$0xff]
    %v4483 = vld [vmem:[%s10 + $0xde8] sm:$0xff]
    %v4484 = vld [vmem:[%s10 + $0xdf0] sm:$0xff]
    %v4485 = vld [vmem:[%s10 + $0xdf8] sm:$0xff]
    %v4486 = vld [vmem:[%s10 + $0xe00] sm:$0xff]
    %v4487 = vld [vmem:[%s10 + $0xe08] sm:$0xff]
    %v4488 = vld [vmem:[%s10 + $0xe10] sm:$0xff]
    %v4489 = vld [vmem:[%s10 + $0xe18] sm:$0xff]
    %v4490 = vld [vmem:[%s10 + $0xe20] sm:$0xff]
    %v4491 = vld [vmem:[%s10 + $0xe28] sm:$0xff]
    %v4492 = vld [vmem:[%s10 + $0xe30] sm:$0xff]
    %v4493 = vld [vmem:[%s10 + $0xe38] sm:$0xff]
    %v4494 = vld [vmem:[%s10 + $0xe40] sm:$0xff]
    %v4495 = vld [vmem:[%s10 + $0xe48] sm:$0xff]
    %v4496 = vld [vmem:[%s10 + $0xe50] sm:$0xff]
    %v4497 = vld [vmem:[%s10 + $0xe58] sm:$0xff]
    %v4498 = vld [vmem:[%s10 + $0xe60] sm:$0xff]
    %v4499 = vld [vmem:[%s10 + $0xe68] sm:$0xff]
    %v4500 = vld [vmem:[%s10 + $0xe70] sm:$0xff]
    %v4501 = vld [vmem:[%s10 + $0xe78] sm:$0xff]
    %v4502 = vld [vmem:[%s10 + $0xe80] sm:$0xff]
    %v4503 = vld [vmem:[%s10 + $0xe88] sm:$0xff]
    %v4504 = vld [vmem:[%s10 + $0xe90] sm:$0xff]
    %v4505 = vld [vmem:[%s10 + $0xe98] sm:$0xff]
    %v4506 = vld [vmem:[%s10 + $0xea0] sm:$0xff]
    %v4507 = vld [vmem:[%s10 + $0xea8] sm:$0xff]
    %v4508 = vld [vmem:[%s10 + $0xeb0] sm:$0xff]
    %v4509 = vld [vmem:[%s10 + $0xeb8] sm:$0xff]
    %v4510 = vld [vmem:[%s10 + $0xec0] sm:$0xff]
    %v4511 = vld [vmem:[%s10 + $0xec8] sm:$0xff]
    %v4512 = vld [vmem:[%s10 + $0xed0] sm:$0xff]
    %v4513 = vld [vmem:[%s10 + $0xed8] sm:$0xff]
    %v4514 = vld [vmem:[%s10 + $0xee0] sm:$0xff]
    %v4515 = vld [vmem:[%s10 + $0xee8] sm:$0xff]
    %v4516 = vld [vmem:[%s10 + $0xef0] sm:$0xff]
    %v4517 = vld [vmem:[%s10 + $0xef8] sm:$0xff]
    %v4518 = vld [vmem:[%s10 + $0xf00] sm:$0xff]
    %v4519 = vld [vmem:[%s10 + $0xf08] sm:$0xff]
    %v4520 = vld [vmem:[%s10 + $0xf10] sm:$0xff]
    %v4521 = vld [vmem:[%s10 + $0xf18] sm:$0xff]
    %v4522 = vld [vmem:[%s10 + $0xf20] sm:$0xff]
    %v4523 = vld [vmem:[%s10 + $0xf28] sm:$0xff]
    %v4524 = vld [vmem:[%s10 + $0xf30] sm:$0xff]
    %v4525 = vld [vmem:[%s10 + $0xf38] sm:$0xff]
    %v4526 = vld [vmem:[%s10 + $0xf40] sm:$0xff]
    %v4527 = vld [vmem:[%s10 + $0xf48] sm:$0xff]
    %v4528 = vld [vmem:[%s10 + $0xf50] sm:$0xff]
    %v4529 = vld [vmem:[%s10 + $0xf58] sm:$0xff]
    %v4530 = vld [vmem:[%s10 + $0xf60] sm:$0xff]
    %v4531 = vld [vmem:[%s10 + $0xf68] sm:$0xff]
    %v4532 = vld [vmem:[%s10 + $0xf70] sm:$0xff]
    %v4533 = vld [vmem:[%s10 + $0xf78] sm:$0xff]
    %v4534 = vld [vmem:[%s10 + $0xf80] sm:$0xff]
    %v4535 = vld [vmem:[%s10 + $0xf88] sm:$0xff]
    %v4536 = vld [vmem:[%s10 + $0xf90] sm:$0xff]
    %v4537 = vld [vmem:[%s10 + $0xf98] sm:$0xff]
    %v4538 = vld [vmem:[%s10 + $0xfa0] sm:$0xff]
    %v4539 = vld [vmem:[%s10 + $0xfa8] sm:$0xff]
    %v4540 = vld [vmem:[%s10 + $0xfb0] sm:$0xff]
    %v4541 = vld [vmem:[%s10 + $0xfb8] sm:$0xff]
    %v4542 = vld [vmem:[%s10 + $0xfc0] sm:$0xff]
    %v4543 = vld [vmem:[%s10 + $0xfc8] sm:$0xff]
    %v4544 = vld [vmem:[%s10 + $0xfd0] sm:$0xff]
    %v4545 = vld [vmem:[%s10 + $0xfd8] sm:$0xff]
    %v4546 = vld [vmem:[%s10 + $0xfe0] sm:$0xff]
    %v4547 = vld [vmem:[%s10 + $0xfe8] sm:$0xff]
    %v4548 = vld [vmem:[%s10 + $0xff0] sm:$0xff]
    %v4549 = vld [vmem:[%s10 + $0xff8] sm:$0xff]
    %v4550 = vld [vmem:[%s10 + $0x1000] sm:$0xff]
    %v4551 = vld [vmem:[%s10 + $0x1008] sm:$0xff]
    %v4552 = vld [vmem:[%s10 + $0x1010] sm:$0xff]
    %v4553 = vld [vmem:[%s10 + $0x1018] sm:$0xff]
    %v4554 = vld [vmem:[%s10 + $0x1020] sm:$0xff]
    %v4555 = vld [vmem:[%s10 + $0x1028] sm:$0xff]
    %v4556 = vld [vmem:[%s10 + $0x1030] sm:$0xff]
    %v4557 = vld [vmem:[%s10 + $0x1038] sm:$0xff]
    %v4558 = vld [vmem:[%s10 + $0x1040] sm:$0xff]
    %v4559 = vld [vmem:[%s10 + $0x1048] sm:$0xff]
    %v4560 = vld [vmem:[%s10 + $0x1050] sm:$0xff]
    %v4561 = vld [vmem:[%s10 + $0x1058] sm:$0xff]
    %v4562 = vld [vmem:[%s10 + $0x1060] sm:$0xff]
    %v4563 = vld [vmem:[%s10 + $0x1068] sm:$0xff]
    %v4564 = vld [vmem:[%s10 + $0x1070] sm:$0xff]
    %v4565 = vld [vmem:[%s10 + $0x1078] sm:$0xff]
    %v4566 = vld [vmem:[%s10 + $0x1080] sm:$0xff]
    %v4567 = vld [vmem:[%s10 + $0x1088] sm:$0xff]
    %v4568 = vld [vmem:[%s10 + $0x1090] sm:$0xff]
    %v4569 = vld [vmem:[%s10 + $0x1098] sm:$0xff]
    %v4570 = vld [vmem:[%s10 + $0x10a0] sm:$0xff]
    %v4571 = vld [vmem:[%s10 + $0x10a8] sm:$0xff]
    %v4572 = vld [vmem:[%s10 + $0x10b0] sm:$0xff]
    %v4573 = vld [vmem:[%s10 + $0x10b8] sm:$0xff]
    %v4574 = vld [vmem:[%s10 + $0x10c0] sm:$0xff]
    %v4575 = vld [vmem:[%s10 + $0x10c8] sm:$0xff]
    %v4576 = vld [vmem:[%s10 + $0x10d0] sm:$0xff]
    %v4577 = vld [vmem:[%s10 + $0x10d8] sm:$0xff]
    %v4578 = vld [vmem:[%s10 + $0x10e0] sm:$0xff]
    %v4579 = vld [vmem:[%s10 + $0x10e8] sm:$0xff]
    %v4580 = vld [vmem:[%s10 + $0x10f0] sm:$0xff]
    %v4581 = vld [vmem:[%s10 + $0x10f8] sm:$0xff]
    %v4582 = vld [vmem:[%s10 + $0x1100] sm:$0xff]
    %v4583 = vld [vmem:[%s10 + $0x1108] sm:$0xff]
    %v4584 = vld [vmem:[%s10 + $0x1110] sm:$0xff]
    %v4585 = vld [vmem:[%s10 + $0x1118] sm:$0xff]
    %v4586 = vld [vmem:[%s10 + $0x1120] sm:$0xff]
    %v4587 = vld [vmem:[%s10 + $0x1128] sm:$0xff]
    %v4588 = vld [vmem:[%s10 + $0x1130] sm:$0xff]
    %v4589 = vld [vmem:[%s10 + $0x1138] sm:$0xff]
    %v4590 = vld [vmem:[%s10 + $0x1140] sm:$0xff]
    %v4591 = vld [vmem:[%s10 + $0x1148] sm:$0xff]
    %v4592 = vld [vmem:[%s10 + $0x1150] sm:$0xff]
    %v4593 = vld [vmem:[%s10 + $0x1158] sm:$0xff]
    %v4594 = vld [vmem:[%s10 + $0x1160] sm:$0xff]
    %v4595 = vld [vmem:[%s10 + $0x1168] sm:$0xff]
    %v4596 = vld [vmem:[%s10 + $0x1170] sm:$0xff]
    %v4597 = vld [vmem:[%s10 + $0x1178] sm:$0xff]
    %v4598 = vld [vmem:[%s10 + $0x1180] sm:$0xff]
    %v4599 = vld [vmem:[%s10 + $0x1188] sm:$0xff]
    %v4600 = vld [vmem:[%s10 + $0x1190] sm:$0xff]
    %v4601 = vld [vmem:[%s10 + $0x1198] sm:$0xff]
    %v4602 = vld [vmem:[%s10 + $0x11a0] sm:$0xff]
    %v4603 = vld [vmem:[%s10 + $0x11a8] sm:$0xff]
    %v4604 = vld [vmem:[%s10 + $0x11b0] sm:$0xff]
    %v4605 = vld [vmem:[%s10 + $0x11b8] sm:$0xff]
    %v4606 = vld [vmem:[%s10 + $0x11c0] sm:$0xff]
    %v4607 = vld [vmem:[%s10 + $0x11c8] sm:$0xff]
    %v4608 = vld [vmem:[%s10 + $0x11d0] sm:$0xff]
    %v4609 = vld [vmem:[%s10 + $0x11d8] sm:$0xff]
    %v4610 = vld [vmem:[%s10 + $0x11e0] sm:$0xff]
    %v4611 = vld [vmem:[%s10 + $0x11e8] sm:$0xff]
    %v4612 = vld [vmem:[%s10 + $0x11f0] sm:$0xff]
    %v4613 = vld [vmem:[%s10 + $0x11f8] sm:$0xff]
    %v4614 = vld [vmem:[%s11] sm:$0xf]
    %v4616 = vperm.slane %v4614, 0
    %v4617 = vperm.slane %v4614, 1
    %v4618 = vperm.slane %v4614, 2
    %v4619 = vperm.slane %v4614, 3
    %v4696 = vrot.slane %v3966, 1
    %v4697 = vrot.slane %v3984, 1
    %v4698 = vsel %vm1080, %v4696, %v4697
    %v4699 = vrot.slane %v3967, 1
    %v4700 = vrot.slane %v3985, 1
    %v4701 = vsel %vm1080, %v4699, %v4700
    %v4702 = vrot.slane %v3968, 1
    %v4703 = vrot.slane %v3986, 1
    %v4704 = vsel %vm1080, %v4702, %v4703
    %v4705 = vrot.slane %v3969, 1
    %v4706 = vrot.slane %v3987, 1
    %v4707 = vsel %vm1080, %v4705, %v4706
    %v4708 = vrot.slane %v3970, 1
    %v4709 = vrot.slane %v3988, 1
    %v4710 = vsel %vm1080, %v4708, %v4709
    %v4711 = vrot.slane %v3971, 1
    %v4712 = vrot.slane %v3989, 1
    %v4713 = vsel %vm1080, %v4711, %v4712
    %v4714 = vrot.slane %v3972, 1
    %v4715 = vrot.slane %v3990, 1
    %v4716 = vsel %vm1080, %v4714, %v4715
    %v4717 = vrot.slane %v3973, 1
    %v4718 = vrot.slane %v3991, 1
    %v4719 = vsel %vm1080, %v4717, %v4718
    %v4720 = vrot.slane %v3974, 1
    %v4721 = vrot.slane %v3992, 1
    %v4722 = vsel %vm1080, %v4720, %v4721
    %v4723 = vrot.slane %v3975, 1
    %v4724 = vrot.slane %v3993, 1
    %v4725 = vsel %vm1080, %v4723, %v4724
    %v4726 = vrot.slane %v3976, 1
    %v4727 = vrot.slane %v3994, 1
    %v4728 = vsel %vm1080, %v4726, %v4727
    %v4729 = vrot.slane %v3977, 1
    %v4730 = vrot.slane %v3995, 1
    %v4731 = vsel %vm1080, %v4729, %v4730
    %v4732 = vrot.slane %v3978, 1
    %v4733 = vrot.slane %v3996, 1
    %v4734 = vsel %vm1080, %v4732, %v4733
    %v4735 = vrot.slane %v3979, 1
    %v4736 = vrot.slane %v3997, 1
    %v4737 = vsel %vm1080, %v4735, %v4736
    %v4738 = vrot.slane %v3980, 1
    %v4739 = vrot.slane %v3998, 1
    %v4740 = vsel %vm1080, %v4738, %v4739
    %v4741 = vrot.slane %v3981, 1
    %v4742 = vrot.slane %v3999, 1
    %v4743 = vsel %vm1080, %v4741, %v4742
    %v4744 = vrot.slane %v3982, 1
    %v4745 = vrot.slane %v4000, 1
    %v4746 = vsel %vm1080, %v4744, %v4745
    %v4747 = vrot.slane %v3983, 1
    %v4748 = vrot.slane %v4001, 1
    %v4749 = vsel %vm1080, %v4747, %v4748
    %v4750 = vrot.slane %v4002, 1
    %v4751 = vsel %vm1080, %v4697, %v4750
    %v4752 = vrot.slane %v4003, 1
    %v4753 = vsel %vm1080, %v4700, %v4752
    %v4754 = vrot.slane %v4004, 1
    %v4755 = vsel %vm1080, %v4703, %v4754
    %v4756 = vrot.slane %v4005, 1
    %v4757 = vsel %vm1080, %v4706, %v4756
    %v4758 = vrot.slane %v4006, 1
    %v4759 = vsel %vm1080, %v4709, %v4758
    %v4760 = vrot.slane %v4007, 1
    %v4761 = vsel %vm1080, %v4712, %v4760
    %v4762 = vrot.slane %v4008, 1
    %v4763 = vsel %vm1080, %v4715, %v4762
    %v4764 = vrot.slane %v4009, 1
    %v4765 = vsel %vm1080, %v4718, %v4764
    %v4766 = vrot.slane %v4010, 1
    %v4767 = vsel %vm1080, %v4721, %v4766
    %v4768 = vrot.slane %v4011, 1
    %v4769 = vsel %vm1080, %v4724, %v4768
    %v4770 = vrot.slane %v4012, 1
    %v4771 = vsel %vm1080, %v4727, %v4770
    %v4772 = vrot.slane %v4013, 1
    %v4773 = vsel %vm1080, %v4730, %v4772
    %v4774 = vrot.slane %v4014, 1
    %v4775 = vsel %vm1080, %v4733, %v4774
    %v4776 = vrot.slane %v4015, 1
    %v4777 = vsel %vm1080, %v4736, %v4776
    %v4778 = vrot.slane %v4016, 1
    %v4779 = vsel %vm1080, %v4739, %v4778
    %v4780 = vrot.slane %v4017, 1
    %v4781 = vsel %vm1080, %v4742, %v4780
    %v4782 = vrot.slane %v4018, 1
    %v4783 = vsel %vm1080, %v4745, %v4782
    %v4784 = vrot.slane %v4019, 1
    %v4785 = vsel %vm1080, %v4748, %v4784
    %v4786 = vrot.slane %v4020, 1
    %v4787 = vsel %vm1080, %v4750, %v4786
    %v4788 = vrot.slane %v4021, 1
    %v4789 = vsel %vm1080, %v4752, %v4788
    %v4790 = vrot.slane %v4022, 1
    %v4791 = vsel %vm1080, %v4754, %v4790
    %v4792 = vrot.slane %v4023, 1
    %v4793 = vsel %vm1080, %v4756, %v4792
    %v4794 = vrot.slane %v4024, 1
    %v4795 = vsel %vm1080, %v4758, %v4794
    %v4796 = vrot.slane %v4025, 1
    %v4797 = vsel %vm1080, %v4760, %v4796
    %v4798 = vrot.slane %v4026, 1
    %v4799 = vsel %vm1080, %v4762, %v4798
    %v4800 = vrot.slane %v4027, 1
    %v4801 = vsel %vm1080, %v4764, %v4800
    %v4802 = vrot.slane %v4028, 1
    %v4803 = vsel %vm1080, %v4766, %v4802
    %v4804 = vrot.slane %v4029, 1
    %v4805 = vsel %vm1080, %v4768, %v4804
    %v4806 = vrot.slane %v4030, 1
    %v4807 = vsel %vm1080, %v4770, %v4806
    %v4808 = vrot.slane %v4031, 1
    %v4809 = vsel %vm1080, %v4772, %v4808
    %v4810 = vrot.slane %v4032, 1
    %v4811 = vsel %vm1080, %v4774, %v4810
    %v4812 = vrot.slane %v4033, 1
    %v4813 = vsel %vm1080, %v4776, %v4812
    %v4814 = vrot.slane %v4034, 1
    %v4815 = vsel %vm1080, %v4778, %v4814
    %v4816 = vrot.slane %v4035, 1
    %v4817 = vsel %vm1080, %v4780, %v4816
    %v4818 = vrot.slane %v4036, 1
    %v4819 = vsel %vm1080, %v4782, %v4818
    %v4820 = vrot.slane %v4037, 1
    %v4821 = vsel %vm1080, %v4784, %v4820
    %v5470 = vunpack.c.l.b16 %v4038
    %v5471 = vunpack.c.h.b16 %v4038
    %v5472 = vunpack.c.l.b16 %v4039
    %v5473 = vunpack.c.h.b16 %v4039
    %v5474 = vunpack.c.l.b16 %v4040
    %v5475 = vunpack.c.h.b16 %v4040
    %v5476 = vunpack.c.l.b16 %v4041
    %v5477 = vunpack.c.h.b16 %v4041
    %v5478 = vunpack.c.l.b16 %v4042
    %v5479 = vunpack.c.h.b16 %v4042
    %v5480 = vunpack.c.l.b16 %v4043
    %v5481 = vunpack.c.h.b16 %v4043
    %v5482 = vunpack.c.l.b16 %v4044
    %v5483 = vunpack.c.h.b16 %v4044
    %v5484 = vunpack.c.l.b16 %v4045
    %v5485 = vunpack.c.h.b16 %v4045
    %v5486 = vunpack.c.l.b16 %v4046
    %v5487 = vunpack.c.h.b16 %v4046
    %v5488 = vunpack.c.l.b16 %v4047
    %v5489 = vunpack.c.h.b16 %v4047
    %v5490 = vunpack.c.l.b16 %v4048
    %v5491 = vunpack.c.h.b16 %v4048
    %v5492 = vunpack.c.l.b16 %v4049
    %v5493 = vunpack.c.h.b16 %v4049
    %v5494 = vunpack.c.l.b16 %v4050
    %v5495 = vunpack.c.h.b16 %v4050
    %v5496 = vunpack.c.l.b16 %v4051
    %v5497 = vunpack.c.h.b16 %v4051
    %v5498 = vunpack.c.l.b16 %v4052
    %v5499 = vunpack.c.h.b16 %v4052
    %v5500 = vunpack.c.l.b16 %v4053
    %v5501 = vunpack.c.h.b16 %v4053
    %v5502 = vunpack.c.l.b16 %v4054
    %v5503 = vunpack.c.h.b16 %v4054
    %v5504 = vunpack.c.l.b16 %v4055
    %v5505 = vunpack.c.h.b16 %v4055
    %v5506 = vunpack.c.l.b16 %v4056
    %v5507 = vunpack.c.h.b16 %v4056
    %v5508 = vunpack.c.l.b16 %v4057
    %v5509 = vunpack.c.h.b16 %v4057
    %v5510 = vunpack.c.l.b16 %v4058
    %v5511 = vunpack.c.h.b16 %v4058
    %v5512 = vunpack.c.l.b16 %v4059
    %v5513 = vunpack.c.h.b16 %v4059
    %v5514 = vunpack.c.l.b16 %v4060
    %v5515 = vunpack.c.h.b16 %v4060
    %v5516 = vunpack.c.l.b16 %v4061
    %v5517 = vunpack.c.h.b16 %v4061
    %v5518 = vunpack.c.l.b16 %v4062
    %v5519 = vunpack.c.h.b16 %v4062
    %v5520 = vunpack.c.l.b16 %v4063
    %v5521 = vunpack.c.h.b16 %v4063
    %v5522 = vunpack.c.l.b16 %v4064
    %v5523 = vunpack.c.h.b16 %v4064
    %v5524 = vunpack.c.l.b16 %v4065
    %v5525 = vunpack.c.h.b16 %v4065
    %v5526 = vunpack.c.l.b16 %v4066
    %v5527 = vunpack.c.h.b16 %v4066
    %v5528 = vunpack.c.l.b16 %v4067
    %v5529 = vunpack.c.h.b16 %v4067
    %v5530 = vunpack.c.l.b16 %v4068
    %v5531 = vunpack.c.h.b16 %v4068
    %v5532 = vunpack.c.l.b16 %v4069
    %v5533 = vunpack.c.h.b16 %v4069
    %v5534 = vunpack.c.l.b16 %v4070
    %v5535 = vunpack.c.h.b16 %v4070
    %v5536 = vunpack.c.l.b16 %v4071
    %v5537 = vunpack.c.h.b16 %v4071
    %v5538 = vunpack.c.l.b16 %v4072
    %v5539 = vunpack.c.h.b16 %v4072
    %v5540 = vunpack.c.l.b16 %v4073
    %v5541 = vunpack.c.h.b16 %v4073
    %v5542 = vunpack.c.l.b16 %v4074
    %v5543 = vunpack.c.h.b16 %v4074
    %v5544 = vunpack.c.l.b16 %v4075
    %v5545 = vunpack.c.h.b16 %v4075
    %v5546 = vunpack.c.l.b16 %v4076
    %v5547 = vunpack.c.h.b16 %v4076
    %v5548 = vunpack.c.l.b16 %v4077
    %v5549 = vunpack.c.h.b16 %v4077
    %v5550 = vunpack.c.l.b16 %v4078
    %v5551 = vunpack.c.h.b16 %v4078
    %v5552 = vunpack.c.l.b16 %v4079
    %v5553 = vunpack.c.h.b16 %v4079
    %v5554 = vunpack.c.l.b16 %v4080
    %v5555 = vunpack.c.h.b16 %v4080
    %v5556 = vunpack.c.l.b16 %v4081
    %v5557 = vunpack.c.h.b16 %v4081
    %v5558 = vunpack.c.l.b16 %v4082
    %v5559 = vunpack.c.h.b16 %v4082
    %v5560 = vunpack.c.l.b16 %v4083
    %v5561 = vunpack.c.h.b16 %v4083
    %v5562 = vunpack.c.l.b16 %v4084
    %v5563 = vunpack.c.h.b16 %v4084
    %v5564 = vunpack.c.l.b16 %v4085
    %v5565 = vunpack.c.h.b16 %v4085
    %v5566 = vunpack.c.l.b16 %v4086
    %v5567 = vunpack.c.h.b16 %v4086
    %v5568 = vunpack.c.l.b16 %v4087
    %v5569 = vunpack.c.h.b16 %v4087
    %v5570 = vunpack.c.l.b16 %v4088
    %v5571 = vunpack.c.h.b16 %v4088
    %v5572 = vunpack.c.l.b16 %v4089
    %v5573 = vunpack.c.h.b16 %v4089
    %v5574 = vunpack.c.l.b16 %v4090
    %v5575 = vunpack.c.h.b16 %v4090
    %v5576 = vunpack.c.l.b16 %v4091
    %v5577 = vunpack.c.h.b16 %v4091
    %v5578 = vunpack.c.l.b16 %v4092
    %v5579 = vunpack.c.h.b16 %v4092
    %v5580 = vunpack.c.l.b16 %v4093
    %v5581 = vunpack.c.h.b16 %v4093
    %v5582 = vunpack.c.l.b16 %v4094
    %v5583 = vunpack.c.h.b16 %v4094
    %v5584 = vunpack.c.l.b16 %v4095
    %v5585 = vunpack.c.h.b16 %v4095
    %v5586 = vunpack.c.l.b16 %v4096
    %v5587 = vunpack.c.h.b16 %v4096
    %v5588 = vunpack.c.l.b16 %v4097
    %v5589 = vunpack.c.h.b16 %v4097
    %v5590 = vunpack.c.l.b16 %v4098
    %v5591 = vunpack.c.h.b16 %v4098
    %v5592 = vunpack.c.l.b16 %v4099
    %v5593 = vunpack.c.h.b16 %v4099
    %v5594 = vunpack.c.l.b16 %v4100
    %v5595 = vunpack.c.h.b16 %v4100
    %v5596 = vunpack.c.l.b16 %v4101
    %v5597 = vunpack.c.h.b16 %v4101
    %v5598 = vunpack.c.l.b16 %v4102
    %v5599 = vunpack.c.h.b16 %v4102
    %v5600 = vunpack.c.l.b16 %v4103
    %v5601 = vunpack.c.h.b16 %v4103
    %v5602 = vunpack.c.l.b16 %v4104
    %v5603 = vunpack.c.h.b16 %v4104
    %v5604 = vunpack.c.l.b16 %v4105
    %v5605 = vunpack.c.h.b16 %v4105
    %v5606 = vunpack.c.l.b16 %v4106
    %v5607 = vunpack.c.h.b16 %v4106
    %v5608 = vunpack.c.l.b16 %v4107
    %v5609 = vunpack.c.h.b16 %v4107
    %v5610 = vunpack.c.l.b16 %v4108
    %v5611 = vunpack.c.h.b16 %v4108
    %v5612 = vunpack.c.l.b16 %v4109
    %v5613 = vunpack.c.h.b16 %v4109
    %v5614 = vunpack.c.l.b16 %v4110
    %v5615 = vunpack.c.h.b16 %v4110
    %v5616 = vunpack.c.l.b16 %v4111
    %v5617 = vunpack.c.h.b16 %v4111
    %v5618 = vunpack.c.l.b16 %v4112
    %v5619 = vunpack.c.h.b16 %v4112
    %v5620 = vunpack.c.l.b16 %v4113
    %v5621 = vunpack.c.h.b16 %v4113
    %v5622 = vunpack.c.l.b16 %v4114
    %v5623 = vunpack.c.h.b16 %v4114
    %v5624 = vunpack.c.l.b16 %v4115
    %v5625 = vunpack.c.h.b16 %v4115
    %v5626 = vunpack.c.l.b16 %v4116
    %v5627 = vunpack.c.h.b16 %v4116
    %v5628 = vunpack.c.l.b16 %v4117
    %v5629 = vunpack.c.h.b16 %v4117
    %v5630 = vunpack.c.l.b16 %v4118
    %v5631 = vunpack.c.h.b16 %v4118
    %v5632 = vunpack.c.l.b16 %v4119
    %v5633 = vunpack.c.h.b16 %v4119
    %v5634 = vunpack.c.l.b16 %v4120
    %v5635 = vunpack.c.h.b16 %v4120
    %v5636 = vunpack.c.l.b16 %v4121
    %v5637 = vunpack.c.h.b16 %v4121
    %v5638 = vunpack.c.l.b16 %v4122
    %v5639 = vunpack.c.h.b16 %v4122
    %v5640 = vunpack.c.l.b16 %v4123
    %v5641 = vunpack.c.h.b16 %v4123
    %v5642 = vunpack.c.l.b16 %v4124
    %v5643 = vunpack.c.h.b16 %v4124
    %v5644 = vunpack.c.l.b16 %v4125
    %v5645 = vunpack.c.h.b16 %v4125
    %v5646 = vunpack.c.l.b16 %v4126
    %v5647 = vunpack.c.h.b16 %v4126
    %v5648 = vunpack.c.l.b16 %v4127
    %v5649 = vunpack.c.h.b16 %v4127
    %v5650 = vunpack.c.l.b16 %v4128
    %v5651 = vunpack.c.h.b16 %v4128
    %v5652 = vunpack.c.l.b16 %v4129
    %v5653 = vunpack.c.h.b16 %v4129
    %v5654 = vunpack.c.l.b16 %v4130
    %v5655 = vunpack.c.h.b16 %v4130
    %v5656 = vunpack.c.l.b16 %v4131
    %v5657 = vunpack.c.h.b16 %v4131
    %v5658 = vunpack.c.l.b16 %v4132
    %v5659 = vunpack.c.h.b16 %v4132
    %v5660 = vunpack.c.l.b16 %v4133
    %v5661 = vunpack.c.h.b16 %v4133
    %v5662 = vunpack.c.l.b16 %v4134
    %v5663 = vunpack.c.h.b16 %v4134
    %v5664 = vunpack.c.l.b16 %v4135
    %v5665 = vunpack.c.h.b16 %v4135
    %v5666 = vunpack.c.l.b16 %v4136
    %v5667 = vunpack.c.h.b16 %v4136
    %v5668 = vunpack.c.l.b16 %v4137
    %v5669 = vunpack.c.h.b16 %v4137
    %v5670 = vunpack.c.l.b16 %v4138
    %v5671 = vunpack.c.h.b16 %v4138
    %v5672 = vunpack.c.l.b16 %v4139
    %v5673 = vunpack.c.h.b16 %v4139
    %v5674 = vunpack.c.l.b16 %v4140
    %v5675 = vunpack.c.h.b16 %v4140
    %v5676 = vunpack.c.l.b16 %v4141
    %v5677 = vunpack.c.h.b16 %v4141
    %v5678 = vunpack.c.l.b16 %v4142
    %v5679 = vunpack.c.h.b16 %v4142
    %v5680 = vunpack.c.l.b16 %v4143
    %v5681 = vunpack.c.h.b16 %v4143
    %v5682 = vunpack.c.l.b16 %v4144
    %v5683 = vunpack.c.h.b16 %v4144
    %v5684 = vunpack.c.l.b16 %v4145
    %v5685 = vunpack.c.h.b16 %v4145
    %v5686 = vunpack.c.l.b16 %v4146
    %v5687 = vunpack.c.h.b16 %v4146
    %v5688 = vunpack.c.l.b16 %v4147
    %v5689 = vunpack.c.h.b16 %v4147
    %v5690 = vunpack.c.l.b16 %v4148
    %v5691 = vunpack.c.h.b16 %v4148
    %v5692 = vunpack.c.l.b16 %v4149
    %v5693 = vunpack.c.h.b16 %v4149
    %v5694 = vunpack.c.l.b16 %v4150
    %v5695 = vunpack.c.h.b16 %v4150
    %v5696 = vunpack.c.l.b16 %v4151
    %v5697 = vunpack.c.h.b16 %v4151
    %v5698 = vunpack.c.l.b16 %v4152
    %v5699 = vunpack.c.h.b16 %v4152
    %v5700 = vunpack.c.l.b16 %v4153
    %v5701 = vunpack.c.h.b16 %v4153
    %v5702 = vunpack.c.l.b16 %v4154
    %v5703 = vunpack.c.h.b16 %v4154
    %v5704 = vunpack.c.l.b16 %v4155
    %v5705 = vunpack.c.h.b16 %v4155
    %v5706 = vunpack.c.l.b16 %v4156
    %v5707 = vunpack.c.h.b16 %v4156
    %v5708 = vunpack.c.l.b16 %v4157
    %v5709 = vunpack.c.h.b16 %v4157
    %v5710 = vunpack.c.l.b16 %v4158
    %v5711 = vunpack.c.h.b16 %v4158
    %v5712 = vunpack.c.l.b16 %v4159
    %v5713 = vunpack.c.h.b16 %v4159
    %v5714 = vunpack.c.l.b16 %v4160
    %v5715 = vunpack.c.h.b16 %v4160
    %v5716 = vunpack.c.l.b16 %v4161
    %v5717 = vunpack.c.h.b16 %v4161
    %v5718 = vunpack.c.l.b16 %v4162
    %v5719 = vunpack.c.h.b16 %v4162
    %v5720 = vunpack.c.l.b16 %v4163
    %v5721 = vunpack.c.h.b16 %v4163
    %v5722 = vunpack.c.l.b16 %v4164
    %v5723 = vunpack.c.h.b16 %v4164
    %v5724 = vunpack.c.l.b16 %v4165
    %v5725 = vunpack.c.h.b16 %v4165
    %v5726 = vunpack.c.l.b16 %v4166
    %v5727 = vunpack.c.h.b16 %v4166
    %v5728 = vunpack.c.l.b16 %v4167
    %v5729 = vunpack.c.h.b16 %v4167
    %v5730 = vunpack.c.l.b16 %v4168
    %v5731 = vunpack.c.h.b16 %v4168
    %v5732 = vunpack.c.l.b16 %v4169
    %v5733 = vunpack.c.h.b16 %v4169
    %v5734 = vunpack.c.l.b16 %v4170
    %v5735 = vunpack.c.h.b16 %v4170
    %v5736 = vunpack.c.l.b16 %v4171
    %v5737 = vunpack.c.h.b16 %v4171
    %v5738 = vunpack.c.l.b16 %v4172
    %v5739 = vunpack.c.h.b16 %v4172
    %v5740 = vunpack.c.l.b16 %v4173
    %v5741 = vunpack.c.h.b16 %v4173
    %v5742 = vunpack.c.l.b16 %v4174
    %v5743 = vunpack.c.h.b16 %v4174
    %v5744 = vunpack.c.l.b16 %v4175
    %v5745 = vunpack.c.h.b16 %v4175
    %v5746 = vunpack.c.l.b16 %v4176
    %v5747 = vunpack.c.h.b16 %v4176
    %v5748 = vunpack.c.l.b16 %v4177
    %v5749 = vunpack.c.h.b16 %v4177
    %v5750 = vunpack.c.l.b16 %v4178
    %v5751 = vunpack.c.h.b16 %v4178
    %v5752 = vunpack.c.l.b16 %v4179
    %v5753 = vunpack.c.h.b16 %v4179
    %v5754 = vunpack.c.l.b16 %v4180
    %v5755 = vunpack.c.h.b16 %v4180
    %v5756 = vunpack.c.l.b16 %v4181
    %v5757 = vunpack.c.h.b16 %v4181
    %v5758 = vunpack.c.l.b16 %v4182
    %v5759 = vunpack.c.h.b16 %v4182
    %v5760 = vunpack.c.l.b16 %v4183
    %v5761 = vunpack.c.h.b16 %v4183
    %v5762 = vunpack.c.l.b16 %v4184
    %v5763 = vunpack.c.h.b16 %v4184
    %v5764 = vunpack.c.l.b16 %v4185
    %v5765 = vunpack.c.h.b16 %v4185
    %v5766 = vunpack.c.l.b16 %v4186
    %v5767 = vunpack.c.h.b16 %v4186
    %v5768 = vunpack.c.l.b16 %v4187
    %v5769 = vunpack.c.h.b16 %v4187
    %v5770 = vunpack.c.l.b16 %v4188
    %v5771 = vunpack.c.h.b16 %v4188
    %v5772 = vunpack.c.l.b16 %v4189
    %v5773 = vunpack.c.h.b16 %v4189
    %v5774 = vunpack.c.l.b16 %v4190
    %v5775 = vunpack.c.h.b16 %v4190
    %v5776 = vunpack.c.l.b16 %v4191
    %v5777 = vunpack.c.h.b16 %v4191
    %v5778 = vunpack.c.l.b16 %v4192
    %v5779 = vunpack.c.h.b16 %v4192
    %v5780 = vunpack.c.l.b16 %v4193
    %v5781 = vunpack.c.h.b16 %v4193
    %v5782 = vunpack.c.l.b16 %v4194
    %v5783 = vunpack.c.h.b16 %v4194
    %v5784 = vunpack.c.l.b16 %v4195
    %v5785 = vunpack.c.h.b16 %v4195
    %v5786 = vunpack.c.l.b16 %v4196
    %v5787 = vunpack.c.h.b16 %v4196
    %v5788 = vunpack.c.l.b16 %v4197
    %v5789 = vunpack.c.h.b16 %v4197
    %v5790 = vunpack.c.l.b16 %v4198
    %v5791 = vunpack.c.h.b16 %v4198
    %v5792 = vunpack.c.l.b16 %v4199
    %v5793 = vunpack.c.h.b16 %v4199
    %v5794 = vunpack.c.l.b16 %v4200
    %v5795 = vunpack.c.h.b16 %v4200
    %v5796 = vunpack.c.l.b16 %v4201
    %v5797 = vunpack.c.h.b16 %v4201
    %v5798 = vunpack.c.l.b16 %v4202
    %v5799 = vunpack.c.h.b16 %v4202
    %v5800 = vunpack.c.l.b16 %v4203
    %v5801 = vunpack.c.h.b16 %v4203
    %v5802 = vunpack.c.l.b16 %v4204
    %v5803 = vunpack.c.h.b16 %v4204
    %v5804 = vunpack.c.l.b16 %v4205
    %v5805 = vunpack.c.h.b16 %v4205
    %v5806 = vunpack.c.l.b16 %v4206
    %v5807 = vunpack.c.h.b16 %v4206
    %v5808 = vunpack.c.l.b16 %v4207
    %v5809 = vunpack.c.h.b16 %v4207
    %v5810 = vunpack.c.l.b16 %v4208
    %v5811 = vunpack.c.h.b16 %v4208
    %v5812 = vunpack.c.l.b16 %v4209
    %v5813 = vunpack.c.h.b16 %v4209
    %v5814 = vunpack.c.l.b16 %v4210
    %v5815 = vunpack.c.h.b16 %v4210
    %v5816 = vunpack.c.l.b16 %v4211
    %v5817 = vunpack.c.h.b16 %v4211
    %v5818 = vunpack.c.l.b16 %v4212
    %v5819 = vunpack.c.h.b16 %v4212
    %v5820 = vunpack.c.l.b16 %v4213
    %v5821 = vunpack.c.h.b16 %v4213
    %v5822 = vunpack.c.l.b16 %v4214
    %v5823 = vunpack.c.h.b16 %v4214
    %v5824 = vunpack.c.l.b16 %v4215
    %v5825 = vunpack.c.h.b16 %v4215
    %v5826 = vunpack.c.l.b16 %v4216
    %v5827 = vunpack.c.h.b16 %v4216
    %v5828 = vunpack.c.l.b16 %v4217
    %v5829 = vunpack.c.h.b16 %v4217
    %v5830 = vunpack.c.l.b16 %v4218
    %v5831 = vunpack.c.h.b16 %v4218
    %v5832 = vunpack.c.l.b16 %v4219
    %v5833 = vunpack.c.h.b16 %v4219
    %v5834 = vunpack.c.l.b16 %v4220
    %v5835 = vunpack.c.h.b16 %v4220
    %v5836 = vunpack.c.l.b16 %v4221
    %v5837 = vunpack.c.h.b16 %v4221
    %v5838 = vunpack.c.l.b16 %v4222
    %v5839 = vunpack.c.h.b16 %v4222
    %v5840 = vunpack.c.l.b16 %v4223
    %v5841 = vunpack.c.h.b16 %v4223
    %v5842 = vunpack.c.l.b16 %v4224
    %v5843 = vunpack.c.h.b16 %v4224
    %v5844 = vunpack.c.l.b16 %v4225
    %v5845 = vunpack.c.h.b16 %v4225
    %v5846 = vunpack.c.l.b16 %v4226
    %v5847 = vunpack.c.h.b16 %v4226
    %v5848 = vunpack.c.l.b16 %v4227
    %v5849 = vunpack.c.h.b16 %v4227
    %v5850 = vunpack.c.l.b16 %v4228
    %v5851 = vunpack.c.h.b16 %v4228
    %v5852 = vunpack.c.l.b16 %v4229
    %v5853 = vunpack.c.h.b16 %v4229
    %v5854 = vunpack.c.l.b16 %v4230
    %v5855 = vunpack.c.h.b16 %v4230
    %v5856 = vunpack.c.l.b16 %v4231
    %v5857 = vunpack.c.h.b16 %v4231
    %v5858 = vunpack.c.l.b16 %v4232
    %v5859 = vunpack.c.h.b16 %v4232
    %v5860 = vunpack.c.l.b16 %v4233
    %v5861 = vunpack.c.h.b16 %v4233
    %v5862 = vunpack.c.l.b16 %v4234
    %v5863 = vunpack.c.h.b16 %v4234
    %v5864 = vunpack.c.l.b16 %v4235
    %v5865 = vunpack.c.h.b16 %v4235
    %v5866 = vunpack.c.l.b16 %v4236
    %v5867 = vunpack.c.h.b16 %v4236
    %v5868 = vunpack.c.l.b16 %v4237
    %v5869 = vunpack.c.h.b16 %v4237
    %v5870 = vunpack.c.l.b16 %v4238
    %v5871 = vunpack.c.h.b16 %v4238
    %v5872 = vunpack.c.l.b16 %v4239
    %v5873 = vunpack.c.h.b16 %v4239
    %v5874 = vunpack.c.l.b16 %v4240
    %v5875 = vunpack.c.h.b16 %v4240
    %v5876 = vunpack.c.l.b16 %v4241
    %v5877 = vunpack.c.h.b16 %v4241
    %v5878 = vunpack.c.l.b16 %v4242
    %v5879 = vunpack.c.h.b16 %v4242
    %v5880 = vunpack.c.l.b16 %v4243
    %v5881 = vunpack.c.h.b16 %v4243
    %v5882 = vunpack.c.l.b16 %v4244
    %v5883 = vunpack.c.h.b16 %v4244
    %v5884 = vunpack.c.l.b16 %v4245
    %v5885 = vunpack.c.h.b16 %v4245
    %v5886 = vunpack.c.l.b16 %v4246
    %v5887 = vunpack.c.h.b16 %v4246
    %v5888 = vunpack.c.l.b16 %v4247
    %v5889 = vunpack.c.h.b16 %v4247
    %v5890 = vunpack.c.l.b16 %v4248
    %v5891 = vunpack.c.h.b16 %v4248
    %v5892 = vunpack.c.l.b16 %v4249
    %v5893 = vunpack.c.h.b16 %v4249
    %v5894 = vunpack.c.l.b16 %v4250
    %v5895 = vunpack.c.h.b16 %v4250
    %v5896 = vunpack.c.l.b16 %v4251
    %v5897 = vunpack.c.h.b16 %v4251
    %v5898 = vunpack.c.l.b16 %v4252
    %v5899 = vunpack.c.h.b16 %v4252
    %v5900 = vunpack.c.l.b16 %v4253
    %v5901 = vunpack.c.h.b16 %v4253
    %v5902 = vunpack.c.l.b16 %v4254
    %v5903 = vunpack.c.h.b16 %v4254
    %v5904 = vunpack.c.l.b16 %v4255
    %v5905 = vunpack.c.h.b16 %v4255
    %v5906 = vunpack.c.l.b16 %v4256
    %v5907 = vunpack.c.h.b16 %v4256
    %v5908 = vunpack.c.l.b16 %v4257
    %v5909 = vunpack.c.h.b16 %v4257
    %v5910 = vunpack.c.l.b16 %v4258
    %v5911 = vunpack.c.h.b16 %v4258
    %v5912 = vunpack.c.l.b16 %v4259
    %v5913 = vunpack.c.h.b16 %v4259
    %v5914 = vunpack.c.l.b16 %v4260
    %v5915 = vunpack.c.h.b16 %v4260
    %v5916 = vunpack.c.l.b16 %v4261
    %v5917 = vunpack.c.h.b16 %v4261
    %v5918 = vunpack.c.l.b16 %v4262
    %v5919 = vunpack.c.h.b16 %v4262
    %v5920 = vunpack.c.l.b16 %v4263
    %v5921 = vunpack.c.h.b16 %v4263
    %v5922 = vunpack.c.l.b16 %v4264
    %v5923 = vunpack.c.h.b16 %v4264
    %v5924 = vunpack.c.l.b16 %v4265
    %v5925 = vunpack.c.h.b16 %v4265
    %v5926 = vunpack.c.l.b16 %v4266
    %v5927 = vunpack.c.h.b16 %v4266
    %v5928 = vunpack.c.l.b16 %v4267
    %v5929 = vunpack.c.h.b16 %v4267
    %v5930 = vunpack.c.l.b16 %v4268
    %v5931 = vunpack.c.h.b16 %v4268
    %v5932 = vunpack.c.l.b16 %v4269
    %v5933 = vunpack.c.h.b16 %v4269
    %v5934 = vunpack.c.l.b16 %v4270
    %v5935 = vunpack.c.h.b16 %v4270
    %v5936 = vunpack.c.l.b16 %v4271
    %v5937 = vunpack.c.h.b16 %v4271
    %v5938 = vunpack.c.l.b16 %v4272
    %v5939 = vunpack.c.h.b16 %v4272
    %v5940 = vunpack.c.l.b16 %v4273
    %v5941 = vunpack.c.h.b16 %v4273
    %v5942 = vunpack.c.l.b16 %v4274
    %v5943 = vunpack.c.h.b16 %v4274
    %v5944 = vunpack.c.l.b16 %v4275
    %v5945 = vunpack.c.h.b16 %v4275
    %v5946 = vunpack.c.l.b16 %v4276
    %v5947 = vunpack.c.h.b16 %v4276
    %v5948 = vunpack.c.l.b16 %v4277
    %v5949 = vunpack.c.h.b16 %v4277
    %v5950 = vunpack.c.l.b16 %v4278
    %v5951 = vunpack.c.h.b16 %v4278
    %v5952 = vunpack.c.l.b16 %v4279
    %v5953 = vunpack.c.h.b16 %v4279
    %v5954 = vunpack.c.l.b16 %v4280
    %v5955 = vunpack.c.h.b16 %v4280
    %v5956 = vunpack.c.l.b16 %v4281
    %v5957 = vunpack.c.h.b16 %v4281
    %v5958 = vunpack.c.l.b16 %v4282
    %v5959 = vunpack.c.h.b16 %v4282
    %v5960 = vunpack.c.l.b16 %v4283
    %v5961 = vunpack.c.h.b16 %v4283
    %v5962 = vunpack.c.l.b16 %v4284
    %v5963 = vunpack.c.h.b16 %v4284
    %v5964 = vunpack.c.l.b16 %v4285
    %v5965 = vunpack.c.h.b16 %v4285
    %v5966 = vunpack.c.l.b16 %v4286
    %v5967 = vunpack.c.h.b16 %v4286
    %v5968 = vunpack.c.l.b16 %v4287
    %v5969 = vunpack.c.h.b16 %v4287
    %v5970 = vunpack.c.l.b16 %v4288
    %v5971 = vunpack.c.h.b16 %v4288
    %v5972 = vunpack.c.l.b16 %v4289
    %v5973 = vunpack.c.h.b16 %v4289
    %v5974 = vunpack.c.l.b16 %v4290
    %v5975 = vunpack.c.h.b16 %v4290
    %v5976 = vunpack.c.l.b16 %v4291
    %v5977 = vunpack.c.h.b16 %v4291
    %v5978 = vunpack.c.l.b16 %v4292
    %v5979 = vunpack.c.h.b16 %v4292
    %v5980 = vunpack.c.l.b16 %v4293
    %v5981 = vunpack.c.h.b16 %v4293
    %v5982 = vunpack.c.l.b16 %v4294
    %v5983 = vunpack.c.h.b16 %v4294
    %v5984 = vunpack.c.l.b16 %v4295
    %v5985 = vunpack.c.h.b16 %v4295
    %v5986 = vunpack.c.l.b16 %v4296
    %v5987 = vunpack.c.h.b16 %v4296
    %v5988 = vunpack.c.l.b16 %v4297
    %v5989 = vunpack.c.h.b16 %v4297
    %v5990 = vunpack.c.l.b16 %v4298
    %v5991 = vunpack.c.h.b16 %v4298
    %v5992 = vunpack.c.l.b16 %v4299
    %v5993 = vunpack.c.h.b16 %v4299
    %v5994 = vunpack.c.l.b16 %v4300
    %v5995 = vunpack.c.h.b16 %v4300
    %v5996 = vunpack.c.l.b16 %v4301
    %v5997 = vunpack.c.h.b16 %v4301
    %v5998 = vunpack.c.l.b16 %v4302
    %v5999 = vunpack.c.h.b16 %v4302
    %v6000 = vunpack.c.l.b16 %v4303
    %v6001 = vunpack.c.h.b16 %v4303
    %v6002 = vunpack.c.l.b16 %v4304
    %v6003 = vunpack.c.h.b16 %v4304
    %v6004 = vunpack.c.l.b16 %v4305
    %v6005 = vunpack.c.h.b16 %v4305
    %v6006 = vunpack.c.l.b16 %v4306
    %v6007 = vunpack.c.h.b16 %v4306
    %v6008 = vunpack.c.l.b16 %v4307
    %v6009 = vunpack.c.h.b16 %v4307
    %v6010 = vunpack.c.l.b16 %v4308
    %v6011 = vunpack.c.h.b16 %v4308
    %v6012 = vunpack.c.l.b16 %v4309
    %v6013 = vunpack.c.h.b16 %v4309
    %v6014 = vunpack.c.l.b16 %v4310
    %v6015 = vunpack.c.h.b16 %v4310
    %v6016 = vunpack.c.l.b16 %v4311
    %v6017 = vunpack.c.h.b16 %v4311
    %v6018 = vunpack.c.l.b16 %v4312
    %v6019 = vunpack.c.h.b16 %v4312
    %v6020 = vunpack.c.l.b16 %v4313
    %v6021 = vunpack.c.h.b16 %v4313
    %v6022 = vunpack.c.l.b16 %v4314
    %v6023 = vunpack.c.h.b16 %v4314
    %v6024 = vunpack.c.l.b16 %v4315
    %v6025 = vunpack.c.h.b16 %v4315
    %v6026 = vunpack.c.l.b16 %v4316
    %v6027 = vunpack.c.h.b16 %v4316
    %v6028 = vunpack.c.l.b16 %v4317
    %v6029 = vunpack.c.h.b16 %v4317
    %v6030 = vunpack.c.l.b16 %v4318
    %v6031 = vunpack.c.h.b16 %v4318
    %v6032 = vunpack.c.l.b16 %v4319
    %v6033 = vunpack.c.h.b16 %v4319
    %v6034 = vunpack.c.l.b16 %v4320
    %v6035 = vunpack.c.h.b16 %v4320
    %v6036 = vunpack.c.l.b16 %v4321
    %v6037 = vunpack.c.h.b16 %v4321
    %v6038 = vunpack.c.l.b16 %v4322
    %v6039 = vunpack.c.h.b16 %v4322
    %v6040 = vunpack.c.l.b16 %v4323
    %v6041 = vunpack.c.h.b16 %v4323
    %v6042 = vunpack.c.l.b16 %v4324
    %v6043 = vunpack.c.h.b16 %v4324
    %v6044 = vunpack.c.l.b16 %v4325
    %v6045 = vunpack.c.h.b16 %v4325
    %v6046 = vunpack.c.l.b16 %v4326
    %v6047 = vunpack.c.h.b16 %v4326
    %v6048 = vunpack.c.l.b16 %v4327
    %v6049 = vunpack.c.h.b16 %v4327
    %v6050 = vunpack.c.l.b16 %v4328
    %v6051 = vunpack.c.h.b16 %v4328
    %v6052 = vunpack.c.l.b16 %v4329
    %v6053 = vunpack.c.h.b16 %v4329
    %v6054 = vunpack.c.l.b16 %v4330
    %v6055 = vunpack.c.h.b16 %v4330
    %v6056 = vunpack.c.l.b16 %v4331
    %v6057 = vunpack.c.h.b16 %v4331
    %v6058 = vunpack.c.l.b16 %v4332
    %v6059 = vunpack.c.h.b16 %v4332
    %v6060 = vunpack.c.l.b16 %v4333
    %v6061 = vunpack.c.h.b16 %v4333
    %v6062 = vunpack.c.l.b16 %v4334
    %v6063 = vunpack.c.h.b16 %v4334
    %v6064 = vunpack.c.l.b16 %v4335
    %v6065 = vunpack.c.h.b16 %v4335
    %v6066 = vunpack.c.l.b16 %v4336
    %v6067 = vunpack.c.h.b16 %v4336
    %v6068 = vunpack.c.l.b16 %v4337
    %v6069 = vunpack.c.h.b16 %v4337
    %v6070 = vunpack.c.l.b16 %v4338
    %v6071 = vunpack.c.h.b16 %v4338
    %v6072 = vunpack.c.l.b16 %v4339
    %v6073 = vunpack.c.h.b16 %v4339
    %v6074 = vunpack.c.l.b16 %v4340
    %v6075 = vunpack.c.h.b16 %v4340
    %v6076 = vunpack.c.l.b16 %v4341
    %v6077 = vunpack.c.h.b16 %v4341
    %v6078 = vunpack.c.l.b16 %v4342
    %v6079 = vunpack.c.h.b16 %v4342
    %v6080 = vunpack.c.l.b16 %v4343
    %v6081 = vunpack.c.h.b16 %v4343
    %v6082 = vunpack.c.l.b16 %v4344
    %v6083 = vunpack.c.h.b16 %v4344
    %v6084 = vunpack.c.l.b16 %v4345
    %v6085 = vunpack.c.h.b16 %v4345
    %v6086 = vunpack.c.l.b16 %v4346
    %v6087 = vunpack.c.h.b16 %v4346
    %v6088 = vunpack.c.l.b16 %v4347
    %v6089 = vunpack.c.h.b16 %v4347
    %v6090 = vunpack.c.l.b16 %v4348
    %v6091 = vunpack.c.h.b16 %v4348
    %v6092 = vunpack.c.l.b16 %v4349
    %v6093 = vunpack.c.h.b16 %v4349
    %v6094 = vunpack.c.l.b16 %v4350
    %v6095 = vunpack.c.h.b16 %v4350
    %v6096 = vunpack.c.l.b16 %v4351
    %v6097 = vunpack.c.h.b16 %v4351
    %v6098 = vunpack.c.l.b16 %v4352
    %v6099 = vunpack.c.h.b16 %v4352
    %v6100 = vunpack.c.l.b16 %v4353
    %v6101 = vunpack.c.h.b16 %v4353
    %v6102 = vunpack.c.l.b16 %v4354
    %v6103 = vunpack.c.h.b16 %v4354
    %v6104 = vunpack.c.l.b16 %v4355
    %v6105 = vunpack.c.h.b16 %v4355
    %v6106 = vunpack.c.l.b16 %v4356
    %v6107 = vunpack.c.h.b16 %v4356
    %v6108 = vunpack.c.l.b16 %v4357
    %v6109 = vunpack.c.h.b16 %v4357
    %v6110 = vunpack.c.l.b16 %v4358
    %v6111 = vunpack.c.h.b16 %v4358
    %v6112 = vunpack.c.l.b16 %v4359
    %v6113 = vunpack.c.h.b16 %v4359
    %v6114 = vunpack.c.l.b16 %v4360
    %v6115 = vunpack.c.h.b16 %v4360
    %v6116 = vunpack.c.l.b16 %v4361
    %v6117 = vunpack.c.h.b16 %v4361
    %v6118 = vunpack.c.l.b16 %v4362
    %v6119 = vunpack.c.h.b16 %v4362
    %v6120 = vunpack.c.l.b16 %v4363
    %v6121 = vunpack.c.h.b16 %v4363
    %v6122 = vunpack.c.l.b16 %v4364
    %v6123 = vunpack.c.h.b16 %v4364
    %v6124 = vunpack.c.l.b16 %v4365
    %v6125 = vunpack.c.h.b16 %v4365
    %v6126 = vunpack.c.l.b16 %v4366
    %v6127 = vunpack.c.h.b16 %v4366
    %v6128 = vunpack.c.l.b16 %v4367
    %v6129 = vunpack.c.h.b16 %v4367
    %v6130 = vunpack.c.l.b16 %v4368
    %v6131 = vunpack.c.h.b16 %v4368
    %v6132 = vunpack.c.l.b16 %v4369
    %v6133 = vunpack.c.h.b16 %v4369
    %v6134 = vunpack.c.l.b16 %v4370
    %v6135 = vunpack.c.h.b16 %v4370
    %v6136 = vunpack.c.l.b16 %v4371
    %v6137 = vunpack.c.h.b16 %v4371
    %v6138 = vunpack.c.l.b16 %v4372
    %v6139 = vunpack.c.h.b16 %v4372
    %v6140 = vunpack.c.l.b16 %v4373
    %v6141 = vunpack.c.h.b16 %v4373
    %v6142 = vunpack.c.l.b16 %v4374
    %v6143 = vunpack.c.h.b16 %v4374
    %v6144 = vunpack.c.l.b16 %v4375
    %v6145 = vunpack.c.h.b16 %v4375
    %v6146 = vunpack.c.l.b16 %v4376
    %v6147 = vunpack.c.h.b16 %v4376
    %v6148 = vunpack.c.l.b16 %v4377
    %v6149 = vunpack.c.h.b16 %v4377
    %v6150 = vunpack.c.l.b16 %v4378
    %v6151 = vunpack.c.h.b16 %v4378
    %v6152 = vunpack.c.l.b16 %v4379
    %v6153 = vunpack.c.h.b16 %v4379
    %v6154 = vunpack.c.l.b16 %v4380
    %v6155 = vunpack.c.h.b16 %v4380
    %v6156 = vunpack.c.l.b16 %v4381
    %v6157 = vunpack.c.h.b16 %v4381
    %v6158 = vunpack.c.l.b16 %v4382
    %v6159 = vunpack.c.h.b16 %v4382
    %v6160 = vunpack.c.l.b16 %v4383
    %v6161 = vunpack.c.h.b16 %v4383
    %v6162 = vunpack.c.l.b16 %v4384
    %v6163 = vunpack.c.h.b16 %v4384
    %v6164 = vunpack.c.l.b16 %v4385
    %v6165 = vunpack.c.h.b16 %v4385
    %v6166 = vunpack.c.l.b16 %v4386
    %v6167 = vunpack.c.h.b16 %v4386
    %v6168 = vunpack.c.l.b16 %v4387
    %v6169 = vunpack.c.h.b16 %v4387
    %v6170 = vunpack.c.l.b16 %v4388
    %v6171 = vunpack.c.h.b16 %v4388
    %v6172 = vunpack.c.l.b16 %v4389
    %v6173 = vunpack.c.h.b16 %v4389
    %v6174 = vunpack.c.l.b16 %v4390
    %v6175 = vunpack.c.h.b16 %v4390
    %v6176 = vunpack.c.l.b16 %v4391
    %v6177 = vunpack.c.h.b16 %v4391
    %v6178 = vunpack.c.l.b16 %v4392
    %v6179 = vunpack.c.h.b16 %v4392
    %v6180 = vunpack.c.l.b16 %v4393
    %v6181 = vunpack.c.h.b16 %v4393
    %v6182 = vunpack.c.l.b16 %v4394
    %v6183 = vunpack.c.h.b16 %v4394
    %v6184 = vunpack.c.l.b16 %v4395
    %v6185 = vunpack.c.h.b16 %v4395
    %v6186 = vunpack.c.l.b16 %v4396
    %v6187 = vunpack.c.h.b16 %v4396
    %v6188 = vunpack.c.l.b16 %v4397
    %v6189 = vunpack.c.h.b16 %v4397
    %v6190 = vunpack.c.l.b16 %v4398
    %v6191 = vunpack.c.h.b16 %v4398
    %v6192 = vunpack.c.l.b16 %v4399
    %v6193 = vunpack.c.h.b16 %v4399
    %v6194 = vunpack.c.l.b16 %v4400
    %v6195 = vunpack.c.h.b16 %v4400
    %v6196 = vunpack.c.l.b16 %v4401
    %v6197 = vunpack.c.h.b16 %v4401
    %v6198 = vunpack.c.l.b16 %v4402
    %v6199 = vunpack.c.h.b16 %v4402
    %v6200 = vunpack.c.l.b16 %v4403
    %v6201 = vunpack.c.h.b16 %v4403
    %v6202 = vunpack.c.l.b16 %v4404
    %v6203 = vunpack.c.h.b16 %v4404
    %v6204 = vunpack.c.l.b16 %v4405
    %v6205 = vunpack.c.h.b16 %v4405
    %v6206 = vunpack.c.l.b16 %v4406
    %v6207 = vunpack.c.h.b16 %v4406
    %v6208 = vunpack.c.l.b16 %v4407
    %v6209 = vunpack.c.h.b16 %v4407
    %v6210 = vunpack.c.l.b16 %v4408
    %v6211 = vunpack.c.h.b16 %v4408
    %v6212 = vunpack.c.l.b16 %v4409
    %v6213 = vunpack.c.h.b16 %v4409
    %v6214 = vunpack.c.l.b16 %v4410
    %v6215 = vunpack.c.h.b16 %v4410
    %v6216 = vunpack.c.l.b16 %v4411
    %v6217 = vunpack.c.h.b16 %v4411
    %v6218 = vunpack.c.l.b16 %v4412
    %v6219 = vunpack.c.h.b16 %v4412
    %v6220 = vunpack.c.l.b16 %v4413
    %v6221 = vunpack.c.h.b16 %v4413
    %v6222 = vunpack.c.l.b16 %v4414
    %v6223 = vunpack.c.h.b16 %v4414
    %v6224 = vunpack.c.l.b16 %v4415
    %v6225 = vunpack.c.h.b16 %v4415
    %v6226 = vunpack.c.l.b16 %v4416
    %v6227 = vunpack.c.h.b16 %v4416
    %v6228 = vunpack.c.l.b16 %v4417
    %v6229 = vunpack.c.h.b16 %v4417
    %v6230 = vunpack.c.l.b16 %v4418
    %v6231 = vunpack.c.h.b16 %v4418
    %v6232 = vunpack.c.l.b16 %v4419
    %v6233 = vunpack.c.h.b16 %v4419
    %v6234 = vunpack.c.l.b16 %v4420
    %v6235 = vunpack.c.h.b16 %v4420
    %v6236 = vunpack.c.l.b16 %v4421
    %v6237 = vunpack.c.h.b16 %v4421
    %v6238 = vunpack.c.l.b16 %v4422
    %v6239 = vunpack.c.h.b16 %v4422
    %v6240 = vunpack.c.l.b16 %v4423
    %v6241 = vunpack.c.h.b16 %v4423
    %v6242 = vunpack.c.l.b16 %v4424
    %v6243 = vunpack.c.h.b16 %v4424
    %v6244 = vunpack.c.l.b16 %v4425
    %v6245 = vunpack.c.h.b16 %v4425
    %v6246 = vunpack.c.l.b16 %v4426
    %v6247 = vunpack.c.h.b16 %v4426
    %v6248 = vunpack.c.l.b16 %v4427
    %v6249 = vunpack.c.h.b16 %v4427
    %v6250 = vunpack.c.l.b16 %v4428
    %v6251 = vunpack.c.h.b16 %v4428
    %v6252 = vunpack.c.l.b16 %v4429
    %v6253 = vunpack.c.h.b16 %v4429
    %v6254 = vunpack.c.l.b16 %v4430
    %v6255 = vunpack.c.h.b16 %v4430
    %v6256 = vunpack.c.l.b16 %v4431
    %v6257 = vunpack.c.h.b16 %v4431
    %v6258 = vunpack.c.l.b16 %v4432
    %v6259 = vunpack.c.h.b16 %v4432
    %v6260 = vunpack.c.l.b16 %v4433
    %v6261 = vunpack.c.h.b16 %v4433
    %v6262 = vunpack.c.l.b16 %v4434
    %v6263 = vunpack.c.h.b16 %v4434
    %v6264 = vunpack.c.l.b16 %v4435
    %v6265 = vunpack.c.h.b16 %v4435
    %v6266 = vunpack.c.l.b16 %v4436
    %v6267 = vunpack.c.h.b16 %v4436
    %v6268 = vunpack.c.l.b16 %v4437
    %v6269 = vunpack.c.h.b16 %v4437
    %v6270 = vunpack.c.l.b16 %v4438
    %v6271 = vunpack.c.h.b16 %v4438
    %v6272 = vunpack.c.l.b16 %v4439
    %v6273 = vunpack.c.h.b16 %v4439
    %v6274 = vunpack.c.l.b16 %v4440
    %v6275 = vunpack.c.h.b16 %v4440
    %v6276 = vunpack.c.l.b16 %v4441
    %v6277 = vunpack.c.h.b16 %v4441
    %v6278 = vunpack.c.l.b16 %v4442
    %v6279 = vunpack.c.h.b16 %v4442
    %v6280 = vunpack.c.l.b16 %v4443
    %v6281 = vunpack.c.h.b16 %v4443
    %v6282 = vunpack.c.l.b16 %v4444
    %v6283 = vunpack.c.h.b16 %v4444
    %v6284 = vunpack.c.l.b16 %v4445
    %v6285 = vunpack.c.h.b16 %v4445
    %v6286 = vunpack.c.l.b16 %v4446
    %v6287 = vunpack.c.h.b16 %v4446
    %v6288 = vunpack.c.l.b16 %v4447
    %v6289 = vunpack.c.h.b16 %v4447
    %v6290 = vunpack.c.l.b16 %v4448
    %v6291 = vunpack.c.h.b16 %v4448
    %v6292 = vunpack.c.l.b16 %v4449
    %v6293 = vunpack.c.h.b16 %v4449
    %v6294 = vunpack.c.l.b16 %v4450
    %v6295 = vunpack.c.h.b16 %v4450
    %v6296 = vunpack.c.l.b16 %v4451
    %v6297 = vunpack.c.h.b16 %v4451
    %v6298 = vunpack.c.l.b16 %v4452
    %v6299 = vunpack.c.h.b16 %v4452
    %v6300 = vunpack.c.l.b16 %v4453
    %v6301 = vunpack.c.h.b16 %v4453
    %v6302 = vunpack.c.l.b16 %v4454
    %v6303 = vunpack.c.h.b16 %v4454
    %v6304 = vunpack.c.l.b16 %v4455
    %v6305 = vunpack.c.h.b16 %v4455
    %v6306 = vunpack.c.l.b16 %v4456
    %v6307 = vunpack.c.h.b16 %v4456
    %v6308 = vunpack.c.l.b16 %v4457
    %v6309 = vunpack.c.h.b16 %v4457
    %v6310 = vunpack.c.l.b16 %v4458
    %v6311 = vunpack.c.h.b16 %v4458
    %v6312 = vunpack.c.l.b16 %v4459
    %v6313 = vunpack.c.h.b16 %v4459
    %v6314 = vunpack.c.l.b16 %v4460
    %v6315 = vunpack.c.h.b16 %v4460
    %v6316 = vunpack.c.l.b16 %v4461
    %v6317 = vunpack.c.h.b16 %v4461
    %v6318 = vunpack.c.l.b16 %v4462
    %v6319 = vunpack.c.h.b16 %v4462
    %v6320 = vunpack.c.l.b16 %v4463
    %v6321 = vunpack.c.h.b16 %v4463
    %v6322 = vunpack.c.l.b16 %v4464
    %v6323 = vunpack.c.h.b16 %v4464
    %v6324 = vunpack.c.l.b16 %v4465
    %v6325 = vunpack.c.h.b16 %v4465
    %v6326 = vunpack.c.l.b16 %v4466
    %v6327 = vunpack.c.h.b16 %v4466
    %v6328 = vunpack.c.l.b16 %v4467
    %v6329 = vunpack.c.h.b16 %v4467
    %v6330 = vunpack.c.l.b16 %v4468
    %v6331 = vunpack.c.h.b16 %v4468
    %v6332 = vunpack.c.l.b16 %v4469
    %v6333 = vunpack.c.h.b16 %v4469
    %v6334 = vunpack.c.l.b16 %v4470
    %v6335 = vunpack.c.h.b16 %v4470
    %v6336 = vunpack.c.l.b16 %v4471
    %v6337 = vunpack.c.h.b16 %v4471
    %v6338 = vunpack.c.l.b16 %v4472
    %v6339 = vunpack.c.h.b16 %v4472
    %v6340 = vunpack.c.l.b16 %v4473
    %v6341 = vunpack.c.h.b16 %v4473
    %v6342 = vunpack.c.l.b16 %v4474
    %v6343 = vunpack.c.h.b16 %v4474
    %v6344 = vunpack.c.l.b16 %v4475
    %v6345 = vunpack.c.h.b16 %v4475
    %v6346 = vunpack.c.l.b16 %v4476
    %v6347 = vunpack.c.h.b16 %v4476
    %v6348 = vunpack.c.l.b16 %v4477
    %v6349 = vunpack.c.h.b16 %v4477
    %v6350 = vunpack.c.l.b16 %v4478
    %v6351 = vunpack.c.h.b16 %v4478
    %v6352 = vunpack.c.l.b16 %v4479
    %v6353 = vunpack.c.h.b16 %v4479
    %v6354 = vunpack.c.l.b16 %v4480
    %v6355 = vunpack.c.h.b16 %v4480
    %v6356 = vunpack.c.l.b16 %v4481
    %v6357 = vunpack.c.h.b16 %v4481
    %v6358 = vunpack.c.l.b16 %v4482
    %v6359 = vunpack.c.h.b16 %v4482
    %v6360 = vunpack.c.l.b16 %v4483
    %v6361 = vunpack.c.h.b16 %v4483
    %v6362 = vunpack.c.l.b16 %v4484
    %v6363 = vunpack.c.h.b16 %v4484
    %v6364 = vunpack.c.l.b16 %v4485
    %v6365 = vunpack.c.h.b16 %v4485
    %v6366 = vunpack.c.l.b16 %v4486
    %v6367 = vunpack.c.h.b16 %v4486
    %v6368 = vunpack.c.l.b16 %v4487
    %v6369 = vunpack.c.h.b16 %v4487
    %v6370 = vunpack.c.l.b16 %v4488
    %v6371 = vunpack.c.h.b16 %v4488
    %v6372 = vunpack.c.l.b16 %v4489
    %v6373 = vunpack.c.h.b16 %v4489
    %v6374 = vunpack.c.l.b16 %v4490
    %v6375 = vunpack.c.h.b16 %v4490
    %v6376 = vunpack.c.l.b16 %v4491
    %v6377 = vunpack.c.h.b16 %v4491
    %v6378 = vunpack.c.l.b16 %v4492
    %v6379 = vunpack.c.h.b16 %v4492
    %v6380 = vunpack.c.l.b16 %v4493
    %v6381 = vunpack.c.h.b16 %v4493
    %v6382 = vunpack.c.l.b16 %v4494
    %v6383 = vunpack.c.h.b16 %v4494
    %v6384 = vunpack.c.l.b16 %v4495
    %v6385 = vunpack.c.h.b16 %v4495
    %v6386 = vunpack.c.l.b16 %v4496
    %v6387 = vunpack.c.h.b16 %v4496
    %v6388 = vunpack.c.l.b16 %v4497
    %v6389 = vunpack.c.h.b16 %v4497
    %v6390 = vunpack.c.l.b16 %v4498
    %v6391 = vunpack.c.h.b16 %v4498
    %v6392 = vunpack.c.l.b16 %v4499
    %v6393 = vunpack.c.h.b16 %v4499
    %v6394 = vunpack.c.l.b16 %v4500
    %v6395 = vunpack.c.h.b16 %v4500
    %v6396 = vunpack.c.l.b16 %v4501
    %v6397 = vunpack.c.h.b16 %v4501
    %v6398 = vunpack.c.l.b16 %v4502
    %v6399 = vunpack.c.h.b16 %v4502
    %v6400 = vunpack.c.l.b16 %v4503
    %v6401 = vunpack.c.h.b16 %v4503
    %v6402 = vunpack.c.l.b16 %v4504
    %v6403 = vunpack.c.h.b16 %v4504
    %v6404 = vunpack.c.l.b16 %v4505
    %v6405 = vunpack.c.h.b16 %v4505
    %v6406 = vunpack.c.l.b16 %v4506
    %v6407 = vunpack.c.h.b16 %v4506
    %v6408 = vunpack.c.l.b16 %v4507
    %v6409 = vunpack.c.h.b16 %v4507
    %v6410 = vunpack.c.l.b16 %v4508
    %v6411 = vunpack.c.h.b16 %v4508
    %v6412 = vunpack.c.l.b16 %v4509
    %v6413 = vunpack.c.h.b16 %v4509
    %v6414 = vunpack.c.l.b16 %v4510
    %v6415 = vunpack.c.h.b16 %v4510
    %v6416 = vunpack.c.l.b16 %v4511
    %v6417 = vunpack.c.h.b16 %v4511
    %v6418 = vunpack.c.l.b16 %v4512
    %v6419 = vunpack.c.h.b16 %v4512
    %v6420 = vunpack.c.l.b16 %v4513
    %v6421 = vunpack.c.h.b16 %v4513
    %v6422 = vunpack.c.l.b16 %v4514
    %v6423 = vunpack.c.h.b16 %v4514
    %v6424 = vunpack.c.l.b16 %v4515
    %v6425 = vunpack.c.h.b16 %v4515
    %v6426 = vunpack.c.l.b16 %v4516
    %v6427 = vunpack.c.h.b16 %v4516
    %v6428 = vunpack.c.l.b16 %v4517
    %v6429 = vunpack.c.h.b16 %v4517
    %v6430 = vunpack.c.l.b16 %v4518
    %v6431 = vunpack.c.h.b16 %v4518
    %v6432 = vunpack.c.l.b16 %v4519
    %v6433 = vunpack.c.h.b16 %v4519
    %v6434 = vunpack.c.l.b16 %v4520
    %v6435 = vunpack.c.h.b16 %v4520
    %v6436 = vunpack.c.l.b16 %v4521
    %v6437 = vunpack.c.h.b16 %v4521
    %v6438 = vunpack.c.l.b16 %v4522
    %v6439 = vunpack.c.h.b16 %v4522
    %v6440 = vunpack.c.l.b16 %v4523
    %v6441 = vunpack.c.h.b16 %v4523
    %v6442 = vunpack.c.l.b16 %v4524
    %v6443 = vunpack.c.h.b16 %v4524
    %v6444 = vunpack.c.l.b16 %v4525
    %v6445 = vunpack.c.h.b16 %v4525
    %v6446 = vunpack.c.l.b16 %v4526
    %v6447 = vunpack.c.h.b16 %v4526
    %v6448 = vunpack.c.l.b16 %v4527
    %v6449 = vunpack.c.h.b16 %v4527
    %v6450 = vunpack.c.l.b16 %v4528
    %v6451 = vunpack.c.h.b16 %v4528
    %v6452 = vunpack.c.l.b16 %v4529
    %v6453 = vunpack.c.h.b16 %v4529
    %v6454 = vunpack.c.l.b16 %v4530
    %v6455 = vunpack.c.h.b16 %v4530
    %v6456 = vunpack.c.l.b16 %v4531
    %v6457 = vunpack.c.h.b16 %v4531
    %v6458 = vunpack.c.l.b16 %v4532
    %v6459 = vunpack.c.h.b16 %v4532
    %v6460 = vunpack.c.l.b16 %v4533
    %v6461 = vunpack.c.h.b16 %v4533
    %v6462 = vunpack.c.l.b16 %v4534
    %v6463 = vunpack.c.h.b16 %v4534
    %v6464 = vunpack.c.l.b16 %v4535
    %v6465 = vunpack.c.h.b16 %v4535
    %v6466 = vunpack.c.l.b16 %v4536
    %v6467 = vunpack.c.h.b16 %v4536
    %v6468 = vunpack.c.l.b16 %v4537
    %v6469 = vunpack.c.h.b16 %v4537
    %v6470 = vunpack.c.l.b16 %v4538
    %v6471 = vunpack.c.h.b16 %v4538
    %v6472 = vunpack.c.l.b16 %v4539
    %v6473 = vunpack.c.h.b16 %v4539
    %v6474 = vunpack.c.l.b16 %v4540
    %v6475 = vunpack.c.h.b16 %v4540
    %v6476 = vunpack.c.l.b16 %v4541
    %v6477 = vunpack.c.h.b16 %v4541
    %v6478 = vunpack.c.l.b16 %v4542
    %v6479 = vunpack.c.h.b16 %v4542
    %v6480 = vunpack.c.l.b16 %v4543
    %v6481 = vunpack.c.h.b16 %v4543
    %v6482 = vunpack.c.l.b16 %v4544
    %v6483 = vunpack.c.h.b16 %v4544
    %v6484 = vunpack.c.l.b16 %v4545
    %v6485 = vunpack.c.h.b16 %v4545
    %v6486 = vunpack.c.l.b16 %v4546
    %v6487 = vunpack.c.h.b16 %v4546
    %v6488 = vunpack.c.l.b16 %v4547
    %v6489 = vunpack.c.h.b16 %v4547
    %v6490 = vunpack.c.l.b16 %v4548
    %v6491 = vunpack.c.h.b16 %v4548
    %v6492 = vunpack.c.l.b16 %v4549
    %v6493 = vunpack.c.h.b16 %v4549
    %v6494 = vunpack.c.l.b16 %v4550
    %v6495 = vunpack.c.h.b16 %v4550
    %v6496 = vunpack.c.l.b16 %v4551
    %v6497 = vunpack.c.h.b16 %v4551
    %v6498 = vunpack.c.l.b16 %v4552
    %v6499 = vunpack.c.h.b16 %v4552
    %v6500 = vunpack.c.l.b16 %v4553
    %v6501 = vunpack.c.h.b16 %v4553
    %v6502 = vunpack.c.l.b16 %v4554
    %v6503 = vunpack.c.h.b16 %v4554
    %v6504 = vunpack.c.l.b16 %v4555
    %v6505 = vunpack.c.h.b16 %v4555
    %v6506 = vunpack.c.l.b16 %v4556
    %v6507 = vunpack.c.h.b16 %v4556
    %v6508 = vunpack.c.l.b16 %v4557
    %v6509 = vunpack.c.h.b16 %v4557
    %v6510 = vunpack.c.l.b16 %v4558
    %v6511 = vunpack.c.h.b16 %v4558
    %v6512 = vunpack.c.l.b16 %v4559
    %v6513 = vunpack.c.h.b16 %v4559
    %v6514 = vunpack.c.l.b16 %v4560
    %v6515 = vunpack.c.h.b16 %v4560
    %v6516 = vunpack.c.l.b16 %v4561
    %v6517 = vunpack.c.h.b16 %v4561
    %v6518 = vunpack.c.l.b16 %v4562
    %v6519 = vunpack.c.h.b16 %v4562
    %v6520 = vunpack.c.l.b16 %v4563
    %v6521 = vunpack.c.h.b16 %v4563
    %v6522 = vunpack.c.l.b16 %v4564
    %v6523 = vunpack.c.h.b16 %v4564
    %v6524 = vunpack.c.l.b16 %v4565
    %v6525 = vunpack.c.h.b16 %v4565
    %v6526 = vunpack.c.l.b16 %v4566
    %v6527 = vunpack.c.h.b16 %v4566
    %v6528 = vunpack.c.l.b16 %v4567
    %v6529 = vunpack.c.h.b16 %v4567
    %v6530 = vunpack.c.l.b16 %v4568
    %v6531 = vunpack.c.h.b16 %v4568
    %v6532 = vunpack.c.l.b16 %v4569
    %v6533 = vunpack.c.h.b16 %v4569
    %v6534 = vunpack.c.l.b16 %v4570
    %v6535 = vunpack.c.h.b16 %v4570
    %v6536 = vunpack.c.l.b16 %v4571
    %v6537 = vunpack.c.h.b16 %v4571
    %v6538 = vunpack.c.l.b16 %v4572
    %v6539 = vunpack.c.h.b16 %v4572
    %v6540 = vunpack.c.l.b16 %v4573
    %v6541 = vunpack.c.h.b16 %v4573
    %v6542 = vunpack.c.l.b16 %v4574
    %v6543 = vunpack.c.h.b16 %v4574
    %v6544 = vunpack.c.l.b16 %v4575
    %v6545 = vunpack.c.h.b16 %v4575
    %v6546 = vunpack.c.l.b16 %v4576
    %v6547 = vunpack.c.h.b16 %v4576
    %v6548 = vunpack.c.l.b16 %v4577
    %v6549 = vunpack.c.h.b16 %v4577
    %v6550 = vunpack.c.l.b16 %v4578
    %v6551 = vunpack.c.h.b16 %v4578
    %v6552 = vunpack.c.l.b16 %v4579
    %v6553 = vunpack.c.h.b16 %v4579
    %v6554 = vunpack.c.l.b16 %v4580
    %v6555 = vunpack.c.h.b16 %v4580
    %v6556 = vunpack.c.l.b16 %v4581
    %v6557 = vunpack.c.h.b16 %v4581
    %v6558 = vunpack.c.l.b16 %v4582
    %v6559 = vunpack.c.h.b16 %v4582
    %v6560 = vunpack.c.l.b16 %v4583
    %v6561 = vunpack.c.h.b16 %v4583
    %v6562 = vunpack.c.l.b16 %v4584
    %v6563 = vunpack.c.h.b16 %v4584
    %v6564 = vunpack.c.l.b16 %v4585
    %v6565 = vunpack.c.h.b16 %v4585
    %v6566 = vunpack.c.l.b16 %v4586
    %v6567 = vunpack.c.h.b16 %v4586
    %v6568 = vunpack.c.l.b16 %v4587
    %v6569 = vunpack.c.h.b16 %v4587
    %v6570 = vunpack.c.l.b16 %v4588
    %v6571 = vunpack.c.h.b16 %v4588
    %v6572 = vunpack.c.l.b16 %v4589
    %v6573 = vunpack.c.h.b16 %v4589
    %v6574 = vunpack.c.l.b16 %v4590
    %v6575 = vunpack.c.h.b16 %v4590
    %v6576 = vunpack.c.l.b16 %v4591
    %v6577 = vunpack.c.h.b16 %v4591
    %v6578 = vunpack.c.l.b16 %v4592
    %v6579 = vunpack.c.h.b16 %v4592
    %v6580 = vunpack.c.l.b16 %v4593
    %v6581 = vunpack.c.h.b16 %v4593
    %v6582 = vunpack.c.l.b16 %v4594
    %v6583 = vunpack.c.h.b16 %v4594
    %v6584 = vunpack.c.l.b16 %v4595
    %v6585 = vunpack.c.h.b16 %v4595
    %v6586 = vunpack.c.l.b16 %v4596
    %v6587 = vunpack.c.h.b16 %v4596
    %v6588 = vunpack.c.l.b16 %v4597
    %v6589 = vunpack.c.h.b16 %v4597
    %v6590 = vunpack.c.l.b16 %v4598
    %v6591 = vunpack.c.h.b16 %v4598
    %v6592 = vunpack.c.l.b16 %v4599
    %v6593 = vunpack.c.h.b16 %v4599
    %v6594 = vunpack.c.l.b16 %v4600
    %v6595 = vunpack.c.h.b16 %v4600
    %v6596 = vunpack.c.l.b16 %v4601
    %v6597 = vunpack.c.h.b16 %v4601
    %v6598 = vunpack.c.l.b16 %v4602
    %v6599 = vunpack.c.h.b16 %v4602
    %v6600 = vunpack.c.l.b16 %v4603
    %v6601 = vunpack.c.h.b16 %v4603
    %v6602 = vunpack.c.l.b16 %v4604
    %v6603 = vunpack.c.h.b16 %v4604
    %v6604 = vunpack.c.l.b16 %v4605
    %v6605 = vunpack.c.h.b16 %v4605
    %v6606 = vunpack.c.l.b16 %v4606
    %v6607 = vunpack.c.h.b16 %v4606
    %v6608 = vunpack.c.l.b16 %v4607
    %v6609 = vunpack.c.h.b16 %v4607
    %v6610 = vunpack.c.l.b16 %v4608
    %v6611 = vunpack.c.h.b16 %v4608
    %v6612 = vunpack.c.l.b16 %v4609
    %v6613 = vunpack.c.h.b16 %v4609
    %v6614 = vunpack.c.l.b16 %v4610
    %v6615 = vunpack.c.h.b16 %v4610
    %v6616 = vunpack.c.l.b16 %v4611
    %v6617 = vunpack.c.h.b16 %v4611
    %v6618 = vunpack.c.l.b16 %v4612
    %v6619 = vunpack.c.h.b16 %v4612
    %v6620 = vunpack.c.l.b16 %v4613
    %v6621 = vunpack.c.h.b16 %v4613
    %v6622 = vpack.c.b16 %v5474, %v5470
    %v6623 = vpack.c.b16 %v5475, %v5471
    %v6624 = vpack.c.b16 %v5476, %v5472
    %v6625 = vpack.c.b16 %v5477, %v5473
    %v6626 = vpack.c.b16 %v5482, %v5478
    %v6627 = vpack.c.b16 %v5483, %v5479
    %v6628 = vpack.c.b16 %v5484, %v5480
    %v6629 = vpack.c.b16 %v5485, %v5481
    %v6630 = vpack.c.b16 %v5490, %v5486
    %v6631 = vpack.c.b16 %v5491, %v5487
    %v6632 = vpack.c.b16 %v5492, %v5488
    %v6633 = vpack.c.b16 %v5493, %v5489
    %v6634 = vpack.c.b16 %v5498, %v5494
    %v6635 = vpack.c.b16 %v5499, %v5495
    %v6636 = vpack.c.b16 %v5500, %v5496
    %v6637 = vpack.c.b16 %v5501, %v5497
    %v6638 = vpack.c.b16 %v5506, %v5502
    %v6639 = vpack.c.b16 %v5507, %v5503
    %v6640 = vpack.c.b16 %v5508, %v5504
    %v6641 = vpack.c.b16 %v5509, %v5505
    %v6642 = vpack.c.b16 %v5514, %v5510
    %v6643 = vpack.c.b16 %v5515, %v5511
    %v6644 = vpack.c.b16 %v5516, %v5512
    %v6645 = vpack.c.b16 %v5517, %v5513
    %v6646 = vpack.c.b16 %v5522, %v5518
    %v6647 = vpack.c.b16 %v5523, %v5519
    %v6648 = vpack.c.b16 %v5524, %v5520
    %v6649 = vpack.c.b16 %v5525, %v5521
    %v6650 = vpack.c.b16 %v5530, %v5526
    %v6651 = vpack.c.b16 %v5531, %v5527
    %v6652 = vpack.c.b16 %v5532, %v5528
    %v6653 = vpack.c.b16 %v5533, %v5529
    %v6654 = vpack.c.b16 %v5538, %v5534
    %v6655 = vpack.c.b16 %v5539, %v5535
    %v6656 = vpack.c.b16 %v5540, %v5536
    %v6657 = vpack.c.b16 %v5541, %v5537
    %v6658 = vpack.c.b16 %v5546, %v5542
    %v6659 = vpack.c.b16 %v5547, %v5543
    %v6660 = vpack.c.b16 %v5548, %v5544
    %v6661 = vpack.c.b16 %v5549, %v5545
    %v6662 = vpack.c.b16 %v5554, %v5550
    %v6663 = vpack.c.b16 %v5555, %v5551
    %v6664 = vpack.c.b16 %v5556, %v5552
    %v6665 = vpack.c.b16 %v5557, %v5553
    %v6666 = vpack.c.b16 %v5562, %v5558
    %v6667 = vpack.c.b16 %v5563, %v5559
    %v6668 = vpack.c.b16 %v5564, %v5560
    %v6669 = vpack.c.b16 %v5565, %v5561
    %v6670 = vpack.c.b16 %v5570, %v5566
    %v6671 = vpack.c.b16 %v5571, %v5567
    %v6672 = vpack.c.b16 %v5572, %v5568
    %v6673 = vpack.c.b16 %v5573, %v5569
    %v6674 = vpack.c.b16 %v5578, %v5574
    %v6675 = vpack.c.b16 %v5579, %v5575
    %v6676 = vpack.c.b16 %v5580, %v5576
    %v6677 = vpack.c.b16 %v5581, %v5577
    %v6678 = vpack.c.b16 %v5586, %v5582
    %v6679 = vpack.c.b16 %v5587, %v5583
    %v6680 = vpack.c.b16 %v5588, %v5584
    %v6681 = vpack.c.b16 %v5589, %v5585
    %v6682 = vpack.c.b16 %v5594, %v5590
    %v6683 = vpack.c.b16 %v5595, %v5591
    %v6684 = vpack.c.b16 %v5596, %v5592
    %v6685 = vpack.c.b16 %v5597, %v5593
    %v6686 = vpack.c.b16 %v5602, %v5598
    %v6687 = vpack.c.b16 %v5603, %v5599
    %v6688 = vpack.c.b16 %v5604, %v5600
    %v6689 = vpack.c.b16 %v5605, %v5601
    %v6690 = vpack.c.b16 %v5610, %v5606
    %v6691 = vpack.c.b16 %v5611, %v5607
    %v6692 = vpack.c.b16 %v5612, %v5608
    %v6693 = vpack.c.b16 %v5613, %v5609
    %v6694 = vpack.c.b16 %v5618, %v5614
    %v6695 = vpack.c.b16 %v5619, %v5615
    %v6696 = vpack.c.b16 %v5620, %v5616
    %v6697 = vpack.c.b16 %v5621, %v5617
    %v6698 = vpack.c.b16 %v5626, %v5622
    %v6699 = vpack.c.b16 %v5627, %v5623
    %v6700 = vpack.c.b16 %v5628, %v5624
    %v6701 = vpack.c.b16 %v5629, %v5625
    %v6702 = vpack.c.b16 %v5634, %v5630
    %v6703 = vpack.c.b16 %v5635, %v5631
    %v6704 = vpack.c.b16 %v5636, %v5632
    %v6705 = vpack.c.b16 %v5637, %v5633
    %v6706 = vpack.c.b16 %v5642, %v5638
    %v6707 = vpack.c.b16 %v5643, %v5639
    %v6708 = vpack.c.b16 %v5644, %v5640
    %v6709 = vpack.c.b16 %v5645, %v5641
    %v6710 = vpack.c.b16 %v5650, %v5646
    %v6711 = vpack.c.b16 %v5651, %v5647
    %v6712 = vpack.c.b16 %v5652, %v5648
    %v6713 = vpack.c.b16 %v5653, %v5649
    %v6714 = vpack.c.b16 %v5658, %v5654
    %v6715 = vpack.c.b16 %v5659, %v5655
    %v6716 = vpack.c.b16 %v5660, %v5656
    %v6717 = vpack.c.b16 %v5661, %v5657
    %v6718 = vpack.c.b16 %v5666, %v5662
    %v6719 = vpack.c.b16 %v5667, %v5663
    %v6720 = vpack.c.b16 %v5668, %v5664
    %v6721 = vpack.c.b16 %v5669, %v5665
    %v6722 = vpack.c.b16 %v5674, %v5670
    %v6723 = vpack.c.b16 %v5675, %v5671
    %v6724 = vpack.c.b16 %v5676, %v5672
    %v6725 = vpack.c.b16 %v5677, %v5673
    %v6726 = vpack.c.b16 %v5682, %v5678
    %v6727 = vpack.c.b16 %v5683, %v5679
    %v6728 = vpack.c.b16 %v5684, %v5680
    %v6729 = vpack.c.b16 %v5685, %v5681
    %v6730 = vpack.c.b16 %v5690, %v5686
    %v6731 = vpack.c.b16 %v5691, %v5687
    %v6732 = vpack.c.b16 %v5692, %v5688
    %v6733 = vpack.c.b16 %v5693, %v5689
    %v6734 = vpack.c.b16 %v5698, %v5694
    %v6735 = vpack.c.b16 %v5699, %v5695
    %v6736 = vpack.c.b16 %v5700, %v5696
    %v6737 = vpack.c.b16 %v5701, %v5697
    %v6738 = vpack.c.b16 %v5706, %v5702
    %v6739 = vpack.c.b16 %v5707, %v5703
    %v6740 = vpack.c.b16 %v5708, %v5704
    %v6741 = vpack.c.b16 %v5709, %v5705
    %v6742 = vpack.c.b16 %v5714, %v5710
    %v6743 = vpack.c.b16 %v5715, %v5711
    %v6744 = vpack.c.b16 %v5716, %v5712
    %v6745 = vpack.c.b16 %v5717, %v5713
    %v6746 = vpack.c.b16 %v5722, %v5718
    %v6747 = vpack.c.b16 %v5723, %v5719
    %v6748 = vpack.c.b16 %v5724, %v5720
    %v6749 = vpack.c.b16 %v5725, %v5721
    %v6750 = vpack.c.b16 %v5730, %v5726
    %v6751 = vpack.c.b16 %v5731, %v5727
    %v6752 = vpack.c.b16 %v5732, %v5728
    %v6753 = vpack.c.b16 %v5733, %v5729
    %v6754 = vpack.c.b16 %v5738, %v5734
    %v6755 = vpack.c.b16 %v5739, %v5735
    %v6756 = vpack.c.b16 %v5740, %v5736
    %v6757 = vpack.c.b16 %v5741, %v5737
    %v6758 = vpack.c.b16 %v5746, %v5742
    %v6759 = vpack.c.b16 %v5747, %v5743
    %v6760 = vpack.c.b16 %v5748, %v5744
    %v6761 = vpack.c.b16 %v5749, %v5745
    %v6762 = vpack.c.b16 %v5754, %v5750
    %v6763 = vpack.c.b16 %v5755, %v5751
    %v6764 = vpack.c.b16 %v5756, %v5752
    %v6765 = vpack.c.b16 %v5757, %v5753
    %v6766 = vpack.c.b16 %v5762, %v5758
    %v6767 = vpack.c.b16 %v5763, %v5759
    %v6768 = vpack.c.b16 %v5764, %v5760
    %v6769 = vpack.c.b16 %v5765, %v5761
    %v6770 = vpack.c.b16 %v5770, %v5766
    %v6771 = vpack.c.b16 %v5771, %v5767
    %v6772 = vpack.c.b16 %v5772, %v5768
    %v6773 = vpack.c.b16 %v5773, %v5769
    %v6774 = vpack.c.b16 %v5778, %v5774
    %v6775 = vpack.c.b16 %v5779, %v5775
    %v6776 = vpack.c.b16 %v5780, %v5776
    %v6777 = vpack.c.b16 %v5781, %v5777
    %v6778 = vpack.c.b16 %v5786, %v5782
    %v6779 = vpack.c.b16 %v5787, %v5783
    %v6780 = vpack.c.b16 %v5788, %v5784
    %v6781 = vpack.c.b16 %v5789, %v5785
    %v6782 = vpack.c.b16 %v5794, %v5790
    %v6783 = vpack.c.b16 %v5795, %v5791
    %v6784 = vpack.c.b16 %v5796, %v5792
    %v6785 = vpack.c.b16 %v5797, %v5793
    %v6786 = vpack.c.b16 %v5802, %v5798
    %v6787 = vpack.c.b16 %v5803, %v5799
    %v6788 = vpack.c.b16 %v5804, %v5800
    %v6789 = vpack.c.b16 %v5805, %v5801
    %v6790 = vpack.c.b16 %v5810, %v5806
    %v6791 = vpack.c.b16 %v5811, %v5807
    %v6792 = vpack.c.b16 %v5812, %v5808
    %v6793 = vpack.c.b16 %v5813, %v5809
    %v6794 = vpack.c.b16 %v5818, %v5814
    %v6795 = vpack.c.b16 %v5819, %v5815
    %v6796 = vpack.c.b16 %v5820, %v5816
    %v6797 = vpack.c.b16 %v5821, %v5817
    %v6798 = vpack.c.b16 %v5826, %v5822
    %v6799 = vpack.c.b16 %v5827, %v5823
    %v6800 = vpack.c.b16 %v5828, %v5824
    %v6801 = vpack.c.b16 %v5829, %v5825
    %v6802 = vpack.c.b16 %v5834, %v5830
    %v6803 = vpack.c.b16 %v5835, %v5831
    %v6804 = vpack.c.b16 %v5836, %v5832
    %v6805 = vpack.c.b16 %v5837, %v5833
    %v6806 = vpack.c.b16 %v5842, %v5838
    %v6807 = vpack.c.b16 %v5843, %v5839
    %v6808 = vpack.c.b16 %v5844, %v5840
    %v6809 = vpack.c.b16 %v5845, %v5841
    %v6810 = vpack.c.b16 %v5850, %v5846
    %v6811 = vpack.c.b16 %v5851, %v5847
    %v6812 = vpack.c.b16 %v5852, %v5848
    %v6813 = vpack.c.b16 %v5853, %v5849
    %v6814 = vpack.c.b16 %v5858, %v5854
    %v6815 = vpack.c.b16 %v5859, %v5855
    %v6816 = vpack.c.b16 %v5860, %v5856
    %v6817 = vpack.c.b16 %v5861, %v5857
    %v6818 = vpack.c.b16 %v5866, %v5862
    %v6819 = vpack.c.b16 %v5867, %v5863
    %v6820 = vpack.c.b16 %v5868, %v5864
    %v6821 = vpack.c.b16 %v5869, %v5865
    %v6822 = vpack.c.b16 %v5874, %v5870
    %v6823 = vpack.c.b16 %v5875, %v5871
    %v6824 = vpack.c.b16 %v5876, %v5872
    %v6825 = vpack.c.b16 %v5877, %v5873
    %v6826 = vpack.c.b16 %v5882, %v5878
    %v6827 = vpack.c.b16 %v5883, %v5879
    %v6828 = vpack.c.b16 %v5884, %v5880
    %v6829 = vpack.c.b16 %v5885, %v5881
    %v6830 = vpack.c.b16 %v5890, %v5886
    %v6831 = vpack.c.b16 %v5891, %v5887
    %v6832 = vpack.c.b16 %v5892, %v5888
    %v6833 = vpack.c.b16 %v5893, %v5889
    %v6834 = vpack.c.b16 %v5898, %v5894
    %v6835 = vpack.c.b16 %v5899, %v5895
    %v6836 = vpack.c.b16 %v5900, %v5896
    %v6837 = vpack.c.b16 %v5901, %v5897
    %v6838 = vpack.c.b16 %v5906, %v5902
    %v6839 = vpack.c.b16 %v5907, %v5903
    %v6840 = vpack.c.b16 %v5908, %v5904
    %v6841 = vpack.c.b16 %v5909, %v5905
    %v6842 = vpack.c.b16 %v5914, %v5910
    %v6843 = vpack.c.b16 %v5915, %v5911
    %v6844 = vpack.c.b16 %v5916, %v5912
    %v6845 = vpack.c.b16 %v5917, %v5913
    %v6846 = vpack.c.b16 %v5922, %v5918
    %v6847 = vpack.c.b16 %v5923, %v5919
    %v6848 = vpack.c.b16 %v5924, %v5920
    %v6849 = vpack.c.b16 %v5925, %v5921
    %v6850 = vpack.c.b16 %v5930, %v5926
    %v6851 = vpack.c.b16 %v5931, %v5927
    %v6852 = vpack.c.b16 %v5932, %v5928
    %v6853 = vpack.c.b16 %v5933, %v5929
    %v6854 = vpack.c.b16 %v5938, %v5934
    %v6855 = vpack.c.b16 %v5939, %v5935
    %v6856 = vpack.c.b16 %v5940, %v5936
    %v6857 = vpack.c.b16 %v5941, %v5937
    %v6858 = vpack.c.b16 %v5946, %v5942
    %v6859 = vpack.c.b16 %v5947, %v5943
    %v6860 = vpack.c.b16 %v5948, %v5944
    %v6861 = vpack.c.b16 %v5949, %v5945
    %v6862 = vpack.c.b16 %v5954, %v5950
    %v6863 = vpack.c.b16 %v5955, %v5951
    %v6864 = vpack.c.b16 %v5956, %v5952
    %v6865 = vpack.c.b16 %v5957, %v5953
    %v6866 = vpack.c.b16 %v5962, %v5958
    %v6867 = vpack.c.b16 %v5963, %v5959
    %v6868 = vpack.c.b16 %v5964, %v5960
    %v6869 = vpack.c.b16 %v5965, %v5961
    %v6870 = vpack.c.b16 %v5970, %v5966
    %v6871 = vpack.c.b16 %v5971, %v5967
    %v6872 = vpack.c.b16 %v5972, %v5968
    %v6873 = vpack.c.b16 %v5973, %v5969
    %v6874 = vpack.c.b16 %v5978, %v5974
    %v6875 = vpack.c.b16 %v5979, %v5975
    %v6876 = vpack.c.b16 %v5980, %v5976
    %v6877 = vpack.c.b16 %v5981, %v5977
    %v6878 = vpack.c.b16 %v5986, %v5982
    %v6879 = vpack.c.b16 %v5987, %v5983
    %v6880 = vpack.c.b16 %v5988, %v5984
    %v6881 = vpack.c.b16 %v5989, %v5985
    %v6882 = vpack.c.b16 %v5994, %v5990
    %v6883 = vpack.c.b16 %v5995, %v5991
    %v6884 = vpack.c.b16 %v5996, %v5992
    %v6885 = vpack.c.b16 %v5997, %v5993
    %v6886 = vpack.c.b16 %v6002, %v5998
    %v6887 = vpack.c.b16 %v6003, %v5999
    %v6888 = vpack.c.b16 %v6004, %v6000
    %v6889 = vpack.c.b16 %v6005, %v6001
    %v6890 = vpack.c.b16 %v6010, %v6006
    %v6891 = vpack.c.b16 %v6011, %v6007
    %v6892 = vpack.c.b16 %v6012, %v6008
    %v6893 = vpack.c.b16 %v6013, %v6009
    %v6894 = vpack.c.b16 %v6018, %v6014
    %v6895 = vpack.c.b16 %v6019, %v6015
    %v6896 = vpack.c.b16 %v6020, %v6016
    %v6897 = vpack.c.b16 %v6021, %v6017
    %v6898 = vpack.c.b16 %v6026, %v6022
    %v6899 = vpack.c.b16 %v6027, %v6023
    %v6900 = vpack.c.b16 %v6028, %v6024
    %v6901 = vpack.c.b16 %v6029, %v6025
    %v6902 = vpack.c.b16 %v6034, %v6030
    %v6903 = vpack.c.b16 %v6035, %v6031
    %v6904 = vpack.c.b16 %v6036, %v6032
    %v6905 = vpack.c.b16 %v6037, %v6033
    %v6906 = vpack.c.b16 %v6042, %v6038
    %v6907 = vpack.c.b16 %v6043, %v6039
    %v6908 = vpack.c.b16 %v6044, %v6040
    %v6909 = vpack.c.b16 %v6045, %v6041
    %v6910 = vpack.c.b16 %v6050, %v6046
    %v6911 = vpack.c.b16 %v6051, %v6047
    %v6912 = vpack.c.b16 %v6052, %v6048
    %v6913 = vpack.c.b16 %v6053, %v6049
    %v6914 = vpack.c.b16 %v6058, %v6054
    %v6915 = vpack.c.b16 %v6059, %v6055
    %v6916 = vpack.c.b16 %v6060, %v6056
    %v6917 = vpack.c.b16 %v6061, %v6057
    %v6918 = vpack.c.b16 %v6066, %v6062
    %v6919 = vpack.c.b16 %v6067, %v6063
    %v6920 = vpack.c.b16 %v6068, %v6064
    %v6921 = vpack.c.b16 %v6069, %v6065
    %v6922 = vpack.c.b16 %v6074, %v6070
    %v6923 = vpack.c.b16 %v6075, %v6071
    %v6924 = vpack.c.b16 %v6076, %v6072
    %v6925 = vpack.c.b16 %v6077, %v6073
    %v6926 = vpack.c.b16 %v6082, %v6078
    %v6927 = vpack.c.b16 %v6083, %v6079
    %v6928 = vpack.c.b16 %v6084, %v6080
    %v6929 = vpack.c.b16 %v6085, %v6081
    %v6930 = vpack.c.b16 %v6090, %v6086
    %v6931 = vpack.c.b16 %v6091, %v6087
    %v6932 = vpack.c.b16 %v6092, %v6088
    %v6933 = vpack.c.b16 %v6093, %v6089
    %v6934 = vpack.c.b16 %v6098, %v6094
    %v6935 = vpack.c.b16 %v6099, %v6095
    %v6936 = vpack.c.b16 %v6100, %v6096
    %v6937 = vpack.c.b16 %v6101, %v6097
    %v6938 = vpack.c.b16 %v6106, %v6102
    %v6939 = vpack.c.b16 %v6107, %v6103
    %v6940 = vpack.c.b16 %v6108, %v6104
    %v6941 = vpack.c.b16 %v6109, %v6105
    %v6942 = vpack.c.b16 %v6114, %v6110
    %v6943 = vpack.c.b16 %v6115, %v6111
    %v6944 = vpack.c.b16 %v6116, %v6112
    %v6945 = vpack.c.b16 %v6117, %v6113
    %v6946 = vpack.c.b16 %v6122, %v6118
    %v6947 = vpack.c.b16 %v6123, %v6119
    %v6948 = vpack.c.b16 %v6124, %v6120
    %v6949 = vpack.c.b16 %v6125, %v6121
    %v6950 = vpack.c.b16 %v6130, %v6126
    %v6951 = vpack.c.b16 %v6131, %v6127
    %v6952 = vpack.c.b16 %v6132, %v6128
    %v6953 = vpack.c.b16 %v6133, %v6129
    %v6954 = vpack.c.b16 %v6138, %v6134
    %v6955 = vpack.c.b16 %v6139, %v6135
    %v6956 = vpack.c.b16 %v6140, %v6136
    %v6957 = vpack.c.b16 %v6141, %v6137
    %v6958 = vpack.c.b16 %v6146, %v6142
    %v6959 = vpack.c.b16 %v6147, %v6143
    %v6960 = vpack.c.b16 %v6148, %v6144
    %v6961 = vpack.c.b16 %v6149, %v6145
    %v6962 = vpack.c.b16 %v6154, %v6150
    %v6963 = vpack.c.b16 %v6155, %v6151
    %v6964 = vpack.c.b16 %v6156, %v6152
    %v6965 = vpack.c.b16 %v6157, %v6153
    %v6966 = vpack.c.b16 %v6162, %v6158
    %v6967 = vpack.c.b16 %v6163, %v6159
    %v6968 = vpack.c.b16 %v6164, %v6160
    %v6969 = vpack.c.b16 %v6165, %v6161
    %v6970 = vpack.c.b16 %v6170, %v6166
    %v6971 = vpack.c.b16 %v6171, %v6167
    %v6972 = vpack.c.b16 %v6172, %v6168
    %v6973 = vpack.c.b16 %v6173, %v6169
    %v6974 = vpack.c.b16 %v6178, %v6174
    %v6975 = vpack.c.b16 %v6179, %v6175
    %v6976 = vpack.c.b16 %v6180, %v6176
    %v6977 = vpack.c.b16 %v6181, %v6177
    %v6978 = vpack.c.b16 %v6186, %v6182
    %v6979 = vpack.c.b16 %v6187, %v6183
    %v6980 = vpack.c.b16 %v6188, %v6184
    %v6981 = vpack.c.b16 %v6189, %v6185
    %v6982 = vpack.c.b16 %v6194, %v6190
    %v6983 = vpack.c.b16 %v6195, %v6191
    %v6984 = vpack.c.b16 %v6196, %v6192
    %v6985 = vpack.c.b16 %v6197, %v6193
    %v6986 = vpack.c.b16 %v6202, %v6198
    %v6987 = vpack.c.b16 %v6203, %v6199
    %v6988 = vpack.c.b16 %v6204, %v6200
    %v6989 = vpack.c.b16 %v6205, %v6201
    %v6990 = vpack.c.b16 %v6210, %v6206
    %v6991 = vpack.c.b16 %v6211, %v6207
    %v6992 = vpack.c.b16 %v6212, %v6208
    %v6993 = vpack.c.b16 %v6213, %v6209
    %v6994 = vpack.c.b16 %v6218, %v6214
    %v6995 = vpack.c.b16 %v6219, %v6215
    %v6996 = vpack.c.b16 %v6220, %v6216
    %v6997 = vpack.c.b16 %v6221, %v6217
    %v6998 = vpack.c.b16 %v6226, %v6222
    %v6999 = vpack.c.b16 %v6227, %v6223
    %v7000 = vpack.c.b16 %v6228, %v6224
    %v7001 = vpack.c.b16 %v6229, %v6225
    %v7002 = vpack.c.b16 %v6234, %v6230
    %v7003 = vpack.c.b16 %v6235, %v6231
    %v7004 = vpack.c.b16 %v6236, %v6232
    %v7005 = vpack.c.b16 %v6237, %v6233
    %v7006 = vpack.c.b16 %v6242, %v6238
    %v7007 = vpack.c.b16 %v6243, %v6239
    %v7008 = vpack.c.b16 %v6244, %v6240
    %v7009 = vpack.c.b16 %v6245, %v6241
    %v7010 = vpack.c.b16 %v6250, %v6246
    %v7011 = vpack.c.b16 %v6251, %v6247
    %v7012 = vpack.c.b16 %v6252, %v6248
    %v7013 = vpack.c.b16 %v6253, %v6249
    %v7014 = vpack.c.b16 %v6258, %v6254
    %v7015 = vpack.c.b16 %v6259, %v6255
    %v7016 = vpack.c.b16 %v6260, %v6256
    %v7017 = vpack.c.b16 %v6261, %v6257
    %v7018 = vpack.c.b16 %v6266, %v6262
    %v7019 = vpack.c.b16 %v6267, %v6263
    %v7020 = vpack.c.b16 %v6268, %v6264
    %v7021 = vpack.c.b16 %v6269, %v6265
    %v7022 = vpack.c.b16 %v6274, %v6270
    %v7023 = vpack.c.b16 %v6275, %v6271
    %v7024 = vpack.c.b16 %v6276, %v6272
    %v7025 = vpack.c.b16 %v6277, %v6273
    %v7026 = vpack.c.b16 %v6282, %v6278
    %v7027 = vpack.c.b16 %v6283, %v6279
    %v7028 = vpack.c.b16 %v6284, %v6280
    %v7029 = vpack.c.b16 %v6285, %v6281
    %v7030 = vpack.c.b16 %v6290, %v6286
    %v7031 = vpack.c.b16 %v6291, %v6287
    %v7032 = vpack.c.b16 %v6292, %v6288
    %v7033 = vpack.c.b16 %v6293, %v6289
    %v7034 = vpack.c.b16 %v6298, %v6294
    %v7035 = vpack.c.b16 %v6299, %v6295
    %v7036 = vpack.c.b16 %v6300, %v6296
    %v7037 = vpack.c.b16 %v6301, %v6297
    %v7038 = vpack.c.b16 %v6306, %v6302
    %v7039 = vpack.c.b16 %v6307, %v6303
    %v7040 = vpack.c.b16 %v6308, %v6304
    %v7041 = vpack.c.b16 %v6309, %v6305
    %v7042 = vpack.c.b16 %v6314, %v6310
    %v7043 = vpack.c.b16 %v6315, %v6311
    %v7044 = vpack.c.b16 %v6316, %v6312
    %v7045 = vpack.c.b16 %v6317, %v6313
    %v7046 = vpack.c.b16 %v6322, %v6318
    %v7047 = vpack.c.b16 %v6323, %v6319
    %v7048 = vpack.c.b16 %v6324, %v6320
    %v7049 = vpack.c.b16 %v6325, %v6321
    %v7050 = vpack.c.b16 %v6330, %v6326
    %v7051 = vpack.c.b16 %v6331, %v6327
    %v7052 = vpack.c.b16 %v6332, %v6328
    %v7053 = vpack.c.b16 %v6333, %v6329
    %v7054 = vpack.c.b16 %v6338, %v6334
    %v7055 = vpack.c.b16 %v6339, %v6335
    %v7056 = vpack.c.b16 %v6340, %v6336
    %v7057 = vpack.c.b16 %v6341, %v6337
    %v7058 = vpack.c.b16 %v6346, %v6342
    %v7059 = vpack.c.b16 %v6347, %v6343
    %v7060 = vpack.c.b16 %v6348, %v6344
    %v7061 = vpack.c.b16 %v6349, %v6345
    %v7062 = vpack.c.b16 %v6354, %v6350
    %v7063 = vpack.c.b16 %v6355, %v6351
    %v7064 = vpack.c.b16 %v6356, %v6352
    %v7065 = vpack.c.b16 %v6357, %v6353
    %v7066 = vpack.c.b16 %v6362, %v6358
    %v7067 = vpack.c.b16 %v6363, %v6359
    %v7068 = vpack.c.b16 %v6364, %v6360
    %v7069 = vpack.c.b16 %v6365, %v6361
    %v7070 = vpack.c.b16 %v6370, %v6366
    %v7071 = vpack.c.b16 %v6371, %v6367
    %v7072 = vpack.c.b16 %v6372, %v6368
    %v7073 = vpack.c.b16 %v6373, %v6369
    %v7074 = vpack.c.b16 %v6378, %v6374
    %v7075 = vpack.c.b16 %v6379, %v6375
    %v7076 = vpack.c.b16 %v6380, %v6376
    %v7077 = vpack.c.b16 %v6381, %v6377
    %v7078 = vpack.c.b16 %v6386, %v6382
    %v7079 = vpack.c.b16 %v6387, %v6383
    %v7080 = vpack.c.b16 %v6388, %v6384
    %v7081 = vpack.c.b16 %v6389, %v6385
    %v7082 = vpack.c.b16 %v6394, %v6390
    %v7083 = vpack.c.b16 %v6395, %v6391
    %v7084 = vpack.c.b16 %v6396, %v6392
    %v7085 = vpack.c.b16 %v6397, %v6393
    %v7086 = vpack.c.b16 %v6402, %v6398
    %v7087 = vpack.c.b16 %v6403, %v6399
    %v7088 = vpack.c.b16 %v6404, %v6400
    %v7089 = vpack.c.b16 %v6405, %v6401
    %v7090 = vpack.c.b16 %v6410, %v6406
    %v7091 = vpack.c.b16 %v6411, %v6407
    %v7092 = vpack.c.b16 %v6412, %v6408
    %v7093 = vpack.c.b16 %v6413, %v6409
    %v7094 = vpack.c.b16 %v6418, %v6414
    %v7095 = vpack.c.b16 %v6419, %v6415
    %v7096 = vpack.c.b16 %v6420, %v6416
    %v7097 = vpack.c.b16 %v6421, %v6417
    %v7098 = vpack.c.b16 %v6426, %v6422
    %v7099 = vpack.c.b16 %v6427, %v6423
    %v7100 = vpack.c.b16 %v6428, %v6424
    %v7101 = vpack.c.b16 %v6429, %v6425
    %v7102 = vpack.c.b16 %v6434, %v6430
    %v7103 = vpack.c.b16 %v6435, %v6431
    %v7104 = vpack.c.b16 %v6436, %v6432
    %v7105 = vpack.c.b16 %v6437, %v6433
    %v7106 = vpack.c.b16 %v6442, %v6438
    %v7107 = vpack.c.b16 %v6443, %v6439
    %v7108 = vpack.c.b16 %v6444, %v6440
    %v7109 = vpack.c.b16 %v6445, %v6441
    %v7110 = vpack.c.b16 %v6450, %v6446
    %v7111 = vpack.c.b16 %v6451, %v6447
    %v7112 = vpack.c.b16 %v6452, %v6448
    %v7113 = vpack.c.b16 %v6453, %v6449
    %v7114 = vpack.c.b16 %v6458, %v6454
    %v7115 = vpack.c.b16 %v6459, %v6455
    %v7116 = vpack.c.b16 %v6460, %v6456
    %v7117 = vpack.c.b16 %v6461, %v6457
    %v7118 = vpack.c.b16 %v6466, %v6462
    %v7119 = vpack.c.b16 %v6467, %v6463
    %v7120 = vpack.c.b16 %v6468, %v6464
    %v7121 = vpack.c.b16 %v6469, %v6465
    %v7122 = vpack.c.b16 %v6474, %v6470
    %v7123 = vpack.c.b16 %v6475, %v6471
    %v7124 = vpack.c.b16 %v6476, %v6472
    %v7125 = vpack.c.b16 %v6477, %v6473
    %v7126 = vpack.c.b16 %v6482, %v6478
    %v7127 = vpack.c.b16 %v6483, %v6479
    %v7128 = vpack.c.b16 %v6484, %v6480
    %v7129 = vpack.c.b16 %v6485, %v6481
    %v7130 = vpack.c.b16 %v6490, %v6486
    %v7131 = vpack.c.b16 %v6491, %v6487
    %v7132 = vpack.c.b16 %v6492, %v6488
    %v7133 = vpack.c.b16 %v6493, %v6489
    %v7134 = vpack.c.b16 %v6498, %v6494
    %v7135 = vpack.c.b16 %v6499, %v6495
    %v7136 = vpack.c.b16 %v6500, %v6496
    %v7137 = vpack.c.b16 %v6501, %v6497
    %v7138 = vpack.c.b16 %v6506, %v6502
    %v7139 = vpack.c.b16 %v6507, %v6503
    %v7140 = vpack.c.b16 %v6508, %v6504
    %v7141 = vpack.c.b16 %v6509, %v6505
    %v7142 = vpack.c.b16 %v6514, %v6510
    %v7143 = vpack.c.b16 %v6515, %v6511
    %v7144 = vpack.c.b16 %v6516, %v6512
    %v7145 = vpack.c.b16 %v6517, %v6513
    %v7146 = vpack.c.b16 %v6522, %v6518
    %v7147 = vpack.c.b16 %v6523, %v6519
    %v7148 = vpack.c.b16 %v6524, %v6520
    %v7149 = vpack.c.b16 %v6525, %v6521
    %v7150 = vpack.c.b16 %v6530, %v6526
    %v7151 = vpack.c.b16 %v6531, %v6527
    %v7152 = vpack.c.b16 %v6532, %v6528
    %v7153 = vpack.c.b16 %v6533, %v6529
    %v7154 = vpack.c.b16 %v6538, %v6534
    %v7155 = vpack.c.b16 %v6539, %v6535
    %v7156 = vpack.c.b16 %v6540, %v6536
    %v7157 = vpack.c.b16 %v6541, %v6537
    %v7158 = vpack.c.b16 %v6546, %v6542
    %v7159 = vpack.c.b16 %v6547, %v6543
    %v7160 = vpack.c.b16 %v6548, %v6544
    %v7161 = vpack.c.b16 %v6549, %v6545
    %v7162 = vpack.c.b16 %v6554, %v6550
    %v7163 = vpack.c.b16 %v6555, %v6551
    %v7164 = vpack.c.b16 %v6556, %v6552
    %v7165 = vpack.c.b16 %v6557, %v6553
    %v7166 = vpack.c.b16 %v6562, %v6558
    %v7167 = vpack.c.b16 %v6563, %v6559
    %v7168 = vpack.c.b16 %v6564, %v6560
    %v7169 = vpack.c.b16 %v6565, %v6561
    %v7170 = vpack.c.b16 %v6570, %v6566
    %v7171 = vpack.c.b16 %v6571, %v6567
    %v7172 = vpack.c.b16 %v6572, %v6568
    %v7173 = vpack.c.b16 %v6573, %v6569
    %v7174 = vpack.c.b16 %v6578, %v6574
    %v7175 = vpack.c.b16 %v6579, %v6575
    %v7176 = vpack.c.b16 %v6580, %v6576
    %v7177 = vpack.c.b16 %v6581, %v6577
    %v7178 = vpack.c.b16 %v6586, %v6582
    %v7179 = vpack.c.b16 %v6587, %v6583
    %v7180 = vpack.c.b16 %v6588, %v6584
    %v7181 = vpack.c.b16 %v6589, %v6585
    %v7182 = vpack.c.b16 %v6594, %v6590
    %v7183 = vpack.c.b16 %v6595, %v6591
    %v7184 = vpack.c.b16 %v6596, %v6592
    %v7185 = vpack.c.b16 %v6597, %v6593
    %v7186 = vpack.c.b16 %v6602, %v6598
    %v7187 = vpack.c.b16 %v6603, %v6599
    %v7188 = vpack.c.b16 %v6604, %v6600
    %v7189 = vpack.c.b16 %v6605, %v6601
    %v7190 = vpack.c.b16 %v6610, %v6606
    %v7191 = vpack.c.b16 %v6611, %v6607
    %v7192 = vpack.c.b16 %v6612, %v6608
    %v7193 = vpack.c.b16 %v6613, %v6609
    %v7194 = vpack.c.b16 %v6618, %v6614
    %v7195 = vpack.c.b16 %v6619, %v6615
    %v7196 = vpack.c.b16 %v6620, %v6616
    %v7197 = vpack.c.b16 %v6621, %v6617
    %7774 = vmatpush.bf16.msra.mxu0 %v6650
    %7775 = vmatpush.bf16.msra.mxu0 %v6646
    %7776 = vmatpush.bf16.msra.mxu0 %v6642
    %7777 = vmatpush.bf16.msra.mxu0 %v6638
    %7778 = vmatpush.bf16.msra.mxu0 %v6634
    %7779 = vmatpush.bf16.msra.mxu0 %v6630
    %7780 = vmatpush.bf16.msra.mxu0 %v6626
    %7781 = vmatpush.bf16.msra.mxu0 %v6622
    %7782 = vmatmul.bf16.gmra.mxu0 %v4698
    %v7783 = vpop.f32.mrf.mxu0
    %v7784 = vadd.f32 %v4616, %v7783
    %v7785 = vpop.f32.mrf.mxu0
    %v7786 = vadd.f32 %v4616, %v7785
    %7787 = vmatmul.bf16.gmra.mxu0 %v4751
    %v7788 = vpop.f32.mrf.mxu0
    %v7789 = vadd.f32 %v4616, %v7788
    %v7790 = vpop.f32.mrf.mxu0
    %v7791 = vadd.f32 %v4616, %v7790
    %7792 = vmatmul.bf16.gmra.mxu0 %v4787
    %v7793 = vpop.f32.mrf.mxu0
    %v7794 = vadd.f32 %v4616, %v7793
    %v7795 = vpop.f32.mrf.mxu0
    %v7796 = vadd.f32 %v4616, %v7795
    %7797 = vmatmul.bf16.gmra.mxu0 %v4786
    %v7798 = vpop.f32.mrf.mxu0
    %v7799 = vadd.f32 %v4616, %v7798
    %v7800 = vpop.f32.mrf.mxu0
    %7801 = vdwg.mxu0
    %7802 = vmatpush.bf16.msra.mxu0 %v6682
    %7803 = vmatpush.bf16.msra.mxu0 %v6678
    %7804 = vmatpush.bf16.msra.mxu0 %v6674
    %7805 = vmatpush.bf16.msra.mxu0 %v6670
    %7806 = vmatpush.bf16.msra.mxu0 %v6666
    %7807 = vmatpush.bf16.msra.mxu0 %v6662
    %7808 = vmatpush.bf16.msra.mxu0 %v6658
    %7809 = vmatpush.bf16.msra.mxu0 %v6654
    %7810 = vmatmul.bf16.gmra.mxu0 %v4701
    %v7811 = vpop.f32.mrf.mxu0
    %v7812 = vadd.f32 %v7784, %v7811
    %v7813 = vpop.f32.mrf.mxu0
    %v7814 = vadd.f32 %v7786, %v7813
    %7815 = vmatmul.bf16.gmra.mxu0 %v4753
    %v7816 = vpop.f32.mrf.mxu0
    %v7817 = vadd.f32 %v7789, %v7816
    %v7818 = vpop.f32.mrf.mxu0
    %v7819 = vadd.f32 %v7791, %v7818
    %7820 = vmatmul.bf16.gmra.mxu0 %v4789
    %v7821 = vpop.f32.mrf.mxu0
    %v7822 = vadd.f32 %v7794, %v7821
    %v7823 = vpop.f32.mrf.mxu0
    %v7824 = vadd.f32 %v7796, %v7823
    %7825 = vmatmul.bf16.gmra.mxu0 %v4788
    %v7826 = vpop.f32.mrf.mxu0
    %v7827 = vadd.f32 %v7799, %v7826
    %v7828 = vpop.f32.mrf.mxu0
    %7829 = vdwg.mxu0
    %7830 = vmatpush.bf16.msra.mxu0 %v6714
    %7831 = vmatpush.bf16.msra.mxu0 %v6710
    %7832 = vmatpush.bf16.msra.mxu0 %v6706
    %7833 = vmatpush.bf16.msra.mxu0 %v6702
    %7834 = vmatpush.bf16.msra.mxu0 %v6698
    %7835 = vmatpush.bf16.msra.mxu0 %v6694
    %7836 = vmatpush.bf16.msra.mxu0 %v6690
    %7837 = vmatpush.bf16.msra.mxu0 %v6686
    %7838 = vmatmul.bf16.gmra.mxu0 %v4704
    %v7839 = vpop.f32.mrf.mxu0
    %v7840 = vadd.f32 %v7812, %v7839
    %v7841 = vpop.f32.mrf.mxu0
    %v7842 = vadd.f32 %v7814, %v7841
    %7843 = vmatmul.bf16.gmra.mxu0 %v4755
    %v7844 = vpop.f32.mrf.mxu0
    %v7845 = vadd.f32 %v7817, %v7844
    %v7846 = vpop.f32.mrf.mxu0
    %v7847 = vadd.f32 %v7819, %v7846
    %7848 = vmatmul.bf16.gmra.mxu0 %v4791
    %v7849 = vpop.f32.mrf.mxu0
    %v7850 = vadd.f32 %v7822, %v7849
    %v7851 = vpop.f32.mrf.mxu0
    %v7852 = vadd.f32 %v7824, %v7851
    %7853 = vmatmul.bf16.gmra.mxu0 %v4790
    %v7854 = vpop.f32.mrf.mxu0
    %v7855 = vadd.f32 %v7827, %v7854
    %v7856 = vpop.f32.mrf.mxu0
    %7857 = vdwg.mxu0
    %7858 = vmatpush.bf16.msra.mxu0 %v6746
    %7859 = vmatpush.bf16.msra.mxu0 %v6742
    %7860 = vmatpush.bf16.msra.mxu0 %v6738
    %7861 = vmatpush.bf16.msra.mxu0 %v6734
    %7862 = vmatpush.bf16.msra.mxu0 %v6730
    %7863 = vmatpush.bf16.msra.mxu0 %v6726
    %7864 = vmatpush.bf16.msra.mxu0 %v6722
    %7865 = vmatpush.bf16.msra.mxu0 %v6718
    %7866 = vmatmul.bf16.gmra.mxu0 %v4707
    %v7867 = vpop.f32.mrf.mxu0
    %v7868 = vadd.f32 %v7840, %v7867
    %v7869 = vpop.f32.mrf.mxu0
    %v7870 = vadd.f32 %v7842, %v7869
    %7871 = vmatmul.bf16.gmra.mxu0 %v4757
    %v7872 = vpop.f32.mrf.mxu0
    %v7873 = vadd.f32 %v7845, %v7872
    %v7874 = vpop.f32.mrf.mxu0
    %v7875 = vadd.f32 %v7847, %v7874
    %7876 = vmatmul.bf16.gmra.mxu0 %v4793
    %v7877 = vpop.f32.mrf.mxu0
    %v7878 = vadd.f32 %v7850, %v7877
    %v7879 = vpop.f32.mrf.mxu0
    %v7880 = vadd.f32 %v7852, %v7879
    %7881 = vmatmul.bf16.gmra.mxu0 %v4792
    %v7882 = vpop.f32.mrf.mxu0
    %v7883 = vadd.f32 %v7855, %v7882
    %v7884 = vpop.f32.mrf.mxu0
    %7885 = vdwg.mxu0
    %7886 = vmatpush.bf16.msra.mxu0 %v6778
    %7887 = vmatpush.bf16.msra.mxu0 %v6774
    %7888 = vmatpush.bf16.msra.mxu0 %v6770
    %7889 = vmatpush.bf16.msra.mxu0 %v6766
    %7890 = vmatpush.bf16.msra.mxu0 %v6762
    %7891 = vmatpush.bf16.msra.mxu0 %v6758
    %7892 = vmatpush.bf16.msra.mxu0 %v6754
    %7893 = vmatpush.bf16.msra.mxu0 %v6750
    %7894 = vmatmul.bf16.gmra.mxu0 %v4710
    %v7895 = vpop.f32.mrf.mxu0
    %v7896 = vadd.f32 %v7868, %v7895
    %v7897 = vpop.f32.mrf.mxu0
    %v7898 = vadd.f32 %v7870, %v7897
    %7899 = vmatmul.bf16.gmra.mxu0 %v4759
    %v7900 = vpop.f32.mrf.mxu0
    %v7901 = vadd.f32 %v7873, %v7900
    %v7902 = vpop.f32.mrf.mxu0
    %v7903 = vadd.f32 %v7875, %v7902
    %7904 = vmatmul.bf16.gmra.mxu0 %v4795
    %v7905 = vpop.f32.mrf.mxu0
    %v7906 = vadd.f32 %v7878, %v7905
    %v7907 = vpop.f32.mrf.mxu0
    %v7908 = vadd.f32 %v7880, %v7907
    %7909 = vmatmul.bf16.gmra.mxu0 %v4794
    %v7910 = vpop.f32.mrf.mxu0
    %v7911 = vadd.f32 %v7883, %v7910
    %v7912 = vpop.f32.mrf.mxu0
    %7913 = vdwg.mxu0
    %7914 = vmatpush.bf16.msra.mxu0 %v6810
    %7915 = vmatpush.bf16.msra.mxu0 %v6806
    %7916 = vmatpush.bf16.msra.mxu0 %v6802
    %7917 = vmatpush.bf16.msra.mxu0 %v6798
    %7918 = vmatpush.bf16.msra.mxu0 %v6794
    %7919 = vmatpush.bf16.msra.mxu0 %v6790
    %7920 = vmatpush.bf16.msra.mxu0 %v6786
    %7921 = vmatpush.bf16.msra.mxu0 %v6782
    %7922 = vmatmul.bf16.gmra.mxu0 %v4713
    %v7923 = vpop.f32.mrf.mxu0
    %v7924 = vadd.f32 %v7896, %v7923
    %v7925 = vpop.f32.mrf.mxu0
    %v7926 = vadd.f32 %v7898, %v7925
    %7927 = vmatmul.bf16.gmra.mxu0 %v4761
    %v7928 = vpop.f32.mrf.mxu0
    %v7929 = vadd.f32 %v7901, %v7928
    %v7930 = vpop.f32.mrf.mxu0
    %v7931 = vadd.f32 %v7903, %v7930
    %7932 = vmatmul.bf16.gmra.mxu0 %v4797
    %v7933 = vpop.f32.mrf.mxu0
    %v7934 = vadd.f32 %v7906, %v7933
    %v7935 = vpop.f32.mrf.mxu0
    %v7936 = vadd.f32 %v7908, %v7935
    %7937 = vmatmul.bf16.gmra.mxu0 %v4796
    %v7938 = vpop.f32.mrf.mxu0
    %v7939 = vadd.f32 %v7911, %v7938
    %v7940 = vpop.f32.mrf.mxu0
    %7941 = vdwg.mxu0
    %7942 = vmatpush.bf16.msra.mxu0 %v6842
    %7943 = vmatpush.bf16.msra.mxu0 %v6838
    %7944 = vmatpush.bf16.msra.mxu0 %v6834
    %7945 = vmatpush.bf16.msra.mxu0 %v6830
    %7946 = vmatpush.bf16.msra.mxu0 %v6826
    %7947 = vmatpush.bf16.msra.mxu0 %v6822
    %7948 = vmatpush.bf16.msra.mxu0 %v6818
    %7949 = vmatpush.bf16.msra.mxu0 %v6814
    %7950 = vmatmul.bf16.gmra.mxu0 %v4716
    %v7951 = vpop.f32.mrf.mxu0
    %v7952 = vadd.f32 %v7924, %v7951
    %v7953 = vpop.f32.mrf.mxu0
    %v7954 = vadd.f32 %v7926, %v7953
    %7955 = vmatmul.bf16.gmra.mxu0 %v4763
    %v7956 = vpop.f32.mrf.mxu0
    %v7957 = vadd.f32 %v7929, %v7956
    %v7958 = vpop.f32.mrf.mxu0
    %v7959 = vadd.f32 %v7931, %v7958
    %7960 = vmatmul.bf16.gmra.mxu0 %v4799
    %v7961 = vpop.f32.mrf.mxu0
    %v7962 = vadd.f32 %v7934, %v7961
    %v7963 = vpop.f32.mrf.mxu0
    %v7964 = vadd.f32 %v7936, %v7963
    %7965 = vmatmul.bf16.gmra.mxu0 %v4798
    %v7966 = vpop.f32.mrf.mxu0
    %v7967 = vadd.f32 %v7939, %v7966
    %v7968 = vpop.f32.mrf.mxu0
    %7969 = vdwg.mxu0
    %7970 = vmatpush.bf16.msra.mxu0 %v6874
    %7971 = vmatpush.bf16.msra.mxu0 %v6870
    %7972 = vmatpush.bf16.msra.mxu0 %v6866
    %7973 = vmatpush.bf16.msra.mxu0 %v6862
    %7974 = vmatpush.bf16.msra.mxu0 %v6858
    %7975 = vmatpush.bf16.msra.mxu0 %v6854
    %7976 = vmatpush.bf16.msra.mxu0 %v6850
    %7977 = vmatpush.bf16.msra.mxu0 %v6846
    %7978 = vmatmul.bf16.gmra.mxu0 %v4719
    %v7979 = vpop.f32.mrf.mxu0
    %v7980 = vadd.f32 %v7952, %v7979
    %v7981 = vpop.f32.mrf.mxu0
    %v7982 = vadd.f32 %v7954, %v7981
    %7983 = vmatmul.bf16.gmra.mxu0 %v4765
    %v7984 = vpop.f32.mrf.mxu0
    %v7985 = vadd.f32 %v7957, %v7984
    %v7986 = vpop.f32.mrf.mxu0
    %v7987 = vadd.f32 %v7959, %v7986
    %7988 = vmatmul.bf16.gmra.mxu0 %v4801
    %v7989 = vpop.f32.mrf.mxu0
    %v7990 = vadd.f32 %v7962, %v7989
    %v7991 = vpop.f32.mrf.mxu0
    %v7992 = vadd.f32 %v7964, %v7991
    %7993 = vmatmul.bf16.gmra.mxu0 %v4800
    %v7994 = vpop.f32.mrf.mxu0
    %v7995 = vadd.f32 %v7967, %v7994
    %v7996 = vpop.f32.mrf.mxu0
    %7997 = vdwg.mxu0
    %7998 = vmatpush.bf16.msra.mxu0 %v6906
    %7999 = vmatpush.bf16.msra.mxu0 %v6902
    %8000 = vmatpush.bf16.msra.mxu0 %v6898
    %8001 = vmatpush.bf16.msra.mxu0 %v6894
    %8002 = vmatpush.bf16.msra.mxu0 %v6890
    %8003 = vmatpush.bf16.msra.mxu0 %v6886
    %8004 = vmatpush.bf16.msra.mxu0 %v6882
    %8005 = vmatpush.bf16.msra.mxu0 %v6878
    %8006 = vmatmul.bf16.gmra.mxu0 %v4722
    %v8007 = vpop.f32.mrf.mxu0
    %v8008 = vadd.f32 %v7980, %v8007
    %v8009 = vpop.f32.mrf.mxu0
    %v8010 = vadd.f32 %v7982, %v8009
    %8011 = vmatmul.bf16.gmra.mxu0 %v4767
    %v8012 = vpop.f32.mrf.mxu0
    %v8013 = vadd.f32 %v7985, %v8012
    %v8014 = vpop.f32.mrf.mxu0
    %v8015 = vadd.f32 %v7987, %v8014
    %8016 = vmatmul.bf16.gmra.mxu0 %v4803
    %v8017 = vpop.f32.mrf.mxu0
    %v8018 = vadd.f32 %v7990, %v8017
    %v8019 = vpop.f32.mrf.mxu0
    %v8020 = vadd.f32 %v7992, %v8019
    %8021 = vmatmul.bf16.gmra.mxu0 %v4802
    %v8022 = vpop.f32.mrf.mxu0
    %v8023 = vadd.f32 %v7995, %v8022
    %v8024 = vpop.f32.mrf.mxu0
    %8025 = vdwg.mxu0
    %8026 = vmatpush.bf16.msra.mxu0 %v6938
    %8027 = vmatpush.bf16.msra.mxu0 %v6934
    %8028 = vmatpush.bf16.msra.mxu0 %v6930
    %8029 = vmatpush.bf16.msra.mxu0 %v6926
    %8030 = vmatpush.bf16.msra.mxu0 %v6922
    %8031 = vmatpush.bf16.msra.mxu0 %v6918
    %8032 = vmatpush.bf16.msra.mxu0 %v6914
    %8033 = vmatpush.bf16.msra.mxu0 %v6910
    %8034 = vmatmul.bf16.gmra.mxu0 %v4725
    %v8035 = vpop.f32.mrf.mxu0
    %v8036 = vadd.f32 %v8008, %v8035
    %v8037 = vpop.f32.mrf.mxu0
    %v8038 = vadd.f32 %v8010, %v8037
    %8039 = vmatmul.bf16.gmra.mxu0 %v4769
    %v8040 = vpop.f32.mrf.mxu0
    %v8041 = vadd.f32 %v8013, %v8040
    %v8042 = vpop.f32.mrf.mxu0
    %v8043 = vadd.f32 %v8015, %v8042
    %8044 = vmatmul.bf16.gmra.mxu0 %v4805
    %v8045 = vpop.f32.mrf.mxu0
    %v8046 = vadd.f32 %v8018, %v8045
    %v8047 = vpop.f32.mrf.mxu0
    %v8048 = vadd.f32 %v8020, %v8047
    %8049 = vmatmul.bf16.gmra.mxu0 %v4804
    %v8050 = vpop.f32.mrf.mxu0
    %v8051 = vadd.f32 %v8023, %v8050
    %v8052 = vpop.f32.mrf.mxu0
    %8053 = vdwg.mxu0
    %8054 = vmatpush.bf16.msra.mxu0 %v6970
    %8055 = vmatpush.bf16.msra.mxu0 %v6966
    %8056 = vmatpush.bf16.msra.mxu0 %v6962
    %8057 = vmatpush.bf16.msra.mxu0 %v6958
    %8058 = vmatpush.bf16.msra.mxu0 %v6954
    %8059 = vmatpush.bf16.msra.mxu0 %v6950
    %8060 = vmatpush.bf16.msra.mxu0 %v6946
    %8061 = vmatpush.bf16.msra.mxu0 %v6942
    %8062 = vmatmul.bf16.gmra.mxu0 %v4728
    %v8063 = vpop.f32.mrf.mxu0
    %v8064 = vadd.f32 %v8036, %v8063
    %v8065 = vpop.f32.mrf.mxu0
    %v8066 = vadd.f32 %v8038, %v8065
    %8067 = vmatmul.bf16.gmra.mxu0 %v4771
    %v8068 = vpop.f32.mrf.mxu0
    %v8069 = vadd.f32 %v8041, %v8068
    %v8070 = vpop.f32.mrf.mxu0
    %v8071 = vadd.f32 %v8043, %v8070
    %8072 = vmatmul.bf16.gmra.mxu0 %v4807
    %v8073 = vpop.f32.mrf.mxu0
    %v8074 = vadd.f32 %v8046, %v8073
    %v8075 = vpop.f32.mrf.mxu0
    %v8076 = vadd.f32 %v8048, %v8075
    %8077 = vmatmul.bf16.gmra.mxu0 %v4806
    %v8078 = vpop.f32.mrf.mxu0
    %v8079 = vadd.f32 %v8051, %v8078
    %v8080 = vpop.f32.mrf.mxu0
    %8081 = vdwg.mxu0
    %8082 = vmatpush.bf16.msra.mxu0 %v7002
    %8083 = vmatpush.bf16.msra.mxu0 %v6998
    %8084 = vmatpush.bf16.msra.mxu0 %v6994
    %8085 = vmatpush.bf16.msra.mxu0 %v6990
    %8086 = vmatpush.bf16.msra.mxu0 %v6986
    %8087 = vmatpush.bf16.msra.mxu0 %v6982
    %8088 = vmatpush.bf16.msra.mxu0 %v6978
    %8089 = vmatpush.bf16.msra.mxu0 %v6974
    %8090 = vmatmul.bf16.gmra.mxu0 %v4731
    %v8091 = vpop.f32.mrf.mxu0
    %v8092 = vadd.f32 %v8064, %v8091
    %v8093 = vpop.f32.mrf.mxu0
    %v8094 = vadd.f32 %v8066, %v8093
    %8095 = vmatmul.bf16.gmra.mxu0 %v4773
    %v8096 = vpop.f32.mrf.mxu0
    %v8097 = vadd.f32 %v8069, %v8096
    %v8098 = vpop.f32.mrf.mxu0
    %v8099 = vadd.f32 %v8071, %v8098
    %8100 = vmatmul.bf16.gmra.mxu0 %v4809
    %v8101 = vpop.f32.mrf.mxu0
    %v8102 = vadd.f32 %v8074, %v8101
    %v8103 = vpop.f32.mrf.mxu0
    %v8104 = vadd.f32 %v8076, %v8103
    %8105 = vmatmul.bf16.gmra.mxu0 %v4808
    %v8106 = vpop.f32.mrf.mxu0
    %v8107 = vadd.f32 %v8079, %v8106
    %v8108 = vpop.f32.mrf.mxu0
    %8109 = vdwg.mxu0
    %8110 = vmatpush.bf16.msra.mxu0 %v7034
    %8111 = vmatpush.bf16.msra.mxu0 %v7030
    %8112 = vmatpush.bf16.msra.mxu0 %v7026
    %8113 = vmatpush.bf16.msra.mxu0 %v7022
    %8114 = vmatpush.bf16.msra.mxu0 %v7018
    %8115 = vmatpush.bf16.msra.mxu0 %v7014
    %8116 = vmatpush.bf16.msra.mxu0 %v7010
    %8117 = vmatpush.bf16.msra.mxu0 %v7006
    %8118 = vmatmul.bf16.gmra.mxu0 %v4734
    %v8119 = vpop.f32.mrf.mxu0
    %v8120 = vadd.f32 %v8092, %v8119
    %v8121 = vpop.f32.mrf.mxu0
    %v8122 = vadd.f32 %v8094, %v8121
    %8123 = vmatmul.bf16.gmra.mxu0 %v4775
    %v8124 = vpop.f32.mrf.mxu0
    %v8125 = vadd.f32 %v8097, %v8124
    %v8126 = vpop.f32.mrf.mxu0
    %v8127 = vadd.f32 %v8099, %v8126
    %8128 = vmatmul.bf16.gmra.mxu0 %v4811
    %v8129 = vpop.f32.mrf.mxu0
    %v8130 = vadd.f32 %v8102, %v8129
    %v8131 = vpop.f32.mrf.mxu0
    %v8132 = vadd.f32 %v8104, %v8131
    %8133 = vmatmul.bf16.gmra.mxu0 %v4810
    %v8134 = vpop.f32.mrf.mxu0
    %v8135 = vadd.f32 %v8107, %v8134
    %v8136 = vpop.f32.mrf.mxu0
    %8137 = vdwg.mxu0
    %8138 = vmatpush.bf16.msra.mxu0 %v7066
    %8139 = vmatpush.bf16.msra.mxu0 %v7062
    %8140 = vmatpush.bf16.msra.mxu0 %v7058
    %8141 = vmatpush.bf16.msra.mxu0 %v7054
    %8142 = vmatpush.bf16.msra.mxu0 %v7050
    %8143 = vmatpush.bf16.msra.mxu0 %v7046
    %8144 = vmatpush.bf16.msra.mxu0 %v7042
    %8145 = vmatpush.bf16.msra.mxu0 %v7038
    %8146 = vmatmul.bf16.gmra.mxu0 %v4737
    %v8147 = vpop.f32.mrf.mxu0
    %v8148 = vadd.f32 %v8120, %v8147
    %v8149 = vpop.f32.mrf.mxu0
    %v8150 = vadd.f32 %v8122, %v8149
    %8151 = vmatmul.bf16.gmra.mxu0 %v4777
    %v8152 = vpop.f32.mrf.mxu0
    %v8153 = vadd.f32 %v8125, %v8152
    %v8154 = vpop.f32.mrf.mxu0
    %v8155 = vadd.f32 %v8127, %v8154
    %8156 = vmatmul.bf16.gmra.mxu0 %v4813
    %v8157 = vpop.f32.mrf.mxu0
    %v8158 = vadd.f32 %v8130, %v8157
    %v8159 = vpop.f32.mrf.mxu0
    %v8160 = vadd.f32 %v8132, %v8159
    %8161 = vmatmul.bf16.gmra.mxu0 %v4812
    %v8162 = vpop.f32.mrf.mxu0
    %v8163 = vadd.f32 %v8135, %v8162
    %v8164 = vpop.f32.mrf.mxu0
    %8165 = vdwg.mxu0
    %8166 = vmatpush.bf16.msra.mxu0 %v7098
    %8167 = vmatpush.bf16.msra.mxu0 %v7094
    %8168 = vmatpush.bf16.msra.mxu0 %v7090
    %8169 = vmatpush.bf16.msra.mxu0 %v7086
    %8170 = vmatpush.bf16.msra.mxu0 %v7082
    %8171 = vmatpush.bf16.msra.mxu0 %v7078
    %8172 = vmatpush.bf16.msra.mxu0 %v7074
    %8173 = vmatpush.bf16.msra.mxu0 %v7070
    %8174 = vmatmul.bf16.gmra.mxu0 %v4740
    %v8175 = vpop.f32.mrf.mxu0
    %v8176 = vadd.f32 %v8148, %v8175
    %v8177 = vpop.f32.mrf.mxu0
    %v8178 = vadd.f32 %v8150, %v8177
    %8179 = vmatmul.bf16.gmra.mxu0 %v4779
    %v8180 = vpop.f32.mrf.mxu0
    %v8181 = vadd.f32 %v8153, %v8180
    %v8182 = vpop.f32.mrf.mxu0
    %v8183 = vadd.f32 %v8155, %v8182
    %8184 = vmatmul.bf16.gmra.mxu0 %v4815
    %v8185 = vpop.f32.mrf.mxu0
    %v8186 = vadd.f32 %v8158, %v8185
    %v8187 = vpop.f32.mrf.mxu0
    %v8188 = vadd.f32 %v8160, %v8187
    %8189 = vmatmul.bf16.gmra.mxu0 %v4814
    %v8190 = vpop.f32.mrf.mxu0
    %v8191 = vadd.f32 %v8163, %v8190
    %v8192 = vpop.f32.mrf.mxu0
    %8193 = vdwg.mxu0
    %8194 = vmatpush.bf16.msra.mxu0 %v7130
    %8195 = vmatpush.bf16.msra.mxu0 %v7126
    %8196 = vmatpush.bf16.msra.mxu0 %v7122
    %8197 = vmatpush.bf16.msra.mxu0 %v7118
    %8198 = vmatpush.bf16.msra.mxu0 %v7114
    %8199 = vmatpush.bf16.msra.mxu0 %v7110
    %8200 = vmatpush.bf16.msra.mxu0 %v7106
    %8201 = vmatpush.bf16.msra.mxu0 %v7102
    %8202 = vmatmul.bf16.gmra.mxu0 %v4743
    %v8203 = vpop.f32.mrf.mxu0
    %v8204 = vadd.f32 %v8176, %v8203
    %v8205 = vpop.f32.mrf.mxu0
    %v8206 = vadd.f32 %v8178, %v8205
    %8207 = vmatmul.bf16.gmra.mxu0 %v4781
    %v8208 = vpop.f32.mrf.mxu0
    %v8209 = vadd.f32 %v8181, %v8208
    %v8210 = vpop.f32.mrf.mxu0
    %v8211 = vadd.f32 %v8183, %v8210
    %8212 = vmatmul.bf16.gmra.mxu0 %v4817
    %v8213 = vpop.f32.mrf.mxu0
    %v8214 = vadd.f32 %v8186, %v8213
    %v8215 = vpop.f32.mrf.mxu0
    %v8216 = vadd.f32 %v8188, %v8215
    %8217 = vmatmul.bf16.gmra.mxu0 %v4816
    %v8218 = vpop.f32.mrf.mxu0
    %v8219 = vadd.f32 %v8191, %v8218
    %v8220 = vpop.f32.mrf.mxu0
    %8221 = vdwg.mxu0
    %8222 = vmatpush.bf16.msra.mxu0 %v7162
    %8223 = vmatpush.bf16.msra.mxu0 %v7158
    %8224 = vmatpush.bf16.msra.mxu0 %v7154
    %8225 = vmatpush.bf16.msra.mxu0 %v7150
    %8226 = vmatpush.bf16.msra.mxu0 %v7146
    %8227 = vmatpush.bf16.msra.mxu0 %v7142
    %8228 = vmatpush.bf16.msra.mxu0 %v7138
    %8229 = vmatpush.bf16.msra.mxu0 %v7134
    %8230 = vmatmul.bf16.gmra.mxu0 %v4746
    %v8231 = vpop.f32.mrf.mxu0
    %v8232 = vadd.f32 %v8204, %v8231
    %v8233 = vpop.f32.mrf.mxu0
    %v8234 = vadd.f32 %v8206, %v8233
    %8235 = vmatmul.bf16.gmra.mxu0 %v4783
    %v8236 = vpop.f32.mrf.mxu0
    %v8237 = vadd.f32 %v8209, %v8236
    %v8238 = vpop.f32.mrf.mxu0
    %v8239 = vadd.f32 %v8211, %v8238
    %8240 = vmatmul.bf16.gmra.mxu0 %v4819
    %v8241 = vpop.f32.mrf.mxu0
    %v8242 = vadd.f32 %v8214, %v8241
    %v8243 = vpop.f32.mrf.mxu0
    %v8244 = vadd.f32 %v8216, %v8243
    %8245 = vmatmul.bf16.gmra.mxu0 %v4818
    %v8246 = vpop.f32.mrf.mxu0
    %v8247 = vadd.f32 %v8219, %v8246
    %v8248 = vpop.f32.mrf.mxu0
    %8249 = vdwg.mxu0
    %8250 = vmatpush.bf16.msra.mxu0 %v7194
    %8251 = vmatpush.bf16.msra.mxu0 %v7190
    %8252 = vmatpush.bf16.msra.mxu0 %v7186
    %8253 = vmatpush.bf16.msra.mxu0 %v7182
    %8254 = vmatpush.bf16.msra.mxu0 %v7178
    %8255 = vmatpush.bf16.msra.mxu0 %v7174
    %8256 = vmatpush.bf16.msra.mxu0 %v7170
    %8257 = vmatpush.bf16.msra.mxu0 %v7166
    %8258 = vmatmul.bf16.gmra.mxu0 %v4749
    %v8259 = vpop.f32.mrf.mxu0
    %v8260 = vadd.f32 %v8232, %v8259
    %v8261 = vpop.f32.mrf.mxu0
    %v8262 = vadd.f32 %v8234, %v8261
    %8263 = vmatmul.bf16.gmra.mxu0 %v4785
    %v8264 = vpop.f32.mrf.mxu0
    %v8265 = vadd.f32 %v8237, %v8264
    %v8266 = vpop.f32.mrf.mxu0
    %v8267 = vadd.f32 %v8239, %v8266
    %8268 = vmatmul.bf16.gmra.mxu0 %v4821
    %v8269 = vpop.f32.mrf.mxu0
    %v8270 = vadd.f32 %v8242, %v8269
    %v8271 = vpop.f32.mrf.mxu0
    %v8272 = vadd.f32 %v8244, %v8271
    %8273 = vmatmul.bf16.gmra.mxu0 %v4820
    %v8274 = vpop.f32.mrf.mxu0
    %v8275 = vadd.f32 %v8247, %v8274
    %v8276 = vpop.f32.mrf.mxu0
    %8277 = vdwg.mxu0
    %8278 = vmatpush.bf16.msra.mxu0 %v6651
    %8279 = vmatpush.bf16.msra.mxu0 %v6647
    %8280 = vmatpush.bf16.msra.mxu0 %v6643
    %8281 = vmatpush.bf16.msra.mxu0 %v6639
    %8282 = vmatpush.bf16.msra.mxu0 %v6635
    %8283 = vmatpush.bf16.msra.mxu0 %v6631
    %8284 = vmatpush.bf16.msra.mxu0 %v6627
    %8285 = vmatpush.bf16.msra.mxu0 %v6623
    %8286 = vmatmul.bf16.gmra.mxu0 %v4698
    %v8287 = vpop.f32.mrf.mxu0
    %v8288 = vadd.f32 %v4617, %v8287
    %v8289 = vpop.f32.mrf.mxu0
    %v8290 = vadd.f32 %v4617, %v8289
    %8291 = vmatmul.bf16.gmra.mxu0 %v4751
    %v8292 = vpop.f32.mrf.mxu0
    %v8293 = vadd.f32 %v4617, %v8292
    %v8294 = vpop.f32.mrf.mxu0
    %v8295 = vadd.f32 %v4617, %v8294
    %8296 = vmatmul.bf16.gmra.mxu0 %v4787
    %v8297 = vpop.f32.mrf.mxu0
    %v8298 = vadd.f32 %v4617, %v8297
    %v8299 = vpop.f32.mrf.mxu0
    %v8300 = vadd.f32 %v4617, %v8299
    %8301 = vmatmul.bf16.gmra.mxu0 %v4786
    %v8302 = vpop.f32.mrf.mxu0
    %v8303 = vadd.f32 %v4617, %v8302
    %v8304 = vpop.f32.mrf.mxu0
    %8305 = vdwg.mxu0
    %8306 = vmatpush.bf16.msra.mxu0 %v6683
    %8307 = vmatpush.bf16.msra.mxu0 %v6679
    %8308 = vmatpush.bf16.msra.mxu0 %v6675
    %8309 = vmatpush.bf16.msra.mxu0 %v6671
    %8310 = vmatpush.bf16.msra.mxu0 %v6667
    %8311 = vmatpush.bf16.msra.mxu0 %v6663
    %8312 = vmatpush.bf16.msra.mxu0 %v6659
    %8313 = vmatpush.bf16.msra.mxu0 %v6655
    %8314 = vmatmul.bf16.gmra.mxu0 %v4701
    %v8315 = vpop.f32.mrf.mxu0
    %v8316 = vadd.f32 %v8288, %v8315
    %v8317 = vpop.f32.mrf.mxu0
    %v8318 = vadd.f32 %v8290, %v8317
    %8319 = vmatmul.bf16.gmra.mxu0 %v4753
    %v8320 = vpop.f32.mrf.mxu0
    %v8321 = vadd.f32 %v8293, %v8320
    %v8322 = vpop.f32.mrf.mxu0
    %v8323 = vadd.f32 %v8295, %v8322
    %8324 = vmatmul.bf16.gmra.mxu0 %v4789
    %v8325 = vpop.f32.mrf.mxu0
    %v8326 = vadd.f32 %v8298, %v8325
    %v8327 = vpop.f32.mrf.mxu0
    %v8328 = vadd.f32 %v8300, %v8327
    %8329 = vmatmul.bf16.gmra.mxu0 %v4788
    %v8330 = vpop.f32.mrf.mxu0
    %v8331 = vadd.f32 %v8303, %v8330
    %v8332 = vpop.f32.mrf.mxu0
    %8333 = vdwg.mxu0
    %8334 = vmatpush.bf16.msra.mxu0 %v6715
    %8335 = vmatpush.bf16.msra.mxu0 %v6711
    %8336 = vmatpush.bf16.msra.mxu0 %v6707
    %8337 = vmatpush.bf16.msra.mxu0 %v6703
    %8338 = vmatpush.bf16.msra.mxu0 %v6699
    %8339 = vmatpush.bf16.msra.mxu0 %v6695
    %8340 = vmatpush.bf16.msra.mxu0 %v6691
    %8341 = vmatpush.bf16.msra.mxu0 %v6687
    %8342 = vmatmul.bf16.gmra.mxu0 %v4704
    %v8343 = vpop.f32.mrf.mxu0
    %v8344 = vadd.f32 %v8316, %v8343
    %v8345 = vpop.f32.mrf.mxu0
    %v8346 = vadd.f32 %v8318, %v8345
    %8347 = vmatmul.bf16.gmra.mxu0 %v4755
    %v8348 = vpop.f32.mrf.mxu0
    %v8349 = vadd.f32 %v8321, %v8348
    %v8350 = vpop.f32.mrf.mxu0
    %v8351 = vadd.f32 %v8323, %v8350
    %8352 = vmatmul.bf16.gmra.mxu0 %v4791
    %v8353 = vpop.f32.mrf.mxu0
    %v8354 = vadd.f32 %v8326, %v8353
    %v8355 = vpop.f32.mrf.mxu0
    %v8356 = vadd.f32 %v8328, %v8355
    %8357 = vmatmul.bf16.gmra.mxu0 %v4790
    %v8358 = vpop.f32.mrf.mxu0
    %v8359 = vadd.f32 %v8331, %v8358
    %v8360 = vpop.f32.mrf.mxu0
    %8361 = vdwg.mxu0
    %8362 = vmatpush.bf16.msra.mxu0 %v6747
    %8363 = vmatpush.bf16.msra.mxu0 %v6743
    %8364 = vmatpush.bf16.msra.mxu0 %v6739
    %8365 = vmatpush.bf16.msra.mxu0 %v6735
    %8366 = vmatpush.bf16.msra.mxu0 %v6731
    %8367 = vmatpush.bf16.msra.mxu0 %v6727
    %8368 = vmatpush.bf16.msra.mxu0 %v6723
    %8369 = vmatpush.bf16.msra.mxu0 %v6719
    %8370 = vmatmul.bf16.gmra.mxu0 %v4707
    %v8371 = vpop.f32.mrf.mxu0
    %v8372 = vadd.f32 %v8344, %v8371
    %v8373 = vpop.f32.mrf.mxu0
    %v8374 = vadd.f32 %v8346, %v8373
    %8375 = vmatmul.bf16.gmra.mxu0 %v4757
    %v8376 = vpop.f32.mrf.mxu0
    %v8377 = vadd.f32 %v8349, %v8376
    %v8378 = vpop.f32.mrf.mxu0
    %v8379 = vadd.f32 %v8351, %v8378
    %8380 = vmatmul.bf16.gmra.mxu0 %v4793
    %v8381 = vpop.f32.mrf.mxu0
    %v8382 = vadd.f32 %v8354, %v8381
    %v8383 = vpop.f32.mrf.mxu0
    %v8384 = vadd.f32 %v8356, %v8383
    %8385 = vmatmul.bf16.gmra.mxu0 %v4792
    %v8386 = vpop.f32.mrf.mxu0
    %v8387 = vadd.f32 %v8359, %v8386
    %v8388 = vpop.f32.mrf.mxu0
    %8389 = vdwg.mxu0
    %8390 = vmatpush.bf16.msra.mxu0 %v6779
    %8391 = vmatpush.bf16.msra.mxu0 %v6775
    %8392 = vmatpush.bf16.msra.mxu0 %v6771
    %8393 = vmatpush.bf16.msra.mxu0 %v6767
    %8394 = vmatpush.bf16.msra.mxu0 %v6763
    %8395 = vmatpush.bf16.msra.mxu0 %v6759
    %8396 = vmatpush.bf16.msra.mxu0 %v6755
    %8397 = vmatpush.bf16.msra.mxu0 %v6751
    %8398 = vmatmul.bf16.gmra.mxu0 %v4710
    %v8399 = vpop.f32.mrf.mxu0
    %v8400 = vadd.f32 %v8372, %v8399
    %v8401 = vpop.f32.mrf.mxu0
    %v8402 = vadd.f32 %v8374, %v8401
    %8403 = vmatmul.bf16.gmra.mxu0 %v4759
    %v8404 = vpop.f32.mrf.mxu0
    %v8405 = vadd.f32 %v8377, %v8404
    %v8406 = vpop.f32.mrf.mxu0
    %v8407 = vadd.f32 %v8379, %v8406
    %8408 = vmatmul.bf16.gmra.mxu0 %v4795
    %v8409 = vpop.f32.mrf.mxu0
    %v8410 = vadd.f32 %v8382, %v8409
    %v8411 = vpop.f32.mrf.mxu0
    %v8412 = vadd.f32 %v8384, %v8411
    %8413 = vmatmul.bf16.gmra.mxu0 %v4794
    %v8414 = vpop.f32.mrf.mxu0
    %v8415 = vadd.f32 %v8387, %v8414
    %v8416 = vpop.f32.mrf.mxu0
    %8417 = vdwg.mxu0
    %8418 = vmatpush.bf16.msra.mxu0 %v6811
    %8419 = vmatpush.bf16.msra.mxu0 %v6807
    %8420 = vmatpush.bf16.msra.mxu0 %v6803
    %8421 = vmatpush.bf16.msra.mxu0 %v6799
    %8422 = vmatpush.bf16.msra.mxu0 %v6795
    %8423 = vmatpush.bf16.msra.mxu0 %v6791
    %8424 = vmatpush.bf16.msra.mxu0 %v6787
    %8425 = vmatpush.bf16.msra.mxu0 %v6783
    %8426 = vmatmul.bf16.gmra.mxu0 %v4713
    %v8427 = vpop.f32.mrf.mxu0
    %v8428 = vadd.f32 %v8400, %v8427
    %v8429 = vpop.f32.mrf.mxu0
    %v8430 = vadd.f32 %v8402, %v8429
    %8431 = vmatmul.bf16.gmra.mxu0 %v4761
    %v8432 = vpop.f32.mrf.mxu0
    %v8433 = vadd.f32 %v8405, %v8432
    %v8434 = vpop.f32.mrf.mxu0
    %v8435 = vadd.f32 %v8407, %v8434
    %8436 = vmatmul.bf16.gmra.mxu0 %v4797
    %v8437 = vpop.f32.mrf.mxu0
    %v8438 = vadd.f32 %v8410, %v8437
    %v8439 = vpop.f32.mrf.mxu0
    %v8440 = vadd.f32 %v8412, %v8439
    %8441 = vmatmul.bf16.gmra.mxu0 %v4796
    %v8442 = vpop.f32.mrf.mxu0
    %v8443 = vadd.f32 %v8415, %v8442
    %v8444 = vpop.f32.mrf.mxu0
    %8445 = vdwg.mxu0
    %8446 = vmatpush.bf16.msra.mxu0 %v6843
    %8447 = vmatpush.bf16.msra.mxu0 %v6839
    %8448 = vmatpush.bf16.msra.mxu0 %v6835
    %8449 = vmatpush.bf16.msra.mxu0 %v6831
    %8450 = vmatpush.bf16.msra.mxu0 %v6827
    %8451 = vmatpush.bf16.msra.mxu0 %v6823
    %8452 = vmatpush.bf16.msra.mxu0 %v6819
    %8453 = vmatpush.bf16.msra.mxu0 %v6815
    %8454 = vmatmul.bf16.gmra.mxu0 %v4716
    %v8455 = vpop.f32.mrf.mxu0
    %v8456 = vadd.f32 %v8428, %v8455
    %v8457 = vpop.f32.mrf.mxu0
    %v8458 = vadd.f32 %v8430, %v8457
    %8459 = vmatmul.bf16.gmra.mxu0 %v4763
    %v8460 = vpop.f32.mrf.mxu0
    %v8461 = vadd.f32 %v8433, %v8460
    %v8462 = vpop.f32.mrf.mxu0
    %v8463 = vadd.f32 %v8435, %v8462
    %8464 = vmatmul.bf16.gmra.mxu0 %v4799
    %v8465 = vpop.f32.mrf.mxu0
    %v8466 = vadd.f32 %v8438, %v8465
    %v8467 = vpop.f32.mrf.mxu0
    %v8468 = vadd.f32 %v8440, %v8467
    %8469 = vmatmul.bf16.gmra.mxu0 %v4798
    %v8470 = vpop.f32.mrf.mxu0
    %v8471 = vadd.f32 %v8443, %v8470
    %v8472 = vpop.f32.mrf.mxu0
    %8473 = vdwg.mxu0
    %8474 = vmatpush.bf16.msra.mxu0 %v6875
    %8475 = vmatpush.bf16.msra.mxu0 %v6871
    %8476 = vmatpush.bf16.msra.mxu0 %v6867
    %8477 = vmatpush.bf16.msra.mxu0 %v6863
    %8478 = vmatpush.bf16.msra.mxu0 %v6859
    %8479 = vmatpush.bf16.msra.mxu0 %v6855
    %8480 = vmatpush.bf16.msra.mxu0 %v6851
    %8481 = vmatpush.bf16.msra.mxu0 %v6847
    %8482 = vmatmul.bf16.gmra.mxu0 %v4719
    %v8483 = vpop.f32.mrf.mxu0
    %v8484 = vadd.f32 %v8456, %v8483
    %v8485 = vpop.f32.mrf.mxu0
    %v8486 = vadd.f32 %v8458, %v8485
    %8487 = vmatmul.bf16.gmra.mxu0 %v4765
    %v8488 = vpop.f32.mrf.mxu0
    %v8489 = vadd.f32 %v8461, %v8488
    %v8490 = vpop.f32.mrf.mxu0
    %v8491 = vadd.f32 %v8463, %v8490
    %8492 = vmatmul.bf16.gmra.mxu0 %v4801
    %v8493 = vpop.f32.mrf.mxu0
    %v8494 = vadd.f32 %v8466, %v8493
    %v8495 = vpop.f32.mrf.mxu0
    %v8496 = vadd.f32 %v8468, %v8495
    %8497 = vmatmul.bf16.gmra.mxu0 %v4800
    %v8498 = vpop.f32.mrf.mxu0
    %v8499 = vadd.f32 %v8471, %v8498
    %v8500 = vpop.f32.mrf.mxu0
    %8501 = vdwg.mxu0
    %8502 = vmatpush.bf16.msra.mxu0 %v6907
    %8503 = vmatpush.bf16.msra.mxu0 %v6903
    %8504 = vmatpush.bf16.msra.mxu0 %v6899
    %8505 = vmatpush.bf16.msra.mxu0 %v6895
    %8506 = vmatpush.bf16.msra.mxu0 %v6891
    %8507 = vmatpush.bf16.msra.mxu0 %v6887
    %8508 = vmatpush.bf16.msra.mxu0 %v6883
    %8509 = vmatpush.bf16.msra.mxu0 %v6879
    %8510 = vmatmul.bf16.gmra.mxu0 %v4722
    %v8511 = vpop.f32.mrf.mxu0
    %v8512 = vadd.f32 %v8484, %v8511
    %v8513 = vpop.f32.mrf.mxu0
    %v8514 = vadd.f32 %v8486, %v8513
    %8515 = vmatmul.bf16.gmra.mxu0 %v4767
    %v8516 = vpop.f32.mrf.mxu0
    %v8517 = vadd.f32 %v8489, %v8516
    %v8518 = vpop.f32.mrf.mxu0
    %v8519 = vadd.f32 %v8491, %v8518
    %8520 = vmatmul.bf16.gmra.mxu0 %v4803
    %v8521 = vpop.f32.mrf.mxu0
    %v8522 = vadd.f32 %v8494, %v8521
    %v8523 = vpop.f32.mrf.mxu0
    %v8524 = vadd.f32 %v8496, %v8523
    %8525 = vmatmul.bf16.gmra.mxu0 %v4802
    %v8526 = vpop.f32.mrf.mxu0
    %v8527 = vadd.f32 %v8499, %v8526
    %v8528 = vpop.f32.mrf.mxu0
    %8529 = vdwg.mxu0
    %8530 = vmatpush.bf16.msra.mxu0 %v6939
    %8531 = vmatpush.bf16.msra.mxu0 %v6935
    %8532 = vmatpush.bf16.msra.mxu0 %v6931
    %8533 = vmatpush.bf16.msra.mxu0 %v6927
    %8534 = vmatpush.bf16.msra.mxu0 %v6923
    %8535 = vmatpush.bf16.msra.mxu0 %v6919
    %8536 = vmatpush.bf16.msra.mxu0 %v6915
    %8537 = vmatpush.bf16.msra.mxu0 %v6911
    %8538 = vmatmul.bf16.gmra.mxu0 %v4725
    %v8539 = vpop.f32.mrf.mxu0
    %v8540 = vadd.f32 %v8512, %v8539
    %v8541 = vpop.f32.mrf.mxu0
    %v8542 = vadd.f32 %v8514, %v8541
    %8543 = vmatmul.bf16.gmra.mxu0 %v4769
    %v8544 = vpop.f32.mrf.mxu0
    %v8545 = vadd.f32 %v8517, %v8544
    %v8546 = vpop.f32.mrf.mxu0
    %v8547 = vadd.f32 %v8519, %v8546
    %8548 = vmatmul.bf16.gmra.mxu0 %v4805
    %v8549 = vpop.f32.mrf.mxu0
    %v8550 = vadd.f32 %v8522, %v8549
    %v8551 = vpop.f32.mrf.mxu0
    %v8552 = vadd.f32 %v8524, %v8551
    %8553 = vmatmul.bf16.gmra.mxu0 %v4804
    %v8554 = vpop.f32.mrf.mxu0
    %v8555 = vadd.f32 %v8527, %v8554
    %v8556 = vpop.f32.mrf.mxu0
    %8557 = vdwg.mxu0
    %8558 = vmatpush.bf16.msra.mxu0 %v6971
    %8559 = vmatpush.bf16.msra.mxu0 %v6967
    %8560 = vmatpush.bf16.msra.mxu0 %v6963
    %8561 = vmatpush.bf16.msra.mxu0 %v6959
    %8562 = vmatpush.bf16.msra.mxu0 %v6955
    %8563 = vmatpush.bf16.msra.mxu0 %v6951
    %8564 = vmatpush.bf16.msra.mxu0 %v6947
    %8565 = vmatpush.bf16.msra.mxu0 %v6943
    %8566 = vmatmul.bf16.gmra.mxu0 %v4728
    %v8567 = vpop.f32.mrf.mxu0
    %v8568 = vadd.f32 %v8540, %v8567
    %v8569 = vpop.f32.mrf.mxu0
    %v8570 = vadd.f32 %v8542, %v8569
    %8571 = vmatmul.bf16.gmra.mxu0 %v4771
    %v8572 = vpop.f32.mrf.mxu0
    %v8573 = vadd.f32 %v8545, %v8572
    %v8574 = vpop.f32.mrf.mxu0
    %v8575 = vadd.f32 %v8547, %v8574
    %8576 = vmatmul.bf16.gmra.mxu0 %v4807
    %v8577 = vpop.f32.mrf.mxu0
    %v8578 = vadd.f32 %v8550, %v8577
    %v8579 = vpop.f32.mrf.mxu0
    %v8580 = vadd.f32 %v8552, %v8579
    %8581 = vmatmul.bf16.gmra.mxu0 %v4806
    %v8582 = vpop.f32.mrf.mxu0
    %v8583 = vadd.f32 %v8555, %v8582
    %v8584 = vpop.f32.mrf.mxu0
    %8585 = vdwg.mxu0
    %8586 = vmatpush.bf16.msra.mxu0 %v7003
    %8587 = vmatpush.bf16.msra.mxu0 %v6999
    %8588 = vmatpush.bf16.msra.mxu0 %v6995
    %8589 = vmatpush.bf16.msra.mxu0 %v6991
    %8590 = vmatpush.bf16.msra.mxu0 %v6987
    %8591 = vmatpush.bf16.msra.mxu0 %v6983
    %8592 = vmatpush.bf16.msra.mxu0 %v6979
    %8593 = vmatpush.bf16.msra.mxu0 %v6975
    %8594 = vmatmul.bf16.gmra.mxu0 %v4731
    %v8595 = vpop.f32.mrf.mxu0
    %v8596 = vadd.f32 %v8568, %v8595
    %v8597 = vpop.f32.mrf.mxu0
    %v8598 = vadd.f32 %v8570, %v8597
    %8599 = vmatmul.bf16.gmra.mxu0 %v4773
    %v8600 = vpop.f32.mrf.mxu0
    %v8601 = vadd.f32 %v8573, %v8600
    %v8602 = vpop.f32.mrf.mxu0
    %v8603 = vadd.f32 %v8575, %v8602
    %8604 = vmatmul.bf16.gmra.mxu0 %v4809
    %v8605 = vpop.f32.mrf.mxu0
    %v8606 = vadd.f32 %v8578, %v8605
    %v8607 = vpop.f32.mrf.mxu0
    %v8608 = vadd.f32 %v8580, %v8607
    %8609 = vmatmul.bf16.gmra.mxu0 %v4808
    %v8610 = vpop.f32.mrf.mxu0
    %v8611 = vadd.f32 %v8583, %v8610
    %v8612 = vpop.f32.mrf.mxu0
    %8613 = vdwg.mxu0
    %8614 = vmatpush.bf16.msra.mxu0 %v7035
    %8615 = vmatpush.bf16.msra.mxu0 %v7031
    %8616 = vmatpush.bf16.msra.mxu0 %v7027
    %8617 = vmatpush.bf16.msra.mxu0 %v7023
    %8618 = vmatpush.bf16.msra.mxu0 %v7019
    %8619 = vmatpush.bf16.msra.mxu0 %v7015
    %8620 = vmatpush.bf16.msra.mxu0 %v7011
    %8621 = vmatpush.bf16.msra.mxu0 %v7007
    %8622 = vmatmul.bf16.gmra.mxu0 %v4734
    %v8623 = vpop.f32.mrf.mxu0
    %v8624 = vadd.f32 %v8596, %v8623
    %v8625 = vpop.f32.mrf.mxu0
    %v8626 = vadd.f32 %v8598, %v8625
    %8627 = vmatmul.bf16.gmra.mxu0 %v4775
    %v8628 = vpop.f32.mrf.mxu0
    %v8629 = vadd.f32 %v8601, %v8628
    %v8630 = vpop.f32.mrf.mxu0
    %v8631 = vadd.f32 %v8603, %v8630
    %8632 = vmatmul.bf16.gmra.mxu0 %v4811
    %v8633 = vpop.f32.mrf.mxu0
    %v8634 = vadd.f32 %v8606, %v8633
    %v8635 = vpop.f32.mrf.mxu0
    %v8636 = vadd.f32 %v8608, %v8635
    %8637 = vmatmul.bf16.gmra.mxu0 %v4810
    %v8638 = vpop.f32.mrf.mxu0
    %v8639 = vadd.f32 %v8611, %v8638
    %v8640 = vpop.f32.mrf.mxu0
    %8641 = vdwg.mxu0
    %8642 = vmatpush.bf16.msra.mxu0 %v7067
    %8643 = vmatpush.bf16.msra.mxu0 %v7063
    %8644 = vmatpush.bf16.msra.mxu0 %v7059
    %8645 = vmatpush.bf16.msra.mxu0 %v7055
    %8646 = vmatpush.bf16.msra.mxu0 %v7051
    %8647 = vmatpush.bf16.msra.mxu0 %v7047
    %8648 = vmatpush.bf16.msra.mxu0 %v7043
    %8649 = vmatpush.bf16.msra.mxu0 %v7039
    %8650 = vmatmul.bf16.gmra.mxu0 %v4737
    %v8651 = vpop.f32.mrf.mxu0
    %v8652 = vadd.f32 %v8624, %v8651
    %v8653 = vpop.f32.mrf.mxu0
    %v8654 = vadd.f32 %v8626, %v8653
    %8655 = vmatmul.bf16.gmra.mxu0 %v4777
    %v8656 = vpop.f32.mrf.mxu0
    %v8657 = vadd.f32 %v8629, %v8656
    %v8658 = vpop.f32.mrf.mxu0
    %v8659 = vadd.f32 %v8631, %v8658
    %8660 = vmatmul.bf16.gmra.mxu0 %v4813
    %v8661 = vpop.f32.mrf.mxu0
    %v8662 = vadd.f32 %v8634, %v8661
    %v8663 = vpop.f32.mrf.mxu0
    %v8664 = vadd.f32 %v8636, %v8663
    %8665 = vmatmul.bf16.gmra.mxu0 %v4812
    %v8666 = vpop.f32.mrf.mxu0
    %v8667 = vadd.f32 %v8639, %v8666
    %v8668 = vpop.f32.mrf.mxu0
    %8669 = vdwg.mxu0
    %8670 = vmatpush.bf16.msra.mxu0 %v7099
    %8671 = vmatpush.bf16.msra.mxu0 %v7095
    %8672 = vmatpush.bf16.msra.mxu0 %v7091
    %8673 = vmatpush.bf16.msra.mxu0 %v7087
    %8674 = vmatpush.bf16.msra.mxu0 %v7083
    %8675 = vmatpush.bf16.msra.mxu0 %v7079
    %8676 = vmatpush.bf16.msra.mxu0 %v7075
    %8677 = vmatpush.bf16.msra.mxu0 %v7071
    %8678 = vmatmul.bf16.gmra.mxu0 %v4740
    %v8679 = vpop.f32.mrf.mxu0
    %v8680 = vadd.f32 %v8652, %v8679
    %v8681 = vpop.f32.mrf.mxu0
    %v8682 = vadd.f32 %v8654, %v8681
    %8683 = vmatmul.bf16.gmra.mxu0 %v4779
    %v8684 = vpop.f32.mrf.mxu0
    %v8685 = vadd.f32 %v8657, %v8684
    %v8686 = vpop.f32.mrf.mxu0
    %v8687 = vadd.f32 %v8659, %v8686
    %8688 = vmatmul.bf16.gmra.mxu0 %v4815
    %v8689 = vpop.f32.mrf.mxu0
    %v8690 = vadd.f32 %v8662, %v8689
    %v8691 = vpop.f32.mrf.mxu0
    %v8692 = vadd.f32 %v8664, %v8691
    %8693 = vmatmul.bf16.gmra.mxu0 %v4814
    %v8694 = vpop.f32.mrf.mxu0
    %v8695 = vadd.f32 %v8667, %v8694
    %v8696 = vpop.f32.mrf.mxu0
    %8697 = vdwg.mxu0
    %8698 = vmatpush.bf16.msra.mxu0 %v7131
    %8699 = vmatpush.bf16.msra.mxu0 %v7127
    %8700 = vmatpush.bf16.msra.mxu0 %v7123
    %8701 = vmatpush.bf16.msra.mxu0 %v7119
    %8702 = vmatpush.bf16.msra.mxu0 %v7115
    %8703 = vmatpush.bf16.msra.mxu0 %v7111
    %8704 = vmatpush.bf16.msra.mxu0 %v7107
    %8705 = vmatpush.bf16.msra.mxu0 %v7103
    %8706 = vmatmul.bf16.gmra.mxu0 %v4743
    %v8707 = vpop.f32.mrf.mxu0
    %v8708 = vadd.f32 %v8680, %v8707
    %v8709 = vpop.f32.mrf.mxu0
    %v8710 = vadd.f32 %v8682, %v8709
    %8711 = vmatmul.bf16.gmra.mxu0 %v4781
    %v8712 = vpop.f32.mrf.mxu0
    %v8713 = vadd.f32 %v8685, %v8712
    %v8714 = vpop.f32.mrf.mxu0
    %v8715 = vadd.f32 %v8687, %v8714
    %8716 = vmatmul.bf16.gmra.mxu0 %v4817
    %v8717 = vpop.f32.mrf.mxu0
    %v8718 = vadd.f32 %v8690, %v8717
    %v8719 = vpop.f32.mrf.mxu0
    %v8720 = vadd.f32 %v8692, %v8719
    %8721 = vmatmul.bf16.gmra.mxu0 %v4816
    %v8722 = vpop.f32.mrf.mxu0
    %v8723 = vadd.f32 %v8695, %v8722
    %v8724 = vpop.f32.mrf.mxu0
    %8725 = vdwg.mxu0
    %8726 = vmatpush.bf16.msra.mxu0 %v7163
    %8727 = vmatpush.bf16.msra.mxu0 %v7159
    %8728 = vmatpush.bf16.msra.mxu0 %v7155
    %8729 = vmatpush.bf16.msra.mxu0 %v7151
    %8730 = vmatpush.bf16.msra.mxu0 %v7147
    %8731 = vmatpush.bf16.msra.mxu0 %v7143
    %8732 = vmatpush.bf16.msra.mxu0 %v7139
    %8733 = vmatpush.bf16.msra.mxu0 %v7135
    %8734 = vmatmul.bf16.gmra.mxu0 %v4746
    %v8735 = vpop.f32.mrf.mxu0
    %v8736 = vadd.f32 %v8708, %v8735
    %v8737 = vpop.f32.mrf.mxu0
    %v8738 = vadd.f32 %v8710, %v8737
    %8739 = vmatmul.bf16.gmra.mxu0 %v4783
    %v8740 = vpop.f32.mrf.mxu0
    %v8741 = vadd.f32 %v8713, %v8740
    %v8742 = vpop.f32.mrf.mxu0
    %v8743 = vadd.f32 %v8715, %v8742
    %8744 = vmatmul.bf16.gmra.mxu0 %v4819
    %v8745 = vpop.f32.mrf.mxu0
    %v8746 = vadd.f32 %v8718, %v8745
    %v8747 = vpop.f32.mrf.mxu0
    %v8748 = vadd.f32 %v8720, %v8747
    %8749 = vmatmul.bf16.gmra.mxu0 %v4818
    %v8750 = vpop.f32.mrf.mxu0
    %v8751 = vadd.f32 %v8723, %v8750
    %v8752 = vpop.f32.mrf.mxu0
    %8753 = vdwg.mxu0
    %8754 = vmatpush.bf16.msra.mxu0 %v7195
    %8755 = vmatpush.bf16.msra.mxu0 %v7191
    %8756 = vmatpush.bf16.msra.mxu0 %v7187
    %8757 = vmatpush.bf16.msra.mxu0 %v7183
    %8758 = vmatpush.bf16.msra.mxu0 %v7179
    %8759 = vmatpush.bf16.msra.mxu0 %v7175
    %8760 = vmatpush.bf16.msra.mxu0 %v7171
    %8761 = vmatpush.bf16.msra.mxu0 %v7167
    %8762 = vmatmul.bf16.gmra.mxu0 %v4749
    %v8763 = vpop.f32.mrf.mxu0
    %v8764 = vadd.f32 %v8736, %v8763
    %v8765 = vpop.f32.mrf.mxu0
    %v8766 = vadd.f32 %v8738, %v8765
    %8767 = vmatmul.bf16.gmra.mxu0 %v4785
    %v8768 = vpop.f32.mrf.mxu0
    %v8769 = vadd.f32 %v8741, %v8768
    %v8770 = vpop.f32.mrf.mxu0
    %v8771 = vadd.f32 %v8743, %v8770
    %8772 = vmatmul.bf16.gmra.mxu0 %v4821
    %v8773 = vpop.f32.mrf.mxu0
    %v8774 = vadd.f32 %v8746, %v8773
    %v8775 = vpop.f32.mrf.mxu0
    %v8776 = vadd.f32 %v8748, %v8775
    %8777 = vmatmul.bf16.gmra.mxu0 %v4820
    %v8778 = vpop.f32.mrf.mxu0
    %v8779 = vadd.f32 %v8751, %v8778
    %v8780 = vpop.f32.mrf.mxu0
    %8781 = vdwg.mxu0
    %8782 = vmatpush.bf16.msra.mxu0 %v6652
    %8783 = vmatpush.bf16.msra.mxu0 %v6648
    %8784 = vmatpush.bf16.msra.mxu0 %v6644
    %8785 = vmatpush.bf16.msra.mxu0 %v6640
    %8786 = vmatpush.bf16.msra.mxu0 %v6636
    %8787 = vmatpush.bf16.msra.mxu0 %v6632
    %8788 = vmatpush.bf16.msra.mxu0 %v6628
    %8789 = vmatpush.bf16.msra.mxu0 %v6624
    %8790 = vmatmul.bf16.gmra.mxu0 %v4698
    %v8791 = vpop.f32.mrf.mxu0
    %v8792 = vadd.f32 %v4618, %v8791
    %v8793 = vpop.f32.mrf.mxu0
    %v8794 = vadd.f32 %v4618, %v8793
    %8795 = vmatmul.bf16.gmra.mxu0 %v4751
    %v8796 = vpop.f32.mrf.mxu0
    %v8797 = vadd.f32 %v4618, %v8796
    %v8798 = vpop.f32.mrf.mxu0
    %v8799 = vadd.f32 %v4618, %v8798
    %8800 = vmatmul.bf16.gmra.mxu0 %v4787
    %v8801 = vpop.f32.mrf.mxu0
    %v8802 = vadd.f32 %v4618, %v8801
    %v8803 = vpop.f32.mrf.mxu0
    %v8804 = vadd.f32 %v4618, %v8803
    %8805 = vmatmul.bf16.gmra.mxu0 %v4786
    %v8806 = vpop.f32.mrf.mxu0
    %v8807 = vadd.f32 %v4618, %v8806
    %v8808 = vpop.f32.mrf.mxu0
    %8809 = vdwg.mxu0
    %8810 = vmatpush.bf16.msra.mxu0 %v6684
    %8811 = vmatpush.bf16.msra.mxu0 %v6680
    %8812 = vmatpush.bf16.msra.mxu0 %v6676
    %8813 = vmatpush.bf16.msra.mxu0 %v6672
    %8814 = vmatpush.bf16.msra.mxu0 %v6668
    %8815 = vmatpush.bf16.msra.mxu0 %v6664
    %8816 = vmatpush.bf16.msra.mxu0 %v6660
    %8817 = vmatpush.bf16.msra.mxu0 %v6656
    %8818 = vmatmul.bf16.gmra.mxu0 %v4701
    %v8819 = vpop.f32.mrf.mxu0
    %v8820 = vadd.f32 %v8792, %v8819
    %v8821 = vpop.f32.mrf.mxu0
    %v8822 = vadd.f32 %v8794, %v8821
    %8823 = vmatmul.bf16.gmra.mxu0 %v4753
    %v8824 = vpop.f32.mrf.mxu0
    %v8825 = vadd.f32 %v8797, %v8824
    %v8826 = vpop.f32.mrf.mxu0
    %v8827 = vadd.f32 %v8799, %v8826
    %8828 = vmatmul.bf16.gmra.mxu0 %v4789
    %v8829 = vpop.f32.mrf.mxu0
    %v8830 = vadd.f32 %v8802, %v8829
    %v8831 = vpop.f32.mrf.mxu0
    %v8832 = vadd.f32 %v8804, %v8831
    %8833 = vmatmul.bf16.gmra.mxu0 %v4788
    %v8834 = vpop.f32.mrf.mxu0
    %v8835 = vadd.f32 %v8807, %v8834
    %v8836 = vpop.f32.mrf.mxu0
    %8837 = vdwg.mxu0
    %8838 = vmatpush.bf16.msra.mxu0 %v6716
    %8839 = vmatpush.bf16.msra.mxu0 %v6712
    %8840 = vmatpush.bf16.msra.mxu0 %v6708
    %8841 = vmatpush.bf16.msra.mxu0 %v6704
    %8842 = vmatpush.bf16.msra.mxu0 %v6700
    %8843 = vmatpush.bf16.msra.mxu0 %v6696
    %8844 = vmatpush.bf16.msra.mxu0 %v6692
    %8845 = vmatpush.bf16.msra.mxu0 %v6688
    %8846 = vmatmul.bf16.gmra.mxu0 %v4704
    %v8847 = vpop.f32.mrf.mxu0
    %v8848 = vadd.f32 %v8820, %v8847
    %v8849 = vpop.f32.mrf.mxu0
    %v8850 = vadd.f32 %v8822, %v8849
    %8851 = vmatmul.bf16.gmra.mxu0 %v4755
    %v8852 = vpop.f32.mrf.mxu0
    %v8853 = vadd.f32 %v8825, %v8852
    %v8854 = vpop.f32.mrf.mxu0
    %v8855 = vadd.f32 %v8827, %v8854
    %8856 = vmatmul.bf16.gmra.mxu0 %v4791
    %v8857 = vpop.f32.mrf.mxu0
    %v8858 = vadd.f32 %v8830, %v8857
    %v8859 = vpop.f32.mrf.mxu0
    %v8860 = vadd.f32 %v8832, %v8859
    %8861 = vmatmul.bf16.gmra.mxu0 %v4790
    %v8862 = vpop.f32.mrf.mxu0
    %v8863 = vadd.f32 %v8835, %v8862
    %v8864 = vpop.f32.mrf.mxu0
    %8865 = vdwg.mxu0
    %8866 = vmatpush.bf16.msra.mxu0 %v6748
    %8867 = vmatpush.bf16.msra.mxu0 %v6744
    %8868 = vmatpush.bf16.msra.mxu0 %v6740
    %8869 = vmatpush.bf16.msra.mxu0 %v6736
    %8870 = vmatpush.bf16.msra.mxu0 %v6732
    %8871 = vmatpush.bf16.msra.mxu0 %v6728
    %8872 = vmatpush.bf16.msra.mxu0 %v6724
    %8873 = vmatpush.bf16.msra.mxu0 %v6720
    %8874 = vmatmul.bf16.gmra.mxu0 %v4707
    %v8875 = vpop.f32.mrf.mxu0
    %v8876 = vadd.f32 %v8848, %v8875
    %v8877 = vpop.f32.mrf.mxu0
    %v8878 = vadd.f32 %v8850, %v8877
    %8879 = vmatmul.bf16.gmra.mxu0 %v4757
    %v8880 = vpop.f32.mrf.mxu0
    %v8881 = vadd.f32 %v8853, %v8880
    %v8882 = vpop.f32.mrf.mxu0
    %v8883 = vadd.f32 %v8855, %v8882
    %8884 = vmatmul.bf16.gmra.mxu0 %v4793
    %v8885 = vpop.f32.mrf.mxu0
    %v8886 = vadd.f32 %v8858, %v8885
    %v8887 = vpop.f32.mrf.mxu0
    %v8888 = vadd.f32 %v8860, %v8887
    %8889 = vmatmul.bf16.gmra.mxu0 %v4792
    %v8890 = vpop.f32.mrf.mxu0
    %v8891 = vadd.f32 %v8863, %v8890
    %v8892 = vpop.f32.mrf.mxu0
    %8893 = vdwg.mxu0
    %8894 = vmatpush.bf16.msra.mxu0 %v6780
    %8895 = vmatpush.bf16.msra.mxu0 %v6776
    %8896 = vmatpush.bf16.msra.mxu0 %v6772
    %8897 = vmatpush.bf16.msra.mxu0 %v6768
    %8898 = vmatpush.bf16.msra.mxu0 %v6764
    %8899 = vmatpush.bf16.msra.mxu0 %v6760
    %8900 = vmatpush.bf16.msra.mxu0 %v6756
    %8901 = vmatpush.bf16.msra.mxu0 %v6752
    %8902 = vmatmul.bf16.gmra.mxu0 %v4710
    %v8903 = vpop.f32.mrf.mxu0
    %v8904 = vadd.f32 %v8876, %v8903
    %v8905 = vpop.f32.mrf.mxu0
    %v8906 = vadd.f32 %v8878, %v8905
    %8907 = vmatmul.bf16.gmra.mxu0 %v4759
    %v8908 = vpop.f32.mrf.mxu0
    %v8909 = vadd.f32 %v8881, %v8908
    %v8910 = vpop.f32.mrf.mxu0
    %v8911 = vadd.f32 %v8883, %v8910
    %8912 = vmatmul.bf16.gmra.mxu0 %v4795
    %v8913 = vpop.f32.mrf.mxu0
    %v8914 = vadd.f32 %v8886, %v8913
    %v8915 = vpop.f32.mrf.mxu0
    %v8916 = vadd.f32 %v8888, %v8915
    %8917 = vmatmul.bf16.gmra.mxu0 %v4794
    %v8918 = vpop.f32.mrf.mxu0
    %v8919 = vadd.f32 %v8891, %v8918
    %v8920 = vpop.f32.mrf.mxu0
    %8921 = vdwg.mxu0
    %8922 = vmatpush.bf16.msra.mxu0 %v6812
    %8923 = vmatpush.bf16.msra.mxu0 %v6808
    %8924 = vmatpush.bf16.msra.mxu0 %v6804
    %8925 = vmatpush.bf16.msra.mxu0 %v6800
    %8926 = vmatpush.bf16.msra.mxu0 %v6796
    %8927 = vmatpush.bf16.msra.mxu0 %v6792
    %8928 = vmatpush.bf16.msra.mxu0 %v6788
    %8929 = vmatpush.bf16.msra.mxu0 %v6784
    %8930 = vmatmul.bf16.gmra.mxu0 %v4713
    %v8931 = vpop.f32.mrf.mxu0
    %v8932 = vadd.f32 %v8904, %v8931
    %v8933 = vpop.f32.mrf.mxu0
    %v8934 = vadd.f32 %v8906, %v8933
    %8935 = vmatmul.bf16.gmra.mxu0 %v4761
    %v8936 = vpop.f32.mrf.mxu0
    %v8937 = vadd.f32 %v8909, %v8936
    %v8938 = vpop.f32.mrf.mxu0
    %v8939 = vadd.f32 %v8911, %v8938
    %8940 = vmatmul.bf16.gmra.mxu0 %v4797
    %v8941 = vpop.f32.mrf.mxu0
    %v8942 = vadd.f32 %v8914, %v8941
    %v8943 = vpop.f32.mrf.mxu0
    %v8944 = vadd.f32 %v8916, %v8943
    %8945 = vmatmul.bf16.gmra.mxu0 %v4796
    %v8946 = vpop.f32.mrf.mxu0
    %v8947 = vadd.f32 %v8919, %v8946
    %v8948 = vpop.f32.mrf.mxu0
    %8949 = vdwg.mxu0
    %8950 = vmatpush.bf16.msra.mxu0 %v6844
    %8951 = vmatpush.bf16.msra.mxu0 %v6840
    %8952 = vmatpush.bf16.msra.mxu0 %v6836
    %8953 = vmatpush.bf16.msra.mxu0 %v6832
    %8954 = vmatpush.bf16.msra.mxu0 %v6828
    %8955 = vmatpush.bf16.msra.mxu0 %v6824
    %8956 = vmatpush.bf16.msra.mxu0 %v6820
    %8957 = vmatpush.bf16.msra.mxu0 %v6816
    %8958 = vmatmul.bf16.gmra.mxu0 %v4716
    %v8959 = vpop.f32.mrf.mxu0
    %v8960 = vadd.f32 %v8932, %v8959
    %v8961 = vpop.f32.mrf.mxu0
    %v8962 = vadd.f32 %v8934, %v8961
    %8963 = vmatmul.bf16.gmra.mxu0 %v4763
    %v8964 = vpop.f32.mrf.mxu0
    %v8965 = vadd.f32 %v8937, %v8964
    %v8966 = vpop.f32.mrf.mxu0
    %v8967 = vadd.f32 %v8939, %v8966
    %8968 = vmatmul.bf16.gmra.mxu0 %v4799
    %v8969 = vpop.f32.mrf.mxu0
    %v8970 = vadd.f32 %v8942, %v8969
    %v8971 = vpop.f32.mrf.mxu0
    %v8972 = vadd.f32 %v8944, %v8971
    %8973 = vmatmul.bf16.gmra.mxu0 %v4798
    %v8974 = vpop.f32.mrf.mxu0
    %v8975 = vadd.f32 %v8947, %v8974
    %v8976 = vpop.f32.mrf.mxu0
    %8977 = vdwg.mxu0
    %8978 = vmatpush.bf16.msra.mxu0 %v6876
    %8979 = vmatpush.bf16.msra.mxu0 %v6872
    %8980 = vmatpush.bf16.msra.mxu0 %v6868
    %8981 = vmatpush.bf16.msra.mxu0 %v6864
    %8982 = vmatpush.bf16.msra.mxu0 %v6860
    %8983 = vmatpush.bf16.msra.mxu0 %v6856
    %8984 = vmatpush.bf16.msra.mxu0 %v6852
    %8985 = vmatpush.bf16.msra.mxu0 %v6848
    %8986 = vmatmul.bf16.gmra.mxu0 %v4719
    %v8987 = vpop.f32.mrf.mxu0
    %v8988 = vadd.f32 %v8960, %v8987
    %v8989 = vpop.f32.mrf.mxu0
    %v8990 = vadd.f32 %v8962, %v8989
    %8991 = vmatmul.bf16.gmra.mxu0 %v4765
    %v8992 = vpop.f32.mrf.mxu0
    %v8993 = vadd.f32 %v8965, %v8992
    %v8994 = vpop.f32.mrf.mxu0
    %v8995 = vadd.f32 %v8967, %v8994
    %8996 = vmatmul.bf16.gmra.mxu0 %v4801
    %v8997 = vpop.f32.mrf.mxu0
    %v8998 = vadd.f32 %v8970, %v8997
    %v8999 = vpop.f32.mrf.mxu0
    %v9000 = vadd.f32 %v8972, %v8999
    %9001 = vmatmul.bf16.gmra.mxu0 %v4800
    %v9002 = vpop.f32.mrf.mxu0
    %v9003 = vadd.f32 %v8975, %v9002
    %v9004 = vpop.f32.mrf.mxu0
    %9005 = vdwg.mxu0
    %9006 = vmatpush.bf16.msra.mxu0 %v6908
    %9007 = vmatpush.bf16.msra.mxu0 %v6904
    %9008 = vmatpush.bf16.msra.mxu0 %v6900
    %9009 = vmatpush.bf16.msra.mxu0 %v6896
    %9010 = vmatpush.bf16.msra.mxu0 %v6892
    %9011 = vmatpush.bf16.msra.mxu0 %v6888
    %9012 = vmatpush.bf16.msra.mxu0 %v6884
    %9013 = vmatpush.bf16.msra.mxu0 %v6880
    %9014 = vmatmul.bf16.gmra.mxu0 %v4722
    %v9015 = vpop.f32.mrf.mxu0
    %v9016 = vadd.f32 %v8988, %v9015
    %v9017 = vpop.f32.mrf.mxu0
    %v9018 = vadd.f32 %v8990, %v9017
    %9019 = vmatmul.bf16.gmra.mxu0 %v4767
    %v9020 = vpop.f32.mrf.mxu0
    %v9021 = vadd.f32 %v8993, %v9020
    %v9022 = vpop.f32.mrf.mxu0
    %v9023 = vadd.f32 %v8995, %v9022
    %9024 = vmatmul.bf16.gmra.mxu0 %v4803
    %v9025 = vpop.f32.mrf.mxu0
    %v9026 = vadd.f32 %v8998, %v9025
    %v9027 = vpop.f32.mrf.mxu0
    %v9028 = vadd.f32 %v9000, %v9027
    %9029 = vmatmul.bf16.gmra.mxu0 %v4802
    %v9030 = vpop.f32.mrf.mxu0
    %v9031 = vadd.f32 %v9003, %v9030
    %v9032 = vpop.f32.mrf.mxu0
    %9033 = vdwg.mxu0
    %9034 = vmatpush.bf16.msra.mxu0 %v6940
    %9035 = vmatpush.bf16.msra.mxu0 %v6936
    %9036 = vmatpush.bf16.msra.mxu0 %v6932
    %9037 = vmatpush.bf16.msra.mxu0 %v6928
    %9038 = vmatpush.bf16.msra.mxu0 %v6924
    %9039 = vmatpush.bf16.msra.mxu0 %v6920
    %9040 = vmatpush.bf16.msra.mxu0 %v6916
    %9041 = vmatpush.bf16.msra.mxu0 %v6912
    %9042 = vmatmul.bf16.gmra.mxu0 %v4725
    %v9043 = vpop.f32.mrf.mxu0
    %v9044 = vadd.f32 %v9016, %v9043
    %v9045 = vpop.f32.mrf.mxu0
    %v9046 = vadd.f32 %v9018, %v9045
    %9047 = vmatmul.bf16.gmra.mxu0 %v4769
    %v9048 = vpop.f32.mrf.mxu0
    %v9049 = vadd.f32 %v9021, %v9048
    %v9050 = vpop.f32.mrf.mxu0
    %v9051 = vadd.f32 %v9023, %v9050
    %9052 = vmatmul.bf16.gmra.mxu0 %v4805
    %v9053 = vpop.f32.mrf.mxu0
    %v9054 = vadd.f32 %v9026, %v9053
    %v9055 = vpop.f32.mrf.mxu0
    %v9056 = vadd.f32 %v9028, %v9055
    %9057 = vmatmul.bf16.gmra.mxu0 %v4804
    %v9058 = vpop.f32.mrf.mxu0
    %v9059 = vadd.f32 %v9031, %v9058
    %v9060 = vpop.f32.mrf.mxu0
    %9061 = vdwg.mxu0
    %9062 = vmatpush.bf16.msra.mxu0 %v6972
    %9063 = vmatpush.bf16.msra.mxu0 %v6968
    %9064 = vmatpush.bf16.msra.mxu0 %v6964
    %9065 = vmatpush.bf16.msra.mxu0 %v6960
    %9066 = vmatpush.bf16.msra.mxu0 %v6956
    %9067 = vmatpush.bf16.msra.mxu0 %v6952
    %9068 = vmatpush.bf16.msra.mxu0 %v6948
    %9069 = vmatpush.bf16.msra.mxu0 %v6944
    %9070 = vmatmul.bf16.gmra.mxu0 %v4728
    %v9071 = vpop.f32.mrf.mxu0
    %v9072 = vadd.f32 %v9044, %v9071
    %v9073 = vpop.f32.mrf.mxu0
    %v9074 = vadd.f32 %v9046, %v9073
    %9075 = vmatmul.bf16.gmra.mxu0 %v4771
    %v9076 = vpop.f32.mrf.mxu0
    %v9077 = vadd.f32 %v9049, %v9076
    %v9078 = vpop.f32.mrf.mxu0
    %v9079 = vadd.f32 %v9051, %v9078
    %9080 = vmatmul.bf16.gmra.mxu0 %v4807
    %v9081 = vpop.f32.mrf.mxu0
    %v9082 = vadd.f32 %v9054, %v9081
    %v9083 = vpop.f32.mrf.mxu0
    %v9084 = vadd.f32 %v9056, %v9083
    %9085 = vmatmul.bf16.gmra.mxu0 %v4806
    %v9086 = vpop.f32.mrf.mxu0
    %v9087 = vadd.f32 %v9059, %v9086
    %v9088 = vpop.f32.mrf.mxu0
    %9089 = vdwg.mxu0
    %9090 = vmatpush.bf16.msra.mxu0 %v7004
    %9091 = vmatpush.bf16.msra.mxu0 %v7000
    %9092 = vmatpush.bf16.msra.mxu0 %v6996
    %9093 = vmatpush.bf16.msra.mxu0 %v6992
    %9094 = vmatpush.bf16.msra.mxu0 %v6988
    %9095 = vmatpush.bf16.msra.mxu0 %v6984
    %9096 = vmatpush.bf16.msra.mxu0 %v6980
    %9097 = vmatpush.bf16.msra.mxu0 %v6976
    %9098 = vmatmul.bf16.gmra.mxu0 %v4731
    %v9099 = vpop.f32.mrf.mxu0
    %v9100 = vadd.f32 %v9072, %v9099
    %v9101 = vpop.f32.mrf.mxu0
    %v9102 = vadd.f32 %v9074, %v9101
    %9103 = vmatmul.bf16.gmra.mxu0 %v4773
    %v9104 = vpop.f32.mrf.mxu0
    %v9105 = vadd.f32 %v9077, %v9104
    %v9106 = vpop.f32.mrf.mxu0
    %v9107 = vadd.f32 %v9079, %v9106
    %9108 = vmatmul.bf16.gmra.mxu0 %v4809
    %v9109 = vpop.f32.mrf.mxu0
    %v9110 = vadd.f32 %v9082, %v9109
    %v9111 = vpop.f32.mrf.mxu0
    %v9112 = vadd.f32 %v9084, %v9111
    %9113 = vmatmul.bf16.gmra.mxu0 %v4808
    %v9114 = vpop.f32.mrf.mxu0
    %v9115 = vadd.f32 %v9087, %v9114
    %v9116 = vpop.f32.mrf.mxu0
    %9117 = vdwg.mxu0
    %9118 = vmatpush.bf16.msra.mxu0 %v7036
    %9119 = vmatpush.bf16.msra.mxu0 %v7032
    %9120 = vmatpush.bf16.msra.mxu0 %v7028
    %9121 = vmatpush.bf16.msra.mxu0 %v7024
    %9122 = vmatpush.bf16.msra.mxu0 %v7020
    %9123 = vmatpush.bf16.msra.mxu0 %v7016
    %9124 = vmatpush.bf16.msra.mxu0 %v7012
    %9125 = vmatpush.bf16.msra.mxu0 %v7008
    %9126 = vmatmul.bf16.gmra.mxu0 %v4734
    %v9127 = vpop.f32.mrf.mxu0
    %v9128 = vadd.f32 %v9100, %v9127
    %v9129 = vpop.f32.mrf.mxu0
    %v9130 = vadd.f32 %v9102, %v9129
    %9131 = vmatmul.bf16.gmra.mxu0 %v4775
    %v9132 = vpop.f32.mrf.mxu0
    %v9133 = vadd.f32 %v9105, %v9132
    %v9134 = vpop.f32.mrf.mxu0
    %v9135 = vadd.f32 %v9107, %v9134
    %9136 = vmatmul.bf16.gmra.mxu0 %v4811
    %v9137 = vpop.f32.mrf.mxu0
    %v9138 = vadd.f32 %v9110, %v9137
    %v9139 = vpop.f32.mrf.mxu0
    %v9140 = vadd.f32 %v9112, %v9139
    %9141 = vmatmul.bf16.gmra.mxu0 %v4810
    %v9142 = vpop.f32.mrf.mxu0
    %v9143 = vadd.f32 %v9115, %v9142
    %v9144 = vpop.f32.mrf.mxu0
    %9145 = vdwg.mxu0
    %9146 = vmatpush.bf16.msra.mxu0 %v7068
    %9147 = vmatpush.bf16.msra.mxu0 %v7064
    %9148 = vmatpush.bf16.msra.mxu0 %v7060
    %9149 = vmatpush.bf16.msra.mxu0 %v7056
    %9150 = vmatpush.bf16.msra.mxu0 %v7052
    %9151 = vmatpush.bf16.msra.mxu0 %v7048
    %9152 = vmatpush.bf16.msra.mxu0 %v7044
    %9153 = vmatpush.bf16.msra.mxu0 %v7040
    %9154 = vmatmul.bf16.gmra.mxu0 %v4737
    %v9155 = vpop.f32.mrf.mxu0
    %v9156 = vadd.f32 %v9128, %v9155
    %v9157 = vpop.f32.mrf.mxu0
    %v9158 = vadd.f32 %v9130, %v9157
    %9159 = vmatmul.bf16.gmra.mxu0 %v4777
    %v9160 = vpop.f32.mrf.mxu0
    %v9161 = vadd.f32 %v9133, %v9160
    %v9162 = vpop.f32.mrf.mxu0
    %v9163 = vadd.f32 %v9135, %v9162
    %9164 = vmatmul.bf16.gmra.mxu0 %v4813
    %v9165 = vpop.f32.mrf.mxu0
    %v9166 = vadd.f32 %v9138, %v9165
    %v9167 = vpop.f32.mrf.mxu0
    %v9168 = vadd.f32 %v9140, %v9167
    %9169 = vmatmul.bf16.gmra.mxu0 %v4812
    %v9170 = vpop.f32.mrf.mxu0
    %v9171 = vadd.f32 %v9143, %v9170
    %v9172 = vpop.f32.mrf.mxu0
    %9173 = vdwg.mxu0
    %9174 = vmatpush.bf16.msra.mxu0 %v7100
    %9175 = vmatpush.bf16.msra.mxu0 %v7096
    %9176 = vmatpush.bf16.msra.mxu0 %v7092
    %9177 = vmatpush.bf16.msra.mxu0 %v7088
    %9178 = vmatpush.bf16.msra.mxu0 %v7084
    %9179 = vmatpush.bf16.msra.mxu0 %v7080
    %9180 = vmatpush.bf16.msra.mxu0 %v7076
    %9181 = vmatpush.bf16.msra.mxu0 %v7072
    %9182 = vmatmul.bf16.gmra.mxu0 %v4740
    %v9183 = vpop.f32.mrf.mxu0
    %v9184 = vadd.f32 %v9156, %v9183
    %v9185 = vpop.f32.mrf.mxu0
    %v9186 = vadd.f32 %v9158, %v9185
    %9187 = vmatmul.bf16.gmra.mxu0 %v4779
    %v9188 = vpop.f32.mrf.mxu0
    %v9189 = vadd.f32 %v9161, %v9188
    %v9190 = vpop.f32.mrf.mxu0
    %v9191 = vadd.f32 %v9163, %v9190
    %9192 = vmatmul.bf16.gmra.mxu0 %v4815
    %v9193 = vpop.f32.mrf.mxu0
    %v9194 = vadd.f32 %v9166, %v9193
    %v9195 = vpop.f32.mrf.mxu0
    %v9196 = vadd.f32 %v9168, %v9195
    %9197 = vmatmul.bf16.gmra.mxu0 %v4814
    %v9198 = vpop.f32.mrf.mxu0
    %v9199 = vadd.f32 %v9171, %v9198
    %v9200 = vpop.f32.mrf.mxu0
    %9201 = vdwg.mxu0
    %9202 = vmatpush.bf16.msra.mxu0 %v7132
    %9203 = vmatpush.bf16.msra.mxu0 %v7128
    %9204 = vmatpush.bf16.msra.mxu0 %v7124
    %9205 = vmatpush.bf16.msra.mxu0 %v7120
    %9206 = vmatpush.bf16.msra.mxu0 %v7116
    %9207 = vmatpush.bf16.msra.mxu0 %v7112
    %9208 = vmatpush.bf16.msra.mxu0 %v7108
    %9209 = vmatpush.bf16.msra.mxu0 %v7104
    %9210 = vmatmul.bf16.gmra.mxu0 %v4743
    %v9211 = vpop.f32.mrf.mxu0
    %v9212 = vadd.f32 %v9184, %v9211
    %v9213 = vpop.f32.mrf.mxu0
    %v9214 = vadd.f32 %v9186, %v9213
    %9215 = vmatmul.bf16.gmra.mxu0 %v4781
    %v9216 = vpop.f32.mrf.mxu0
    %v9217 = vadd.f32 %v9189, %v9216
    %v9218 = vpop.f32.mrf.mxu0
    %v9219 = vadd.f32 %v9191, %v9218
    %9220 = vmatmul.bf16.gmra.mxu0 %v4817
    %v9221 = vpop.f32.mrf.mxu0
    %v9222 = vadd.f32 %v9194, %v9221
    %v9223 = vpop.f32.mrf.mxu0
    %v9224 = vadd.f32 %v9196, %v9223
    %9225 = vmatmul.bf16.gmra.mxu0 %v4816
    %v9226 = vpop.f32.mrf.mxu0
    %v9227 = vadd.f32 %v9199, %v9226
    %v9228 = vpop.f32.mrf.mxu0
    %9229 = vdwg.mxu0
    %9230 = vmatpush.bf16.msra.mxu0 %v7164
    %9231 = vmatpush.bf16.msra.mxu0 %v7160
    %9232 = vmatpush.bf16.msra.mxu0 %v7156
    %9233 = vmatpush.bf16.msra.mxu0 %v7152
    %9234 = vmatpush.bf16.msra.mxu0 %v7148
    %9235 = vmatpush.bf16.msra.mxu0 %v7144
    %9236 = vmatpush.bf16.msra.mxu0 %v7140
    %9237 = vmatpush.bf16.msra.mxu0 %v7136
    %9238 = vmatmul.bf16.gmra.mxu0 %v4746
    %v9239 = vpop.f32.mrf.mxu0
    %v9240 = vadd.f32 %v9212, %v9239
    %v9241 = vpop.f32.mrf.mxu0
    %v9242 = vadd.f32 %v9214, %v9241
    %9243 = vmatmul.bf16.gmra.mxu0 %v4783
    %v9244 = vpop.f32.mrf.mxu0
    %v9245 = vadd.f32 %v9217, %v9244
    %v9246 = vpop.f32.mrf.mxu0
    %v9247 = vadd.f32 %v9219, %v9246
    %9248 = vmatmul.bf16.gmra.mxu0 %v4819
    %v9249 = vpop.f32.mrf.mxu0
    %v9250 = vadd.f32 %v9222, %v9249
    %v9251 = vpop.f32.mrf.mxu0
    %v9252 = vadd.f32 %v9224, %v9251
    %9253 = vmatmul.bf16.gmra.mxu0 %v4818
    %v9254 = vpop.f32.mrf.mxu0
    %v9255 = vadd.f32 %v9227, %v9254
    %v9256 = vpop.f32.mrf.mxu0
    %9257 = vdwg.mxu0
    %9258 = vmatpush.bf16.msra.mxu0 %v7196
    %9259 = vmatpush.bf16.msra.mxu0 %v7192
    %9260 = vmatpush.bf16.msra.mxu0 %v7188
    %9261 = vmatpush.bf16.msra.mxu0 %v7184
    %9262 = vmatpush.bf16.msra.mxu0 %v7180
    %9263 = vmatpush.bf16.msra.mxu0 %v7176
    %9264 = vmatpush.bf16.msra.mxu0 %v7172
    %9265 = vmatpush.bf16.msra.mxu0 %v7168
    %9266 = vmatmul.bf16.gmra.mxu0 %v4749
    %v9267 = vpop.f32.mrf.mxu0
    %v9268 = vadd.f32 %v9240, %v9267
    %v9269 = vpop.f32.mrf.mxu0
    %v9270 = vadd.f32 %v9242, %v9269
    %9271 = vmatmul.bf16.gmra.mxu0 %v4785
    %v9272 = vpop.f32.mrf.mxu0
    %v9273 = vadd.f32 %v9245, %v9272
    %v9274 = vpop.f32.mrf.mxu0
    %v9275 = vadd.f32 %v9247, %v9274
    %9276 = vmatmul.bf16.gmra.mxu0 %v4821
    %v9277 = vpop.f32.mrf.mxu0
    %v9278 = vadd.f32 %v9250, %v9277
    %v9279 = vpop.f32.mrf.mxu0
    %v9280 = vadd.f32 %v9252, %v9279
    %9281 = vmatmul.bf16.gmra.mxu0 %v4820
    %v9282 = vpop.f32.mrf.mxu0
    %v9283 = vadd.f32 %v9255, %v9282
    %v9284 = vpop.f32.mrf.mxu0
    %9285 = vdwg.mxu0
    %9286 = vmatpush.bf16.msra.mxu0 %v6653
    %9287 = vmatpush.bf16.msra.mxu0 %v6649
    %9288 = vmatpush.bf16.msra.mxu0 %v6645
    %9289 = vmatpush.bf16.msra.mxu0 %v6641
    %9290 = vmatpush.bf16.msra.mxu0 %v6637
    %9291 = vmatpush.bf16.msra.mxu0 %v6633
    %9292 = vmatpush.bf16.msra.mxu0 %v6629
    %9293 = vmatpush.bf16.msra.mxu0 %v6625
    %9294 = vmatmul.bf16.gmra.mxu0 %v4698
    %v9295 = vpop.f32.mrf.mxu0
    %v9296 = vadd.f32 %v4619, %v9295
    %v9297 = vpop.f32.mrf.mxu0
    %v9298 = vadd.f32 %v4619, %v9297
    %9299 = vmatmul.bf16.gmra.mxu0 %v4751
    %v9300 = vpop.f32.mrf.mxu0
    %v9301 = vadd.f32 %v4619, %v9300
    %v9302 = vpop.f32.mrf.mxu0
    %v9303 = vadd.f32 %v4619, %v9302
    %9304 = vmatmul.bf16.gmra.mxu0 %v4787
    %v9305 = vpop.f32.mrf.mxu0
    %v9306 = vadd.f32 %v4619, %v9305
    %v9307 = vpop.f32.mrf.mxu0
    %v9308 = vadd.f32 %v4619, %v9307
    %9309 = vmatmul.bf16.gmra.mxu0 %v4786
    %v9310 = vpop.f32.mrf.mxu0
    %v9311 = vadd.f32 %v4619, %v9310
    %v9312 = vpop.f32.mrf.mxu0
    %9313 = vdwg.mxu0
    %9314 = vmatpush.bf16.msra.mxu0 %v6685
    %9315 = vmatpush.bf16.msra.mxu0 %v6681
    %9316 = vmatpush.bf16.msra.mxu0 %v6677
    %9317 = vmatpush.bf16.msra.mxu0 %v6673
    %9318 = vmatpush.bf16.msra.mxu0 %v6669
    %9319 = vmatpush.bf16.msra.mxu0 %v6665
    %9320 = vmatpush.bf16.msra.mxu0 %v6661
    %9321 = vmatpush.bf16.msra.mxu0 %v6657
    %9322 = vmatmul.bf16.gmra.mxu0 %v4701
    %v9323 = vpop.f32.mrf.mxu0
    %v9324 = vadd.f32 %v9296, %v9323
    %v9325 = vpop.f32.mrf.mxu0
    %v9326 = vadd.f32 %v9298, %v9325
    %9327 = vmatmul.bf16.gmra.mxu0 %v4753
    %v9328 = vpop.f32.mrf.mxu0
    %v9329 = vadd.f32 %v9301, %v9328
    %v9330 = vpop.f32.mrf.mxu0
    %v9331 = vadd.f32 %v9303, %v9330
    %9332 = vmatmul.bf16.gmra.mxu0 %v4789
    %v9333 = vpop.f32.mrf.mxu0
    %v9334 = vadd.f32 %v9306, %v9333
    %v9335 = vpop.f32.mrf.mxu0
    %v9336 = vadd.f32 %v9308, %v9335
    %9337 = vmatmul.bf16.gmra.mxu0 %v4788
    %v9338 = vpop.f32.mrf.mxu0
    %v9339 = vadd.f32 %v9311, %v9338
    %v9340 = vpop.f32.mrf.mxu0
    %9341 = vdwg.mxu0
    %9342 = vmatpush.bf16.msra.mxu0 %v6717
    %9343 = vmatpush.bf16.msra.mxu0 %v6713
    %9344 = vmatpush.bf16.msra.mxu0 %v6709
    %9345 = vmatpush.bf16.msra.mxu0 %v6705
    %9346 = vmatpush.bf16.msra.mxu0 %v6701
    %9347 = vmatpush.bf16.msra.mxu0 %v6697
    %9348 = vmatpush.bf16.msra.mxu0 %v6693
    %9349 = vmatpush.bf16.msra.mxu0 %v6689
    %9350 = vmatmul.bf16.gmra.mxu0 %v4704
    %v9351 = vpop.f32.mrf.mxu0
    %v9352 = vadd.f32 %v9324, %v9351
    %v9353 = vpop.f32.mrf.mxu0
    %v9354 = vadd.f32 %v9326, %v9353
    %9355 = vmatmul.bf16.gmra.mxu0 %v4755
    %v9356 = vpop.f32.mrf.mxu0
    %v9357 = vadd.f32 %v9329, %v9356
    %v9358 = vpop.f32.mrf.mxu0
    %v9359 = vadd.f32 %v9331, %v9358
    %9360 = vmatmul.bf16.gmra.mxu0 %v4791
    %v9361 = vpop.f32.mrf.mxu0
    %v9362 = vadd.f32 %v9334, %v9361
    %v9363 = vpop.f32.mrf.mxu0
    %v9364 = vadd.f32 %v9336, %v9363
    %9365 = vmatmul.bf16.gmra.mxu0 %v4790
    %v9366 = vpop.f32.mrf.mxu0
    %v9367 = vadd.f32 %v9339, %v9366
    %v9368 = vpop.f32.mrf.mxu0
    %9369 = vdwg.mxu0
    %9370 = vmatpush.bf16.msra.mxu0 %v6749
    %9371 = vmatpush.bf16.msra.mxu0 %v6745
    %9372 = vmatpush.bf16.msra.mxu0 %v6741
    %9373 = vmatpush.bf16.msra.mxu0 %v6737
    %9374 = vmatpush.bf16.msra.mxu0 %v6733
    %9375 = vmatpush.bf16.msra.mxu0 %v6729
    %9376 = vmatpush.bf16.msra.mxu0 %v6725
    %9377 = vmatpush.bf16.msra.mxu0 %v6721
    %9378 = vmatmul.bf16.gmra.mxu0 %v4707
    %v9379 = vpop.f32.mrf.mxu0
    %v9380 = vadd.f32 %v9352, %v9379
    %v9381 = vpop.f32.mrf.mxu0
    %v9382 = vadd.f32 %v9354, %v9381
    %9383 = vmatmul.bf16.gmra.mxu0 %v4757
    %v9384 = vpop.f32.mrf.mxu0
    %v9385 = vadd.f32 %v9357, %v9384
    %v9386 = vpop.f32.mrf.mxu0
    %v9387 = vadd.f32 %v9359, %v9386
    %9388 = vmatmul.bf16.gmra.mxu0 %v4793
    %v9389 = vpop.f32.mrf.mxu0
    %v9390 = vadd.f32 %v9362, %v9389
    %v9391 = vpop.f32.mrf.mxu0
    %v9392 = vadd.f32 %v9364, %v9391
    %9393 = vmatmul.bf16.gmra.mxu0 %v4792
    %v9394 = vpop.f32.mrf.mxu0
    %v9395 = vadd.f32 %v9367, %v9394
    %v9396 = vpop.f32.mrf.mxu0
    %9397 = vdwg.mxu0
    %9398 = vmatpush.bf16.msra.mxu0 %v6781
    %9399 = vmatpush.bf16.msra.mxu0 %v6777
    %9400 = vmatpush.bf16.msra.mxu0 %v6773
    %9401 = vmatpush.bf16.msra.mxu0 %v6769
    %9402 = vmatpush.bf16.msra.mxu0 %v6765
    %9403 = vmatpush.bf16.msra.mxu0 %v6761
    %9404 = vmatpush.bf16.msra.mxu0 %v6757
    %9405 = vmatpush.bf16.msra.mxu0 %v6753
    %9406 = vmatmul.bf16.gmra.mxu0 %v4710
    %v9407 = vpop.f32.mrf.mxu0
    %v9408 = vadd.f32 %v9380, %v9407
    %v9409 = vpop.f32.mrf.mxu0
    %v9410 = vadd.f32 %v9382, %v9409
    %9411 = vmatmul.bf16.gmra.mxu0 %v4759
    %v9412 = vpop.f32.mrf.mxu0
    %v9413 = vadd.f32 %v9385, %v9412
    %v9414 = vpop.f32.mrf.mxu0
    %v9415 = vadd.f32 %v9387, %v9414
    %9416 = vmatmul.bf16.gmra.mxu0 %v4795
    %v9417 = vpop.f32.mrf.mxu0
    %v9418 = vadd.f32 %v9390, %v9417
    %v9419 = vpop.f32.mrf.mxu0
    %v9420 = vadd.f32 %v9392, %v9419
    %9421 = vmatmul.bf16.gmra.mxu0 %v4794
    %v9422 = vpop.f32.mrf.mxu0
    %v9423 = vadd.f32 %v9395, %v9422
    %v9424 = vpop.f32.mrf.mxu0
    %9425 = vdwg.mxu0
    %9426 = vmatpush.bf16.msra.mxu0 %v6813
    %9427 = vmatpush.bf16.msra.mxu0 %v6809
    %9428 = vmatpush.bf16.msra.mxu0 %v6805
    %9429 = vmatpush.bf16.msra.mxu0 %v6801
    %9430 = vmatpush.bf16.msra.mxu0 %v6797
    %9431 = vmatpush.bf16.msra.mxu0 %v6793
    %9432 = vmatpush.bf16.msra.mxu0 %v6789
    %9433 = vmatpush.bf16.msra.mxu0 %v6785
    %9434 = vmatmul.bf16.gmra.mxu0 %v4713
    %v9435 = vpop.f32.mrf.mxu0
    %v9436 = vadd.f32 %v9408, %v9435
    %v9437 = vpop.f32.mrf.mxu0
    %v9438 = vadd.f32 %v9410, %v9437
    %9439 = vmatmul.bf16.gmra.mxu0 %v4761
    %v9440 = vpop.f32.mrf.mxu0
    %v9441 = vadd.f32 %v9413, %v9440
    %v9442 = vpop.f32.mrf.mxu0
    %v9443 = vadd.f32 %v9415, %v9442
    %9444 = vmatmul.bf16.gmra.mxu0 %v4797
    %v9445 = vpop.f32.mrf.mxu0
    %v9446 = vadd.f32 %v9418, %v9445
    %v9447 = vpop.f32.mrf.mxu0
    %v9448 = vadd.f32 %v9420, %v9447
    %9449 = vmatmul.bf16.gmra.mxu0 %v4796
    %v9450 = vpop.f32.mrf.mxu0
    %v9451 = vadd.f32 %v9423, %v9450
    %v9452 = vpop.f32.mrf.mxu0
    %9453 = vdwg.mxu0
    %9454 = vmatpush.bf16.msra.mxu0 %v6845
    %9455 = vmatpush.bf16.msra.mxu0 %v6841
    %9456 = vmatpush.bf16.msra.mxu0 %v6837
    %9457 = vmatpush.bf16.msra.mxu0 %v6833
    %9458 = vmatpush.bf16.msra.mxu0 %v6829
    %9459 = vmatpush.bf16.msra.mxu0 %v6825
    %9460 = vmatpush.bf16.msra.mxu0 %v6821
    %9461 = vmatpush.bf16.msra.mxu0 %v6817
    %9462 = vmatmul.bf16.gmra.mxu0 %v4716
    %v9463 = vpop.f32.mrf.mxu0
    %v9464 = vadd.f32 %v9436, %v9463
    %v9465 = vpop.f32.mrf.mxu0
    %v9466 = vadd.f32 %v9438, %v9465
    %9467 = vmatmul.bf16.gmra.mxu0 %v4763
    %v9468 = vpop.f32.mrf.mxu0
    %v9469 = vadd.f32 %v9441, %v9468
    %v9470 = vpop.f32.mrf.mxu0
    %v9471 = vadd.f32 %v9443, %v9470
    %9472 = vmatmul.bf16.gmra.mxu0 %v4799
    %v9473 = vpop.f32.mrf.mxu0
    %v9474 = vadd.f32 %v9446, %v9473
    %v9475 = vpop.f32.mrf.mxu0
    %v9476 = vadd.f32 %v9448, %v9475
    %9477 = vmatmul.bf16.gmra.mxu0 %v4798
    %v9478 = vpop.f32.mrf.mxu0
    %v9479 = vadd.f32 %v9451, %v9478
    %v9480 = vpop.f32.mrf.mxu0
    %9481 = vdwg.mxu0
    %9482 = vmatpush.bf16.msra.mxu0 %v6877
    %9483 = vmatpush.bf16.msra.mxu0 %v6873
    %9484 = vmatpush.bf16.msra.mxu0 %v6869
    %9485 = vmatpush.bf16.msra.mxu0 %v6865
    %9486 = vmatpush.bf16.msra.mxu0 %v6861
    %9487 = vmatpush.bf16.msra.mxu0 %v6857
    %9488 = vmatpush.bf16.msra.mxu0 %v6853
    %9489 = vmatpush.bf16.msra.mxu0 %v6849
    %9490 = vmatmul.bf16.gmra.mxu0 %v4719
    %v9491 = vpop.f32.mrf.mxu0
    %v9492 = vadd.f32 %v9464, %v9491
    %v9493 = vpop.f32.mrf.mxu0
    %v9494 = vadd.f32 %v9466, %v9493
    %9495 = vmatmul.bf16.gmra.mxu0 %v4765
    %v9496 = vpop.f32.mrf.mxu0
    %v9497 = vadd.f32 %v9469, %v9496
    %v9498 = vpop.f32.mrf.mxu0
    %v9499 = vadd.f32 %v9471, %v9498
    %9500 = vmatmul.bf16.gmra.mxu0 %v4801
    %v9501 = vpop.f32.mrf.mxu0
    %v9502 = vadd.f32 %v9474, %v9501
    %v9503 = vpop.f32.mrf.mxu0
    %v9504 = vadd.f32 %v9476, %v9503
    %9505 = vmatmul.bf16.gmra.mxu0 %v4800
    %v9506 = vpop.f32.mrf.mxu0
    %v9507 = vadd.f32 %v9479, %v9506
    %v9508 = vpop.f32.mrf.mxu0
    %9509 = vdwg.mxu0
    %9510 = vmatpush.bf16.msra.mxu0 %v6909
    %9511 = vmatpush.bf16.msra.mxu0 %v6905
    %9512 = vmatpush.bf16.msra.mxu0 %v6901
    %9513 = vmatpush.bf16.msra.mxu0 %v6897
    %9514 = vmatpush.bf16.msra.mxu0 %v6893
    %9515 = vmatpush.bf16.msra.mxu0 %v6889
    %9516 = vmatpush.bf16.msra.mxu0 %v6885
    %9517 = vmatpush.bf16.msra.mxu0 %v6881
    %9518 = vmatmul.bf16.gmra.mxu0 %v4722
    %v9519 = vpop.f32.mrf.mxu0
    %v9520 = vadd.f32 %v9492, %v9519
    %v9521 = vpop.f32.mrf.mxu0
    %v9522 = vadd.f32 %v9494, %v9521
    %9523 = vmatmul.bf16.gmra.mxu0 %v4767
    %v9524 = vpop.f32.mrf.mxu0
    %v9525 = vadd.f32 %v9497, %v9524
    %v9526 = vpop.f32.mrf.mxu0
    %v9527 = vadd.f32 %v9499, %v9526
    %9528 = vmatmul.bf16.gmra.mxu0 %v4803
    %v9529 = vpop.f32.mrf.mxu0
    %v9530 = vadd.f32 %v9502, %v9529
    %v9531 = vpop.f32.mrf.mxu0
    %v9532 = vadd.f32 %v9504, %v9531
    %9533 = vmatmul.bf16.gmra.mxu0 %v4802
    %v9534 = vpop.f32.mrf.mxu0
    %v9535 = vadd.f32 %v9507, %v9534
    %v9536 = vpop.f32.mrf.mxu0
    %9537 = vdwg.mxu0
    %9538 = vmatpush.bf16.msra.mxu0 %v6941
    %9539 = vmatpush.bf16.msra.mxu0 %v6937
    %9540 = vmatpush.bf16.msra.mxu0 %v6933
    %9541 = vmatpush.bf16.msra.mxu0 %v6929
    %9542 = vmatpush.bf16.msra.mxu0 %v6925
    %9543 = vmatpush.bf16.msra.mxu0 %v6921
    %9544 = vmatpush.bf16.msra.mxu0 %v6917
    %9545 = vmatpush.bf16.msra.mxu0 %v6913
    %9546 = vmatmul.bf16.gmra.mxu0 %v4725
    %v9547 = vpop.f32.mrf.mxu0
    %v9548 = vadd.f32 %v9520, %v9547
    %v9549 = vpop.f32.mrf.mxu0
    %v9550 = vadd.f32 %v9522, %v9549
    %9551 = vmatmul.bf16.gmra.mxu0 %v4769
    %v9552 = vpop.f32.mrf.mxu0
    %v9553 = vadd.f32 %v9525, %v9552
    %v9554 = vpop.f32.mrf.mxu0
    %v9555 = vadd.f32 %v9527, %v9554
    %9556 = vmatmul.bf16.gmra.mxu0 %v4805
    %v9557 = vpop.f32.mrf.mxu0
    %v9558 = vadd.f32 %v9530, %v9557
    %v9559 = vpop.f32.mrf.mxu0
    %v9560 = vadd.f32 %v9532, %v9559
    %9561 = vmatmul.bf16.gmra.mxu0 %v4804
    %v9562 = vpop.f32.mrf.mxu0
    %v9563 = vadd.f32 %v9535, %v9562
    %v9564 = vpop.f32.mrf.mxu0
    %9565 = vdwg.mxu0
    %9566 = vmatpush.bf16.msra.mxu0 %v6973
    %9567 = vmatpush.bf16.msra.mxu0 %v6969
    %9568 = vmatpush.bf16.msra.mxu0 %v6965
    %9569 = vmatpush.bf16.msra.mxu0 %v6961
    %9570 = vmatpush.bf16.msra.mxu0 %v6957
    %9571 = vmatpush.bf16.msra.mxu0 %v6953
    %9572 = vmatpush.bf16.msra.mxu0 %v6949
    %9573 = vmatpush.bf16.msra.mxu0 %v6945
    %9574 = vmatmul.bf16.gmra.mxu0 %v4728
    %v9575 = vpop.f32.mrf.mxu0
    %v9576 = vadd.f32 %v9548, %v9575
    %v9577 = vpop.f32.mrf.mxu0
    %v9578 = vadd.f32 %v9550, %v9577
    %9579 = vmatmul.bf16.gmra.mxu0 %v4771
    %v9580 = vpop.f32.mrf.mxu0
    %v9581 = vadd.f32 %v9553, %v9580
    %v9582 = vpop.f32.mrf.mxu0
    %v9583 = vadd.f32 %v9555, %v9582
    %9584 = vmatmul.bf16.gmra.mxu0 %v4807
    %v9585 = vpop.f32.mrf.mxu0
    %v9586 = vadd.f32 %v9558, %v9585
    %v9587 = vpop.f32.mrf.mxu0
    %v9588 = vadd.f32 %v9560, %v9587
    %9589 = vmatmul.bf16.gmra.mxu0 %v4806
    %v9590 = vpop.f32.mrf.mxu0
    %v9591 = vadd.f32 %v9563, %v9590
    %v9592 = vpop.f32.mrf.mxu0
    %9593 = vdwg.mxu0
    %9594 = vmatpush.bf16.msra.mxu0 %v7005
    %9595 = vmatpush.bf16.msra.mxu0 %v7001
    %9596 = vmatpush.bf16.msra.mxu0 %v6997
    %9597 = vmatpush.bf16.msra.mxu0 %v6993
    %9598 = vmatpush.bf16.msra.mxu0 %v6989
    %9599 = vmatpush.bf16.msra.mxu0 %v6985
    %9600 = vmatpush.bf16.msra.mxu0 %v6981
    %9601 = vmatpush.bf16.msra.mxu0 %v6977
    %9602 = vmatmul.bf16.gmra.mxu0 %v4731
    %v9603 = vpop.f32.mrf.mxu0
    %v9604 = vadd.f32 %v9576, %v9603
    %v9605 = vpop.f32.mrf.mxu0
    %v9606 = vadd.f32 %v9578, %v9605
    %9607 = vmatmul.bf16.gmra.mxu0 %v4773
    %v9608 = vpop.f32.mrf.mxu0
    %v9609 = vadd.f32 %v9581, %v9608
    %v9610 = vpop.f32.mrf.mxu0
    %v9611 = vadd.f32 %v9583, %v9610
    %9612 = vmatmul.bf16.gmra.mxu0 %v4809
    %v9613 = vpop.f32.mrf.mxu0
    %v9614 = vadd.f32 %v9586, %v9613
    %v9615 = vpop.f32.mrf.mxu0
    %v9616 = vadd.f32 %v9588, %v9615
    %9617 = vmatmul.bf16.gmra.mxu0 %v4808
    %v9618 = vpop.f32.mrf.mxu0
    %v9619 = vadd.f32 %v9591, %v9618
    %v9620 = vpop.f32.mrf.mxu0
    %9621 = vdwg.mxu0
    %9622 = vmatpush.bf16.msra.mxu0 %v7037
    %9623 = vmatpush.bf16.msra.mxu0 %v7033
    %9624 = vmatpush.bf16.msra.mxu0 %v7029
    %9625 = vmatpush.bf16.msra.mxu0 %v7025
    %9626 = vmatpush.bf16.msra.mxu0 %v7021
    %9627 = vmatpush.bf16.msra.mxu0 %v7017
    %9628 = vmatpush.bf16.msra.mxu0 %v7013
    %9629 = vmatpush.bf16.msra.mxu0 %v7009
    %9630 = vmatmul.bf16.gmra.mxu0 %v4734
    %v9631 = vpop.f32.mrf.mxu0
    %v9632 = vadd.f32 %v9604, %v9631
    %v9633 = vpop.f32.mrf.mxu0
    %v9634 = vadd.f32 %v9606, %v9633
    %9635 = vmatmul.bf16.gmra.mxu0 %v4775
    %v9636 = vpop.f32.mrf.mxu0
    %v9637 = vadd.f32 %v9609, %v9636
    %v9638 = vpop.f32.mrf.mxu0
    %v9639 = vadd.f32 %v9611, %v9638
    %9640 = vmatmul.bf16.gmra.mxu0 %v4811
    %v9641 = vpop.f32.mrf.mxu0
    %v9642 = vadd.f32 %v9614, %v9641
    %v9643 = vpop.f32.mrf.mxu0
    %v9644 = vadd.f32 %v9616, %v9643
    %9645 = vmatmul.bf16.gmra.mxu0 %v4810
    %v9646 = vpop.f32.mrf.mxu0
    %v9647 = vadd.f32 %v9619, %v9646
    %v9648 = vpop.f32.mrf.mxu0
    %9649 = vdwg.mxu0
    %9650 = vmatpush.bf16.msra.mxu0 %v7069
    %9651 = vmatpush.bf16.msra.mxu0 %v7065
    %9652 = vmatpush.bf16.msra.mxu0 %v7061
    %9653 = vmatpush.bf16.msra.mxu0 %v7057
    %9654 = vmatpush.bf16.msra.mxu0 %v7053
    %9655 = vmatpush.bf16.msra.mxu0 %v7049
    %9656 = vmatpush.bf16.msra.mxu0 %v7045
    %9657 = vmatpush.bf16.msra.mxu0 %v7041
    %9658 = vmatmul.bf16.gmra.mxu0 %v4737
    %v9659 = vpop.f32.mrf.mxu0
    %v9660 = vadd.f32 %v9632, %v9659
    %v9661 = vpop.f32.mrf.mxu0
    %v9662 = vadd.f32 %v9634, %v9661
    %9663 = vmatmul.bf16.gmra.mxu0 %v4777
    %v9664 = vpop.f32.mrf.mxu0
    %v9665 = vadd.f32 %v9637, %v9664
    %v9666 = vpop.f32.mrf.mxu0
    %v9667 = vadd.f32 %v9639, %v9666
    %9668 = vmatmul.bf16.gmra.mxu0 %v4813
    %v9669 = vpop.f32.mrf.mxu0
    %v9670 = vadd.f32 %v9642, %v9669
    %v9671 = vpop.f32.mrf.mxu0
    %v9672 = vadd.f32 %v9644, %v9671
    %9673 = vmatmul.bf16.gmra.mxu0 %v4812
    %v9674 = vpop.f32.mrf.mxu0
    %v9675 = vadd.f32 %v9647, %v9674
    %v9676 = vpop.f32.mrf.mxu0
    %9677 = vdwg.mxu0
    %9678 = vmatpush.bf16.msra.mxu0 %v7101
    %9679 = vmatpush.bf16.msra.mxu0 %v7097
    %9680 = vmatpush.bf16.msra.mxu0 %v7093
    %9681 = vmatpush.bf16.msra.mxu0 %v7089
    %9682 = vmatpush.bf16.msra.mxu0 %v7085
    %9683 = vmatpush.bf16.msra.mxu0 %v7081
    %9684 = vmatpush.bf16.msra.mxu0 %v7077
    %9685 = vmatpush.bf16.msra.mxu0 %v7073
    %9686 = vmatmul.bf16.gmra.mxu0 %v4740
    %v9687 = vpop.f32.mrf.mxu0
    %v9688 = vadd.f32 %v9660, %v9687
    %v9689 = vpop.f32.mrf.mxu0
    %v9690 = vadd.f32 %v9662, %v9689
    %9691 = vmatmul.bf16.gmra.mxu0 %v4779
    %v9692 = vpop.f32.mrf.mxu0
    %v9693 = vadd.f32 %v9665, %v9692
    %v9694 = vpop.f32.mrf.mxu0
    %v9695 = vadd.f32 %v9667, %v9694
    %9696 = vmatmul.bf16.gmra.mxu0 %v4815
    %v9697 = vpop.f32.mrf.mxu0
    %v9698 = vadd.f32 %v9670, %v9697
    %v9699 = vpop.f32.mrf.mxu0
    %v9700 = vadd.f32 %v9672, %v9699
    %9701 = vmatmul.bf16.gmra.mxu0 %v4814
    %v9702 = vpop.f32.mrf.mxu0
    %v9703 = vadd.f32 %v9675, %v9702
    %v9704 = vpop.f32.mrf.mxu0
    %9705 = vdwg.mxu0
    %9706 = vmatpush.bf16.msra.mxu0 %v7133
    %9707 = vmatpush.bf16.msra.mxu0 %v7129
    %9708 = vmatpush.bf16.msra.mxu0 %v7125
    %9709 = vmatpush.bf16.msra.mxu0 %v7121
    %9710 = vmatpush.bf16.msra.mxu0 %v7117
    %9711 = vmatpush.bf16.msra.mxu0 %v7113
    %9712 = vmatpush.bf16.msra.mxu0 %v7109
    %9713 = vmatpush.bf16.msra.mxu0 %v7105
    %9714 = vmatmul.bf16.gmra.mxu0 %v4743
    %v9715 = vpop.f32.mrf.mxu0
    %v9716 = vadd.f32 %v9688, %v9715
    %v9717 = vpop.f32.mrf.mxu0
    %v9718 = vadd.f32 %v9690, %v9717
    %9719 = vmatmul.bf16.gmra.mxu0 %v4781
    %v9720 = vpop.f32.mrf.mxu0
    %v9721 = vadd.f32 %v9693, %v9720
    %v9722 = vpop.f32.mrf.mxu0
    %v9723 = vadd.f32 %v9695, %v9722
    %9724 = vmatmul.bf16.gmra.mxu0 %v4817
    %v9725 = vpop.f32.mrf.mxu0
    %v9726 = vadd.f32 %v9698, %v9725
    %v9727 = vpop.f32.mrf.mxu0
    %v9728 = vadd.f32 %v9700, %v9727
    %9729 = vmatmul.bf16.gmra.mxu0 %v4816
    %v9730 = vpop.f32.mrf.mxu0
    %v9731 = vadd.f32 %v9703, %v9730
    %v9732 = vpop.f32.mrf.mxu0
    %9733 = vdwg.mxu0
    %9734 = vmatpush.bf16.msra.mxu0 %v7165
    %9735 = vmatpush.bf16.msra.mxu0 %v7161
    %9736 = vmatpush.bf16.msra.mxu0 %v7157
    %9737 = vmatpush.bf16.msra.mxu0 %v7153
    %9738 = vmatpush.bf16.msra.mxu0 %v7149
    %9739 = vmatpush.bf16.msra.mxu0 %v7145
    %9740 = vmatpush.bf16.msra.mxu0 %v7141
    %9741 = vmatpush.bf16.msra.mxu0 %v7137
    %9742 = vmatmul.bf16.gmra.mxu0 %v4746
    %v9743 = vpop.f32.mrf.mxu0
    %v9744 = vadd.f32 %v9716, %v9743
    %v9745 = vpop.f32.mrf.mxu0
    %v9746 = vadd.f32 %v9718, %v9745
    %9747 = vmatmul.bf16.gmra.mxu0 %v4783
    %v9748 = vpop.f32.mrf.mxu0
    %v9749 = vadd.f32 %v9721, %v9748
    %v9750 = vpop.f32.mrf.mxu0
    %v9751 = vadd.f32 %v9723, %v9750
    %9752 = vmatmul.bf16.gmra.mxu0 %v4819
    %v9753 = vpop.f32.mrf.mxu0
    %v9754 = vadd.f32 %v9726, %v9753
    %v9755 = vpop.f32.mrf.mxu0
    %v9756 = vadd.f32 %v9728, %v9755
    %9757 = vmatmul.bf16.gmra.mxu0 %v4818
    %v9758 = vpop.f32.mrf.mxu0
    %v9759 = vadd.f32 %v9731, %v9758
    %v9760 = vpop.f32.mrf.mxu0
    %9761 = vdwg.mxu0
    %9762 = vmatpush.bf16.msra.mxu0 %v7197
    %9763 = vmatpush.bf16.msra.mxu0 %v7193
    %9764 = vmatpush.bf16.msra.mxu0 %v7189
    %9765 = vmatpush.bf16.msra.mxu0 %v7185
    %9766 = vmatpush.bf16.msra.mxu0 %v7181
    %9767 = vmatpush.bf16.msra.mxu0 %v7177
    %9768 = vmatpush.bf16.msra.mxu0 %v7173
    %9769 = vmatpush.bf16.msra.mxu0 %v7169
    %9770 = vmatmul.bf16.gmra.mxu0 %v4749
    %v9771 = vpop.f32.mrf.mxu0
    %v9772 = vadd.f32 %v9744, %v9771
    %v9773 = vpop.f32.mrf.mxu0
    %v9774 = vadd.f32 %v9746, %v9773
    %9775 = vmatmul.bf16.gmra.mxu0 %v4785
    %v9776 = vpop.f32.mrf.mxu0
    %v9777 = vadd.f32 %v9749, %v9776
    %v9778 = vpop.f32.mrf.mxu0
    %v9779 = vadd.f32 %v9751, %v9778
    %9780 = vmatmul.bf16.gmra.mxu0 %v4821
    %v9781 = vpop.f32.mrf.mxu0
    %v9782 = vadd.f32 %v9754, %v9781
    %v9783 = vpop.f32.mrf.mxu0
    %v9784 = vadd.f32 %v9756, %v9783
    %9785 = vmatmul.bf16.gmra.mxu0 %v4820
    %v9786 = vpop.f32.mrf.mxu0
    %v9787 = vadd.f32 %v9759, %v9786
    %v9788 = vpop.f32.mrf.mxu0
    %9789 = vdwg.mxu0
    %v9790 = vmax.f32 %v8260, 0.0
    %v9791 = vmax.f32 %v8764, 0.0
    %v9792 = vmax.f32 %v9268, 0.0
    %v9793 = vmax.f32 %v9772, 0.0
    %v9794 = vmax.f32 %v8262, 0.0
    %v9795 = vmax.f32 %v8766, 0.0
    %v9796 = vmax.f32 %v9270, 0.0
    %v9797 = vmax.f32 %v9774, 0.0
    %v9798 = vmax.f32 %v8265, 0.0
    %v9799 = vmax.f32 %v8769, 0.0
    %v9800 = vmax.f32 %v9273, 0.0
    %v9801 = vmax.f32 %v9777, 0.0
    %v9802 = vmax.f32 %v8267, 0.0
    %v9803 = vmax.f32 %v8771, 0.0
    %v9804 = vmax.f32 %v9275, 0.0
    %v9805 = vmax.f32 %v9779, 0.0
    %v9806 = vmax.f32 %v8270, 0.0
    %v9807 = vmax.f32 %v8774, 0.0
    %v9808 = vmax.f32 %v9278, 0.0
    %v9809 = vmax.f32 %v9782, 0.0
    %v9810 = vmax.f32 %v8272, 0.0
    %v9811 = vmax.f32 %v8776, 0.0
    %v9812 = vmax.f32 %v9280, 0.0
    %v9813 = vmax.f32 %v9784, 0.0
    %v9814 = vmax.f32 %v8275, 0.0
    %v9815 = vmax.f32 %v8779, 0.0
    %v9816 = vmax.f32 %v9283, 0.0
    %v9817 = vmax.f32 %v9787, 0.0
    %v9818 = vmul.f32 %v9790, %v1874
    %v9819 = vmul.f32 %v9791, %v1874
    %v9820 = vmul.f32 %v9792, %v1874
    %v9821 = vmul.f32 %v9793, %v1874
    %v9822 = vmul.f32 %v9794, %v1879
    %v9823 = vmul.f32 %v9795, %v1879
    %v9824 = vmul.f32 %v9796, %v1879
    %v9825 = vmul.f32 %v9797, %v1879
    %v9826 = vmul.f32 %v9798, %v1884
    %v9827 = vmul.f32 %v9799, %v1884
    %v9828 = vmul.f32 %v9800, %v1884
    %v9829 = vmul.f32 %v9801, %v1884
    %v9830 = vmul.f32 %v9802, %v1889
    %v9831 = vmul.f32 %v9803, %v1889
    %v9832 = vmul.f32 %v9804, %v1889
    %v9833 = vmul.f32 %v9805, %v1889
    %v9834 = vmul.f32 %v9806, %v1894
    %v9835 = vmul.f32 %v9807, %v1894
    %v9836 = vmul.f32 %v9808, %v1894
    %v9837 = vmul.f32 %v9809, %v1894
    %v9838 = vmul.f32 %v9810, %v1899
    %v9839 = vmul.f32 %v9811, %v1899
    %v9840 = vmul.f32 %v9812, %v1899
    %v9841 = vmul.f32 %v9813, %v1899
    %v9842 = vmul.f32 %v9814, %v1904
    %v9843 = vmul.f32 %v9815, %v1904
    %v9844 = vmul.f32 %v9816, %v1904
    %v9845 = vmul.f32 %v9817, %v1904
    %v9846 = vld [vmem:[%s5] sm:$0x1]
    %v9847 = vpack.c.bf16 %v9822, %v9818
    %v9848 = vpack.c.bf16 %v9823, %v9819
    %v9849 = vpack.c.bf16 %v9824, %v9820
    %v9850 = vpack.c.bf16 %v9825, %v9821
    %v9851 = vpack.c.bf16 %v9830, %v9826
    %v9852 = vpack.c.bf16 %v9831, %v9827
    %v9853 = vpack.c.bf16 %v9832, %v9828
    %v9854 = vpack.c.bf16 %v9833, %v9829
    %v9855 = vpack.c.bf16 %v9838, %v9834
    %v9856 = vpack.c.bf16 %v9839, %v9835
    %v9857 = vpack.c.bf16 %v9840, %v9836
    %v9858 = vpack.c.bf16 %v9841, %v9837
    %v9859 = vpack.c.bf16 %v9842, %v9842
    %v9860 = vpack.c.bf16 %v9843, %v9843
    %v9861 = vpack.c.bf16 %v9844, %v9844
    %v9862 = vpack.c.bf16 %v9845, %v9845
    %vm9863 = vcmask 457728
    %v9865 = vsel %vm9863, %v9846, 0
    %v9868 = vsel %vm836, %v9859, 0
    %v9871 = vsel %vm836, %v9860, 0
    %v9874 = vsel %vm836, %v9861, 0
    %v9877 = vsel %vm836, %v9862, 0
    %9879 = vmatpush.bf16.msra.mxu0 0
    %9880 = vmatpush.bf16.msra.mxu0 0
    %9881 = vmatpush.bf16.msra.mxu0 0
    %9882 = vmatpush.bf16.msra.mxu0 0
    %9883 = vmatpush.bf16.msra.mxu0 %v9868
    %9884 = vmatpush.bf16.msra.mxu0 %v9855
    %9885 = vmatpush.bf16.msra.mxu0 %v9851
    %9886 = vmatpush.bf16.msra.mxu0 %v9847
    %9887 = vmatmul.bf16.gmra.mxu0 %v9865
    %v9888 = vpop.f32.mrf.mxu0
    %v9889 = vadd.f32 0.0, %v9888
    %v9890 = vpop.f32.mrf.mxu0
    %9891 = vdwg.mxu0
    %9892 = vmatpush.bf16.msra.mxu0 0
    %9893 = vmatpush.bf16.msra.mxu0 0
    %9894 = vmatpush.bf16.msra.mxu0 0
    %9895 = vmatpush.bf16.msra.mxu0 0
    %9896 = vmatpush.bf16.msra.mxu0 %v9871
    %9897 = vmatpush.bf16.msra.mxu0 %v9856
    %9898 = vmatpush.bf16.msra.mxu0 %v9852
    %9899 = vmatpush.bf16.msra.mxu0 %v9848
    %9900 = vmatmul.bf16.gmra.mxu0 %v9865
    %v9901 = vpop.f32.mrf.mxu0
    %v9902 = vadd.f32 0.0, %v9901
    %v9903 = vpop.f32.mrf.mxu0
    %9904 = vdwg.mxu0
    %9905 = vmatpush.bf16.msra.mxu0 0
    %9906 = vmatpush.bf16.msra.mxu0 0
    %9907 = vmatpush.bf16.msra.mxu0 0
    %9908 = vmatpush.bf16.msra.mxu0 0
    %9909 = vmatpush.bf16.msra.mxu0 %v9874
    %9910 = vmatpush.bf16.msra.mxu0 %v9857
    %9911 = vmatpush.bf16.msra.mxu0 %v9853
    %9912 = vmatpush.bf16.msra.mxu0 %v9849
    %9913 = vmatmul.bf16.gmra.mxu0 %v9865
    %v9914 = vpop.f32.mrf.mxu0
    %v9915 = vadd.f32 0.0, %v9914
    %v9916 = vpop.f32.mrf.mxu0
    %9917 = vdwg.mxu0
    %9918 = vmatpush.bf16.msra.mxu0 0
    %9919 = vmatpush.bf16.msra.mxu0 0
    %9920 = vmatpush.bf16.msra.mxu0 0
    %9921 = vmatpush.bf16.msra.mxu0 0
    %9922 = vmatpush.bf16.msra.mxu0 %v9877
    %9923 = vmatpush.bf16.msra.mxu0 %v9858
    %9924 = vmatpush.bf16.msra.mxu0 %v9854
    %9925 = vmatpush.bf16.msra.mxu0 %v9850
    %9926 = vmatmul.bf16.gmra.mxu0 %v9865
    %v9927 = vpop.f32.mrf.mxu0
    %v9928 = vadd.f32 0.0, %v9927
    %v9929 = vpop.f32.mrf.mxu0
    %9930 = vdwg.mxu0
    %v9931 = vpack.c.bf16 %v9889, %v9889
    %v9932 = vpack.c.bf16 %v9902, %v9902
    %v9933 = vpack.c.bf16 %v9915, %v9915
    %v9934 = vpack.c.bf16 %v9928, %v9928
    %v9935 = vld [vmem:[%s12] sm:$0xff]
    %v9936 = vld [vmem:[%s12 + $0x8] sm:$0xff]
    %v9937 = vld [vmem:[%s12 + $0x10] sm:$0xff]
    %v9938 = vld [vmem:[%s12 + $0x18] sm:$0xff]
    %v9939 = vld [vmem:[%s12 + $0x20] sm:$0xff]
    %v9940 = vld [vmem:[%s12 + $0x28] sm:$0xff]
    %v9941 = vld [vmem:[%s12 + $0x30] sm:$0xff]
    %v9942 = vld [vmem:[%s12 + $0x38] sm:$0xff]
    %v9943 = vld [vmem:[%s12 + $0x40] sm:$0xff]
    %v9944 = vld [vmem:[%s12 + $0x48] sm:$0xff]
    %v9945 = vld [vmem:[%s12 + $0x50] sm:$0xff]
    %v9946 = vld [vmem:[%s12 + $0x58] sm:$0xff]
    %v9947 = vld [vmem:[%s12 + $0x60] sm:$0xff]
    %v9948 = vld [vmem:[%s12 + $0x68] sm:$0xff]
    %v9949 = vld [vmem:[%s12 + $0x70] sm:$0xff]
    %v9950 = vld [vmem:[%s12 + $0x78] sm:$0xff]
    %v9951 = vld [vmem:[%s12 + $0x80] sm:$0xff]
    %v9952 = vld [vmem:[%s12 + $0x88] sm:$0xff]
    %v9953 = vld [vmem:[%s12 + $0x90] sm:$0xff]
    %v9954 = vld [vmem:[%s12 + $0x98] sm:$0xff]
    %v9955 = vld [vmem:[%s12 + $0xa0] sm:$0xff]
    %v9956 = vld [vmem:[%s12 + $0xa8] sm:$0xff]
    %v9957 = vld [vmem:[%s12 + $0xb0] sm:$0xff]
    %v9958 = vld [vmem:[%s12 + $0xb8] sm:$0xff]
    %v9959 = vld [vmem:[%s12 + $0xc0] sm:$0xff]
    %v9960 = vld [vmem:[%s12 + $0xc8] sm:$0xff]
    %v9961 = vld [vmem:[%s12 + $0xd0] sm:$0xff]
    %v9962 = vld [vmem:[%s12 + $0xd8] sm:$0xff]
    %v9963 = vld [vmem:[%s12 + $0xe0] sm:$0xff]
    %v9964 = vld [vmem:[%s12 + $0xe8] sm:$0xff]
    %v9965 = vld [vmem:[%s12 + $0xf0] sm:$0xff]
    %v9966 = vld [vmem:[%s12 + $0xf8] sm:$0xff]
    %v9967 = vld [vmem:[%s12 + $0x100] sm:$0xff]
    %v9968 = vld [vmem:[%s12 + $0x108] sm:$0xff]
    %v9969 = vld [vmem:[%s12 + $0x110] sm:$0xff]
    %v9970 = vld [vmem:[%s12 + $0x118] sm:$0xff]
    %v9971 = vld [vmem:[%s12 + $0x120] sm:$0xff]
    %v9972 = vld [vmem:[%s12 + $0x128] sm:$0xff]
    %v9973 = vld [vmem:[%s12 + $0x130] sm:$0xff]
    %v9974 = vld [vmem:[%s12 + $0x138] sm:$0xff]
    %v9975 = vld [vmem:[%s12 + $0x140] sm:$0xff]
    %v9976 = vld [vmem:[%s12 + $0x148] sm:$0xff]
    %v9977 = vld [vmem:[%s12 + $0x150] sm:$0xff]
    %v9978 = vld [vmem:[%s12 + $0x158] sm:$0xff]
    %v9979 = vld [vmem:[%s12 + $0x160] sm:$0xff]
    %v9980 = vld [vmem:[%s12 + $0x168] sm:$0xff]
    %v9981 = vld [vmem:[%s12 + $0x170] sm:$0xff]
    %v9982 = vld [vmem:[%s12 + $0x178] sm:$0xff]
    %v9983 = vld [vmem:[%s12 + $0x180] sm:$0xff]
    %v9984 = vld [vmem:[%s12 + $0x188] sm:$0xff]
    %v9985 = vld [vmem:[%s12 + $0x190] sm:$0xff]
    %v9986 = vld [vmem:[%s12 + $0x198] sm:$0xff]
    %v9987 = vld [vmem:[%s12 + $0x1a0] sm:$0xff]
    %v9988 = vld [vmem:[%s12 + $0x1a8] sm:$0xff]
    %v9989 = vld [vmem:[%s12 + $0x1b0] sm:$0xff]
    %v9990 = vld [vmem:[%s12 + $0x1b8] sm:$0xff]
    %v9991 = vld [vmem:[%s12 + $0x1c0] sm:$0xff]
    %v9992 = vld [vmem:[%s12 + $0x1c8] sm:$0xff]
    %v9993 = vld [vmem:[%s12 + $0x1d0] sm:$0xff]
    %v9994 = vld [vmem:[%s12 + $0x1d8] sm:$0xff]
    %v9995 = vld [vmem:[%s12 + $0x1e0] sm:$0xff]
    %v9996 = vld [vmem:[%s12 + $0x1e8] sm:$0xff]
    %v9997 = vld [vmem:[%s12 + $0x1f0] sm:$0xff]
    %v9998 = vld [vmem:[%s12 + $0x1f8] sm:$0xff]
    %v9999 = vld [vmem:[%s13] sm:$0x3]
    %v10001 = vperm.slane %v9999, 0
    %v10002 = vperm.slane %v9999, 1
    %v10069 = vunpack.c.l.b16 %v9935
    %v10070 = vunpack.c.h.b16 %v9935
    %v10071 = vunpack.c.l.b16 %v9936
    %v10072 = vunpack.c.h.b16 %v9936
    %v10073 = vunpack.c.l.b16 %v9937
    %v10074 = vunpack.c.h.b16 %v9937
    %v10075 = vunpack.c.l.b16 %v9938
    %v10076 = vunpack.c.h.b16 %v9938
    %v10077 = vunpack.c.l.b16 %v9939
    %v10078 = vunpack.c.h.b16 %v9939
    %v10079 = vunpack.c.l.b16 %v9940
    %v10080 = vunpack.c.h.b16 %v9940
    %v10081 = vunpack.c.l.b16 %v9941
    %v10082 = vunpack.c.h.b16 %v9941
    %v10083 = vunpack.c.l.b16 %v9942
    %v10084 = vunpack.c.h.b16 %v9942
    %v10085 = vunpack.c.l.b16 %v9943
    %v10086 = vunpack.c.h.b16 %v9943
    %v10087 = vunpack.c.l.b16 %v9944
    %v10088 = vunpack.c.h.b16 %v9944
    %v10089 = vunpack.c.l.b16 %v9945
    %v10090 = vunpack.c.h.b16 %v9945
    %v10091 = vunpack.c.l.b16 %v9946
    %v10092 = vunpack.c.h.b16 %v9946
    %v10093 = vunpack.c.l.b16 %v9947
    %v10094 = vunpack.c.h.b16 %v9947
    %v10095 = vunpack.c.l.b16 %v9948
    %v10096 = vunpack.c.h.b16 %v9948
    %v10097 = vunpack.c.l.b16 %v9949
    %v10098 = vunpack.c.h.b16 %v9949
    %v10099 = vunpack.c.l.b16 %v9950
    %v10100 = vunpack.c.h.b16 %v9950
    %v10101 = vunpack.c.l.b16 %v9951
    %v10102 = vunpack.c.h.b16 %v9951
    %v10103 = vunpack.c.l.b16 %v9952
    %v10104 = vunpack.c.h.b16 %v9952
    %v10105 = vunpack.c.l.b16 %v9953
    %v10106 = vunpack.c.h.b16 %v9953
    %v10107 = vunpack.c.l.b16 %v9954
    %v10108 = vunpack.c.h.b16 %v9954
    %v10109 = vunpack.c.l.b16 %v9955
    %v10110 = vunpack.c.h.b16 %v9955
    %v10111 = vunpack.c.l.b16 %v9956
    %v10112 = vunpack.c.h.b16 %v9956
    %v10113 = vunpack.c.l.b16 %v9957
    %v10114 = vunpack.c.h.b16 %v9957
    %v10115 = vunpack.c.l.b16 %v9958
    %v10116 = vunpack.c.h.b16 %v9958
    %v10117 = vunpack.c.l.b16 %v9959
    %v10118 = vunpack.c.h.b16 %v9959
    %v10119 = vunpack.c.l.b16 %v9960
    %v10120 = vunpack.c.h.b16 %v9960
    %v10121 = vunpack.c.l.b16 %v9961
    %v10122 = vunpack.c.h.b16 %v9961
    %v10123 = vunpack.c.l.b16 %v9962
    %v10124 = vunpack.c.h.b16 %v9962
    %v10125 = vunpack.c.l.b16 %v9963
    %v10126 = vunpack.c.h.b16 %v9963
    %v10127 = vunpack.c.l.b16 %v9964
    %v10128 = vunpack.c.h.b16 %v9964
    %v10129 = vunpack.c.l.b16 %v9965
    %v10130 = vunpack.c.h.b16 %v9965
    %v10131 = vunpack.c.l.b16 %v9966
    %v10132 = vunpack.c.h.b16 %v9966
    %v10133 = vunpack.c.l.b16 %v9967
    %v10134 = vunpack.c.h.b16 %v9967
    %v10135 = vunpack.c.l.b16 %v9968
    %v10136 = vunpack.c.h.b16 %v9968
    %v10137 = vunpack.c.l.b16 %v9969
    %v10138 = vunpack.c.h.b16 %v9969
    %v10139 = vunpack.c.l.b16 %v9970
    %v10140 = vunpack.c.h.b16 %v9970
    %v10141 = vunpack.c.l.b16 %v9971
    %v10142 = vunpack.c.h.b16 %v9971
    %v10143 = vunpack.c.l.b16 %v9972
    %v10144 = vunpack.c.h.b16 %v9972
    %v10145 = vunpack.c.l.b16 %v9973
    %v10146 = vunpack.c.h.b16 %v9973
    %v10147 = vunpack.c.l.b16 %v9974
    %v10148 = vunpack.c.h.b16 %v9974
    %v10149 = vunpack.c.l.b16 %v9975
    %v10150 = vunpack.c.h.b16 %v9975
    %v10151 = vunpack.c.l.b16 %v9976
    %v10152 = vunpack.c.h.b16 %v9976
    %v10153 = vunpack.c.l.b16 %v9977
    %v10154 = vunpack.c.h.b16 %v9977
    %v10155 = vunpack.c.l.b16 %v9978
    %v10156 = vunpack.c.h.b16 %v9978
    %v10157 = vunpack.c.l.b16 %v9979
    %v10158 = vunpack.c.h.b16 %v9979
    %v10159 = vunpack.c.l.b16 %v9980
    %v10160 = vunpack.c.h.b16 %v9980
    %v10161 = vunpack.c.l.b16 %v9981
    %v10162 = vunpack.c.h.b16 %v9981
    %v10163 = vunpack.c.l.b16 %v9982
    %v10164 = vunpack.c.h.b16 %v9982
    %v10165 = vunpack.c.l.b16 %v9983
    %v10166 = vunpack.c.h.b16 %v9983
    %v10167 = vunpack.c.l.b16 %v9984
    %v10168 = vunpack.c.h.b16 %v9984
    %v10169 = vunpack.c.l.b16 %v9985
    %v10170 = vunpack.c.h.b16 %v9985
    %v10171 = vunpack.c.l.b16 %v9986
    %v10172 = vunpack.c.h.b16 %v9986
    %v10173 = vunpack.c.l.b16 %v9987
    %v10174 = vunpack.c.h.b16 %v9987
    %v10175 = vunpack.c.l.b16 %v9988
    %v10176 = vunpack.c.h.b16 %v9988
    %v10177 = vunpack.c.l.b16 %v9989
    %v10178 = vunpack.c.h.b16 %v9989
    %v10179 = vunpack.c.l.b16 %v9990
    %v10180 = vunpack.c.h.b16 %v9990
    %v10181 = vunpack.c.l.b16 %v9991
    %v10182 = vunpack.c.h.b16 %v9991
    %v10183 = vunpack.c.l.b16 %v9992
    %v10184 = vunpack.c.h.b16 %v9992
    %v10185 = vunpack.c.l.b16 %v9993
    %v10186 = vunpack.c.h.b16 %v9993
    %v10187 = vunpack.c.l.b16 %v9994
    %v10188 = vunpack.c.h.b16 %v9994
    %v10189 = vunpack.c.l.b16 %v9995
    %v10190 = vunpack.c.h.b16 %v9995
    %v10191 = vunpack.c.l.b16 %v9996
    %v10192 = vunpack.c.h.b16 %v9996
    %v10193 = vunpack.c.l.b16 %v9997
    %v10194 = vunpack.c.h.b16 %v9997
    %v10195 = vunpack.c.l.b16 %v9998
    %v10196 = vunpack.c.h.b16 %v9998
    %v10197 = vpack.c.b16 %v10071, %v10069
    %v10198 = vpack.c.b16 %v10072, %v10070
    %v10199 = vpack.c.b16 %v10075, %v10073
    %v10200 = vpack.c.b16 %v10076, %v10074
    %v10201 = vpack.c.b16 %v10079, %v10077
    %v10202 = vpack.c.b16 %v10080, %v10078
    %v10203 = vpack.c.b16 %v10083, %v10081
    %v10204 = vpack.c.b16 %v10084, %v10082
    %v10205 = vpack.c.b16 %v10087, %v10085
    %v10206 = vpack.c.b16 %v10088, %v10086
    %v10207 = vpack.c.b16 %v10091, %v10089
    %v10208 = vpack.c.b16 %v10092, %v10090
    %v10209 = vpack.c.b16 %v10095, %v10093
    %v10210 = vpack.c.b16 %v10096, %v10094
    %v10211 = vpack.c.b16 %v10099, %v10097
    %v10212 = vpack.c.b16 %v10100, %v10098
    %v10213 = vpack.c.b16 %v10103, %v10101
    %v10214 = vpack.c.b16 %v10104, %v10102
    %v10215 = vpack.c.b16 %v10107, %v10105
    %v10216 = vpack.c.b16 %v10108, %v10106
    %v10217 = vpack.c.b16 %v10111, %v10109
    %v10218 = vpack.c.b16 %v10112, %v10110
    %v10219 = vpack.c.b16 %v10115, %v10113
    %v10220 = vpack.c.b16 %v10116, %v10114
    %v10221 = vpack.c.b16 %v10119, %v10117
    %v10222 = vpack.c.b16 %v10120, %v10118
    %v10223 = vpack.c.b16 %v10123, %v10121
    %v10224 = vpack.c.b16 %v10124, %v10122
    %v10225 = vpack.c.b16 %v10127, %v10125
    %v10226 = vpack.c.b16 %v10128, %v10126
    %v10227 = vpack.c.b16 %v10131, %v10129
    %v10228 = vpack.c.b16 %v10132, %v10130
    %v10229 = vpack.c.b16 %v10135, %v10133
    %v10230 = vpack.c.b16 %v10136, %v10134
    %v10231 = vpack.c.b16 %v10139, %v10137
    %v10232 = vpack.c.b16 %v10140, %v10138
    %v10233 = vpack.c.b16 %v10143, %v10141
    %v10234 = vpack.c.b16 %v10144, %v10142
    %v10235 = vpack.c.b16 %v10147, %v10145
    %v10236 = vpack.c.b16 %v10148, %v10146
    %v10237 = vpack.c.b16 %v10151, %v10149
    %v10238 = vpack.c.b16 %v10152, %v10150
    %v10239 = vpack.c.b16 %v10155, %v10153
    %v10240 = vpack.c.b16 %v10156, %v10154
    %v10241 = vpack.c.b16 %v10159, %v10157
    %v10242 = vpack.c.b16 %v10160, %v10158
    %v10243 = vpack.c.b16 %v10163, %v10161
    %v10244 = vpack.c.b16 %v10164, %v10162
    %v10245 = vpack.c.b16 %v10167, %v10165
    %v10246 = vpack.c.b16 %v10168, %v10166
    %v10247 = vpack.c.b16 %v10171, %v10169
    %v10248 = vpack.c.b16 %v10172, %v10170
    %v10249 = vpack.c.b16 %v10175, %v10173
    %v10250 = vpack.c.b16 %v10176, %v10174
    %v10251 = vpack.c.b16 %v10179, %v10177
    %v10252 = vpack.c.b16 %v10180, %v10178
    %v10253 = vpack.c.b16 %v10183, %v10181
    %v10254 = vpack.c.b16 %v10184, %v10182
    %v10255 = vpack.c.b16 %v10187, %v10185
    %v10256 = vpack.c.b16 %v10188, %v10186
    %v10257 = vpack.c.b16 %v10191, %v10189
    %v10258 = vpack.c.b16 %v10192, %v10190
    %v10259 = vpack.c.b16 %v10195, %v10193
    %v10260 = vpack.c.b16 %v10196, %v10194
    %10325 = vmatpush.bf16.msra.mxu0 %v10211
    %10326 = vmatpush.bf16.msra.mxu0 %v10209
    %10327 = vmatpush.bf16.msra.mxu0 %v10207
    %10328 = vmatpush.bf16.msra.mxu0 %v10205
    %10329 = vmatpush.bf16.msra.mxu0 %v10203
    %10330 = vmatpush.bf16.msra.mxu0 %v10201
    %10331 = vmatpush.bf16.msra.mxu0 %v10199
    %10332 = vmatpush.bf16.msra.mxu0 %v10197
    %10333 = vmatmul.bf16.gmra.mxu0 %v9931
    %v10334 = vpop.f32.mrf.mxu0
    %v10335 = vadd.f32 %v10001, %v10334
    %v10336 = vpop.f32.mrf.mxu0
    %10337 = vdwg.mxu0
    %10338 = vmatpush.bf16.msra.mxu0 %v10227
    %10339 = vmatpush.bf16.msra.mxu0 %v10225
    %10340 = vmatpush.bf16.msra.mxu0 %v10223
    %10341 = vmatpush.bf16.msra.mxu0 %v10221
    %10342 = vmatpush.bf16.msra.mxu0 %v10219
    %10343 = vmatpush.bf16.msra.mxu0 %v10217
    %10344 = vmatpush.bf16.msra.mxu0 %v10215
    %10345 = vmatpush.bf16.msra.mxu0 %v10213
    %10346 = vmatmul.bf16.gmra.mxu0 %v9932
    %v10347 = vpop.f32.mrf.mxu0
    %v10348 = vadd.f32 %v10335, %v10347
    %v10349 = vpop.f32.mrf.mxu0
    %10350 = vdwg.mxu0
    %10351 = vmatpush.bf16.msra.mxu0 %v10243
    %10352 = vmatpush.bf16.msra.mxu0 %v10241
    %10353 = vmatpush.bf16.msra.mxu0 %v10239
    %10354 = vmatpush.bf16.msra.mxu0 %v10237
    %10355 = vmatpush.bf16.msra.mxu0 %v10235
    %10356 = vmatpush.bf16.msra.mxu0 %v10233
    %10357 = vmatpush.bf16.msra.mxu0 %v10231
    %10358 = vmatpush.bf16.msra.mxu0 %v10229
    %10359 = vmatmul.bf16.gmra.mxu0 %v9933
    %v10360 = vpop.f32.mrf.mxu0
    %v10361 = vadd.f32 %v10348, %v10360
    %v10362 = vpop.f32.mrf.mxu0
    %10363 = vdwg.mxu0
    %10364 = vmatpush.bf16.msra.mxu0 %v10259
    %10365 = vmatpush.bf16.msra.mxu0 %v10257
    %10366 = vmatpush.bf16.msra.mxu0 %v10255
    %10367 = vmatpush.bf16.msra.mxu0 %v10253
    %10368 = vmatpush.bf16.msra.mxu0 %v10251
    %10369 = vmatpush.bf16.msra.mxu0 %v10249
    %10370 = vmatpush.bf16.msra.mxu0 %v10247
    %10371 = vmatpush.bf16.msra.mxu0 %v10245
    %10372 = vmatmul.bf16.gmra.mxu0 %v9934
    %v10373 = vpop.f32.mrf.mxu0
    %v10374 = vadd.f32 %v10361, %v10373
    %v10375 = vpop.f32.mrf.mxu0
    %10376 = vdwg.mxu0
    %10377 = vmatpush.bf16.msra.mxu0 %v10212
    %10378 = vmatpush.bf16.msra.mxu0 %v10210
    %10379 = vmatpush.bf16.msra.mxu0 %v10208
    %10380 = vmatpush.bf16.msra.mxu0 %v10206
    %10381 = vmatpush.bf16.msra.mxu0 %v10204
    %10382 = vmatpush.bf16.msra.mxu0 %v10202
    %10383 = vmatpush.bf16.msra.mxu0 %v10200
    %10384 = vmatpush.bf16.msra.mxu0 %v10198
    %10385 = vmatmul.bf16.gmra.mxu0 %v9931
    %v10386 = vpop.f32.mrf.mxu0
    %v10387 = vadd.f32 %v10002, %v10386
    %v10388 = vpop.f32.mrf.mxu0
    %10389 = vdwg.mxu0
    %10390 = vmatpush.bf16.msra.mxu0 %v10228
    %10391 = vmatpush.bf16.msra.mxu0 %v10226
    %10392 = vmatpush.bf16.msra.mxu0 %v10224
    %10393 = vmatpush.bf16.msra.mxu0 %v10222
    %10394 = vmatpush.bf16.msra.mxu0 %v10220
    %10395 = vmatpush.bf16.msra.mxu0 %v10218
    %10396 = vmatpush.bf16.msra.mxu0 %v10216
    %10397 = vmatpush.bf16.msra.mxu0 %v10214
    %10398 = vmatmul.bf16.gmra.mxu0 %v9932
    %v10399 = vpop.f32.mrf.mxu0
    %v10400 = vadd.f32 %v10387, %v10399
    %v10401 = vpop.f32.mrf.mxu0
    %10402 = vdwg.mxu0
    %10403 = vmatpush.bf16.msra.mxu0 %v10244
    %10404 = vmatpush.bf16.msra.mxu0 %v10242
    %10405 = vmatpush.bf16.msra.mxu0 %v10240
    %10406 = vmatpush.bf16.msra.mxu0 %v10238
    %10407 = vmatpush.bf16.msra.mxu0 %v10236
    %10408 = vmatpush.bf16.msra.mxu0 %v10234
    %10409 = vmatpush.bf16.msra.mxu0 %v10232
    %10410 = vmatpush.bf16.msra.mxu0 %v10230
    %10411 = vmatmul.bf16.gmra.mxu0 %v9933
    %v10412 = vpop.f32.mrf.mxu0
    %v10413 = vadd.f32 %v10400, %v10412
    %v10414 = vpop.f32.mrf.mxu0
    %10415 = vdwg.mxu0
    %10416 = vmatpush.bf16.msra.mxu0 %v10260
    %10417 = vmatpush.bf16.msra.mxu0 %v10258
    %10418 = vmatpush.bf16.msra.mxu0 %v10256
    %10419 = vmatpush.bf16.msra.mxu0 %v10254
    %10420 = vmatpush.bf16.msra.mxu0 %v10252
    %10421 = vmatpush.bf16.msra.mxu0 %v10250
    %10422 = vmatpush.bf16.msra.mxu0 %v10248
    %10423 = vmatpush.bf16.msra.mxu0 %v10246
    %10424 = vmatmul.bf16.gmra.mxu0 %v9934
    %v10425 = vpop.f32.mrf.mxu0
    %v10426 = vadd.f32 %v10413, %v10425
    %v10427 = vpop.f32.mrf.mxu0
    %10428 = vdwg.mxu0
    %v10429 = vmax.f32 %v10374, 0.0
    %v10430 = vmax.f32 %v10426, 0.0
    %v10431 = vpack.c.bf16 %v10429, %v10429
    %v10432 = vpack.c.bf16 %v10430, %v10430
    %v10433 = vld [vmem:[%s14] sm:$0xf]
    %v10434 = vld [vmem:[%s14 + $0x4] sm:$0xf]
    %v10435 = vld [vmem:[%s14 + $0x8] sm:$0xf]
    %v10436 = vld [vmem:[%s14 + $0xc] sm:$0xf]
    %v10437 = vld [vmem:[%s14 + $0x10] sm:$0xf]
    %v10438 = vld [vmem:[%s14 + $0x14] sm:$0xf]
    %v10439 = vld [vmem:[%s14 + $0x18] sm:$0xf]
    %v10440 = vld [vmem:[%s14 + $0x1c] sm:$0xf]
    %v10441 = vld [vmem:[%s14 + $0x20] sm:$0xf]
    %v10442 = vld [vmem:[%s14 + $0x24] sm:$0xf]
    %v10443 = vld [vmem:[%s14 + $0x28] sm:$0xf]
    %v10444 = vld [vmem:[%s14 + $0x2c] sm:$0xf]
    %v10445 = vld [vmem:[%s14 + $0x30] sm:$0xf]
    %v10446 = vld [vmem:[%s14 + $0x34] sm:$0xf]
    %v10447 = vld [vmem:[%s14 + $0x38] sm:$0xf]
    %v10448 = vld [vmem:[%s14 + $0x3c] sm:$0xf]
    %v10449 = vld [vmem:[%s14 + $0x40] sm:$0xf]
    %v10450 = vld [vmem:[%s14 + $0x44] sm:$0xf]
    %v10451 = vld [vmem:[%s14 + $0x48] sm:$0xf]
    %v10452 = vld [vmem:[%s14 + $0x4c] sm:$0xf]
    %v10453 = vld [vmem:[%s14 + $0x50] sm:$0xf]
    %v10454 = vld [vmem:[%s14 + $0x54] sm:$0xf]
    %v10455 = vld [vmem:[%s14 + $0x58] sm:$0xf]
    %v10456 = vld [vmem:[%s14 + $0x5c] sm:$0xf]
    %v10457 = vld [vmem:[%s14 + $0x60] sm:$0xf]
    %v10458 = vld [vmem:[%s14 + $0x64] sm:$0xf]
    %v10459 = vld [vmem:[%s14 + $0x68] sm:$0xf]
    %v10460 = vld [vmem:[%s14 + $0x6c] sm:$0xf]
    %v10461 = vld [vmem:[%s14 + $0x70] sm:$0xf]
    %v10462 = vld [vmem:[%s14 + $0x74] sm:$0xf]
    %v10463 = vld [vmem:[%s14 + $0x78] sm:$0xf]
    %v10464 = vld [vmem:[%s14 + $0x7c] sm:$0xf]
    %v10465 = vld [vmem:[%s15] sm:$0x1]
    %v10467 = vperm.slane %v10465, 0
    %v10501 = vunpack.c.l.b16 %v10433
    %v10502 = vunpack.c.l.b16 %v10434
    %v10503 = vunpack.c.l.b16 %v10435
    %v10504 = vunpack.c.l.b16 %v10436
    %v10505 = vunpack.c.l.b16 %v10437
    %v10506 = vunpack.c.l.b16 %v10438
    %v10507 = vunpack.c.l.b16 %v10439
    %v10508 = vunpack.c.l.b16 %v10440
    %v10509 = vunpack.c.l.b16 %v10441
    %v10510 = vunpack.c.l.b16 %v10442
    %v10511 = vunpack.c.l.b16 %v10443
    %v10512 = vunpack.c.l.b16 %v10444
    %v10513 = vunpack.c.l.b16 %v10445
    %v10514 = vunpack.c.l.b16 %v10446
    %v10515 = vunpack.c.l.b16 %v10447
    %v10516 = vunpack.c.l.b16 %v10448
    %v10517 = vunpack.c.l.b16 %v10449
    %v10518 = vunpack.c.l.b16 %v10450
    %v10519 = vunpack.c.l.b16 %v10451
    %v10520 = vunpack.c.l.b16 %v10452
    %v10521 = vunpack.c.l.b16 %v10453
    %v10522 = vunpack.c.l.b16 %v10454
    %v10523 = vunpack.c.l.b16 %v10455
    %v10524 = vunpack.c.l.b16 %v10456
    %v10525 = vunpack.c.l.b16 %v10457
    %v10526 = vunpack.c.l.b16 %v10458
    %v10527 = vunpack.c.l.b16 %v10459
    %v10528 = vunpack.c.l.b16 %v10460
    %v10529 = vunpack.c.l.b16 %v10461
    %v10530 = vunpack.c.l.b16 %v10462
    %v10531 = vunpack.c.l.b16 %v10463
    %v10532 = vunpack.c.l.b16 %v10464
    %v10533 = vpack.c.b16 %v10502, %v10501
    %v10534 = vpack.c.b16 %v10504, %v10503
    %v10535 = vpack.c.b16 %v10506, %v10505
    %v10536 = vpack.c.b16 %v10508, %v10507
    %v10537 = vpack.c.b16 %v10510, %v10509
    %v10538 = vpack.c.b16 %v10512, %v10511
    %v10539 = vpack.c.b16 %v10514, %v10513
    %v10540 = vpack.c.b16 %v10516, %v10515
    %v10541 = vpack.c.b16 %v10518, %v10517
    %v10542 = vpack.c.b16 %v10520, %v10519
    %v10543 = vpack.c.b16 %v10522, %v10521
    %v10544 = vpack.c.b16 %v10524, %v10523
    %v10545 = vpack.c.b16 %v10526, %v10525
    %v10546 = vpack.c.b16 %v10528, %v10527
    %v10547 = vpack.c.b16 %v10530, %v10529
    %v10548 = vpack.c.b16 %v10532, %v10531
    %10565 = vmatpush.bf16.msra.mxu0 %v10540
    %10566 = vmatpush.bf16.msra.mxu0 %v10539
    %10567 = vmatpush.bf16.msra.mxu0 %v10538
    %10568 = vmatpush.bf16.msra.mxu0 %v10537
    %10569 = vmatpush.bf16.msra.mxu0 %v10536
    %10570 = vmatpush.bf16.msra.mxu0 %v10535
    %10571 = vmatpush.bf16.msra.mxu0 %v10534
    %10572 = vmatpush.bf16.msra.mxu0 %v10533
    %10573 = vmatmul.bf16.gmra.mxu0 %v10431
    %v10574 = vpop.f32.mrf.mxu0
    %v10575 = vadd.f32 %v10467, %v10574
    %v10576 = vpop.f32.mrf.mxu0
    %10577 = vdwg.mxu0
    %10578 = vmatpush.bf16.msra.mxu0 %v10548
    %10579 = vmatpush.bf16.msra.mxu0 %v10547
    %10580 = vmatpush.bf16.msra.mxu0 %v10546
    %10581 = vmatpush.bf16.msra.mxu0 %v10545
    %10582 = vmatpush.bf16.msra.mxu0 %v10544
    %10583 = vmatpush.bf16.msra.mxu0 %v10543
    %10584 = vmatpush.bf16.msra.mxu0 %v10542
    %10585 = vmatpush.bf16.msra.mxu0 %v10541
    %10586 = vmatmul.bf16.gmra.mxu0 %v10432
    %v10587 = vpop.f32.mrf.mxu0
    %v10588 = vadd.f32 %v10575, %v10587
    %v10589 = vpop.f32.mrf.mxu0
    %10590 = vdwg.mxu0
    %10591 = vst [vmem:[#allocation2] sm:$0x3] %v10588
    // Predicated region
    $region66: #{forward.1} parent=1 // pred_check
      _
    $region67: #{forward.1} parent=1 // pred_check_branch
      %10593 = sbr.rel (0) target = $region69
    $region68: #{forward.1} parent=1 // pred_region
      %10595 = vsyncadd [#allocation3], 0
      %s10597 = sshll.u32 [#allocation2], 4
      %s10598 = int_to_ptr.vmem [resolvable:$true] %s10597
      %s10599 = sshll.u32 %s16, 4
      %s10600 = int_to_ptr.hbm [resolvable:$true] %s10599
      %10602 = dma.vmem_to_hbm [thread:$0]  %s10598, 32, %s10600, [#allocation3]
    $region69: #{forward.1} parent=1 // pred_fallthru
      _
    // Predicated region
    $region70: #{forward.1} parent=1 // pred_check
      _
    $region71: #{forward.1} parent=1 // pred_check_branch
      %10604 = sbr.rel (0) target = $region73
    $region72: #{forward.1} parent=1 // pred_region
      %10606 = dma.done [#allocation3], 32
    $region73: #{forward.1} parent=1 // pred_fallthru
      _
    %10607 = vsyncpa [#allocation3], 1

</llo_original>
